<compile_context>
chip_gen: v6e
topology: v6e:2x2x1
jax: 0.10.0
libtpu: 0.0.40
codegen_flags: <defaults>
</compile_context>

<pallas_src>
import math
from functools import partial

import jax
import jax.numpy as jnp
from jax.experimental import pallas as pl
from jax.experimental.pallas import tpu as pltpu  # noqa: F401  (kept per harness contract)

# ----------------------------- hyper-parameters (small) -----------------------------
INPUT_DIM   = 16                  # must equal OUTPUT_DIM for the residual connection
OUTPUT_DIM  = 16
GCN_LAYERS  = 2
ATTN_HEAD   = 4
ENC_LAYERS  = 2
NUM_CLASSES = 2
D_MODEL     = 2 * OUTPUT_DIM * GCN_LAYERS          # 64
D_FF        = 4 * OUTPUT_DIM * GCN_LAYERS          # 128
HEAD_DIM    = D_MODEL // ATTN_HEAD                 # 16

NUM_SAMPLES = 2
NUM_TIME    = 8
NUM_NODES   = 8


# --------------------------------- in-kernel helpers --------------------------------
def _mm(a, b):
    """MXU matmul: bf16 operands, f32 accumulation."""
    return jnp.dot(a.astype(jnp.bfloat16), b.astype(jnp.bfloat16),
                   preferred_element_type=jnp.float32)


def _qkt(q, k):
    """q @ k^T without an explicit transpose (contract last dim of both)."""
    return jax.lax.dot_general(
        q.astype(jnp.bfloat16), k.astype(jnp.bfloat16),
        (((1,), (1,)), ((), ())), preferred_element_type=jnp.float32)


def _layer_norm(x, gamma, beta, eps=1e-5):
    mu = jnp.mean(x, axis=-1, keepdims=True)
    var = jnp.mean((x - mu) ** 2, axis=-1, keepdims=True)
    return (x - mu) * jax.lax.rsqrt(var + eps) * gamma + beta


# ----------------------------------- fused kernel ------------------------------------
def _fused_forward_kernel(x_ref, abd_ref, mask_ref, pe_ref,
                          gcn_w_ref, gcn_b_ref,
                          qkv_w_ref, qkv_b_ref, wo_ref, bo_ref, ln_ref,
                          ffn_w1_ref, ffn_b1_ref, ffn_w2_ref, ffn_b2_ref,
                          pw1_ref, pbn_ref, pw2_ref, pb2_ref,
                          out_ref, *, num_graphs, num_nodes, num_samples, num_time,
                          nhead):
    G, N = num_graphs, num_nodes
    B, T = num_samples, num_time
    d, hd = D_MODEL, HEAD_DIM

    # -------- GCN stack: all B*T graphs at once via block-diagonal adjacency --------
    h = x_ref[...]                                   # (G*N, C) f32
    a_bd = abd_ref[...]                              # (G*N, G*N) bf16 block-diag A_norm
    readouts = []
    for l in range(GCN_LAYERS):
        residual = h
        hw = _mm(h, gcn_w_ref[l])                    # X @ W         : (G*N, C)
        hw = _mm(a_bd, hw) + gcn_b_ref[l]            # A_norm @ (XW) + bias
        h = jnp.maximum(hw, 0.0) + residual          # ReLU, residual (Din == Dout)
        # F.dropout(p=0.2) -> identity (deterministic inference path)
        h3 = h.reshape(G, N, OUTPUT_DIM)
        mean_pool = jnp.mean(h3, axis=1)             # global_mean_pool  (G, C)
        max_pool = jnp.max(h3, axis=1)               # global_max_pool   (G, C)
        readouts.append(jnp.concatenate([mean_pool, max_pool], axis=-1))

    # readout concat + positional encoding (pe pre-tiled to (B*T, d) on host)
    seq = jnp.concatenate(readouts, axis=-1) + pe_ref[...]        # (B*T, d)
    # transformer_dropout -> identity (inference)

    # -------- Transformer encoder (post-norm, ReLU FFN); batch folded into rows -----
    scale = 1.0 / math.sqrt(hd)
    for l in range(ENC_LAYERS):
        q = _mm(seq, qkv_w_ref[l, 0]) + qkv_b_ref[l, 0]           # (B*T, d)
        k = _mm(seq, qkv_w_ref[l, 1]) + qkv_b_ref[l, 1]
        v = _mm(seq, qkv_w_ref[l, 2]) + qkv_b_ref[l, 2]

        attn_rows = []
        for b in range(B):                                        # static unroll, B=2
            rs = slice(b * T, (b + 1) * T)
            mask_b = mask_ref[b]                                  # (1, T) additive key mask
            acc = jnp.zeros((T, d), jnp.float32)
            for hh in range(nhead):                               # static unroll over heads
                cs = slice(hh * hd, (hh + 1) * hd)
                s = _qkt(q[rs, cs], k[rs, cs]) * scale + mask_b   # (T, T)
                s = s - jnp.max(s, axis=-1, keepdims=True)
                p = jnp.exp(s)
                p = p * pl.reciprocal(jnp.sum(p, axis=-1, keepdims=True), approx=True)
                oh = _mm(p, v[rs, cs])                            # (T, hd)
                # fold the per-head output projection in here -> no lane-wise concat
                acc = acc + _mm(oh, wo_ref[l, hh])                # (T, d)
            attn_rows.append(acc)
        attn = jnp.concatenate(attn_rows, axis=0) + bo_ref[l]     # (B*T, d)

        y = _layer_norm(seq + attn, ln_ref[l, 0], ln_ref[l, 1])   # residual + LN1
        f = jnp.maximum(_mm(y, ffn_w1_ref[l]) + ffn_b1_ref[l], 0.0)
        f = _mm(f, ffn_w2_ref[l]) + ffn_b2_ref[l]
        seq = _layer_norm(y + f, ln_ref[l, 2], ln_ref[l, 3])      # residual + LN2

    # -------- mean over time + predictor MLP (BatchNorm1d in eval mode) -------------
    xm = jnp.concatenate(
        [jnp.mean(seq[b * T:(b + 1) * T], axis=0, keepdims=True) for b in range(B)],
        axis=0)                                                   # (B, d)
    hid = _mm(xm, pw1_ref[...]) + pbn_ref[0]                      # Linear(d, 256)
    hid = hid * (1.0 / math.sqrt(1.0 + 1e-5)) * pbn_ref[1] + pbn_ref[2]   # BN (eval)
    hid = jnp.maximum(hid, 0.0)                                   # ReLU; Dropout -> id
    out_ref[...] = _mm(hid, pw2_ref[...]) + pb2_ref[...]          # Linear(256, classes)


def _full_spec(shape):
    nd = len(shape)
    return pl.BlockSpec(shape, lambda *_, _nd=nd: (0,) * _nd)


# -------------------------------- plain-JAX glue -------------------------------------
def gcn_norm_dense(edge_index, edge_weight, num_nodes):
    """GCNConv normalization: add self loops, A[target, source], D^-1/2 A D^-1/2."""
    src, dst = edge_index[0], edge_index[1]
    loops = jnp.arange(num_nodes, dtype=edge_index.dtype)
    src = jnp.concatenate([src, loops])
    dst = jnp.concatenate([dst, loops])
    w = jnp.concatenate([edge_weight, jnp.ones((num_nodes,), jnp.float32)])
    a = jnp.zeros((num_nodes, num_nodes), jnp.float32).at[dst, src].add(w)
    deg = jnp.sum(a, axis=1)
    dis = jnp.where(deg > 0, 1.0 / jnp.sqrt(deg), 0.0)
    return a * dis[:, None] * dis[None, :]


def positional_encoding(t, d):
    pos = jnp.arange(t, dtype=jnp.float32)[:, None]
    div = jnp.exp(jnp.arange(0, d, 2, dtype=jnp.float32) * (-math.log(10000.0) / d))
    ang = pos * div
    return jnp.stack([jnp.sin(ang), jnp.cos(ang)], axis=-1).reshape(t, d)


def gait_graph_net_forward(params, x, edge_index, edge_weight, mask):
    B, T, N, Din = x.shape
    assert Din == INPUT_DIM and INPUT_DIM == OUTPUT_DIM
    G = B * T
    d = D_MODEL

    # ---------------- host-side prep: normalization, packing, layout ----------------
    a_norm = gcn_norm_dense(edge_index, edge_weight, N)                     # (N, N)
    a_bd = jnp.kron(jnp.eye(G, dtype=jnp.float32), a_norm).astype(jnp.bfloat16)
    x_flat = x.reshape(G * N, Din)                                          # (128, 16)
    pe_flat = jnp.tile(positional_encoding(T, d), (B, 1))                   # (B*T, d)
    mask_add = jnp.where(mask, jnp.float32(-1e30), jnp.float32(0.0)).reshape(B, 1, T)

    gcn_w = jnp.stack([w for (w, b) in params['gcn']]).astype(jnp.bfloat16)  # (Lg,C,C)
    gcn_b = jnp.stack([b for (w, b) in params['gcn']])                       # (Lg,1,C)

    enc = params['encoder']
    qkv_w = jnp.stack([jnp.stack([p['wq'], p['wk'], p['wv']]) for p in enc]
                      ).astype(jnp.bfloat16)                                 # (Le,3,d,d)
    qkv_b = jnp.stack([jnp.stack([p['bq'], p['bk'], p['bv']]) for p in enc]) # (Le,3,1,d)
    wo_h = jnp.stack([p['wo'].reshape(ATTN_HEAD, HEAD_DIM, d) for p in enc]
                     ).astype(jnp.bfloat16)                                  # (Le,H,hd,d)
    bo = jnp.stack([p['bo'] for p in enc])                                   # (Le,1,d)
    ln = jnp.stack([jnp.stack([p['g1'], p['be1'], p['g2'], p['be2']]) for p in enc])
    w1 = jnp.stack([p['w1'] for p in enc]).astype(jnp.bfloat16)              # (Le,d,dff)
    b1 = jnp.stack([p['b1'] for p in enc])                                   # (Le,1,dff)
    w2 = jnp.stack([p['w2'] for p in enc]).astype(jnp.bfloat16)              # (Le,dff,d)
    b2 = jnp.stack([p['b2'] for p in enc])                                   # (Le,1,d)

    pp = params['predictor']
    pw1 = pp['w1'].astype(jnp.bfloat16)                                      # (d,256)
    pbn = jnp.stack([pp['b1'], pp['g'], pp['be']])                           # (3,1,256)
    pw2 = pp['w2'].astype(jnp.bfloat16)                                      # (256,classes)
    pb2 = pp['b2']                                                           # (1,classes)

    args = [x_flat, a_bd, mask_add, pe_flat, gcn_w, gcn_b,
            qkv_w, qkv_b, wo_h, bo, ln, w1, b1, w2, b2,
            pw1, pbn, pw2, pb2]

    kernel = partial(_fused_forward_kernel, num_graphs=G, num_nodes=N,
                     num_samples=B, num_time=T, nhead=ATTN_HEAD)
    return pl.pallas_call(
        kernel,
        grid=(1,),
        in_specs=[_full_spec(a.shape) for a in args],
        out_specs=_full_spec((B, NUM_CLASSES)),
        out_shape=jax.ShapeDtypeStruct((B, NUM_CLASSES), jnp.float32),
    )(*args)


def init_params(key):
    keys = iter(jax.random.split(key, 64))

    def dense(shape, scale=0.05):
        return scale * jax.random.normal(next(keys), shape, jnp.float32)

    gcn = []
    for i in range(GCN_LAYERS):
        din = INPUT_DIM if i == 0 else OUTPUT_DIM
        gcn.append((dense((din, OUTPUT_DIM)), dense((1, OUTPUT_DIM))))

    enc = []
    for _ in range(ENC_LAYERS):
        enc.append(dict(
            wq=dense((D_MODEL, D_MODEL)), bq=dense((1, D_MODEL)),
            wk=dense((D_MODEL, D_MODEL)), bk=dense((1, D_MODEL)),
            wv=dense((D_MODEL, D_MODEL)), bv=dense((1, D_MODEL)),
            wo=dense((D_MODEL, D_MODEL)), bo=dense((1, D_MODEL)),
            g1=jnp.ones((1, D_MODEL), jnp.float32), be1=jnp.zeros((1, D_MODEL), jnp.float32),
            w1=dense((D_MODEL, D_FF)), b1=dense((1, D_FF)),
            w2=dense((D_FF, D_MODEL)), b2=dense((1, D_MODEL)),
            g2=jnp.ones((1, D_MODEL), jnp.float32), be2=jnp.zeros((1, D_MODEL), jnp.float32),
        ))

    pred = dict(
        w1=dense((D_MODEL, 256)), b1=dense((1, 256)),
        g=jnp.ones((1, 256), jnp.float32), be=jnp.zeros((1, 256), jnp.float32),
        w2=dense((256, NUM_CLASSES)), b2=dense((1, NUM_CLASSES)),
    )
    return {'gcn': gcn, 'encoder': enc, 'predictor': pred}


# ----------------------------------------- main ---------------------------------------
if __name__ == "__main__":
    key = jax.random.PRNGKey(0)
    pkey, xkey, wkey = jax.random.split(key, 3)
    params = init_params(pkey)

    x = jax.random.normal(xkey, (NUM_SAMPLES, NUM_TIME, NUM_NODES, INPUT_DIM), jnp.float32)

    # bidirectional chain graph over the joints
    src = jnp.concatenate([jnp.arange(NUM_NODES - 1), jnp.arange(1, NUM_NODES)])
    dst = jnp.concatenate([jnp.arange(1, NUM_NODES), jnp.arange(NUM_NODES - 1)])
    edge_index = jnp.stack([src, dst], axis=0).astype(jnp.int32)          # (2, E)
    edge_weight = jnp.abs(jax.random.normal(wkey, (edge_index.shape[1],), jnp.float32)) + 0.5

    # src_key_padding_mask: True = padded / ignored by attention
    mask = jnp.zeros((NUM_SAMPLES, NUM_TIME), jnp.bool_).at[1, -2:].set(True)

    out = jax.jit(gait_graph_net_forward)(params, x, edge_index, edge_weight, mask)
    out = jax.block_until_ready(out)
    assert out.shape == (NUM_SAMPLES, NUM_CLASSES)
    assert bool(jnp.all(jnp.isfinite(out)))
    print("KERNEL_OK")
</pallas_src>

<mosaic_0001>
module attributes {stable_mosaic.version = 11 : i64} {
  func.func @_fused_forward_kernel(%arg0: i32, %arg1: memref<128x16xf32, #tpu.memory_space<vmem>>, %arg2: memref<128x128xbf16, #tpu.memory_space<vmem>>, %arg3: memref<2x1x8xf32, #tpu.memory_space<vmem>>, %arg4: memref<16x64xf32, #tpu.memory_space<vmem>>, %arg5: memref<2x16x16xbf16, #tpu.memory_space<vmem>>, %arg6: memref<2x1x16xf32, #tpu.memory_space<vmem>>, %arg7: memref<2x3x64x64xbf16, #tpu.memory_space<vmem>>, %arg8: memref<2x3x1x64xf32, #tpu.memory_space<vmem>>, %arg9: memref<2x4x16x64xbf16, #tpu.memory_space<vmem>>, %arg10: memref<2x1x64xf32, #tpu.memory_space<vmem>>, %arg11: memref<2x4x1x64xf32, #tpu.memory_space<vmem>>, %arg12: memref<2x64x128xbf16, #tpu.memory_space<vmem>>, %arg13: memref<2x1x128xf32, #tpu.memory_space<vmem>>, %arg14: memref<2x128x64xbf16, #tpu.memory_space<vmem>>, %arg15: memref<2x1x64xf32, #tpu.memory_space<vmem>>, %arg16: memref<64x256xbf16, #tpu.memory_space<vmem>>, %arg17: memref<3x1x256xf32, #tpu.memory_space<vmem>>, %arg18: memref<256x2xbf16, #tpu.memory_space<vmem>>, %arg19: memref<1x2xf32, #tpu.memory_space<vmem>>, %arg20: memref<2x2xf32, #tpu.memory_space<vmem>>) attributes {dimension_semantics = [#tpu.dimension_semantics<arbitrary>], iteration_bounds = array<i64: 1>, scalar_prefetch = 0 : i64, scratch_operands = 0 : i64, tpu.core_type = #tpu.core_type<tc>, window_params = [{pipeline_mode = #tpu.pipeline_mode<synchronous>, transform_indices = @transform_0, window_bounds = array<i64: 128, 16>}, {pipeline_mode = #tpu.pipeline_mode<synchronous>, transform_indices = @transform_1, window_bounds = array<i64: 128, 128>}, {pipeline_mode = #tpu.pipeline_mode<synchronous>, transform_indices = @transform_2, window_bounds = array<i64: 2, 1, 8>}, {pipeline_mode = #tpu.pipeline_mode<synchronous>, transform_indices = @transform_3, window_bounds = array<i64: 16, 64>}, {pipeline_mode = #tpu.pipeline_mode<synchronous>, transform_indices = @transform_4, window_bounds = array<i64: 2, 16, 16>}, {pipeline_mode = #tpu.pipeline_mode<synchronous>, transform_indices = @transform_5, window_bounds = array<i64: 2, 1, 16>}, {pipeline_mode = #tpu.pipeline_mode<synchronous>, transform_indices = @transform_6, window_bounds = array<i64: 2, 3, 64, 64>}, {pipeline_mode = #tpu.pipeline_mode<synchronous>, transform_indices = @transform_7, window_bounds = array<i64: 2, 3, 1, 64>}, {pipeline_mode = #tpu.pipeline_mode<synchronous>, transform_indices = @transform_8, window_bounds = array<i64: 2, 4, 16, 64>}, {pipeline_mode = #tpu.pipeline_mode<synchronous>, transform_indices = @transform_9, window_bounds = array<i64: 2, 1, 64>}, {pipeline_mode = #tpu.pipeline_mode<synchronous>, transform_indices = @transform_10, window_bounds = array<i64: 2, 4, 1, 64>}, {pipeline_mode = #tpu.pipeline_mode<synchronous>, transform_indices = @transform_11, window_bounds = array<i64: 2, 64, 128>}, {pipeline_mode = #tpu.pipeline_mode<synchronous>, transform_indices = @transform_12, window_bounds = array<i64: 2, 1, 128>}, {pipeline_mode = #tpu.pipeline_mode<synchronous>, transform_indices = @transform_13, window_bounds = array<i64: 2, 128, 64>}, {pipeline_mode = #tpu.pipeline_mode<synchronous>, transform_indices = @transform_14, window_bounds = array<i64: 2, 1, 64>}, {pipeline_mode = #tpu.pipeline_mode<synchronous>, transform_indices = @transform_15, window_bounds = array<i64: 64, 256>}, {pipeline_mode = #tpu.pipeline_mode<synchronous>, transform_indices = @transform_16, window_bounds = array<i64: 3, 1, 256>}, {pipeline_mode = #tpu.pipeline_mode<synchronous>, transform_indices = @transform_17, window_bounds = array<i64: 256, 2>}, {pipeline_mode = #tpu.pipeline_mode<synchronous>, transform_indices = @transform_18, window_bounds = array<i64: 1, 2>}, {pipeline_mode = #tpu.pipeline_mode<synchronous>, transform_indices = @transform_19, window_bounds = array<i64: 2, 2>}]} {
    %c0 = arith.constant 0 : index
    %c0_0 = arith.constant 0 : index
    %0 = vector.load %arg1[%c0, %c0_0] : memref<128x16xf32, #tpu.memory_space<vmem>>, vector<128x16xf32>
    %c0_1 = arith.constant 0 : index
    %c0_2 = arith.constant 0 : index
    %1 = vector.load %arg2[%c0_1, %c0_2] : memref<128x128xbf16, #tpu.memory_space<vmem>>, vector<128x128xbf16>
    %c0_3 = arith.constant 0 : index
    %c0_4 = arith.constant 0 : index
    %c0_5 = arith.constant 0 : index
    %2 = vector.load %arg5[%c0_3, %c0_4, %c0_5] : memref<2x16x16xbf16, #tpu.memory_space<vmem>>, vector<1x16x16xbf16>
    %3 = vector.shape_cast %2 : vector<1x16x16xbf16> to vector<16x16xbf16>
    %4 = arith.truncf %0 : vector<128x16xf32> to vector<128x16xbf16>
    %cst = arith.constant dense<0.000000e+00> : vector<128x16xf32>
    %5 = tpu.matmul %4, %3, %cst {dimension_numbers = #tpu.dot_dimension_numbers<[1], [0], [0], [1], [0, 0, 1, 1], [], []>} : vector<128x16xbf16>, vector<16x16xbf16>, vector<128x16xf32> -> vector<128x16xf32>
    %6 = arith.truncf %5 : vector<128x16xf32> to vector<128x16xbf16>
    %cst_6 = arith.constant dense<0.000000e+00> : vector<128x16xf32>
    %7 = tpu.matmul %1, %6, %cst_6 {dimension_numbers = #tpu.dot_dimension_numbers<[1], [0], [0], [1], [0, 0, 1, 1], [], []>} : vector<128x128xbf16>, vector<128x16xbf16>, vector<128x16xf32> -> vector<128x16xf32>
    %c0_7 = arith.constant 0 : index
    %c0_8 = arith.constant 0 : index
    %c0_9 = arith.constant 0 : index
    %8 = vector.load %arg6[%c0_7, %c0_8, %c0_9] : memref<2x1x16xf32, #tpu.memory_space<vmem>>, vector<1x1x16xf32>
    %9 = vector.shape_cast %8 : vector<1x1x16xf32> to vector<1x16xf32>
    %10 = vector.broadcast %9 : vector<1x16xf32> to vector<128x16xf32>
    %11 = arith.addf %7, %10 : vector<128x16xf32>
    %cst_10 = arith.constant 0.000000e+00 : f32
    %12 = vector.broadcast %cst_10 : f32 to vector<128x16xf32>
    %13 = arith.maximumf %11, %12 : vector<128x16xf32>
    %14 = arith.addf %13, %0 : vector<128x16xf32>
    %15 = vector.shape_cast %14 : vector<128x16xf32> to vector<16x8x16xf32>
    %cst_11 = arith.constant dense<0.000000e+00> : vector<16x16xf32>
    %16 = vector.multi_reduction <add>, %15, %cst_11 [1] : vector<16x8x16xf32> to vector<16x16xf32>
    %cst_12 = arith.constant 8.000000e+00 : f32
    %17 = vector.broadcast %cst_12 : f32 to vector<16x16xf32>
    %18 = arith.divf %16, %17 : vector<16x16xf32>
    %cst_13 = arith.constant dense<0xFF800000> : vector<16x16xf32>
    %19 = vector.multi_reduction <maximumf>, %15, %cst_13 [1] : vector<16x8x16xf32> to vector<16x16xf32>
    %20 = tpu.concatenate %18, %19 in 1 : vector<16x16xf32>, vector<16x16xf32> -> vector<16x32xf32>
    %c1 = arith.constant 1 : index
    %c0_14 = arith.constant 0 : index
    %c0_15 = arith.constant 0 : index
    %21 = vector.load %arg5[%c1, %c0_14, %c0_15] : memref<2x16x16xbf16, #tpu.memory_space<vmem>>, vector<1x16x16xbf16>
    %22 = vector.shape_cast %21 : vector<1x16x16xbf16> to vector<16x16xbf16>
    %23 = arith.truncf %14 : vector<128x16xf32> to vector<128x16xbf16>
    %cst_16 = arith.constant dense<0.000000e+00> : vector<128x16xf32>
    %24 = tpu.matmul %23, %22, %cst_16 {dimension_numbers = #tpu.dot_dimension_numbers<[1], [0], [0], [1], [0, 0, 1, 1], [], []>} : vector<128x16xbf16>, vector<16x16xbf16>, vector<128x16xf32> -> vector<128x16xf32>
    %25 = arith.truncf %24 : vector<128x16xf32> to vector<128x16xbf16>
    %cst_17 = arith.constant dense<0.000000e+00> : vector<128x16xf32>
    %26 = tpu.matmul %1, %25, %cst_17 {dimension_numbers = #tpu.dot_dimension_numbers<[1], [0], [0], [1], [0, 0, 1, 1], [], []>} : vector<128x128xbf16>, vector<128x16xbf16>, vector<128x16xf32> -> vector<128x16xf32>
    %c1_18 = arith.constant 1 : index
    %c0_19 = arith.constant 0 : index
    %c0_20 = arith.constant 0 : index
    %27 = vector.load %arg6[%c1_18, %c0_19, %c0_20] : memref<2x1x16xf32, #tpu.memory_space<vmem>>, vector<1x1x16xf32>
    %28 = vector.shape_cast %27 : vector<1x1x16xf32> to vector<1x16xf32>
    %29 = vector.broadcast %28 : vector<1x16xf32> to vector<128x16xf32>
    %30 = arith.addf %26, %29 : vector<128x16xf32>
    %cst_21 = arith.constant 0.000000e+00 : f32
    %31 = vector.broadcast %cst_21 : f32 to vector<128x16xf32>
    %32 = arith.maximumf %30, %31 : vector<128x16xf32>
    %33 = arith.addf %32, %14 : vector<128x16xf32>
    %34 = vector.shape_cast %33 : vector<128x16xf32> to vector<16x8x16xf32>
    %cst_22 = arith.constant dense<0.000000e+00> : vector<16x16xf32>
    %35 = vector.multi_reduction <add>, %34, %cst_22 [1] : vector<16x8x16xf32> to vector<16x16xf32>
    %cst_23 = arith.constant 8.000000e+00 : f32
    %36 = vector.broadcast %cst_23 : f32 to vector<16x16xf32>
    %37 = arith.divf %35, %36 : vector<16x16xf32>
    %cst_24 = arith.constant dense<0xFF800000> : vector<16x16xf32>
    %38 = vector.multi_reduction <maximumf>, %34, %cst_24 [1] : vector<16x8x16xf32> to vector<16x16xf32>
    %39 = tpu.concatenate %37, %38 in 1 : vector<16x16xf32>, vector<16x16xf32> -> vector<16x32xf32>
    %40 = tpu.concatenate %20, %39 in 1 : vector<16x32xf32>, vector<16x32xf32> -> vector<16x64xf32>
    %c0_25 = arith.constant 0 : index
    %c0_26 = arith.constant 0 : index
    %41 = vector.load %arg4[%c0_25, %c0_26] : memref<16x64xf32, #tpu.memory_space<vmem>>, vector<16x64xf32>
    %42 = arith.addf %40, %41 : vector<16x64xf32>
    %c0_27 = arith.constant 0 : index
    %c0_28 = arith.constant 0 : index
    %c0_29 = arith.constant 0 : index
    %c0_30 = arith.constant 0 : index
    %43 = vector.load %arg7[%c0_27, %c0_28, %c0_29, %c0_30] : memref<2x3x64x64xbf16, #tpu.memory_space<vmem>>, vector<1x1x64x64xbf16>
    %44 = vector.shape_cast %43 : vector<1x1x64x64xbf16> to vector<64x64xbf16>
    %45 = arith.truncf %42 : vector<16x64xf32> to vector<16x64xbf16>
    %cst_31 = arith.constant dense<0.000000e+00> : vector<16x64xf32>
    %46 = tpu.matmul %45, %44, %cst_31 {dimension_numbers = #tpu.dot_dimension_numbers<[1], [0], [0], [1], [0, 0, 1, 1], [], []>} : vector<16x64xbf16>, vector<64x64xbf16>, vector<16x64xf32> -> vector<16x64xf32>
    %c0_32 = arith.constant 0 : index
    %c0_33 = arith.constant 0 : index
    %c0_34 = arith.constant 0 : index
    %c0_35 = arith.constant 0 : index
    %47 = vector.load %arg8[%c0_32, %c0_33, %c0_34, %c0_35] : memref<2x3x1x64xf32, #tpu.memory_space<vmem>>, vector<1x1x1x64xf32>
    %48 = vector.shape_cast %47 : vector<1x1x1x64xf32> to vector<1x64xf32>
    %49 = vector.broadcast %48 : vector<1x64xf32> to vector<16x64xf32>
    %50 = arith.addf %46, %49 : vector<16x64xf32>
    %c0_36 = arith.constant 0 : index
    %c1_37 = arith.constant 1 : index
    %c0_38 = arith.constant 0 : index
    %c0_39 = arith.constant 0 : index
    %51 = vector.load %arg7[%c0_36, %c1_37, %c0_38, %c0_39] : memref<2x3x64x64xbf16, #tpu.memory_space<vmem>>, vector<1x1x64x64xbf16>
    %52 = vector.shape_cast %51 : vector<1x1x64x64xbf16> to vector<64x64xbf16>
    %53 = arith.truncf %42 : vector<16x64xf32> to vector<16x64xbf16>
    %cst_40 = arith.constant dense<0.000000e+00> : vector<16x64xf32>
    %54 = tpu.matmul %53, %52, %cst_40 {dimension_numbers = #tpu.dot_dimension_numbers<[1], [0], [0], [1], [0, 0, 1, 1], [], []>} : vector<16x64xbf16>, vector<64x64xbf16>, vector<16x64xf32> -> vector<16x64xf32>
    %c0_41 = arith.constant 0 : index
    %c1_42 = arith.constant 1 : index
    %c0_43 = arith.constant 0 : index
    %c0_44 = arith.constant 0 : index
    %55 = vector.load %arg8[%c0_41, %c1_42, %c0_43, %c0_44] : memref<2x3x1x64xf32, #tpu.memory_space<vmem>>, vector<1x1x1x64xf32>
    %56 = vector.shape_cast %55 : vector<1x1x1x64xf32> to vector<1x64xf32>
    %57 = vector.broadcast %56 : vector<1x64xf32> to vector<16x64xf32>
    %58 = arith.addf %54, %57 : vector<16x64xf32>
    %c0_45 = arith.constant 0 : index
    %c2 = arith.constant 2 : index
    %c0_46 = arith.constant 0 : index
    %c0_47 = arith.constant 0 : index
    %59 = vector.load %arg7[%c0_45, %c2, %c0_46, %c0_47] : memref<2x3x64x64xbf16, #tpu.memory_space<vmem>>, vector<1x1x64x64xbf16>
    %60 = vector.shape_cast %59 : vector<1x1x64x64xbf16> to vector<64x64xbf16>
    %61 = arith.truncf %42 : vector<16x64xf32> to vector<16x64xbf16>
    %cst_48 = arith.constant dense<0.000000e+00> : vector<16x64xf32>
    %62 = tpu.matmul %61, %60, %cst_48 {dimension_numbers = #tpu.dot_dimension_numbers<[1], [0], [0], [1], [0, 0, 1, 1], [], []>} : vector<16x64xbf16>, vector<64x64xbf16>, vector<16x64xf32> -> vector<16x64xf32>
    %c0_49 = arith.constant 0 : index
    %c2_50 = arith.constant 2 : index
    %c0_51 = arith.constant 0 : index
    %c0_52 = arith.constant 0 : index
    %63 = vector.load %arg8[%c0_49, %c2_50, %c0_51, %c0_52] : memref<2x3x1x64xf32, #tpu.memory_space<vmem>>, vector<1x1x1x64xf32>
    %64 = vector.shape_cast %63 : vector<1x1x1x64xf32> to vector<1x64xf32>
    %65 = vector.broadcast %64 : vector<1x64xf32> to vector<16x64xf32>
    %66 = arith.addf %62, %65 : vector<16x64xf32>
    %c0_53 = arith.constant 0 : index
    %c0_54 = arith.constant 0 : index
    %c0_55 = arith.constant 0 : index
    %67 = vector.load %arg3[%c0_53, %c0_54, %c0_55] : memref<2x1x8xf32, #tpu.memory_space<vmem>>, vector<1x1x8xf32>
    %68 = vector.shape_cast %67 : vector<1x1x8xf32> to vector<1x8xf32>
    %cst_56 = arith.constant 0.000000e+00 : f32
    %69 = vector.broadcast %cst_56 : f32 to vector<8x64xf32>
    %70 = vector.extract_strided_slice %50 {offsets = [0, 0], sizes = [8, 16], strides = [1, 1]} : vector<16x64xf32> to vector<8x16xf32>
    %71 = vector.extract_strided_slice %58 {offsets = [0, 0], sizes = [8, 16], strides = [1, 1]} : vector<16x64xf32> to vector<8x16xf32>
    %72 = arith.truncf %70 : vector<8x16xf32> to vector<8x16xbf16>
    %73 = arith.truncf %71 : vector<8x16xf32> to vector<8x16xbf16>
    %cst_57 = arith.constant dense<0.000000e+00> : vector<8x8xf32>
    %74 = tpu.matmul %72, %73, %cst_57 {dimension_numbers = #tpu.dot_dimension_numbers<[1], [1], [0], [0], [0, 0, 1, 0], [], []>} : vector<8x16xbf16>, vector<8x16xbf16>, vector<8x8xf32> -> vector<8x8xf32>
    %cst_58 = arith.constant 2.500000e-01 : f32
    %75 = vector.broadcast %cst_58 : f32 to vector<8x8xf32>
    %76 = arith.mulf %74, %75 : vector<8x8xf32>
    %77 = vector.broadcast %68 : vector<1x8xf32> to vector<8x8xf32>
    %78 = arith.addf %76, %77 : vector<8x8xf32>
    %cst_59 = arith.constant dense<0xFF800000> : vector<8xf32>
    %79 = vector.multi_reduction <maximumf>, %78, %cst_59 [1] : vector<8x8xf32> to vector<8xf32>
    %80 = vector.shape_cast %79 : vector<8xf32> to vector<8x1xf32>
    %81 = vector.broadcast %80 : vector<8x1xf32> to vector<8x8xf32>
    %82 = arith.subf %78, %81 : vector<8x8xf32>
    %83 = math.exp %82 : vector<8x8xf32>
    %cst_60 = arith.constant dense<0.000000e+00> : vector<8xf32>
    %84 = vector.multi_reduction <add>, %83, %cst_60 [1] : vector<8x8xf32> to vector<8xf32>
    %85 = vector.shape_cast %84 : vector<8xf32> to vector<8x1xf32>
    %86 = tpu.reciprocal %85 {approx = true} : vector<8x1xf32> -> vector<8x1xf32>
    %87 = vector.broadcast %86 : vector<8x1xf32> to vector<8x8xf32>
    %88 = arith.mulf %83, %87 : vector<8x8xf32>
    %89 = vector.extract_strided_slice %66 {offsets = [0, 0], sizes = [8, 16], strides = [1, 1]} : vector<16x64xf32> to vector<8x16xf32>
    %90 = arith.truncf %88 : vector<8x8xf32> to vector<8x8xbf16>
    %91 = arith.truncf %89 : vector<8x16xf32> to vector<8x16xbf16>
    %cst_61 = arith.constant dense<0.000000e+00> : vector<8x16xf32>
    %92 = tpu.matmul %90, %91, %cst_61 {dimension_numbers = #tpu.dot_dimension_numbers<[1], [0], [0], [1], [0, 0, 1, 1], [], []>} : vector<8x8xbf16>, vector<8x16xbf16>, vector<8x16xf32> -> vector<8x16xf32>
    %c0_62 = arith.constant 0 : index
    %c0_63 = arith.constant 0 : index
    %c0_64 = arith.constant 0 : index
    %c0_65 = arith.constant 0 : index
    %93 = vector.load %arg9[%c0_62, %c0_63, %c0_64, %c0_65] : memref<2x4x16x64xbf16, #tpu.memory_space<vmem>>, vector<1x1x16x64xbf16>
    %94 = vector.shape_cast %93 : vector<1x1x16x64xbf16> to vector<16x64xbf16>
    %95 = arith.truncf %92 : vector<8x16xf32> to vector<8x16xbf16>
    %cst_66 = arith.constant dense<0.000000e+00> : vector<8x64xf32>
    %96 = tpu.matmul %95, %94, %cst_66 {dimension_numbers = #tpu.dot_dimension_numbers<[1], [0], [0], [1], [0, 0, 1, 1], [], []>} : vector<8x16xbf16>, vector<16x64xbf16>, vector<8x64xf32> -> vector<8x64xf32>
    %97 = arith.addf %69, %96 : vector<8x64xf32>
    %98 = vector.extract_strided_slice %50 {offsets = [0, 16], sizes = [8, 16], strides = [1, 1]} : vector<16x64xf32> to vector<8x16xf32>
    %99 = vector.extract_strided_slice %58 {offsets = [0, 16], sizes = [8, 16], strides = [1, 1]} : vector<16x64xf32> to vector<8x16xf32>
    %100 = arith.truncf %98 : vector<8x16xf32> to vector<8x16xbf16>
    %101 = arith.truncf %99 : vector<8x16xf32> to vector<8x16xbf16>
    %cst_67 = arith.constant dense<0.000000e+00> : vector<8x8xf32>
    %102 = tpu.matmul %100, %101, %cst_67 {dimension_numbers = #tpu.dot_dimension_numbers<[1], [1], [0], [0], [0, 0, 1, 0], [], []>} : vector<8x16xbf16>, vector<8x16xbf16>, vector<8x8xf32> -> vector<8x8xf32>
    %cst_68 = arith.constant 2.500000e-01 : f32
    %103 = vector.broadcast %cst_68 : f32 to vector<8x8xf32>
    %104 = arith.mulf %102, %103 : vector<8x8xf32>
    %105 = vector.broadcast %68 : vector<1x8xf32> to vector<8x8xf32>
    %106 = arith.addf %104, %105 : vector<8x8xf32>
    %cst_69 = arith.constant dense<0xFF800000> : vector<8xf32>
    %107 = vector.multi_reduction <maximumf>, %106, %cst_69 [1] : vector<8x8xf32> to vector<8xf32>
    %108 = vector.shape_cast %107 : vector<8xf32> to vector<8x1xf32>
    %109 = vector.broadcast %108 : vector<8x1xf32> to vector<8x8xf32>
    %110 = arith.subf %106, %109 : vector<8x8xf32>
    %111 = math.exp %110 : vector<8x8xf32>
    %cst_70 = arith.constant dense<0.000000e+00> : vector<8xf32>
    %112 = vector.multi_reduction <add>, %111, %cst_70 [1] : vector<8x8xf32> to vector<8xf32>
    %113 = vector.shape_cast %112 : vector<8xf32> to vector<8x1xf32>
    %114 = tpu.reciprocal %113 {approx = true} : vector<8x1xf32> -> vector<8x1xf32>
    %115 = vector.broadcast %114 : vector<8x1xf32> to vector<8x8xf32>
    %116 = arith.mulf %111, %115 : vector<8x8xf32>
    %117 = vector.extract_strided_slice %66 {offsets = [0, 16], sizes = [8, 16], strides = [1, 1]} : vector<16x64xf32> to vector<8x16xf32>
    %118 = arith.truncf %116 : vector<8x8xf32> to vector<8x8xbf16>
    %119 = arith.truncf %117 : vector<8x16xf32> to vector<8x16xbf16>
    %cst_71 = arith.constant dense<0.000000e+00> : vector<8x16xf32>
    %120 = tpu.matmul %118, %119, %cst_71 {dimension_numbers = #tpu.dot_dimension_numbers<[1], [0], [0], [1], [0, 0, 1, 1], [], []>} : vector<8x8xbf16>, vector<8x16xbf16>, vector<8x16xf32> -> vector<8x16xf32>
    %c0_72 = arith.constant 0 : index
    %c1_73 = arith.constant 1 : index
    %c0_74 = arith.constant 0 : index
    %c0_75 = arith.constant 0 : index
    %121 = vector.load %arg9[%c0_72, %c1_73, %c0_74, %c0_75] : memref<2x4x16x64xbf16, #tpu.memory_space<vmem>>, vector<1x1x16x64xbf16>
    %122 = vector.shape_cast %121 : vector<1x1x16x64xbf16> to vector<16x64xbf16>
    %123 = arith.truncf %120 : vector<8x16xf32> to vector<8x16xbf16>
    %cst_76 = arith.constant dense<0.000000e+00> : vector<8x64xf32>
    %124 = tpu.matmul %123, %122, %cst_76 {dimension_numbers = #tpu.dot_dimension_numbers<[1], [0], [0], [1], [0, 0, 1, 1], [], []>} : vector<8x16xbf16>, vector<16x64xbf16>, vector<8x64xf32> -> vector<8x64xf32>
    %125 = arith.addf %97, %124 : vector<8x64xf32>
    %126 = vector.extract_strided_slice %50 {offsets = [0, 32], sizes = [8, 16], strides = [1, 1]} : vector<16x64xf32> to vector<8x16xf32>
    %127 = vector.extract_strided_slice %58 {offsets = [0, 32], sizes = [8, 16], strides = [1, 1]} : vector<16x64xf32> to vector<8x16xf32>
    %128 = arith.truncf %126 : vector<8x16xf32> to vector<8x16xbf16>
    %129 = arith.truncf %127 : vector<8x16xf32> to vector<8x16xbf16>
    %cst_77 = arith.constant dense<0.000000e+00> : vector<8x8xf32>
    %130 = tpu.matmul %128, %129, %cst_77 {dimension_numbers = #tpu.dot_dimension_numbers<[1], [1], [0], [0], [0, 0, 1, 0], [], []>} : vector<8x16xbf16>, vector<8x16xbf16>, vector<8x8xf32> -> vector<8x8xf32>
    %cst_78 = arith.constant 2.500000e-01 : f32
    %131 = vector.broadcast %cst_78 : f32 to vector<8x8xf32>
    %132 = arith.mulf %130, %131 : vector<8x8xf32>
    %133 = vector.broadcast %68 : vector<1x8xf32> to vector<8x8xf32>
    %134 = arith.addf %132, %133 : vector<8x8xf32>
    %cst_79 = arith.constant dense<0xFF800000> : vector<8xf32>
    %135 = vector.multi_reduction <maximumf>, %134, %cst_79 [1] : vector<8x8xf32> to vector<8xf32>
    %136 = vector.shape_cast %135 : vector<8xf32> to vector<8x1xf32>
    %137 = vector.broadcast %136 : vector<8x1xf32> to vector<8x8xf32>
    %138 = arith.subf %134, %137 : vector<8x8xf32>
    %139 = math.exp %138 : vector<8x8xf32>
    %cst_80 = arith.constant dense<0.000000e+00> : vector<8xf32>
    %140 = vector.multi_reduction <add>, %139, %cst_80 [1] : vector<8x8xf32> to vector<8xf32>
    %141 = vector.shape_cast %140 : vector<8xf32> to vector<8x1xf32>
    %142 = tpu.reciprocal %141 {approx = true} : vector<8x1xf32> -> vector<8x1xf32>
    %143 = vector.broadcast %142 : vector<8x1xf32> to vector<8x8xf32>
    %144 = arith.mulf %139, %143 : vector<8x8xf32>
    %145 = vector.extract_strided_slice %66 {offsets = [0, 32], sizes = [8, 16], strides = [1, 1]} : vector<16x64xf32> to vector<8x16xf32>
    %146 = arith.truncf %144 : vector<8x8xf32> to vector<8x8xbf16>
    %147 = arith.truncf %145 : vector<8x16xf32> to vector<8x16xbf16>
    %cst_81 = arith.constant dense<0.000000e+00> : vector<8x16xf32>
    %148 = tpu.matmul %146, %147, %cst_81 {dimension_numbers = #tpu.dot_dimension_numbers<[1], [0], [0], [1], [0, 0, 1, 1], [], []>} : vector<8x8xbf16>, vector<8x16xbf16>, vector<8x16xf32> -> vector<8x16xf32>
    %c0_82 = arith.constant 0 : index
    %c2_83 = arith.constant 2 : index
    %c0_84 = arith.constant 0 : index
    %c0_85 = arith.constant 0 : index
    %149 = vector.load %arg9[%c0_82, %c2_83, %c0_84, %c0_85] : memref<2x4x16x64xbf16, #tpu.memory_space<vmem>>, vector<1x1x16x64xbf16>
    %150 = vector.shape_cast %149 : vector<1x1x16x64xbf16> to vector<16x64xbf16>
    %151 = arith.truncf %148 : vector<8x16xf32> to vector<8x16xbf16>
    %cst_86 = arith.constant dense<0.000000e+00> : vector<8x64xf32>
    %152 = tpu.matmul %151, %150, %cst_86 {dimension_numbers = #tpu.dot_dimension_numbers<[1], [0], [0], [1], [0, 0, 1, 1], [], []>} : vector<8x16xbf16>, vector<16x64xbf16>, vector<8x64xf32> -> vector<8x64xf32>
    %153 = arith.addf %125, %152 : vector<8x64xf32>
    %154 = vector.extract_strided_slice %50 {offsets = [0, 48], sizes = [8, 16], strides = [1, 1]} : vector<16x64xf32> to vector<8x16xf32>
    %155 = vector.extract_strided_slice %58 {offsets = [0, 48], sizes = [8, 16], strides = [1, 1]} : vector<16x64xf32> to vector<8x16xf32>
    %156 = arith.truncf %154 : vector<8x16xf32> to vector<8x16xbf16>
    %157 = arith.truncf %155 : vector<8x16xf32> to vector<8x16xbf16>
    %cst_87 = arith.constant dense<0.000000e+00> : vector<8x8xf32>
    %158 = tpu.matmul %156, %157, %cst_87 {dimension_numbers = #tpu.dot_dimension_numbers<[1], [1], [0], [0], [0, 0, 1, 0], [], []>} : vector<8x16xbf16>, vector<8x16xbf16>, vector<8x8xf32> -> vector<8x8xf32>
    %cst_88 = arith.constant 2.500000e-01 : f32
    %159 = vector.broadcast %cst_88 : f32 to vector<8x8xf32>
    %160 = arith.mulf %158, %159 : vector<8x8xf32>
    %161 = vector.broadcast %68 : vector<1x8xf32> to vector<8x8xf32>
    %162 = arith.addf %160, %161 : vector<8x8xf32>
    %cst_89 = arith.constant dense<0xFF800000> : vector<8xf32>
    %163 = vector.multi_reduction <maximumf>, %162, %cst_89 [1] : vector<8x8xf32> to vector<8xf32>
    %164 = vector.shape_cast %163 : vector<8xf32> to vector<8x1xf32>
    %165 = vector.broadcast %164 : vector<8x1xf32> to vector<8x8xf32>
    %166 = arith.subf %162, %165 : vector<8x8xf32>
    %167 = math.exp %166 : vector<8x8xf32>
    %cst_90 = arith.constant dense<0.000000e+00> : vector<8xf32>
    %168 = vector.multi_reduction <add>, %167, %cst_90 [1] : vector<8x8xf32> to vector<8xf32>
    %169 = vector.shape_cast %168 : vector<8xf32> to vector<8x1xf32>
    %170 = tpu.reciprocal %169 {approx = true} : vector<8x1xf32> -> vector<8x1xf32>
    %171 = vector.broadcast %170 : vector<8x1xf32> to vector<8x8xf32>
    %172 = arith.mulf %167, %171 : vector<8x8xf32>
    %173 = vector.extract_strided_slice %66 {offsets = [0, 48], sizes = [8, 16], strides = [1, 1]} : vector<16x64xf32> to vector<8x16xf32>
    %174 = arith.truncf %172 : vector<8x8xf32> to vector<8x8xbf16>
    %175 = arith.truncf %173 : vector<8x16xf32> to vector<8x16xbf16>
    %cst_91 = arith.constant dense<0.000000e+00> : vector<8x16xf32>
    %176 = tpu.matmul %174, %175, %cst_91 {dimension_numbers = #tpu.dot_dimension_numbers<[1], [0], [0], [1], [0, 0, 1, 1], [], []>} : vector<8x8xbf16>, vector<8x16xbf16>, vector<8x16xf32> -> vector<8x16xf32>
    %c0_92 = arith.constant 0 : index
    %c3 = arith.constant 3 : index
    %c0_93 = arith.constant 0 : index
    %c0_94 = arith.constant 0 : index
    %177 = vector.load %arg9[%c0_92, %c3, %c0_93, %c0_94] : memref<2x4x16x64xbf16, #tpu.memory_space<vmem>>, vector<1x1x16x64xbf16>
    %178 = vector.shape_cast %177 : vector<1x1x16x64xbf16> to vector<16x64xbf16>
    %179 = arith.truncf %176 : vector<8x16xf32> to vector<8x16xbf16>
    %cst_95 = arith.constant dense<0.000000e+00> : vector<8x64xf32>
    %180 = tpu.matmul %179, %178, %cst_95 {dimension_numbers = #tpu.dot_dimension_numbers<[1], [0], [0], [1], [0, 0, 1, 1], [], []>} : vector<8x16xbf16>, vector<16x64xbf16>, vector<8x64xf32> -> vector<8x64xf32>
    %181 = arith.addf %153, %180 : vector<8x64xf32>
    %c1_96 = arith.constant 1 : index
    %c0_97 = arith.constant 0 : index
    %c0_98 = arith.constant 0 : index
    %182 = vector.load %arg3[%c1_96, %c0_97, %c0_98] : memref<2x1x8xf32, #tpu.memory_space<vmem>>, vector<1x1x8xf32>
    %183 = vector.shape_cast %182 : vector<1x1x8xf32> to vector<1x8xf32>
    %cst_99 = arith.constant 0.000000e+00 : f32
    %184 = vector.broadcast %cst_99 : f32 to vector<8x64xf32>
    %185 = vector.extract_strided_slice %50 {offsets = [8, 0], sizes = [8, 16], strides = [1, 1]} : vector<16x64xf32> to vector<8x16xf32>
    %186 = vector.extract_strided_slice %58 {offsets = [8, 0], sizes = [8, 16], strides = [1, 1]} : vector<16x64xf32> to vector<8x16xf32>
    %187 = arith.truncf %185 : vector<8x16xf32> to vector<8x16xbf16>
    %188 = arith.truncf %186 : vector<8x16xf32> to vector<8x16xbf16>
    %cst_100 = arith.constant dense<0.000000e+00> : vector<8x8xf32>
    %189 = tpu.matmul %187, %188, %cst_100 {dimension_numbers = #tpu.dot_dimension_numbers<[1], [1], [0], [0], [0, 0, 1, 0], [], []>} : vector<8x16xbf16>, vector<8x16xbf16>, vector<8x8xf32> -> vector<8x8xf32>
    %cst_101 = arith.constant 2.500000e-01 : f32
    %190 = vector.broadcast %cst_101 : f32 to vector<8x8xf32>
    %191 = arith.mulf %189, %190 : vector<8x8xf32>
    %192 = vector.broadcast %183 : vector<1x8xf32> to vector<8x8xf32>
    %193 = arith.addf %191, %192 : vector<8x8xf32>
    %cst_102 = arith.constant dense<0xFF800000> : vector<8xf32>
    %194 = vector.multi_reduction <maximumf>, %193, %cst_102 [1] : vector<8x8xf32> to vector<8xf32>
    %195 = vector.shape_cast %194 : vector<8xf32> to vector<8x1xf32>
    %196 = vector.broadcast %195 : vector<8x1xf32> to vector<8x8xf32>
    %197 = arith.subf %193, %196 : vector<8x8xf32>
    %198 = math.exp %197 : vector<8x8xf32>
    %cst_103 = arith.constant dense<0.000000e+00> : vector<8xf32>
    %199 = vector.multi_reduction <add>, %198, %cst_103 [1] : vector<8x8xf32> to vector<8xf32>
    %200 = vector.shape_cast %199 : vector<8xf32> to vector<8x1xf32>
    %201 = tpu.reciprocal %200 {approx = true} : vector<8x1xf32> -> vector<8x1xf32>
    %202 = vector.broadcast %201 : vector<8x1xf32> to vector<8x8xf32>
    %203 = arith.mulf %198, %202 : vector<8x8xf32>
    %204 = vector.extract_strided_slice %66 {offsets = [8, 0], sizes = [8, 16], strides = [1, 1]} : vector<16x64xf32> to vector<8x16xf32>
    %205 = arith.truncf %203 : vector<8x8xf32> to vector<8x8xbf16>
    %206 = arith.truncf %204 : vector<8x16xf32> to vector<8x16xbf16>
    %cst_104 = arith.constant dense<0.000000e+00> : vector<8x16xf32>
    %207 = tpu.matmul %205, %206, %cst_104 {dimension_numbers = #tpu.dot_dimension_numbers<[1], [0], [0], [1], [0, 0, 1, 1], [], []>} : vector<8x8xbf16>, vector<8x16xbf16>, vector<8x16xf32> -> vector<8x16xf32>
    %c0_105 = arith.constant 0 : index
    %c0_106 = arith.constant 0 : index
    %c0_107 = arith.constant 0 : index
    %c0_108 = arith.constant 0 : index
    %208 = vector.load %arg9[%c0_105, %c0_106, %c0_107, %c0_108] : memref<2x4x16x64xbf16, #tpu.memory_space<vmem>>, vector<1x1x16x64xbf16>
    %209 = vector.shape_cast %208 : vector<1x1x16x64xbf16> to vector<16x64xbf16>
    %210 = arith.truncf %207 : vector<8x16xf32> to vector<8x16xbf16>
    %cst_109 = arith.constant dense<0.000000e+00> : vector<8x64xf32>
    %211 = tpu.matmul %210, %209, %cst_109 {dimension_numbers = #tpu.dot_dimension_numbers<[1], [0], [0], [1], [0, 0, 1, 1], [], []>} : vector<8x16xbf16>, vector<16x64xbf16>, vector<8x64xf32> -> vector<8x64xf32>
    %212 = arith.addf %184, %211 : vector<8x64xf32>
    %213 = vector.extract_strided_slice %50 {offsets = [8, 16], sizes = [8, 16], strides = [1, 1]} : vector<16x64xf32> to vector<8x16xf32>
    %214 = vector.extract_strided_slice %58 {offsets = [8, 16], sizes = [8, 16], strides = [1, 1]} : vector<16x64xf32> to vector<8x16xf32>
    %215 = arith.truncf %213 : vector<8x16xf32> to vector<8x16xbf16>
    %216 = arith.truncf %214 : vector<8x16xf32> to vector<8x16xbf16>
    %cst_110 = arith.constant dense<0.000000e+00> : vector<8x8xf32>
    %217 = tpu.matmul %215, %216, %cst_110 {dimension_numbers = #tpu.dot_dimension_numbers<[1], [1], [0], [0], [0, 0, 1, 0], [], []>} : vector<8x16xbf16>, vector<8x16xbf16>, vector<8x8xf32> -> vector<8x8xf32>
    %cst_111 = arith.constant 2.500000e-01 : f32
    %218 = vector.broadcast %cst_111 : f32 to vector<8x8xf32>
    %219 = arith.mulf %217, %218 : vector<8x8xf32>
    %220 = vector.broadcast %183 : vector<1x8xf32> to vector<8x8xf32>
    %221 = arith.addf %219, %220 : vector<8x8xf32>
    %cst_112 = arith.constant dense<0xFF800000> : vector<8xf32>
    %222 = vector.multi_reduction <maximumf>, %221, %cst_112 [1] : vector<8x8xf32> to vector<8xf32>
    %223 = vector.shape_cast %222 : vector<8xf32> to vector<8x1xf32>
    %224 = vector.broadcast %223 : vector<8x1xf32> to vector<8x8xf32>
    %225 = arith.subf %221, %224 : vector<8x8xf32>
    %226 = math.exp %225 : vector<8x8xf32>
    %cst_113 = arith.constant dense<0.000000e+00> : vector<8xf32>
    %227 = vector.multi_reduction <add>, %226, %cst_113 [1] : vector<8x8xf32> to vector<8xf32>
    %228 = vector.shape_cast %227 : vector<8xf32> to vector<8x1xf32>
    %229 = tpu.reciprocal %228 {approx = true} : vector<8x1xf32> -> vector<8x1xf32>
    %230 = vector.broadcast %229 : vector<8x1xf32> to vector<8x8xf32>
    %231 = arith.mulf %226, %230 : vector<8x8xf32>
    %232 = vector.extract_strided_slice %66 {offsets = [8, 16], sizes = [8, 16], strides = [1, 1]} : vector<16x64xf32> to vector<8x16xf32>
    %233 = arith.truncf %231 : vector<8x8xf32> to vector<8x8xbf16>
    %234 = arith.truncf %232 : vector<8x16xf32> to vector<8x16xbf16>
    %cst_114 = arith.constant dense<0.000000e+00> : vector<8x16xf32>
    %235 = tpu.matmul %233, %234, %cst_114 {dimension_numbers = #tpu.dot_dimension_numbers<[1], [0], [0], [1], [0, 0, 1, 1], [], []>} : vector<8x8xbf16>, vector<8x16xbf16>, vector<8x16xf32> -> vector<8x16xf32>
    %c0_115 = arith.constant 0 : index
    %c1_116 = arith.constant 1 : index
    %c0_117 = arith.constant 0 : index
    %c0_118 = arith.constant 0 : index
    %236 = vector.load %arg9[%c0_115, %c1_116, %c0_117, %c0_118] : memref<2x4x16x64xbf16, #tpu.memory_space<vmem>>, vector<1x1x16x64xbf16>
    %237 = vector.shape_cast %236 : vector<1x1x16x64xbf16> to vector<16x64xbf16>
    %238 = arith.truncf %235 : vector<8x16xf32> to vector<8x16xbf16>
    %cst_119 = arith.constant dense<0.000000e+00> : vector<8x64xf32>
    %239 = tpu.matmul %238, %237, %cst_119 {dimension_numbers = #tpu.dot_dimension_numbers<[1], [0], [0], [1], [0, 0, 1, 1], [], []>} : vector<8x16xbf16>, vector<16x64xbf16>, vector<8x64xf32> -> vector<8x64xf32>
    %240 = arith.addf %212, %239 : vector<8x64xf32>
    %241 = vector.extract_strided_slice %50 {offsets = [8, 32], sizes = [8, 16], strides = [1, 1]} : vector<16x64xf32> to vector<8x16xf32>
    %242 = vector.extract_strided_slice %58 {offsets = [8, 32], sizes = [8, 16], strides = [1, 1]} : vector<16x64xf32> to vector<8x16xf32>
    %243 = arith.truncf %241 : vector<8x16xf32> to vector<8x16xbf16>
    %244 = arith.truncf %242 : vector<8x16xf32> to vector<8x16xbf16>
    %cst_120 = arith.constant dense<0.000000e+00> : vector<8x8xf32>
    %245 = tpu.matmul %243, %244, %cst_120 {dimension_numbers = #tpu.dot_dimension_numbers<[1], [1], [0], [0], [0, 0, 1, 0], [], []>} : vector<8x16xbf16>, vector<8x16xbf16>, vector<8x8xf32> -> vector<8x8xf32>
    %cst_121 = arith.constant 2.500000e-01 : f32
    %246 = vector.broadcast %cst_121 : f32 to vector<8x8xf32>
    %247 = arith.mulf %245, %246 : vector<8x8xf32>
    %248 = vector.broadcast %183 : vector<1x8xf32> to vector<8x8xf32>
    %249 = arith.addf %247, %248 : vector<8x8xf32>
    %cst_122 = arith.constant dense<0xFF800000> : vector<8xf32>
    %250 = vector.multi_reduction <maximumf>, %249, %cst_122 [1] : vector<8x8xf32> to vector<8xf32>
    %251 = vector.shape_cast %250 : vector<8xf32> to vector<8x1xf32>
    %252 = vector.broadcast %251 : vector<8x1xf32> to vector<8x8xf32>
    %253 = arith.subf %249, %252 : vector<8x8xf32>
    %254 = math.exp %253 : vector<8x8xf32>
    %cst_123 = arith.constant dense<0.000000e+00> : vector<8xf32>
    %255 = vector.multi_reduction <add>, %254, %cst_123 [1] : vector<8x8xf32> to vector<8xf32>
    %256 = vector.shape_cast %255 : vector<8xf32> to vector<8x1xf32>
    %257 = tpu.reciprocal %256 {approx = true} : vector<8x1xf32> -> vector<8x1xf32>
    %258 = vector.broadcast %257 : vector<8x1xf32> to vector<8x8xf32>
    %259 = arith.mulf %254, %258 : vector<8x8xf32>
    %260 = vector.extract_strided_slice %66 {offsets = [8, 32], sizes = [8, 16], strides = [1, 1]} : vector<16x64xf32> to vector<8x16xf32>
    %261 = arith.truncf %259 : vector<8x8xf32> to vector<8x8xbf16>
    %262 = arith.truncf %260 : vector<8x16xf32> to vector<8x16xbf16>
    %cst_124 = arith.constant dense<0.000000e+00> : vector<8x16xf32>
    %263 = tpu.matmul %261, %262, %cst_124 {dimension_numbers = #tpu.dot_dimension_numbers<[1], [0], [0], [1], [0, 0, 1, 1], [], []>} : vector<8x8xbf16>, vector<8x16xbf16>, vector<8x16xf32> -> vector<8x16xf32>
    %c0_125 = arith.constant 0 : index
    %c2_126 = arith.constant 2 : index
    %c0_127 = arith.constant 0 : index
    %c0_128 = arith.constant 0 : index
    %264 = vector.load %arg9[%c0_125, %c2_126, %c0_127, %c0_128] : memref<2x4x16x64xbf16, #tpu.memory_space<vmem>>, vector<1x1x16x64xbf16>
    %265 = vector.shape_cast %264 : vector<1x1x16x64xbf16> to vector<16x64xbf16>
    %266 = arith.truncf %263 : vector<8x16xf32> to vector<8x16xbf16>
    %cst_129 = arith.constant dense<0.000000e+00> : vector<8x64xf32>
    %267 = tpu.matmul %266, %265, %cst_129 {dimension_numbers = #tpu.dot_dimension_numbers<[1], [0], [0], [1], [0, 0, 1, 1], [], []>} : vector<8x16xbf16>, vector<16x64xbf16>, vector<8x64xf32> -> vector<8x64xf32>
    %268 = arith.addf %240, %267 : vector<8x64xf32>
    %269 = vector.extract_strided_slice %50 {offsets = [8, 48], sizes = [8, 16], strides = [1, 1]} : vector<16x64xf32> to vector<8x16xf32>
    %270 = vector.extract_strided_slice %58 {offsets = [8, 48], sizes = [8, 16], strides = [1, 1]} : vector<16x64xf32> to vector<8x16xf32>
    %271 = arith.truncf %269 : vector<8x16xf32> to vector<8x16xbf16>
    %272 = arith.truncf %270 : vector<8x16xf32> to vector<8x16xbf16>
    %cst_130 = arith.constant dense<0.000000e+00> : vector<8x8xf32>
    %273 = tpu.matmul %271, %272, %cst_130 {dimension_numbers = #tpu.dot_dimension_numbers<[1], [1], [0], [0], [0, 0, 1, 0], [], []>} : vector<8x16xbf16>, vector<8x16xbf16>, vector<8x8xf32> -> vector<8x8xf32>
    %cst_131 = arith.constant 2.500000e-01 : f32
    %274 = vector.broadcast %cst_131 : f32 to vector<8x8xf32>
    %275 = arith.mulf %273, %274 : vector<8x8xf32>
    %276 = vector.broadcast %183 : vector<1x8xf32> to vector<8x8xf32>
    %277 = arith.addf %275, %276 : vector<8x8xf32>
    %cst_132 = arith.constant dense<0xFF800000> : vector<8xf32>
    %278 = vector.multi_reduction <maximumf>, %277, %cst_132 [1] : vector<8x8xf32> to vector<8xf32>
    %279 = vector.shape_cast %278 : vector<8xf32> to vector<8x1xf32>
    %280 = vector.broadcast %279 : vector<8x1xf32> to vector<8x8xf32>
    %281 = arith.subf %277, %280 : vector<8x8xf32>
    %282 = math.exp %281 : vector<8x8xf32>
    %cst_133 = arith.constant dense<0.000000e+00> : vector<8xf32>
    %283 = vector.multi_reduction <add>, %282, %cst_133 [1] : vector<8x8xf32> to vector<8xf32>
    %284 = vector.shape_cast %283 : vector<8xf32> to vector<8x1xf32>
    %285 = tpu.reciprocal %284 {approx = true} : vector<8x1xf32> -> vector<8x1xf32>
    %286 = vector.broadcast %285 : vector<8x1xf32> to vector<8x8xf32>
    %287 = arith.mulf %282, %286 : vector<8x8xf32>
    %288 = vector.extract_strided_slice %66 {offsets = [8, 48], sizes = [8, 16], strides = [1, 1]} : vector<16x64xf32> to vector<8x16xf32>
    %289 = arith.truncf %287 : vector<8x8xf32> to vector<8x8xbf16>
    %290 = arith.truncf %288 : vector<8x16xf32> to vector<8x16xbf16>
    %cst_134 = arith.constant dense<0.000000e+00> : vector<8x16xf32>
    %291 = tpu.matmul %289, %290, %cst_134 {dimension_numbers = #tpu.dot_dimension_numbers<[1], [0], [0], [1], [0, 0, 1, 1], [], []>} : vector<8x8xbf16>, vector<8x16xbf16>, vector<8x16xf32> -> vector<8x16xf32>
    %c0_135 = arith.constant 0 : index
    %c3_136 = arith.constant 3 : index
    %c0_137 = arith.constant 0 : index
    %c0_138 = arith.constant 0 : index
    %292 = vector.load %arg9[%c0_135, %c3_136, %c0_137, %c0_138] : memref<2x4x16x64xbf16, #tpu.memory_space<vmem>>, vector<1x1x16x64xbf16>
    %293 = vector.shape_cast %292 : vector<1x1x16x64xbf16> to vector<16x64xbf16>
    %294 = arith.truncf %291 : vector<8x16xf32> to vector<8x16xbf16>
    %cst_139 = arith.constant dense<0.000000e+00> : vector<8x64xf32>
    %295 = tpu.matmul %294, %293, %cst_139 {dimension_numbers = #tpu.dot_dimension_numbers<[1], [0], [0], [1], [0, 0, 1, 1], [], []>} : vector<8x16xbf16>, vector<16x64xbf16>, vector<8x64xf32> -> vector<8x64xf32>
    %296 = arith.addf %268, %295 : vector<8x64xf32>
    %297 = tpu.concatenate %181, %296 in 0 : vector<8x64xf32>, vector<8x64xf32> -> vector<16x64xf32>
    %c0_140 = arith.constant 0 : index
    %c0_141 = arith.constant 0 : index
    %c0_142 = arith.constant 0 : index
    %298 = vector.load %arg10[%c0_140, %c0_141, %c0_142] : memref<2x1x64xf32, #tpu.memory_space<vmem>>, vector<1x1x64xf32>
    %299 = vector.shape_cast %298 : vector<1x1x64xf32> to vector<1x64xf32>
    %300 = vector.broadcast %299 : vector<1x64xf32> to vector<16x64xf32>
    %301 = arith.addf %297, %300 : vector<16x64xf32>
    %302 = arith.addf %42, %301 : vector<16x64xf32>
    %c0_143 = arith.constant 0 : index
    %c0_144 = arith.constant 0 : index
    %c0_145 = arith.constant 0 : index
    %c0_146 = arith.constant 0 : index
    %303 = vector.load %arg11[%c0_143, %c0_144, %c0_145, %c0_146] : memref<2x4x1x64xf32, #tpu.memory_space<vmem>>, vector<1x1x1x64xf32>
    %304 = vector.shape_cast %303 : vector<1x1x1x64xf32> to vector<1x64xf32>
    %c0_147 = arith.constant 0 : index
    %c1_148 = arith.constant 1 : index
    %c0_149 = arith.constant 0 : index
    %c0_150 = arith.constant 0 : index
    %305 = vector.load %arg11[%c0_147, %c1_148, %c0_149, %c0_150] : memref<2x4x1x64xf32, #tpu.memory_space<vmem>>, vector<1x1x1x64xf32>
    %306 = vector.shape_cast %305 : vector<1x1x1x64xf32> to vector<1x64xf32>
    %cst_151 = arith.constant dense<0.000000e+00> : vector<16xf32>
    %307 = vector.multi_reduction <add>, %302, %cst_151 [1] : vector<16x64xf32> to vector<16xf32>
    %308 = vector.shape_cast %307 : vector<16xf32> to vector<16x1xf32>
    %cst_152 = arith.constant 6.400000e+01 : f32
    %309 = vector.broadcast %cst_152 : f32 to vector<16x1xf32>
    %310 = arith.divf %308, %309 : vector<16x1xf32>
    %311 = vector.broadcast %310 : vector<16x1xf32> to vector<16x64xf32>
    %312 = arith.subf %302, %311 : vector<16x64xf32>
    %313 = arith.mulf %312, %312 : vector<16x64xf32>
    %cst_153 = arith.constant dense<0.000000e+00> : vector<16xf32>
    %314 = vector.multi_reduction <add>, %313, %cst_153 [1] : vector<16x64xf32> to vector<16xf32>
    %315 = vector.shape_cast %314 : vector<16xf32> to vector<16x1xf32>
    %cst_154 = arith.constant 6.400000e+01 : f32
    %316 = vector.broadcast %cst_154 : f32 to vector<16x1xf32>
    %317 = arith.divf %315, %316 : vector<16x1xf32>
    %318 = vector.broadcast %310 : vector<16x1xf32> to vector<16x64xf32>
    %319 = arith.subf %302, %318 : vector<16x64xf32>
    %cst_155 = arith.constant 9.99999974E-6 : f32
    %320 = vector.broadcast %cst_155 : f32 to vector<16x1xf32>
    %321 = arith.addf %317, %320 : vector<16x1xf32>
    %322 = math.rsqrt %321 : vector<16x1xf32>
    %323 = vector.broadcast %322 : vector<16x1xf32> to vector<16x64xf32>
    %324 = arith.mulf %319, %323 : vector<16x64xf32>
    %325 = vector.broadcast %304 : vector<1x64xf32> to vector<16x64xf32>
    %326 = arith.mulf %324, %325 : vector<16x64xf32>
    %327 = vector.broadcast %306 : vector<1x64xf32> to vector<16x64xf32>
    %328 = arith.addf %326, %327 : vector<16x64xf32>
    %c0_156 = arith.constant 0 : index
    %c0_157 = arith.constant 0 : index
    %c0_158 = arith.constant 0 : index
    %329 = vector.load %arg12[%c0_156, %c0_157, %c0_158] : memref<2x64x128xbf16, #tpu.memory_space<vmem>>, vector<1x64x128xbf16>
    %330 = vector.shape_cast %329 : vector<1x64x128xbf16> to vector<64x128xbf16>
    %331 = arith.truncf %328 : vector<16x64xf32> to vector<16x64xbf16>
    %cst_159 = arith.constant dense<0.000000e+00> : vector<16x128xf32>
    %332 = tpu.matmul %331, %330, %cst_159 {dimension_numbers = #tpu.dot_dimension_numbers<[1], [0], [0], [1], [0, 0, 1, 1], [], []>} : vector<16x64xbf16>, vector<64x128xbf16>, vector<16x128xf32> -> vector<16x128xf32>
    %c0_160 = arith.constant 0 : index
    %c0_161 = arith.constant 0 : index
    %c0_162 = arith.constant 0 : index
    %333 = vector.load %arg13[%c0_160, %c0_161, %c0_162] : memref<2x1x128xf32, #tpu.memory_space<vmem>>, vector<1x1x128xf32>
    %334 = vector.shape_cast %333 : vector<1x1x128xf32> to vector<1x128xf32>
    %335 = vector.broadcast %334 : vector<1x128xf32> to vector<16x128xf32>
    %336 = arith.addf %332, %335 : vector<16x128xf32>
    %cst_163 = arith.constant 0.000000e+00 : f32
    %337 = vector.broadcast %cst_163 : f32 to vector<16x128xf32>
    %338 = arith.maximumf %336, %337 : vector<16x128xf32>
    %c0_164 = arith.constant 0 : index
    %c0_165 = arith.constant 0 : index
    %c0_166 = arith.constant 0 : index
    %339 = vector.load %arg14[%c0_164, %c0_165, %c0_166] : memref<2x128x64xbf16, #tpu.memory_space<vmem>>, vector<1x128x64xbf16>
    %340 = vector.shape_cast %339 : vector<1x128x64xbf16> to vector<128x64xbf16>
    %341 = arith.truncf %338 : vector<16x128xf32> to vector<16x128xbf16>
    %cst_167 = arith.constant dense<0.000000e+00> : vector<16x64xf32>
    %342 = tpu.matmul %341, %340, %cst_167 {dimension_numbers = #tpu.dot_dimension_numbers<[1], [0], [0], [1], [0, 0, 1, 1], [], []>} : vector<16x128xbf16>, vector<128x64xbf16>, vector<16x64xf32> -> vector<16x64xf32>
    %c0_168 = arith.constant 0 : index
    %c0_169 = arith.constant 0 : index
    %c0_170 = arith.constant 0 : index
    %343 = vector.load %arg15[%c0_168, %c0_169, %c0_170] : memref<2x1x64xf32, #tpu.memory_space<vmem>>, vector<1x1x64xf32>
    %344 = vector.shape_cast %343 : vector<1x1x64xf32> to vector<1x64xf32>
    %345 = vector.broadcast %344 : vector<1x64xf32> to vector<16x64xf32>
    %346 = arith.addf %342, %345 : vector<16x64xf32>
    %347 = arith.addf %328, %346 : vector<16x64xf32>
    %c0_171 = arith.constant 0 : index
    %c2_172 = arith.constant 2 : index
    %c0_173 = arith.constant 0 : index
    %c0_174 = arith.constant 0 : index
    %348 = vector.load %arg11[%c0_171, %c2_172, %c0_173, %c0_174] : memref<2x4x1x64xf32, #tpu.memory_space<vmem>>, vector<1x1x1x64xf32>
    %349 = vector.shape_cast %348 : vector<1x1x1x64xf32> to vector<1x64xf32>
    %c0_175 = arith.constant 0 : index
    %c3_176 = arith.constant 3 : index
    %c0_177 = arith.constant 0 : index
    %c0_178 = arith.constant 0 : index
    %350 = vector.load %arg11[%c0_175, %c3_176, %c0_177, %c0_178] : memref<2x4x1x64xf32, #tpu.memory_space<vmem>>, vector<1x1x1x64xf32>
    %351 = vector.shape_cast %350 : vector<1x1x1x64xf32> to vector<1x64xf32>
    %cst_179 = arith.constant dense<0.000000e+00> : vector<16xf32>
    %352 = vector.multi_reduction <add>, %347, %cst_179 [1] : vector<16x64xf32> to vector<16xf32>
    %353 = vector.shape_cast %352 : vector<16xf32> to vector<16x1xf32>
    %cst_180 = arith.constant 6.400000e+01 : f32
    %354 = vector.broadcast %cst_180 : f32 to vector<16x1xf32>
    %355 = arith.divf %353, %354 : vector<16x1xf32>
    %356 = vector.broadcast %355 : vector<16x1xf32> to vector<16x64xf32>
    %357 = arith.subf %347, %356 : vector<16x64xf32>
    %358 = arith.mulf %357, %357 : vector<16x64xf32>
    %cst_181 = arith.constant dense<0.000000e+00> : vector<16xf32>
    %359 = vector.multi_reduction <add>, %358, %cst_181 [1] : vector<16x64xf32> to vector<16xf32>
    %360 = vector.shape_cast %359 : vector<16xf32> to vector<16x1xf32>
    %cst_182 = arith.constant 6.400000e+01 : f32
    %361 = vector.broadcast %cst_182 : f32 to vector<16x1xf32>
    %362 = arith.divf %360, %361 : vector<16x1xf32>
    %363 = vector.broadcast %355 : vector<16x1xf32> to vector<16x64xf32>
    %364 = arith.subf %347, %363 : vector<16x64xf32>
    %cst_183 = arith.constant 9.99999974E-6 : f32
    %365 = vector.broadcast %cst_183 : f32 to vector<16x1xf32>
    %366 = arith.addf %362, %365 : vector<16x1xf32>
    %367 = math.rsqrt %366 : vector<16x1xf32>
    %368 = vector.broadcast %367 : vector<16x1xf32> to vector<16x64xf32>
    %369 = arith.mulf %364, %368 : vector<16x64xf32>
    %370 = vector.broadcast %349 : vector<1x64xf32> to vector<16x64xf32>
    %371 = arith.mulf %369, %370 : vector<16x64xf32>
    %372 = vector.broadcast %351 : vector<1x64xf32> to vector<16x64xf32>
    %373 = arith.addf %371, %372 : vector<16x64xf32>
    %c1_184 = arith.constant 1 : index
    %c0_185 = arith.constant 0 : index
    %c0_186 = arith.constant 0 : index
    %c0_187 = arith.constant 0 : index
    %374 = vector.load %arg7[%c1_184, %c0_185, %c0_186, %c0_187] : memref<2x3x64x64xbf16, #tpu.memory_space<vmem>>, vector<1x1x64x64xbf16>
    %375 = vector.shape_cast %374 : vector<1x1x64x64xbf16> to vector<64x64xbf16>
    %376 = arith.truncf %373 : vector<16x64xf32> to vector<16x64xbf16>
    %cst_188 = arith.constant dense<0.000000e+00> : vector<16x64xf32>
    %377 = tpu.matmul %376, %375, %cst_188 {dimension_numbers = #tpu.dot_dimension_numbers<[1], [0], [0], [1], [0, 0, 1, 1], [], []>} : vector<16x64xbf16>, vector<64x64xbf16>, vector<16x64xf32> -> vector<16x64xf32>
    %c1_189 = arith.constant 1 : index
    %c0_190 = arith.constant 0 : index
    %c0_191 = arith.constant 0 : index
    %c0_192 = arith.constant 0 : index
    %378 = vector.load %arg8[%c1_189, %c0_190, %c0_191, %c0_192] : memref<2x3x1x64xf32, #tpu.memory_space<vmem>>, vector<1x1x1x64xf32>
    %379 = vector.shape_cast %378 : vector<1x1x1x64xf32> to vector<1x64xf32>
    %380 = vector.broadcast %379 : vector<1x64xf32> to vector<16x64xf32>
    %381 = arith.addf %377, %380 : vector<16x64xf32>
    %c1_193 = arith.constant 1 : index
    %c1_194 = arith.constant 1 : index
    %c0_195 = arith.constant 0 : index
    %c0_196 = arith.constant 0 : index
    %382 = vector.load %arg7[%c1_193, %c1_194, %c0_195, %c0_196] : memref<2x3x64x64xbf16, #tpu.memory_space<vmem>>, vector<1x1x64x64xbf16>
    %383 = vector.shape_cast %382 : vector<1x1x64x64xbf16> to vector<64x64xbf16>
    %384 = arith.truncf %373 : vector<16x64xf32> to vector<16x64xbf16>
    %cst_197 = arith.constant dense<0.000000e+00> : vector<16x64xf32>
    %385 = tpu.matmul %384, %383, %cst_197 {dimension_numbers = #tpu.dot_dimension_numbers<[1], [0], [0], [1], [0, 0, 1, 1], [], []>} : vector<16x64xbf16>, vector<64x64xbf16>, vector<16x64xf32> -> vector<16x64xf32>
    %c1_198 = arith.constant 1 : index
    %c1_199 = arith.constant 1 : index
    %c0_200 = arith.constant 0 : index
    %c0_201 = arith.constant 0 : index
    %386 = vector.load %arg8[%c1_198, %c1_199, %c0_200, %c0_201] : memref<2x3x1x64xf32, #tpu.memory_space<vmem>>, vector<1x1x1x64xf32>
    %387 = vector.shape_cast %386 : vector<1x1x1x64xf32> to vector<1x64xf32>
    %388 = vector.broadcast %387 : vector<1x64xf32> to vector<16x64xf32>
    %389 = arith.addf %385, %388 : vector<16x64xf32>
    %c1_202 = arith.constant 1 : index
    %c2_203 = arith.constant 2 : index
    %c0_204 = arith.constant 0 : index
    %c0_205 = arith.constant 0 : index
    %390 = vector.load %arg7[%c1_202, %c2_203, %c0_204, %c0_205] : memref<2x3x64x64xbf16, #tpu.memory_space<vmem>>, vector<1x1x64x64xbf16>
    %391 = vector.shape_cast %390 : vector<1x1x64x64xbf16> to vector<64x64xbf16>
    %392 = arith.truncf %373 : vector<16x64xf32> to vector<16x64xbf16>
    %cst_206 = arith.constant dense<0.000000e+00> : vector<16x64xf32>
    %393 = tpu.matmul %392, %391, %cst_206 {dimension_numbers = #tpu.dot_dimension_numbers<[1], [0], [0], [1], [0, 0, 1, 1], [], []>} : vector<16x64xbf16>, vector<64x64xbf16>, vector<16x64xf32> -> vector<16x64xf32>
    %c1_207 = arith.constant 1 : index
    %c2_208 = arith.constant 2 : index
    %c0_209 = arith.constant 0 : index
    %c0_210 = arith.constant 0 : index
    %394 = vector.load %arg8[%c1_207, %c2_208, %c0_209, %c0_210] : memref<2x3x1x64xf32, #tpu.memory_space<vmem>>, vector<1x1x1x64xf32>
    %395 = vector.shape_cast %394 : vector<1x1x1x64xf32> to vector<1x64xf32>
    %396 = vector.broadcast %395 : vector<1x64xf32> to vector<16x64xf32>
    %397 = arith.addf %393, %396 : vector<16x64xf32>
    %c0_211 = arith.constant 0 : index
    %c0_212 = arith.constant 0 : index
    %c0_213 = arith.constant 0 : index
    %398 = vector.load %arg3[%c0_211, %c0_212, %c0_213] : memref<2x1x8xf32, #tpu.memory_space<vmem>>, vector<1x1x8xf32>
    %399 = vector.shape_cast %398 : vector<1x1x8xf32> to vector<1x8xf32>
    %cst_214 = arith.constant 0.000000e+00 : f32
    %400 = vector.broadcast %cst_214 : f32 to vector<8x64xf32>
    %401 = vector.extract_strided_slice %381 {offsets = [0, 0], sizes = [8, 16], strides = [1, 1]} : vector<16x64xf32> to vector<8x16xf32>
    %402 = vector.extract_strided_slice %389 {offsets = [0, 0], sizes = [8, 16], strides = [1, 1]} : vector<16x64xf32> to vector<8x16xf32>
    %403 = arith.truncf %401 : vector<8x16xf32> to vector<8x16xbf16>
    %404 = arith.truncf %402 : vector<8x16xf32> to vector<8x16xbf16>
    %cst_215 = arith.constant dense<0.000000e+00> : vector<8x8xf32>
    %405 = tpu.matmul %403, %404, %cst_215 {dimension_numbers = #tpu.dot_dimension_numbers<[1], [1], [0], [0], [0, 0, 1, 0], [], []>} : vector<8x16xbf16>, vector<8x16xbf16>, vector<8x8xf32> -> vector<8x8xf32>
    %cst_216 = arith.constant 2.500000e-01 : f32
    %406 = vector.broadcast %cst_216 : f32 to vector<8x8xf32>
    %407 = arith.mulf %405, %406 : vector<8x8xf32>
    %408 = vector.broadcast %399 : vector<1x8xf32> to vector<8x8xf32>
    %409 = arith.addf %407, %408 : vector<8x8xf32>
    %cst_217 = arith.constant dense<0xFF800000> : vector<8xf32>
    %410 = vector.multi_reduction <maximumf>, %409, %cst_217 [1] : vector<8x8xf32> to vector<8xf32>
    %411 = vector.shape_cast %410 : vector<8xf32> to vector<8x1xf32>
    %412 = vector.broadcast %411 : vector<8x1xf32> to vector<8x8xf32>
    %413 = arith.subf %409, %412 : vector<8x8xf32>
    %414 = math.exp %413 : vector<8x8xf32>
    %cst_218 = arith.constant dense<0.000000e+00> : vector<8xf32>
    %415 = vector.multi_reduction <add>, %414, %cst_218 [1] : vector<8x8xf32> to vector<8xf32>
    %416 = vector.shape_cast %415 : vector<8xf32> to vector<8x1xf32>
    %417 = tpu.reciprocal %416 {approx = true} : vector<8x1xf32> -> vector<8x1xf32>
    %418 = vector.broadcast %417 : vector<8x1xf32> to vector<8x8xf32>
    %419 = arith.mulf %414, %418 : vector<8x8xf32>
    %420 = vector.extract_strided_slice %397 {offsets = [0, 0], sizes = [8, 16], strides = [1, 1]} : vector<16x64xf32> to vector<8x16xf32>
    %421 = arith.truncf %419 : vector<8x8xf32> to vector<8x8xbf16>
    %422 = arith.truncf %420 : vector<8x16xf32> to vector<8x16xbf16>
    %cst_219 = arith.constant dense<0.000000e+00> : vector<8x16xf32>
    %423 = tpu.matmul %421, %422, %cst_219 {dimension_numbers = #tpu.dot_dimension_numbers<[1], [0], [0], [1], [0, 0, 1, 1], [], []>} : vector<8x8xbf16>, vector<8x16xbf16>, vector<8x16xf32> -> vector<8x16xf32>
    %c1_220 = arith.constant 1 : index
    %c0_221 = arith.constant 0 : index
    %c0_222 = arith.constant 0 : index
    %c0_223 = arith.constant 0 : index
    %424 = vector.load %arg9[%c1_220, %c0_221, %c0_222, %c0_223] : memref<2x4x16x64xbf16, #tpu.memory_space<vmem>>, vector<1x1x16x64xbf16>
    %425 = vector.shape_cast %424 : vector<1x1x16x64xbf16> to vector<16x64xbf16>
    %426 = arith.truncf %423 : vector<8x16xf32> to vector<8x16xbf16>
    %cst_224 = arith.constant dense<0.000000e+00> : vector<8x64xf32>
    %427 = tpu.matmul %426, %425, %cst_224 {dimension_numbers = #tpu.dot_dimension_numbers<[1], [0], [0], [1], [0, 0, 1, 1], [], []>} : vector<8x16xbf16>, vector<16x64xbf16>, vector<8x64xf32> -> vector<8x64xf32>
    %428 = arith.addf %400, %427 : vector<8x64xf32>
    %429 = vector.extract_strided_slice %381 {offsets = [0, 16], sizes = [8, 16], strides = [1, 1]} : vector<16x64xf32> to vector<8x16xf32>
    %430 = vector.extract_strided_slice %389 {offsets = [0, 16], sizes = [8, 16], strides = [1, 1]} : vector<16x64xf32> to vector<8x16xf32>
    %431 = arith.truncf %429 : vector<8x16xf32> to vector<8x16xbf16>
    %432 = arith.truncf %430 : vector<8x16xf32> to vector<8x16xbf16>
    %cst_225 = arith.constant dense<0.000000e+00> : vector<8x8xf32>
    %433 = tpu.matmul %431, %432, %cst_225 {dimension_numbers = #tpu.dot_dimension_numbers<[1], [1], [0], [0], [0, 0, 1, 0], [], []>} : vector<8x16xbf16>, vector<8x16xbf16>, vector<8x8xf32> -> vector<8x8xf32>
    %cst_226 = arith.constant 2.500000e-01 : f32
    %434 = vector.broadcast %cst_226 : f32 to vector<8x8xf32>
    %435 = arith.mulf %433, %434 : vector<8x8xf32>
    %436 = vector.broadcast %399 : vector<1x8xf32> to vector<8x8xf32>
    %437 = arith.addf %435, %436 : vector<8x8xf32>
    %cst_227 = arith.constant dense<0xFF800000> : vector<8xf32>
    %438 = vector.multi_reduction <maximumf>, %437, %cst_227 [1] : vector<8x8xf32> to vector<8xf32>
    %439 = vector.shape_cast %438 : vector<8xf32> to vector<8x1xf32>
    %440 = vector.broadcast %439 : vector<8x1xf32> to vector<8x8xf32>
    %441 = arith.subf %437, %440 : vector<8x8xf32>
    %442 = math.exp %441 : vector<8x8xf32>
    %cst_228 = arith.constant dense<0.000000e+00> : vector<8xf32>
    %443 = vector.multi_reduction <add>, %442, %cst_228 [1] : vector<8x8xf32> to vector<8xf32>
    %444 = vector.shape_cast %443 : vector<8xf32> to vector<8x1xf32>
    %445 = tpu.reciprocal %444 {approx = true} : vector<8x1xf32> -> vector<8x1xf32>
    %446 = vector.broadcast %445 : vector<8x1xf32> to vector<8x8xf32>
    %447 = arith.mulf %442, %446 : vector<8x8xf32>
    %448 = vector.extract_strided_slice %397 {offsets = [0, 16], sizes = [8, 16], strides = [1, 1]} : vector<16x64xf32> to vector<8x16xf32>
    %449 = arith.truncf %447 : vector<8x8xf32> to vector<8x8xbf16>
    %450 = arith.truncf %448 : vector<8x16xf32> to vector<8x16xbf16>
    %cst_229 = arith.constant dense<0.000000e+00> : vector<8x16xf32>
    %451 = tpu.matmul %449, %450, %cst_229 {dimension_numbers = #tpu.dot_dimension_numbers<[1], [0], [0], [1], [0, 0, 1, 1], [], []>} : vector<8x8xbf16>, vector<8x16xbf16>, vector<8x16xf32> -> vector<8x16xf32>
    %c1_230 = arith.constant 1 : index
    %c1_231 = arith.constant 1 : index
    %c0_232 = arith.constant 0 : index
    %c0_233 = arith.constant 0 : index
    %452 = vector.load %arg9[%c1_230, %c1_231, %c0_232, %c0_233] : memref<2x4x16x64xbf16, #tpu.memory_space<vmem>>, vector<1x1x16x64xbf16>
    %453 = vector.shape_cast %452 : vector<1x1x16x64xbf16> to vector<16x64xbf16>
    %454 = arith.truncf %451 : vector<8x16xf32> to vector<8x16xbf16>
    %cst_234 = arith.constant dense<0.000000e+00> : vector<8x64xf32>
    %455 = tpu.matmul %454, %453, %cst_234 {dimension_numbers = #tpu.dot_dimension_numbers<[1], [0], [0], [1], [0, 0, 1, 1], [], []>} : vector<8x16xbf16>, vector<16x64xbf16>, vector<8x64xf32> -> vector<8x64xf32>
    %456 = arith.addf %428, %455 : vector<8x64xf32>
    %457 = vector.extract_strided_slice %381 {offsets = [0, 32], sizes = [8, 16], strides = [1, 1]} : vector<16x64xf32> to vector<8x16xf32>
    %458 = vector.extract_strided_slice %389 {offsets = [0, 32], sizes = [8, 16], strides = [1, 1]} : vector<16x64xf32> to vector<8x16xf32>
    %459 = arith.truncf %457 : vector<8x16xf32> to vector<8x16xbf16>
    %460 = arith.truncf %458 : vector<8x16xf32> to vector<8x16xbf16>
    %cst_235 = arith.constant dense<0.000000e+00> : vector<8x8xf32>
    %461 = tpu.matmul %459, %460, %cst_235 {dimension_numbers = #tpu.dot_dimension_numbers<[1], [1], [0], [0], [0, 0, 1, 0], [], []>} : vector<8x16xbf16>, vector<8x16xbf16>, vector<8x8xf32> -> vector<8x8xf32>
    %cst_236 = arith.constant 2.500000e-01 : f32
    %462 = vector.broadcast %cst_236 : f32 to vector<8x8xf32>
    %463 = arith.mulf %461, %462 : vector<8x8xf32>
    %464 = vector.broadcast %399 : vector<1x8xf32> to vector<8x8xf32>
    %465 = arith.addf %463, %464 : vector<8x8xf32>
    %cst_237 = arith.constant dense<0xFF800000> : vector<8xf32>
    %466 = vector.multi_reduction <maximumf>, %465, %cst_237 [1] : vector<8x8xf32> to vector<8xf32>
    %467 = vector.shape_cast %466 : vector<8xf32> to vector<8x1xf32>
    %468 = vector.broadcast %467 : vector<8x1xf32> to vector<8x8xf32>
    %469 = arith.subf %465, %468 : vector<8x8xf32>
    %470 = math.exp %469 : vector<8x8xf32>
    %cst_238 = arith.constant dense<0.000000e+00> : vector<8xf32>
    %471 = vector.multi_reduction <add>, %470, %cst_238 [1] : vector<8x8xf32> to vector<8xf32>
    %472 = vector.shape_cast %471 : vector<8xf32> to vector<8x1xf32>
    %473 = tpu.reciprocal %472 {approx = true} : vector<8x1xf32> -> vector<8x1xf32>
    %474 = vector.broadcast %473 : vector<8x1xf32> to vector<8x8xf32>
    %475 = arith.mulf %470, %474 : vector<8x8xf32>
    %476 = vector.extract_strided_slice %397 {offsets = [0, 32], sizes = [8, 16], strides = [1, 1]} : vector<16x64xf32> to vector<8x16xf32>
    %477 = arith.truncf %475 : vector<8x8xf32> to vector<8x8xbf16>
    %478 = arith.truncf %476 : vector<8x16xf32> to vector<8x16xbf16>
    %cst_239 = arith.constant dense<0.000000e+00> : vector<8x16xf32>
    %479 = tpu.matmul %477, %478, %cst_239 {dimension_numbers = #tpu.dot_dimension_numbers<[1], [0], [0], [1], [0, 0, 1, 1], [], []>} : vector<8x8xbf16>, vector<8x16xbf16>, vector<8x16xf32> -> vector<8x16xf32>
    %c1_240 = arith.constant 1 : index
    %c2_241 = arith.constant 2 : index
    %c0_242 = arith.constant 0 : index
    %c0_243 = arith.constant 0 : index
    %480 = vector.load %arg9[%c1_240, %c2_241, %c0_242, %c0_243] : memref<2x4x16x64xbf16, #tpu.memory_space<vmem>>, vector<1x1x16x64xbf16>
    %481 = vector.shape_cast %480 : vector<1x1x16x64xbf16> to vector<16x64xbf16>
    %482 = arith.truncf %479 : vector<8x16xf32> to vector<8x16xbf16>
    %cst_244 = arith.constant dense<0.000000e+00> : vector<8x64xf32>
    %483 = tpu.matmul %482, %481, %cst_244 {dimension_numbers = #tpu.dot_dimension_numbers<[1], [0], [0], [1], [0, 0, 1, 1], [], []>} : vector<8x16xbf16>, vector<16x64xbf16>, vector<8x64xf32> -> vector<8x64xf32>
    %484 = arith.addf %456, %483 : vector<8x64xf32>
    %485 = vector.extract_strided_slice %381 {offsets = [0, 48], sizes = [8, 16], strides = [1, 1]} : vector<16x64xf32> to vector<8x16xf32>
    %486 = vector.extract_strided_slice %389 {offsets = [0, 48], sizes = [8, 16], strides = [1, 1]} : vector<16x64xf32> to vector<8x16xf32>
    %487 = arith.truncf %485 : vector<8x16xf32> to vector<8x16xbf16>
    %488 = arith.truncf %486 : vector<8x16xf32> to vector<8x16xbf16>
    %cst_245 = arith.constant dense<0.000000e+00> : vector<8x8xf32>
    %489 = tpu.matmul %487, %488, %cst_245 {dimension_numbers = #tpu.dot_dimension_numbers<[1], [1], [0], [0], [0, 0, 1, 0], [], []>} : vector<8x16xbf16>, vector<8x16xbf16>, vector<8x8xf32> -> vector<8x8xf32>
    %cst_246 = arith.constant 2.500000e-01 : f32
    %490 = vector.broadcast %cst_246 : f32 to vector<8x8xf32>
    %491 = arith.mulf %489, %490 : vector<8x8xf32>
    %492 = vector.broadcast %399 : vector<1x8xf32> to vector<8x8xf32>
    %493 = arith.addf %491, %492 : vector<8x8xf32>
    %cst_247 = arith.constant dense<0xFF800000> : vector<8xf32>
    %494 = vector.multi_reduction <maximumf>, %493, %cst_247 [1] : vector<8x8xf32> to vector<8xf32>
    %495 = vector.shape_cast %494 : vector<8xf32> to vector<8x1xf32>
    %496 = vector.broadcast %495 : vector<8x1xf32> to vector<8x8xf32>
    %497 = arith.subf %493, %496 : vector<8x8xf32>
    %498 = math.exp %497 : vector<8x8xf32>
    %cst_248 = arith.constant dense<0.000000e+00> : vector<8xf32>
    %499 = vector.multi_reduction <add>, %498, %cst_248 [1] : vector<8x8xf32> to vector<8xf32>
    %500 = vector.shape_cast %499 : vector<8xf32> to vector<8x1xf32>
    %501 = tpu.reciprocal %500 {approx = true} : vector<8x1xf32> -> vector<8x1xf32>
    %502 = vector.broadcast %501 : vector<8x1xf32> to vector<8x8xf32>
    %503 = arith.mulf %498, %502 : vector<8x8xf32>
    %504 = vector.extract_strided_slice %397 {offsets = [0, 48], sizes = [8, 16], strides = [1, 1]} : vector<16x64xf32> to vector<8x16xf32>
    %505 = arith.truncf %503 : vector<8x8xf32> to vector<8x8xbf16>
    %506 = arith.truncf %504 : vector<8x16xf32> to vector<8x16xbf16>
    %cst_249 = arith.constant dense<0.000000e+00> : vector<8x16xf32>
    %507 = tpu.matmul %505, %506, %cst_249 {dimension_numbers = #tpu.dot_dimension_numbers<[1], [0], [0], [1], [0, 0, 1, 1], [], []>} : vector<8x8xbf16>, vector<8x16xbf16>, vector<8x16xf32> -> vector<8x16xf32>
    %c1_250 = arith.constant 1 : index
    %c3_251 = arith.constant 3 : index
    %c0_252 = arith.constant 0 : index
    %c0_253 = arith.constant 0 : index
    %508 = vector.load %arg9[%c1_250, %c3_251, %c0_252, %c0_253] : memref<2x4x16x64xbf16, #tpu.memory_space<vmem>>, vector<1x1x16x64xbf16>
    %509 = vector.shape_cast %508 : vector<1x1x16x64xbf16> to vector<16x64xbf16>
    %510 = arith.truncf %507 : vector<8x16xf32> to vector<8x16xbf16>
    %cst_254 = arith.constant dense<0.000000e+00> : vector<8x64xf32>
    %511 = tpu.matmul %510, %509, %cst_254 {dimension_numbers = #tpu.dot_dimension_numbers<[1], [0], [0], [1], [0, 0, 1, 1], [], []>} : vector<8x16xbf16>, vector<16x64xbf16>, vector<8x64xf32> -> vector<8x64xf32>
    %512 = arith.addf %484, %511 : vector<8x64xf32>
    %c1_255 = arith.constant 1 : index
    %c0_256 = arith.constant 0 : index
    %c0_257 = arith.constant 0 : index
    %513 = vector.load %arg3[%c1_255, %c0_256, %c0_257] : memref<2x1x8xf32, #tpu.memory_space<vmem>>, vector<1x1x8xf32>
    %514 = vector.shape_cast %513 : vector<1x1x8xf32> to vector<1x8xf32>
    %cst_258 = arith.constant 0.000000e+00 : f32
    %515 = vector.broadcast %cst_258 : f32 to vector<8x64xf32>
    %516 = vector.extract_strided_slice %381 {offsets = [8, 0], sizes = [8, 16], strides = [1, 1]} : vector<16x64xf32> to vector<8x16xf32>
    %517 = vector.extract_strided_slice %389 {offsets = [8, 0], sizes = [8, 16], strides = [1, 1]} : vector<16x64xf32> to vector<8x16xf32>
    %518 = arith.truncf %516 : vector<8x16xf32> to vector<8x16xbf16>
    %519 = arith.truncf %517 : vector<8x16xf32> to vector<8x16xbf16>
    %cst_259 = arith.constant dense<0.000000e+00> : vector<8x8xf32>
    %520 = tpu.matmul %518, %519, %cst_259 {dimension_numbers = #tpu.dot_dimension_numbers<[1], [1], [0], [0], [0, 0, 1, 0], [], []>} : vector<8x16xbf16>, vector<8x16xbf16>, vector<8x8xf32> -> vector<8x8xf32>
    %cst_260 = arith.constant 2.500000e-01 : f32
    %521 = vector.broadcast %cst_260 : f32 to vector<8x8xf32>
    %522 = arith.mulf %520, %521 : vector<8x8xf32>
    %523 = vector.broadcast %514 : vector<1x8xf32> to vector<8x8xf32>
    %524 = arith.addf %522, %523 : vector<8x8xf32>
    %cst_261 = arith.constant dense<0xFF800000> : vector<8xf32>
    %525 = vector.multi_reduction <maximumf>, %524, %cst_261 [1] : vector<8x8xf32> to vector<8xf32>
    %526 = vector.shape_cast %525 : vector<8xf32> to vector<8x1xf32>
    %527 = vector.broadcast %526 : vector<8x1xf32> to vector<8x8xf32>
    %528 = arith.subf %524, %527 : vector<8x8xf32>
    %529 = math.exp %528 : vector<8x8xf32>
    %cst_262 = arith.constant dense<0.000000e+00> : vector<8xf32>
    %530 = vector.multi_reduction <add>, %529, %cst_262 [1] : vector<8x8xf32> to vector<8xf32>
    %531 = vector.shape_cast %530 : vector<8xf32> to vector<8x1xf32>
    %532 = tpu.reciprocal %531 {approx = true} : vector<8x1xf32> -> vector<8x1xf32>
    %533 = vector.broadcast %532 : vector<8x1xf32> to vector<8x8xf32>
    %534 = arith.mulf %529, %533 : vector<8x8xf32>
    %535 = vector.extract_strided_slice %397 {offsets = [8, 0], sizes = [8, 16], strides = [1, 1]} : vector<16x64xf32> to vector<8x16xf32>
    %536 = arith.truncf %534 : vector<8x8xf32> to vector<8x8xbf16>
    %537 = arith.truncf %535 : vector<8x16xf32> to vector<8x16xbf16>
    %cst_263 = arith.constant dense<0.000000e+00> : vector<8x16xf32>
    %538 = tpu.matmul %536, %537, %cst_263 {dimension_numbers = #tpu.dot_dimension_numbers<[1], [0], [0], [1], [0, 0, 1, 1], [], []>} : vector<8x8xbf16>, vector<8x16xbf16>, vector<8x16xf32> -> vector<8x16xf32>
    %c1_264 = arith.constant 1 : index
    %c0_265 = arith.constant 0 : index
    %c0_266 = arith.constant 0 : index
    %c0_267 = arith.constant 0 : index
    %539 = vector.load %arg9[%c1_264, %c0_265, %c0_266, %c0_267] : memref<2x4x16x64xbf16, #tpu.memory_space<vmem>>, vector<1x1x16x64xbf16>
    %540 = vector.shape_cast %539 : vector<1x1x16x64xbf16> to vector<16x64xbf16>
    %541 = arith.truncf %538 : vector<8x16xf32> to vector<8x16xbf16>
    %cst_268 = arith.constant dense<0.000000e+00> : vector<8x64xf32>
    %542 = tpu.matmul %541, %540, %cst_268 {dimension_numbers = #tpu.dot_dimension_numbers<[1], [0], [0], [1], [0, 0, 1, 1], [], []>} : vector<8x16xbf16>, vector<16x64xbf16>, vector<8x64xf32> -> vector<8x64xf32>
    %543 = arith.addf %515, %542 : vector<8x64xf32>
    %544 = vector.extract_strided_slice %381 {offsets = [8, 16], sizes = [8, 16], strides = [1, 1]} : vector<16x64xf32> to vector<8x16xf32>
    %545 = vector.extract_strided_slice %389 {offsets = [8, 16], sizes = [8, 16], strides = [1, 1]} : vector<16x64xf32> to vector<8x16xf32>
    %546 = arith.truncf %544 : vector<8x16xf32> to vector<8x16xbf16>
    %547 = arith.truncf %545 : vector<8x16xf32> to vector<8x16xbf16>
    %cst_269 = arith.constant dense<0.000000e+00> : vector<8x8xf32>
    %548 = tpu.matmul %546, %547, %cst_269 {dimension_numbers = #tpu.dot_dimension_numbers<[1], [1], [0], [0], [0, 0, 1, 0], [], []>} : vector<8x16xbf16>, vector<8x16xbf16>, vector<8x8xf32> -> vector<8x8xf32>
    %cst_270 = arith.constant 2.500000e-01 : f32
    %549 = vector.broadcast %cst_270 : f32 to vector<8x8xf32>
    %550 = arith.mulf %548, %549 : vector<8x8xf32>
    %551 = vector.broadcast %514 : vector<1x8xf32> to vector<8x8xf32>
    %552 = arith.addf %550, %551 : vector<8x8xf32>
    %cst_271 = arith.constant dense<0xFF800000> : vector<8xf32>
    %553 = vector.multi_reduction <maximumf>, %552, %cst_271 [1] : vector<8x8xf32> to vector<8xf32>
    %554 = vector.shape_cast %553 : vector<8xf32> to vector<8x1xf32>
    %555 = vector.broadcast %554 : vector<8x1xf32> to vector<8x8xf32>
    %556 = arith.subf %552, %555 : vector<8x8xf32>
    %557 = math.exp %556 : vector<8x8xf32>
    %cst_272 = arith.constant dense<0.000000e+00> : vector<8xf32>
    %558 = vector.multi_reduction <add>, %557, %cst_272 [1] : vector<8x8xf32> to vector<8xf32>
    %559 = vector.shape_cast %558 : vector<8xf32> to vector<8x1xf32>
    %560 = tpu.reciprocal %559 {approx = true} : vector<8x1xf32> -> vector<8x1xf32>
    %561 = vector.broadcast %560 : vector<8x1xf32> to vector<8x8xf32>
    %562 = arith.mulf %557, %561 : vector<8x8xf32>
    %563 = vector.extract_strided_slice %397 {offsets = [8, 16], sizes = [8, 16], strides = [1, 1]} : vector<16x64xf32> to vector<8x16xf32>
    %564 = arith.truncf %562 : vector<8x8xf32> to vector<8x8xbf16>
    %565 = arith.truncf %563 : vector<8x16xf32> to vector<8x16xbf16>
    %cst_273 = arith.constant dense<0.000000e+00> : vector<8x16xf32>
    %566 = tpu.matmul %564, %565, %cst_273 {dimension_numbers = #tpu.dot_dimension_numbers<[1], [0], [0], [1], [0, 0, 1, 1], [], []>} : vector<8x8xbf16>, vector<8x16xbf16>, vector<8x16xf32> -> vector<8x16xf32>
    %c1_274 = arith.constant 1 : index
    %c1_275 = arith.constant 1 : index
    %c0_276 = arith.constant 0 : index
    %c0_277 = arith.constant 0 : index
    %567 = vector.load %arg9[%c1_274, %c1_275, %c0_276, %c0_277] : memref<2x4x16x64xbf16, #tpu.memory_space<vmem>>, vector<1x1x16x64xbf16>
    %568 = vector.shape_cast %567 : vector<1x1x16x64xbf16> to vector<16x64xbf16>
    %569 = arith.truncf %566 : vector<8x16xf32> to vector<8x16xbf16>
    %cst_278 = arith.constant dense<0.000000e+00> : vector<8x64xf32>
    %570 = tpu.matmul %569, %568, %cst_278 {dimension_numbers = #tpu.dot_dimension_numbers<[1], [0], [0], [1], [0, 0, 1, 1], [], []>} : vector<8x16xbf16>, vector<16x64xbf16>, vector<8x64xf32> -> vector<8x64xf32>
    %571 = arith.addf %543, %570 : vector<8x64xf32>
    %572 = vector.extract_strided_slice %381 {offsets = [8, 32], sizes = [8, 16], strides = [1, 1]} : vector<16x64xf32> to vector<8x16xf32>
    %573 = vector.extract_strided_slice %389 {offsets = [8, 32], sizes = [8, 16], strides = [1, 1]} : vector<16x64xf32> to vector<8x16xf32>
    %574 = arith.truncf %572 : vector<8x16xf32> to vector<8x16xbf16>
    %575 = arith.truncf %573 : vector<8x16xf32> to vector<8x16xbf16>
    %cst_279 = arith.constant dense<0.000000e+00> : vector<8x8xf32>
    %576 = tpu.matmul %574, %575, %cst_279 {dimension_numbers = #tpu.dot_dimension_numbers<[1], [1], [0], [0], [0, 0, 1, 0], [], []>} : vector<8x16xbf16>, vector<8x16xbf16>, vector<8x8xf32> -> vector<8x8xf32>
    %cst_280 = arith.constant 2.500000e-01 : f32
    %577 = vector.broadcast %cst_280 : f32 to vector<8x8xf32>
    %578 = arith.mulf %576, %577 : vector<8x8xf32>
    %579 = vector.broadcast %514 : vector<1x8xf32> to vector<8x8xf32>
    %580 = arith.addf %578, %579 : vector<8x8xf32>
    %cst_281 = arith.constant dense<0xFF800000> : vector<8xf32>
    %581 = vector.multi_reduction <maximumf>, %580, %cst_281 [1] : vector<8x8xf32> to vector<8xf32>
    %582 = vector.shape_cast %581 : vector<8xf32> to vector<8x1xf32>
    %583 = vector.broadcast %582 : vector<8x1xf32> to vector<8x8xf32>
    %584 = arith.subf %580, %583 : vector<8x8xf32>
    %585 = math.exp %584 : vector<8x8xf32>
    %cst_282 = arith.constant dense<0.000000e+00> : vector<8xf32>
    %586 = vector.multi_reduction <add>, %585, %cst_282 [1] : vector<8x8xf32> to vector<8xf32>
    %587 = vector.shape_cast %586 : vector<8xf32> to vector<8x1xf32>
    %588 = tpu.reciprocal %587 {approx = true} : vector<8x1xf32> -> vector<8x1xf32>
    %589 = vector.broadcast %588 : vector<8x1xf32> to vector<8x8xf32>
    %590 = arith.mulf %585, %589 : vector<8x8xf32>
    %591 = vector.extract_strided_slice %397 {offsets = [8, 32], sizes = [8, 16], strides = [1, 1]} : vector<16x64xf32> to vector<8x16xf32>
    %592 = arith.truncf %590 : vector<8x8xf32> to vector<8x8xbf16>
    %593 = arith.truncf %591 : vector<8x16xf32> to vector<8x16xbf16>
    %cst_283 = arith.constant dense<0.000000e+00> : vector<8x16xf32>
    %594 = tpu.matmul %592, %593, %cst_283 {dimension_numbers = #tpu.dot_dimension_numbers<[1], [0], [0], [1], [0, 0, 1, 1], [], []>} : vector<8x8xbf16>, vector<8x16xbf16>, vector<8x16xf32> -> vector<8x16xf32>
    %c1_284 = arith.constant 1 : index
    %c2_285 = arith.constant 2 : index
    %c0_286 = arith.constant 0 : index
    %c0_287 = arith.constant 0 : index
    %595 = vector.load %arg9[%c1_284, %c2_285, %c0_286, %c0_287] : memref<2x4x16x64xbf16, #tpu.memory_space<vmem>>, vector<1x1x16x64xbf16>
    %596 = vector.shape_cast %595 : vector<1x1x16x64xbf16> to vector<16x64xbf16>
    %597 = arith.truncf %594 : vector<8x16xf32> to vector<8x16xbf16>
    %cst_288 = arith.constant dense<0.000000e+00> : vector<8x64xf32>
    %598 = tpu.matmul %597, %596, %cst_288 {dimension_numbers = #tpu.dot_dimension_numbers<[1], [0], [0], [1], [0, 0, 1, 1], [], []>} : vector<8x16xbf16>, vector<16x64xbf16>, vector<8x64xf32> -> vector<8x64xf32>
    %599 = arith.addf %571, %598 : vector<8x64xf32>
    %600 = vector.extract_strided_slice %381 {offsets = [8, 48], sizes = [8, 16], strides = [1, 1]} : vector<16x64xf32> to vector<8x16xf32>
    %601 = vector.extract_strided_slice %389 {offsets = [8, 48], sizes = [8, 16], strides = [1, 1]} : vector<16x64xf32> to vector<8x16xf32>
    %602 = arith.truncf %600 : vector<8x16xf32> to vector<8x16xbf16>
    %603 = arith.truncf %601 : vector<8x16xf32> to vector<8x16xbf16>
    %cst_289 = arith.constant dense<0.000000e+00> : vector<8x8xf32>
    %604 = tpu.matmul %602, %603, %cst_289 {dimension_numbers = #tpu.dot_dimension_numbers<[1], [1], [0], [0], [0, 0, 1, 0], [], []>} : vector<8x16xbf16>, vector<8x16xbf16>, vector<8x8xf32> -> vector<8x8xf32>
    %cst_290 = arith.constant 2.500000e-01 : f32
    %605 = vector.broadcast %cst_290 : f32 to vector<8x8xf32>
    %606 = arith.mulf %604, %605 : vector<8x8xf32>
    %607 = vector.broadcast %514 : vector<1x8xf32> to vector<8x8xf32>
    %608 = arith.addf %606, %607 : vector<8x8xf32>
    %cst_291 = arith.constant dense<0xFF800000> : vector<8xf32>
    %609 = vector.multi_reduction <maximumf>, %608, %cst_291 [1] : vector<8x8xf32> to vector<8xf32>
    %610 = vector.shape_cast %609 : vector<8xf32> to vector<8x1xf32>
    %611 = vector.broadcast %610 : vector<8x1xf32> to vector<8x8xf32>
    %612 = arith.subf %608, %611 : vector<8x8xf32>
    %613 = math.exp %612 : vector<8x8xf32>
    %cst_292 = arith.constant dense<0.000000e+00> : vector<8xf32>
    %614 = vector.multi_reduction <add>, %613, %cst_292 [1] : vector<8x8xf32> to vector<8xf32>
    %615 = vector.shape_cast %614 : vector<8xf32> to vector<8x1xf32>
    %616 = tpu.reciprocal %615 {approx = true} : vector<8x1xf32> -> vector<8x1xf32>
    %617 = vector.broadcast %616 : vector<8x1xf32> to vector<8x8xf32>
    %618 = arith.mulf %613, %617 : vector<8x8xf32>
    %619 = vector.extract_strided_slice %397 {offsets = [8, 48], sizes = [8, 16], strides = [1, 1]} : vector<16x64xf32> to vector<8x16xf32>
    %620 = arith.truncf %618 : vector<8x8xf32> to vector<8x8xbf16>
    %621 = arith.truncf %619 : vector<8x16xf32> to vector<8x16xbf16>
    %cst_293 = arith.constant dense<0.000000e+00> : vector<8x16xf32>
    %622 = tpu.matmul %620, %621, %cst_293 {dimension_numbers = #tpu.dot_dimension_numbers<[1], [0], [0], [1], [0, 0, 1, 1], [], []>} : vector<8x8xbf16>, vector<8x16xbf16>, vector<8x16xf32> -> vector<8x16xf32>
    %c1_294 = arith.constant 1 : index
    %c3_295 = arith.constant 3 : index
    %c0_296 = arith.constant 0 : index
    %c0_297 = arith.constant 0 : index
    %623 = vector.load %arg9[%c1_294, %c3_295, %c0_296, %c0_297] : memref<2x4x16x64xbf16, #tpu.memory_space<vmem>>, vector<1x1x16x64xbf16>
    %624 = vector.shape_cast %623 : vector<1x1x16x64xbf16> to vector<16x64xbf16>
    %625 = arith.truncf %622 : vector<8x16xf32> to vector<8x16xbf16>
    %cst_298 = arith.constant dense<0.000000e+00> : vector<8x64xf32>
    %626 = tpu.matmul %625, %624, %cst_298 {dimension_numbers = #tpu.dot_dimension_numbers<[1], [0], [0], [1], [0, 0, 1, 1], [], []>} : vector<8x16xbf16>, vector<16x64xbf16>, vector<8x64xf32> -> vector<8x64xf32>
    %627 = arith.addf %599, %626 : vector<8x64xf32>
    %628 = tpu.concatenate %512, %627 in 0 : vector<8x64xf32>, vector<8x64xf32> -> vector<16x64xf32>
    %c1_299 = arith.constant 1 : index
    %c0_300 = arith.constant 0 : index
    %c0_301 = arith.constant 0 : index
    %629 = vector.load %arg10[%c1_299, %c0_300, %c0_301] : memref<2x1x64xf32, #tpu.memory_space<vmem>>, vector<1x1x64xf32>
    %630 = vector.shape_cast %629 : vector<1x1x64xf32> to vector<1x64xf32>
    %631 = vector.broadcast %630 : vector<1x64xf32> to vector<16x64xf32>
    %632 = arith.addf %628, %631 : vector<16x64xf32>
    %633 = arith.addf %373, %632 : vector<16x64xf32>
    %c1_302 = arith.constant 1 : index
    %c0_303 = arith.constant 0 : index
    %c0_304 = arith.constant 0 : index
    %c0_305 = arith.constant 0 : index
    %634 = vector.load %arg11[%c1_302, %c0_303, %c0_304, %c0_305] : memref<2x4x1x64xf32, #tpu.memory_space<vmem>>, vector<1x1x1x64xf32>
    %635 = vector.shape_cast %634 : vector<1x1x1x64xf32> to vector<1x64xf32>
    %c1_306 = arith.constant 1 : index
    %c1_307 = arith.constant 1 : index
    %c0_308 = arith.constant 0 : index
    %c0_309 = arith.constant 0 : index
    %636 = vector.load %arg11[%c1_306, %c1_307, %c0_308, %c0_309] : memref<2x4x1x64xf32, #tpu.memory_space<vmem>>, vector<1x1x1x64xf32>
    %637 = vector.shape_cast %636 : vector<1x1x1x64xf32> to vector<1x64xf32>
    %cst_310 = arith.constant dense<0.000000e+00> : vector<16xf32>
    %638 = vector.multi_reduction <add>, %633, %cst_310 [1] : vector<16x64xf32> to vector<16xf32>
    %639 = vector.shape_cast %638 : vector<16xf32> to vector<16x1xf32>
    %cst_311 = arith.constant 6.400000e+01 : f32
    %640 = vector.broadcast %cst_311 : f32 to vector<16x1xf32>
    %641 = arith.divf %639, %640 : vector<16x1xf32>
    %642 = vector.broadcast %641 : vector<16x1xf32> to vector<16x64xf32>
    %643 = arith.subf %633, %642 : vector<16x64xf32>
    %644 = arith.mulf %643, %643 : vector<16x64xf32>
    %cst_312 = arith.constant dense<0.000000e+00> : vector<16xf32>
    %645 = vector.multi_reduction <add>, %644, %cst_312 [1] : vector<16x64xf32> to vector<16xf32>
    %646 = vector.shape_cast %645 : vector<16xf32> to vector<16x1xf32>
    %cst_313 = arith.constant 6.400000e+01 : f32
    %647 = vector.broadcast %cst_313 : f32 to vector<16x1xf32>
    %648 = arith.divf %646, %647 : vector<16x1xf32>
    %649 = vector.broadcast %641 : vector<16x1xf32> to vector<16x64xf32>
    %650 = arith.subf %633, %649 : vector<16x64xf32>
    %cst_314 = arith.constant 9.99999974E-6 : f32
    %651 = vector.broadcast %cst_314 : f32 to vector<16x1xf32>
    %652 = arith.addf %648, %651 : vector<16x1xf32>
    %653 = math.rsqrt %652 : vector<16x1xf32>
    %654 = vector.broadcast %653 : vector<16x1xf32> to vector<16x64xf32>
    %655 = arith.mulf %650, %654 : vector<16x64xf32>
    %656 = vector.broadcast %635 : vector<1x64xf32> to vector<16x64xf32>
    %657 = arith.mulf %655, %656 : vector<16x64xf32>
    %658 = vector.broadcast %637 : vector<1x64xf32> to vector<16x64xf32>
    %659 = arith.addf %657, %658 : vector<16x64xf32>
    %c1_315 = arith.constant 1 : index
    %c0_316 = arith.constant 0 : index
    %c0_317 = arith.constant 0 : index
    %660 = vector.load %arg12[%c1_315, %c0_316, %c0_317] : memref<2x64x128xbf16, #tpu.memory_space<vmem>>, vector<1x64x128xbf16>
    %661 = vector.shape_cast %660 : vector<1x64x128xbf16> to vector<64x128xbf16>
    %662 = arith.truncf %659 : vector<16x64xf32> to vector<16x64xbf16>
    %cst_318 = arith.constant dense<0.000000e+00> : vector<16x128xf32>
    %663 = tpu.matmul %662, %661, %cst_318 {dimension_numbers = #tpu.dot_dimension_numbers<[1], [0], [0], [1], [0, 0, 1, 1], [], []>} : vector<16x64xbf16>, vector<64x128xbf16>, vector<16x128xf32> -> vector<16x128xf32>
    %c1_319 = arith.constant 1 : index
    %c0_320 = arith.constant 0 : index
    %c0_321 = arith.constant 0 : index
    %664 = vector.load %arg13[%c1_319, %c0_320, %c0_321] : memref<2x1x128xf32, #tpu.memory_space<vmem>>, vector<1x1x128xf32>
    %665 = vector.shape_cast %664 : vector<1x1x128xf32> to vector<1x128xf32>
    %666 = vector.broadcast %665 : vector<1x128xf32> to vector<16x128xf32>
    %667 = arith.addf %663, %666 : vector<16x128xf32>
    %cst_322 = arith.constant 0.000000e+00 : f32
    %668 = vector.broadcast %cst_322 : f32 to vector<16x128xf32>
    %669 = arith.maximumf %667, %668 : vector<16x128xf32>
    %c1_323 = arith.constant 1 : index
    %c0_324 = arith.constant 0 : index
    %c0_325 = arith.constant 0 : index
    %670 = vector.load %arg14[%c1_323, %c0_324, %c0_325] : memref<2x128x64xbf16, #tpu.memory_space<vmem>>, vector<1x128x64xbf16>
    %671 = vector.shape_cast %670 : vector<1x128x64xbf16> to vector<128x64xbf16>
    %672 = arith.truncf %669 : vector<16x128xf32> to vector<16x128xbf16>
    %cst_326 = arith.constant dense<0.000000e+00> : vector<16x64xf32>
    %673 = tpu.matmul %672, %671, %cst_326 {dimension_numbers = #tpu.dot_dimension_numbers<[1], [0], [0], [1], [0, 0, 1, 1], [], []>} : vector<16x128xbf16>, vector<128x64xbf16>, vector<16x64xf32> -> vector<16x64xf32>
    %c1_327 = arith.constant 1 : index
    %c0_328 = arith.constant 0 : index
    %c0_329 = arith.constant 0 : index
    %674 = vector.load %arg15[%c1_327, %c0_328, %c0_329] : memref<2x1x64xf32, #tpu.memory_space<vmem>>, vector<1x1x64xf32>
    %675 = vector.shape_cast %674 : vector<1x1x64xf32> to vector<1x64xf32>
    %676 = vector.broadcast %675 : vector<1x64xf32> to vector<16x64xf32>
    %677 = arith.addf %673, %676 : vector<16x64xf32>
    %678 = arith.addf %659, %677 : vector<16x64xf32>
    %c1_330 = arith.constant 1 : index
    %c2_331 = arith.constant 2 : index
    %c0_332 = arith.constant 0 : index
    %c0_333 = arith.constant 0 : index
    %679 = vector.load %arg11[%c1_330, %c2_331, %c0_332, %c0_333] : memref<2x4x1x64xf32, #tpu.memory_space<vmem>>, vector<1x1x1x64xf32>
    %680 = vector.shape_cast %679 : vector<1x1x1x64xf32> to vector<1x64xf32>
    %c1_334 = arith.constant 1 : index
    %c3_335 = arith.constant 3 : index
    %c0_336 = arith.constant 0 : index
    %c0_337 = arith.constant 0 : index
    %681 = vector.load %arg11[%c1_334, %c3_335, %c0_336, %c0_337] : memref<2x4x1x64xf32, #tpu.memory_space<vmem>>, vector<1x1x1x64xf32>
    %682 = vector.shape_cast %681 : vector<1x1x1x64xf32> to vector<1x64xf32>
    %cst_338 = arith.constant dense<0.000000e+00> : vector<16xf32>
    %683 = vector.multi_reduction <add>, %678, %cst_338 [1] : vector<16x64xf32> to vector<16xf32>
    %684 = vector.shape_cast %683 : vector<16xf32> to vector<16x1xf32>
    %cst_339 = arith.constant 6.400000e+01 : f32
    %685 = vector.broadcast %cst_339 : f32 to vector<16x1xf32>
    %686 = arith.divf %684, %685 : vector<16x1xf32>
    %687 = vector.broadcast %686 : vector<16x1xf32> to vector<16x64xf32>
    %688 = arith.subf %678, %687 : vector<16x64xf32>
    %689 = arith.mulf %688, %688 : vector<16x64xf32>
    %cst_340 = arith.constant dense<0.000000e+00> : vector<16xf32>
    %690 = vector.multi_reduction <add>, %689, %cst_340 [1] : vector<16x64xf32> to vector<16xf32>
    %691 = vector.shape_cast %690 : vector<16xf32> to vector<16x1xf32>
    %cst_341 = arith.constant 6.400000e+01 : f32
    %692 = vector.broadcast %cst_341 : f32 to vector<16x1xf32>
    %693 = arith.divf %691, %692 : vector<16x1xf32>
    %694 = vector.broadcast %686 : vector<16x1xf32> to vector<16x64xf32>
    %695 = arith.subf %678, %694 : vector<16x64xf32>
    %cst_342 = arith.constant 9.99999974E-6 : f32
    %696 = vector.broadcast %cst_342 : f32 to vector<16x1xf32>
    %697 = arith.addf %693, %696 : vector<16x1xf32>
    %698 = math.rsqrt %697 : vector<16x1xf32>
    %699 = vector.broadcast %698 : vector<16x1xf32> to vector<16x64xf32>
    %700 = arith.mulf %695, %699 : vector<16x64xf32>
    %701 = vector.broadcast %680 : vector<1x64xf32> to vector<16x64xf32>
    %702 = arith.mulf %700, %701 : vector<16x64xf32>
    %703 = vector.broadcast %682 : vector<1x64xf32> to vector<16x64xf32>
    %704 = arith.addf %702, %703 : vector<16x64xf32>
    %705 = vector.extract_strided_slice %704 {offsets = [0, 0], sizes = [8, 64], strides = [1, 1]} : vector<16x64xf32> to vector<8x64xf32>
    %cst_343 = arith.constant dense<0.000000e+00> : vector<64xf32>
    %706 = vector.multi_reduction <add>, %705, %cst_343 [0] : vector<8x64xf32> to vector<64xf32>
    %707 = vector.shape_cast %706 : vector<64xf32> to vector<1x64xf32>
    %cst_344 = arith.constant 8.000000e+00 : f32
    %708 = vector.broadcast %cst_344 : f32 to vector<1x64xf32>
    %709 = arith.divf %707, %708 : vector<1x64xf32>
    %710 = vector.extract_strided_slice %704 {offsets = [8, 0], sizes = [8, 64], strides = [1, 1]} : vector<16x64xf32> to vector<8x64xf32>
    %cst_345 = arith.constant dense<0.000000e+00> : vector<64xf32>
    %711 = vector.multi_reduction <add>, %710, %cst_345 [0] : vector<8x64xf32> to vector<64xf32>
    %712 = vector.shape_cast %711 : vector<64xf32> to vector<1x64xf32>
    %cst_346 = arith.constant 8.000000e+00 : f32
    %713 = vector.broadcast %cst_346 : f32 to vector<1x64xf32>
    %714 = arith.divf %712, %713 : vector<1x64xf32>
    %715 = tpu.concatenate %709, %714 in 0 : vector<1x64xf32>, vector<1x64xf32> -> vector<2x64xf32>
    %c0_347 = arith.constant 0 : index
    %c0_348 = arith.constant 0 : index
    %716 = vector.load %arg16[%c0_347, %c0_348] : memref<64x256xbf16, #tpu.memory_space<vmem>>, vector<64x256xbf16>
    %717 = arith.truncf %715 : vector<2x64xf32> to vector<2x64xbf16>
    %cst_349 = arith.constant dense<0.000000e+00> : vector<2x256xf32>
    %718 = tpu.matmul %717, %716, %cst_349 {dimension_numbers = #tpu.dot_dimension_numbers<[1], [0], [0], [1], [0, 0, 1, 1], [], []>} : vector<2x64xbf16>, vector<64x256xbf16>, vector<2x256xf32> -> vector<2x256xf32>
    %c0_350 = arith.constant 0 : index
    %c0_351 = arith.constant 0 : index
    %c0_352 = arith.constant 0 : index
    %719 = vector.load %arg17[%c0_350, %c0_351, %c0_352] : memref<3x1x256xf32, #tpu.memory_space<vmem>>, vector<1x1x256xf32>
    %720 = vector.shape_cast %719 : vector<1x1x256xf32> to vector<1x256xf32>
    %721 = vector.broadcast %720 : vector<1x256xf32> to vector<2x256xf32>
    %722 = arith.addf %718, %721 : vector<2x256xf32>
    %cst_353 = arith.constant 0.999994993 : f32
    %723 = vector.broadcast %cst_353 : f32 to vector<2x256xf32>
    %724 = arith.mulf %722, %723 : vector<2x256xf32>
    %c1_354 = arith.constant 1 : index
    %c0_355 = arith.constant 0 : index
    %c0_356 = arith.constant 0 : index
    %725 = vector.load %arg17[%c1_354, %c0_355, %c0_356] : memref<3x1x256xf32, #tpu.memory_space<vmem>>, vector<1x1x256xf32>
    %726 = vector.shape_cast %725 : vector<1x1x256xf32> to vector<1x256xf32>
    %727 = vector.broadcast %726 : vector<1x256xf32> to vector<2x256xf32>
    %728 = arith.mulf %724, %727 : vector<2x256xf32>
    %c2_357 = arith.constant 2 : index
    %c0_358 = arith.constant 0 : index
    %c0_359 = arith.constant 0 : index
    %729 = vector.load %arg17[%c2_357, %c0_358, %c0_359] : memref<3x1x256xf32, #tpu.memory_space<vmem>>, vector<1x1x256xf32>
    %730 = vector.shape_cast %729 : vector<1x1x256xf32> to vector<1x256xf32>
    %731 = vector.broadcast %730 : vector<1x256xf32> to vector<2x256xf32>
    %732 = arith.addf %728, %731 : vector<2x256xf32>
    %cst_360 = arith.constant 0.000000e+00 : f32
    %733 = vector.broadcast %cst_360 : f32 to vector<2x256xf32>
    %734 = arith.maximumf %732, %733 : vector<2x256xf32>
    %c0_361 = arith.constant 0 : index
    %c0_362 = arith.constant 0 : index
    %735 = vector.load %arg18[%c0_361, %c0_362] : memref<256x2xbf16, #tpu.memory_space<vmem>>, vector<256x2xbf16>
    %736 = arith.truncf %734 : vector<2x256xf32> to vector<2x256xbf16>
    %cst_363 = arith.constant dense<0.000000e+00> : vector<2x2xf32>
    %737 = tpu.matmul %736, %735, %cst_363 {dimension_numbers = #tpu.dot_dimension_numbers<[1], [0], [0], [1], [0, 0, 1, 1], [], []>} : vector<2x256xbf16>, vector<256x2xbf16>, vector<2x2xf32> -> vector<2x2xf32>
    %c0_364 = arith.constant 0 : index
    %c0_365 = arith.constant 0 : index
    %738 = vector.load %arg19[%c0_364, %c0_365] : memref<1x2xf32, #tpu.memory_space<vmem>>, vector<1x2xf32>
    %739 = vector.broadcast %738 : vector<1x2xf32> to vector<2x2xf32>
    %740 = arith.addf %737, %739 : vector<2x2xf32>
    %c0_366 = arith.constant 0 : index
    %c0_367 = arith.constant 0 : index
    %741 = vector.load %arg20[%c0_366, %c0_367] : memref<2x2xf32, #tpu.memory_space<vmem>>, vector<2x2xf32>
    tpu.vector_store %arg20[%c0_366, %c0_367], %740 {strides = array<i32>} : memref<2x2xf32, #tpu.memory_space<vmem>>, vector<2x2xf32>,
    return
  }
  func.func @transform_0(%arg0: i32) -> (i32, i32) {
    %c0_i32 = arith.constant 0 : i32
    %c0_i32_0 = arith.constant 0 : i32
    %c0_i32_1 = arith.constant 0 : i32
    return %c0_i32, %c0_i32_0 : i32, i32
  }
  func.func @transform_1(%arg0: i32) -> (i32, i32) {
    %c0_i32 = arith.constant 0 : i32
    %c0_i32_0 = arith.constant 0 : i32
    %c0_i32_1 = arith.constant 0 : i32
    return %c0_i32, %c0_i32_0 : i32, i32
  }
  func.func @transform_2(%arg0: i32) -> (i32, i32, i32) {
    %c0_i32 = arith.constant 0 : i32
    %c0_i32_0 = arith.constant 0 : i32
    %c0_i32_1 = arith.constant 0 : i32
    %c0_i32_2 = arith.constant 0 : i32
    return %c0_i32, %c0_i32_0, %c0_i32_1 : i32, i32, i32
  }
  func.func @transform_3(%arg0: i32) -> (i32, i32) {
    %c0_i32 = arith.constant 0 : i32
    %c0_i32_0 = arith.constant 0 : i32
    %c0_i32_1 = arith.constant 0 : i32
    return %c0_i32, %c0_i32_0 : i32, i32
  }
  func.func @transform_4(%arg0: i32) -> (i32, i32, i32) {
    %c0_i32 = arith.constant 0 : i32
    %c0_i32_0 = arith.constant 0 : i32
    %c0_i32_1 = arith.constant 0 : i32
    %c0_i32_2 = arith.constant 0 : i32
    return %c0_i32, %c0_i32_0, %c0_i32_1 : i32, i32, i32
  }
  func.func @transform_5(%arg0: i32) -> (i32, i32, i32) {
    %c0_i32 = arith.constant 0 : i32
    %c0_i32_0 = arith.constant 0 : i32
    %c0_i32_1 = arith.constant 0 : i32
    %c0_i32_2 = arith.constant 0 : i32
    return %c0_i32, %c0_i32_0, %c0_i32_1 : i32, i32, i32
  }
  func.func @transform_6(%arg0: i32) -> (i32, i32, i32, i32) {
    %c0_i32 = arith.constant 0 : i32
    %c0_i32_0 = arith.constant 0 : i32
    %c0_i32_1 = arith.constant 0 : i32
    %c0_i32_2 = arith.constant 0 : i32
    %c0_i32_3 = arith.constant 0 : i32
    return %c0_i32, %c0_i32_0, %c0_i32_1, %c0_i32_2 : i32, i32, i32, i32
  }
  func.func @transform_7(%arg0: i32) -> (i32, i32, i32, i32) {
    %c0_i32 = arith.constant 0 : i32
    %c0_i32_0 = arith.constant 0 : i32
    %c0_i32_1 = arith.constant 0 : i32
    %c0_i32_2 = arith.constant 0 : i32
    %c0_i32_3 = arith.constant 0 : i32
    return %c0_i32, %c0_i32_0, %c0_i32_1, %c0_i32_2 : i32, i32, i32, i32
  }
  func.func @transform_8(%arg0: i32) -> (i32, i32, i32, i32) {
    %c0_i32 = arith.constant 0 : i32
    %c0_i32_0 = arith.constant 0 : i32
    %c0_i32_1 = arith.constant 0 : i32
    %c0_i32_2 = arith.constant 0 : i32
    %c0_i32_3 = arith.constant 0 : i32
    return %c0_i32, %c0_i32_0, %c0_i32_1, %c0_i32_2 : i32, i32, i32, i32
  }
  func.func @transform_9(%arg0: i32) -> (i32, i32, i32) {
    %c0_i32 = arith.constant 0 : i32
    %c0_i32_0 = arith.constant 0 : i32
    %c0_i32_1 = arith.constant 0 : i32
    %c0_i32_2 = arith.constant 0 : i32
    return %c0_i32, %c0_i32_0, %c0_i32_1 : i32, i32, i32
  }
  func.func @transform_10(%arg0: i32) -> (i32, i32, i32, i32) {
    %c0_i32 = arith.constant 0 : i32
    %c0_i32_0 = arith.constant 0 : i32
    %c0_i32_1 = arith.constant 0 : i32
    %c0_i32_2 = arith.constant 0 : i32
    %c0_i32_3 = arith.constant 0 : i32
    return %c0_i32, %c0_i32_0, %c0_i32_1, %c0_i32_2 : i32, i32, i32, i32
  }
  func.func @transform_11(%arg0: i32) -> (i32, i32, i32) {
    %c0_i32 = arith.constant 0 : i32
    %c0_i32_0 = arith.constant 0 : i32
    %c0_i32_1 = arith.constant 0 : i32
    %c0_i32_2 = arith.constant 0 : i32
    return %c0_i32, %c0_i32_0, %c0_i32_1 : i32, i32, i32
  }
  func.func @transform_12(%arg0: i32) -> (i32, i32, i32) {
    %c0_i32 = arith.constant 0 : i32
    %c0_i32_0 = arith.constant 0 : i32
    %c0_i32_1 = arith.constant 0 : i32
    %c0_i32_2 = arith.constant 0 : i32
    return %c0_i32, %c0_i32_0, %c0_i32_1 : i32, i32, i32
  }
  func.func @transform_13(%arg0: i32) -> (i32, i32, i32) {
    %c0_i32 = arith.constant 0 : i32
    %c0_i32_0 = arith.constant 0 : i32
    %c0_i32_1 = arith.constant 0 : i32
    %c0_i32_2 = arith.constant 0 : i32
    return %c0_i32, %c0_i32_0, %c0_i32_1 : i32, i32, i32
  }
  func.func @transform_14(%arg0: i32) -> (i32, i32, i32) {
    %c0_i32 = arith.constant 0 : i32
    %c0_i32_0 = arith.constant 0 : i32
    %c0_i32_1 = arith.constant 0 : i32
    %c0_i32_2 = arith.constant 0 : i32
    return %c0_i32, %c0_i32_0, %c0_i32_1 : i32, i32, i32
  }
  func.func @transform_15(%arg0: i32) -> (i32, i32) {
    %c0_i32 = arith.constant 0 : i32
    %c0_i32_0 = arith.constant 0 : i32
    %c0_i32_1 = arith.constant 0 : i32
    return %c0_i32, %c0_i32_0 : i32, i32
  }
  func.func @transform_16(%arg0: i32) -> (i32, i32, i32) {
    %c0_i32 = arith.constant 0 : i32
    %c0_i32_0 = arith.constant 0 : i32
    %c0_i32_1 = arith.constant 0 : i32
    %c0_i32_2 = arith.constant 0 : i32
    return %c0_i32, %c0_i32_0, %c0_i32_1 : i32, i32, i32
  }
  func.func @transform_17(%arg0: i32) -> (i32, i32) {
    %c0_i32 = arith.constant 0 : i32
    %c0_i32_0 = arith.constant 0 : i32
    %c0_i32_1 = arith.constant 0 : i32
    return %c0_i32, %c0_i32_0 : i32, i32
  }
  func.func @transform_18(%arg0: i32) -> (i32, i32) {
    %c0_i32 = arith.constant 0 : i32
    %c0_i32_0 = arith.constant 0 : i32
    %c0_i32_1 = arith.constant 0 : i32
    return %c0_i32, %c0_i32_0 : i32, i32
  }
  func.func @transform_19(%arg0: i32) -> (i32, i32) {
    %c0_i32 = arith.constant 0 : i32
    %c0_i32_0 = arith.constant 0 : i32
    %c0_i32_1 = arith.constant 0 : i32
    return %c0_i32, %c0_i32_0 : i32, i32
  }
}

</mosaic_0001>

<llo_original>
// kernel: gait_graph_net_forward.1
$region0: #{gait_graph_net_forward.1}
  #allocation0 [shape = 'u32[]', space=smem, size = 0x4, offset = 0x4, fixed_abs, tag = 'smem constant byte address 0x4 - core index']
  #allocation1 [shape = 'u32[144,128]{1,0:T(1,128)}', space=vmem, size = 0x12000, scoped, tag = 'internal scratch']
  %s0 = inlined_call_operand.vmem [shape: f32[128,16], index: 0, kind: input, shape index: {}]
  %s1 = inlined_call_operand.vmem [shape: bf16[128,128], index: 1, kind: input, shape index: {}]
  %s2 = inlined_call_operand.vmem [shape: f32[2,1,8], index: 2, kind: input, shape index: {}]
  %s3 = inlined_call_operand.vmem [shape: f32[16,64], index: 3, kind: input, shape index: {}]
  %s4 = inlined_call_operand.vmem [shape: bf16[2,16,16], index: 4, kind: input, shape index: {}]
  %s5 = inlined_call_operand.vmem [shape: f32[2,1,16], index: 5, kind: input, shape index: {}]
  %s6 = inlined_call_operand.vmem [shape: bf16[2,3,64,64], index: 6, kind: input, shape index: {}]
  %s7 = inlined_call_operand.vmem [shape: f32[2,3,1,64], index: 7, kind: input, shape index: {}]
  %s8 = inlined_call_operand.vmem [shape: bf16[2,4,16,64], index: 8, kind: input, shape index: {}]
  %s9 = inlined_call_operand.vmem [shape: f32[2,1,64], index: 9, kind: input, shape index: {}]
  %s10 = inlined_call_operand.vmem [shape: f32[2,4,1,64], index: 10, kind: input, shape index: {}]
  %s11 = inlined_call_operand.vmem [shape: bf16[2,64,128], index: 11, kind: input, shape index: {}]
  %s12 = inlined_call_operand.vmem [shape: f32[2,1,128], index: 12, kind: input, shape index: {}]
  %s13 = inlined_call_operand.vmem [shape: bf16[2,128,64], index: 13, kind: input, shape index: {}]
  %s14 = inlined_call_operand.vmem [shape: f32[2,1,64], index: 14, kind: input, shape index: {}]
  %s15 = inlined_call_operand.vmem [shape: bf16[64,256], index: 15, kind: input, shape index: {}]
  %s16 = inlined_call_operand.vmem [shape: f32[3,1,256], index: 16, kind: input, shape index: {}]
  %s17 = inlined_call_operand.vmem [shape: bf16[256,2], index: 17, kind: input, shape index: {}]
  %s18 = inlined_call_operand.vmem [shape: f32[1,2], index: 18, kind: input, shape index: {}]
  %s19 = inlined_call_operand.hbm [shape: f32[2,2], index: 19, kind: output, shape index: {}]
  %s20 = sld [smem:[#allocation0]]
  $region86: #{gait_graph_net_forward.1} parent=0
    _
  %s22 = ssub.s32 1, %s20
  %s23 = scalar_select 0, %s22, %s20
  $region1: #{gait_graph_net_forward.1} parent=0
    #allocation2 [shape = 'u8[1024]{0}', space=vmem, size = 0x400, scoped, tag = 'output window, operand 0, single buffered']
    #allocation3 [shape = 's32[1]{0}', space=sflag, size = 0x4, scoped, tag = 'scoped memory for gait_graph_net_forward.1']
    %24 = vsyncpa [#allocation3], 0
    // Predicated region
    $region2: #{gait_graph_net_forward.1} parent=1 // pred_check
      _
    $region3: #{gait_graph_net_forward.1} parent=1 // pred_check_branch
      %26 = sbr.rel (0) target = $region5
    $region4: #{gait_graph_net_forward.1} parent=1 // pred_region
      _
    $region5: #{gait_graph_net_forward.1} parent=1 // pred_fallthru
      _
    // Predicated region
    $region6: #{gait_graph_net_forward.1} parent=1 // pred_check
      _
    $region7: #{gait_graph_net_forward.1} parent=1 // pred_check_branch
      %28 = sbr.rel (0) target = $region9
    $region8: #{gait_graph_net_forward.1} parent=1 // pred_region
      _
    $region9: #{gait_graph_net_forward.1} parent=1 // pred_fallthru
      _
    // Predicated region
    $region10: #{gait_graph_net_forward.1} parent=1 // pred_check
      _
    $region11: #{gait_graph_net_forward.1} parent=1 // pred_check_branch
      %30 = sbr.rel (0) target = $region13
    $region12: #{gait_graph_net_forward.1} parent=1 // pred_region
      _
    $region13: #{gait_graph_net_forward.1} parent=1 // pred_fallthru
      _
    // Predicated region
    $region14: #{gait_graph_net_forward.1} parent=1 // pred_check
      _
    $region15: #{gait_graph_net_forward.1} parent=1 // pred_check_branch
      %32 = sbr.rel (0) target = $region17
    $region16: #{gait_graph_net_forward.1} parent=1 // pred_region
      _
    $region17: #{gait_graph_net_forward.1} parent=1 // pred_fallthru
      _
    // Predicated region
    $region18: #{gait_graph_net_forward.1} parent=1 // pred_check
      _
    $region19: #{gait_graph_net_forward.1} parent=1 // pred_check_branch
      %34 = sbr.rel (0) target = $region21
    $region20: #{gait_graph_net_forward.1} parent=1 // pred_region
      _
    $region21: #{gait_graph_net_forward.1} parent=1 // pred_fallthru
      _
    // Predicated region
    $region22: #{gait_graph_net_forward.1} parent=1 // pred_check
      _
    $region23: #{gait_graph_net_forward.1} parent=1 // pred_check_branch
      %36 = sbr.rel (0) target = $region25
    $region24: #{gait_graph_net_forward.1} parent=1 // pred_region
      _
    $region25: #{gait_graph_net_forward.1} parent=1 // pred_fallthru
      _
    // Predicated region
    $region26: #{gait_graph_net_forward.1} parent=1 // pred_check
      _
    $region27: #{gait_graph_net_forward.1} parent=1 // pred_check_branch
      %38 = sbr.rel (0) target = $region29
    $region28: #{gait_graph_net_forward.1} parent=1 // pred_region
      _
    $region29: #{gait_graph_net_forward.1} parent=1 // pred_fallthru
      _
    // Predicated region
    $region30: #{gait_graph_net_forward.1} parent=1 // pred_check
      _
    $region31: #{gait_graph_net_forward.1} parent=1 // pred_check_branch
      %40 = sbr.rel (0) target = $region33
    $region32: #{gait_graph_net_forward.1} parent=1 // pred_region
      _
    $region33: #{gait_graph_net_forward.1} parent=1 // pred_fallthru
      _
    // Predicated region
    $region34: #{gait_graph_net_forward.1} parent=1 // pred_check
      _
    $region35: #{gait_graph_net_forward.1} parent=1 // pred_check_branch
      %42 = sbr.rel (0) target = $region37
    $region36: #{gait_graph_net_forward.1} parent=1 // pred_region
      _
    $region37: #{gait_graph_net_forward.1} parent=1 // pred_fallthru
      _
    // Predicated region
    $region38: #{gait_graph_net_forward.1} parent=1 // pred_check
      _
    $region39: #{gait_graph_net_forward.1} parent=1 // pred_check_branch
      %44 = sbr.rel (0) target = $region41
    $region40: #{gait_graph_net_forward.1} parent=1 // pred_region
      _
    $region41: #{gait_graph_net_forward.1} parent=1 // pred_fallthru
      _
    // Predicated region
    $region42: #{gait_graph_net_forward.1} parent=1 // pred_check
      _
    $region43: #{gait_graph_net_forward.1} parent=1 // pred_check_branch
      %46 = sbr.rel (0) target = $region45
    $region44: #{gait_graph_net_forward.1} parent=1 // pred_region
      _
    $region45: #{gait_graph_net_forward.1} parent=1 // pred_fallthru
      _
    // Predicated region
    $region46: #{gait_graph_net_forward.1} parent=1 // pred_check
      _
    $region47: #{gait_graph_net_forward.1} parent=1 // pred_check_branch
      %48 = sbr.rel (0) target = $region49
    $region48: #{gait_graph_net_forward.1} parent=1 // pred_region
      _
    $region49: #{gait_graph_net_forward.1} parent=1 // pred_fallthru
      _
    // Predicated region
    $region50: #{gait_graph_net_forward.1} parent=1 // pred_check
      _
    $region51: #{gait_graph_net_forward.1} parent=1 // pred_check_branch
      %50 = sbr.rel (0) target = $region53
    $region52: #{gait_graph_net_forward.1} parent=1 // pred_region
      _
    $region53: #{gait_graph_net_forward.1} parent=1 // pred_fallthru
      _
    // Predicated region
    $region54: #{gait_graph_net_forward.1} parent=1 // pred_check
      _
    $region55: #{gait_graph_net_forward.1} parent=1 // pred_check_branch
      %52 = sbr.rel (0) target = $region57
    $region56: #{gait_graph_net_forward.1} parent=1 // pred_region
      _
    $region57: #{gait_graph_net_forward.1} parent=1 // pred_fallthru
      _
    // Predicated region
    $region58: #{gait_graph_net_forward.1} parent=1 // pred_check
      _
    $region59: #{gait_graph_net_forward.1} parent=1 // pred_check_branch
      %54 = sbr.rel (0) target = $region61
    $region60: #{gait_graph_net_forward.1} parent=1 // pred_region
      _
    $region61: #{gait_graph_net_forward.1} parent=1 // pred_fallthru
      _
    // Predicated region
    $region62: #{gait_graph_net_forward.1} parent=1 // pred_check
      _
    $region63: #{gait_graph_net_forward.1} parent=1 // pred_check_branch
      %56 = sbr.rel (0) target = $region65
    $region64: #{gait_graph_net_forward.1} parent=1 // pred_region
      _
    $region65: #{gait_graph_net_forward.1} parent=1 // pred_fallthru
      _
    // Predicated region
    $region66: #{gait_graph_net_forward.1} parent=1 // pred_check
      _
    $region67: #{gait_graph_net_forward.1} parent=1 // pred_check_branch
      %58 = sbr.rel (0) target = $region69
    $region68: #{gait_graph_net_forward.1} parent=1 // pred_region
      _
    $region69: #{gait_graph_net_forward.1} parent=1 // pred_fallthru
      _
    // Predicated region
    $region70: #{gait_graph_net_forward.1} parent=1 // pred_check
      _
    $region71: #{gait_graph_net_forward.1} parent=1 // pred_check_branch
      %60 = sbr.rel (0) target = $region73
    $region72: #{gait_graph_net_forward.1} parent=1 // pred_region
      _
    $region73: #{gait_graph_net_forward.1} parent=1 // pred_fallthru
      _
    // Predicated region
    $region74: #{gait_graph_net_forward.1} parent=1 // pred_check
      _
    $region75: #{gait_graph_net_forward.1} parent=1 // pred_check_branch
      %62 = sbr.rel (0) target = $region77
    $region76: #{gait_graph_net_forward.1} parent=1 // pred_region
      _
    $region77: #{gait_graph_net_forward.1} parent=1 // pred_fallthru
      _
    %v64 = vld [vmem:[%s0] sm:$0xff]
    %v65 = vld [vmem:[%s0 + $0x8] sm:$0xff]
    %v66 = vld [vmem:[%s0 + $0x10] sm:$0xff]
    %v67 = vld [vmem:[%s0 + $0x18] sm:$0xff]
    %v68 = vld [vmem:[%s0 + $0x20] sm:$0xff]
    %v69 = vld [vmem:[%s0 + $0x28] sm:$0xff]
    %v70 = vld [vmem:[%s0 + $0x30] sm:$0xff]
    %v71 = vld [vmem:[%s0 + $0x38] sm:$0xff]
    %v72 = vld [vmem:[%s0 + $0x40] sm:$0xff]
    %v73 = vld [vmem:[%s0 + $0x48] sm:$0xff]
    %v74 = vld [vmem:[%s0 + $0x50] sm:$0xff]
    %v75 = vld [vmem:[%s0 + $0x58] sm:$0xff]
    %v76 = vld [vmem:[%s0 + $0x60] sm:$0xff]
    %v77 = vld [vmem:[%s0 + $0x68] sm:$0xff]
    %v78 = vld [vmem:[%s0 + $0x70] sm:$0xff]
    %v79 = vld [vmem:[%s0 + $0x78] sm:$0xff]
    %v80 = vld [vmem:[%s1] sm:$0xf]
    %v81 = vld [vmem:[%s1 + $0x4] sm:$0xf]
    %v82 = vld [vmem:[%s1 + $0x8] sm:$0xf]
    %v83 = vld [vmem:[%s1 + $0xc] sm:$0xf]
    %v84 = vld [vmem:[%s1 + $0x10] sm:$0xf]
    %v85 = vld [vmem:[%s1 + $0x14] sm:$0xf]
    %v86 = vld [vmem:[%s1 + $0x18] sm:$0xf]
    %v87 = vld [vmem:[%s1 + $0x1c] sm:$0xf]
    %v88 = vld [vmem:[%s1 + $0x20] sm:$0xf]
    %v89 = vld [vmem:[%s1 + $0x24] sm:$0xf]
    %v90 = vld [vmem:[%s1 + $0x28] sm:$0xf]
    %v91 = vld [vmem:[%s1 + $0x2c] sm:$0xf]
    %v92 = vld [vmem:[%s1 + $0x30] sm:$0xf]
    %v93 = vld [vmem:[%s1 + $0x34] sm:$0xf]
    %v94 = vld [vmem:[%s1 + $0x38] sm:$0xf]
    %v95 = vld [vmem:[%s1 + $0x3c] sm:$0xf]
    %v96 = vld [vmem:[%s4] sm:$0xf]
    %v97 = vld [vmem:[%s4 + $0x4] sm:$0xf]
    %v98 = vpack.c.bf16 %v65, %v64
    %v99 = vpack.c.bf16 %v67, %v66
    %v100 = vpack.c.bf16 %v69, %v68
    %v101 = vpack.c.bf16 %v71, %v70
    %v102 = vpack.c.bf16 %v73, %v72
    %v103 = vpack.c.bf16 %v75, %v74
    %v104 = vpack.c.bf16 %v77, %v76
    %v105 = vpack.c.bf16 %v79, %v78
    %v108 = vunpack.c.l.b16 %v96
    %v109 = vunpack.c.l.b16 %v97
    %v110 = vpack.c.b16 %v109, %v108
    %vm112 = vcmask 130048
    %v114 = vsel %vm112, %v98, 0
    %v117 = vsel %vm112, %v99, 0
    %v120 = vsel %vm112, %v100, 0
    %v123 = vsel %vm112, %v101, 0
    %v126 = vsel %vm112, %v102, 0
    %v129 = vsel %vm112, %v103, 0
    %v132 = vsel %vm112, %v104, 0
    %v135 = vsel %vm112, %v105, 0
    %137 = vmatprep.subr.bf16.mxu0 0
    %138 = vmatpush1.bf16.msra.mxu0 0
    %139 = vmatprep.subr.bf16.mxu0 0
    %140 = vmatpush1.bf16.msra.mxu0 0
    %141 = vmatprep.subr.bf16.mxu0 0
    %142 = vmatpush1.bf16.msra.mxu0 0
    %143 = vmatprep.subr.bf16.mxu0 0
    %144 = vmatpush1.bf16.msra.mxu0 0
    %145 = vmatprep.subr.bf16.mxu0 0
    %146 = vmatpush1.bf16.msra.mxu0 0
    %147 = vmatprep.subr.bf16.mxu0 0
    %148 = vmatpush1.bf16.msra.mxu0 0
    %149 = vmatprep.subr.bf16.mxu0 0
    %150 = vmatpush1.bf16.msra.mxu0 0
    %151 = vmatprep.subr.bf16.mxu0 0
    %152 = vmatpush1.bf16.msra.mxu0 %v110
    %153 = vmatprep.subr.bf16.mxu0 0
    %154 = vmatpush2.bf16.msra.mxu0 0
    %155 = vmatprep.subr.bf16.mxu0 0
    %156 = vmatpush2.bf16.msra.mxu0 0
    %157 = vmatprep.subr.bf16.mxu0 0
    %158 = vmatpush2.bf16.msra.mxu0 0
    %159 = vmatprep.subr.bf16.mxu0 0
    %160 = vmatpush2.bf16.msra.mxu0 0
    %161 = vmatprep.subr.bf16.mxu0 0
    %162 = vmatpush2.bf16.msra.mxu0 0
    %163 = vmatprep.subr.bf16.mxu0 0
    %164 = vmatpush2.bf16.msra.mxu0 0
    %165 = vmatprep.subr.bf16.mxu0 0
    %166 = vmatpush2.bf16.msra.mxu0 0
    %167 = vmatprep.subr.bf16.mxu0 0
    %168 = vmatpush2.bf16.msra.mxu0 0
    %169 = vmatprep.mubr.bf16.mxu0 0
    %170 = vmatmul.mubr.bf16.gmra.mxu0 %v114
    %v171 = vpop.f32.mrf.mxu0
    %v172 = vadd.f32 0.0, %v171
    %v173 = vpop.f32.mrf.mxu0
    %v174 = vpop.f32.mrf.mxu0
    %v175 = vadd.f32 0.0, %v174
    %v176 = vpop.f32.mrf.mxu0
    %177 = vmatprep.mubr.bf16.mxu0 0
    %178 = vmatmul.mubr.bf16.gmra.mxu0 %v117
    %v179 = vpop.f32.mrf.mxu0
    %v180 = vadd.f32 0.0, %v179
    %v181 = vpop.f32.mrf.mxu0
    %v182 = vpop.f32.mrf.mxu0
    %v183 = vadd.f32 0.0, %v182
    %v184 = vpop.f32.mrf.mxu0
    %185 = vmatprep.mubr.bf16.mxu0 0
    %186 = vmatmul.mubr.bf16.gmra.mxu0 %v120
    %v187 = vpop.f32.mrf.mxu0
    %v188 = vadd.f32 0.0, %v187
    %v189 = vpop.f32.mrf.mxu0
    %v190 = vpop.f32.mrf.mxu0
    %v191 = vadd.f32 0.0, %v190
    %v192 = vpop.f32.mrf.mxu0
    %193 = vmatprep.mubr.bf16.mxu0 0
    %194 = vmatmul.mubr.bf16.gmra.mxu0 %v123
    %v195 = vpop.f32.mrf.mxu0
    %v196 = vadd.f32 0.0, %v195
    %v197 = vpop.f32.mrf.mxu0
    %v198 = vpop.f32.mrf.mxu0
    %v199 = vadd.f32 0.0, %v198
    %v200 = vpop.f32.mrf.mxu0
    %201 = vmatprep.mubr.bf16.mxu0 0
    %202 = vmatmul.mubr.bf16.gmra.mxu0 %v126
    %v203 = vpop.f32.mrf.mxu0
    %v204 = vadd.f32 0.0, %v203
    %v205 = vpop.f32.mrf.mxu0
    %v206 = vpop.f32.mrf.mxu0
    %v207 = vadd.f32 0.0, %v206
    %v208 = vpop.f32.mrf.mxu0
    %209 = vmatprep.mubr.bf16.mxu0 0
    %210 = vmatmul.mubr.bf16.gmra.mxu0 %v129
    %v211 = vpop.f32.mrf.mxu0
    %v212 = vadd.f32 0.0, %v211
    %v213 = vpop.f32.mrf.mxu0
    %v214 = vpop.f32.mrf.mxu0
    %v215 = vadd.f32 0.0, %v214
    %v216 = vpop.f32.mrf.mxu0
    %217 = vmatprep.mubr.bf16.mxu0 0
    %218 = vmatmul.mubr.bf16.gmra.mxu0 %v132
    %v219 = vpop.f32.mrf.mxu0
    %v220 = vadd.f32 0.0, %v219
    %v221 = vpop.f32.mrf.mxu0
    %v222 = vpop.f32.mrf.mxu0
    %v223 = vadd.f32 0.0, %v222
    %v224 = vpop.f32.mrf.mxu0
    %225 = vmatprep.mubr.bf16.mxu0 0
    %226 = vmatmul.mubr.bf16.gmra.mxu0 %v135
    %v227 = vpop.f32.mrf.mxu0
    %v228 = vadd.f32 0.0, %v227
    %v229 = vpop.f32.mrf.mxu0
    %v230 = vpop.f32.mrf.mxu0
    %v231 = vadd.f32 0.0, %v230
    %v232 = vpop.f32.mrf.mxu0
    %233 = vdwg.mxu0
    %v234 = vpack.c.bf16 %v175, %v172
    %v235 = vpack.c.bf16 %v183, %v180
    %v236 = vpack.c.bf16 %v191, %v188
    %v237 = vpack.c.bf16 %v199, %v196
    %v238 = vpack.c.bf16 %v207, %v204
    %v239 = vpack.c.bf16 %v215, %v212
    %v240 = vpack.c.bf16 %v223, %v220
    %v241 = vpack.c.bf16 %v231, %v228
    %v242 = vld [vmem:[%s5] sm:$0x1]
    %v244 = vlaneseq
    %v245 = vshrl.u32 %v244, 7
    %v246 = vsub.s32 0, %v245
    %v247 = vrot.slane %v242, %v246
    %v265 = vunpack.c.l.b16 %v80
    %v266 = vunpack.c.l.b16 %v81
    %v267 = vunpack.c.l.b16 %v82
    %v268 = vunpack.c.l.b16 %v83
    %v269 = vunpack.c.l.b16 %v84
    %v270 = vunpack.c.l.b16 %v85
    %v271 = vunpack.c.l.b16 %v86
    %v272 = vunpack.c.l.b16 %v87
    %v273 = vunpack.c.l.b16 %v88
    %v274 = vunpack.c.l.b16 %v89
    %v275 = vunpack.c.l.b16 %v90
    %v276 = vunpack.c.l.b16 %v91
    %v277 = vunpack.c.l.b16 %v92
    %v278 = vunpack.c.l.b16 %v93
    %v279 = vunpack.c.l.b16 %v94
    %v280 = vunpack.c.l.b16 %v95
    %v281 = vpack.c.b16 %v266, %v265
    %v282 = vpack.c.b16 %v268, %v267
    %v283 = vpack.c.b16 %v270, %v269
    %v284 = vpack.c.b16 %v272, %v271
    %v285 = vpack.c.b16 %v274, %v273
    %v286 = vpack.c.b16 %v276, %v275
    %v287 = vpack.c.b16 %v278, %v277
    %v288 = vpack.c.b16 %v280, %v279
    %297 = vmatprep.subr.bf16.mxu0 0
    %298 = vmatpush1.bf16.msra.mxu0 %v241
    %299 = vmatprep.subr.bf16.mxu0 0
    %300 = vmatpush1.bf16.msra.mxu0 %v240
    %301 = vmatprep.subr.bf16.mxu0 0
    %302 = vmatpush1.bf16.msra.mxu0 %v239
    %303 = vmatprep.subr.bf16.mxu0 0
    %304 = vmatpush1.bf16.msra.mxu0 %v238
    %305 = vmatprep.subr.bf16.mxu0 0
    %306 = vmatpush1.bf16.msra.mxu0 %v237
    %307 = vmatprep.subr.bf16.mxu0 0
    %308 = vmatpush1.bf16.msra.mxu0 %v236
    %309 = vmatprep.subr.bf16.mxu0 0
    %310 = vmatpush1.bf16.msra.mxu0 %v235
    %311 = vmatprep.subr.bf16.mxu0 0
    %312 = vmatpush1.bf16.msra.mxu0 %v234
    %313 = vmatprep.subr.bf16.mxu0 0
    %314 = vmatpush2.bf16.msra.mxu0 0
    %315 = vmatprep.subr.bf16.mxu0 0
    %316 = vmatpush2.bf16.msra.mxu0 0
    %317 = vmatprep.subr.bf16.mxu0 0
    %318 = vmatpush2.bf16.msra.mxu0 0
    %319 = vmatprep.subr.bf16.mxu0 0
    %320 = vmatpush2.bf16.msra.mxu0 0
    %321 = vmatprep.subr.bf16.mxu0 0
    %322 = vmatpush2.bf16.msra.mxu0 0
    %323 = vmatprep.subr.bf16.mxu0 0
    %324 = vmatpush2.bf16.msra.mxu0 0
    %325 = vmatprep.subr.bf16.mxu0 0
    %326 = vmatpush2.bf16.msra.mxu0 0
    %327 = vmatprep.subr.bf16.mxu0 0
    %328 = vmatpush2.bf16.msra.mxu0 0
    %329 = vmatprep.mubr.bf16.mxu0 0
    %330 = vmatmul.mubr.bf16.gmra.mxu0 %v281
    %v331 = vpop.f32.mrf.mxu0
    %v332 = vadd.f32 %v247, %v331
    %v333 = vpop.f32.mrf.mxu0
    %v334 = vpop.f32.mrf.mxu0
    %v335 = vadd.f32 %v247, %v334
    %v336 = vpop.f32.mrf.mxu0
    %337 = vmatprep.mubr.bf16.mxu0 0
    %338 = vmatmul.mubr.bf16.gmra.mxu0 %v282
    %v339 = vpop.f32.mrf.mxu0
    %v340 = vadd.f32 %v247, %v339
    %v341 = vpop.f32.mrf.mxu0
    %v342 = vpop.f32.mrf.mxu0
    %v343 = vadd.f32 %v247, %v342
    %v344 = vpop.f32.mrf.mxu0
    %345 = vmatprep.mubr.bf16.mxu0 0
    %346 = vmatmul.mubr.bf16.gmra.mxu0 %v283
    %v347 = vpop.f32.mrf.mxu0
    %v348 = vadd.f32 %v247, %v347
    %v349 = vpop.f32.mrf.mxu0
    %v350 = vpop.f32.mrf.mxu0
    %v351 = vadd.f32 %v247, %v350
    %v352 = vpop.f32.mrf.mxu0
    %353 = vmatprep.mubr.bf16.mxu0 0
    %354 = vmatmul.mubr.bf16.gmra.mxu0 %v284
    %v355 = vpop.f32.mrf.mxu0
    %v356 = vadd.f32 %v247, %v355
    %v357 = vpop.f32.mrf.mxu0
    %v358 = vpop.f32.mrf.mxu0
    %v359 = vadd.f32 %v247, %v358
    %v360 = vpop.f32.mrf.mxu0
    %361 = vmatprep.mubr.bf16.mxu0 0
    %362 = vmatmul.mubr.bf16.gmra.mxu0 %v285
    %v363 = vpop.f32.mrf.mxu0
    %v364 = vadd.f32 %v247, %v363
    %v365 = vpop.f32.mrf.mxu0
    %v366 = vpop.f32.mrf.mxu0
    %v367 = vadd.f32 %v247, %v366
    %v368 = vpop.f32.mrf.mxu0
    %369 = vmatprep.mubr.bf16.mxu0 0
    %370 = vmatmul.mubr.bf16.gmra.mxu0 %v286
    %v371 = vpop.f32.mrf.mxu0
    %v372 = vadd.f32 %v247, %v371
    %v373 = vpop.f32.mrf.mxu0
    %v374 = vpop.f32.mrf.mxu0
    %v375 = vadd.f32 %v247, %v374
    %v376 = vpop.f32.mrf.mxu0
    %377 = vmatprep.mubr.bf16.mxu0 0
    %378 = vmatmul.mubr.bf16.gmra.mxu0 %v287
    %v379 = vpop.f32.mrf.mxu0
    %v380 = vadd.f32 %v247, %v379
    %v381 = vpop.f32.mrf.mxu0
    %v382 = vpop.f32.mrf.mxu0
    %v383 = vadd.f32 %v247, %v382
    %v384 = vpop.f32.mrf.mxu0
    %385 = vmatprep.mubr.bf16.mxu0 0
    %386 = vmatmul.mubr.bf16.gmra.mxu0 %v288
    %v387 = vpop.f32.mrf.mxu0
    %v388 = vadd.f32 %v247, %v387
    %v389 = vpop.f32.mrf.mxu0
    %v390 = vpop.f32.mrf.mxu0
    %v391 = vadd.f32 %v247, %v390
    %v392 = vpop.f32.mrf.mxu0
    %393 = vdwg.mxu0
    %v394 = vmax.f32 %v332, 0.0
    %v395 = vmax.f32 %v335, 0.0
    %v396 = vmax.f32 %v340, 0.0
    %v397 = vmax.f32 %v343, 0.0
    %v398 = vmax.f32 %v348, 0.0
    %v399 = vmax.f32 %v351, 0.0
    %v400 = vmax.f32 %v356, 0.0
    %v401 = vmax.f32 %v359, 0.0
    %v402 = vmax.f32 %v364, 0.0
    %v403 = vmax.f32 %v367, 0.0
    %v404 = vmax.f32 %v372, 0.0
    %v405 = vmax.f32 %v375, 0.0
    %v406 = vmax.f32 %v380, 0.0
    %v407 = vmax.f32 %v383, 0.0
    %v408 = vmax.f32 %v388, 0.0
    %v409 = vmax.f32 %v391, 0.0
    %v410 = vadd.f32 %v394, %v64
    %v411 = vadd.f32 %v395, %v65
    %v412 = vadd.f32 %v396, %v66
    %v413 = vadd.f32 %v397, %v67
    %v414 = vadd.f32 %v398, %v68
    %v415 = vadd.f32 %v399, %v69
    %v416 = vadd.f32 %v400, %v70
    %v417 = vadd.f32 %v401, %v71
    %v418 = vadd.f32 %v402, %v72
    %v419 = vadd.f32 %v403, %v73
    %v420 = vadd.f32 %v404, %v74
    %v421 = vadd.f32 %v405, %v75
    %v422 = vadd.f32 %v406, %v76
    %v423 = vadd.f32 %v407, %v77
    %v424 = vadd.f32 %v408, %v78
    %v425 = vadd.f32 %v409, %v79
    %v426 = vsel %vm112, %v410, 0.0
    %v427 = vrot.slane %v426, 4
    %v428 = vadd.f32 %v426, %v427
    %v429 = vrot.slane %v428, 2
    %v430 = vadd.f32 %v428, %v429
    %v431 = vrot.slane %v430, 1
    %v432 = vadd.f32 %v430, %v431
    %v433 = vsel %vm112, %v411, 0.0
    %v434 = vrot.slane %v433, 4
    %v435 = vadd.f32 %v433, %v434
    %v436 = vrot.slane %v435, 2
    %v437 = vadd.f32 %v435, %v436
    %v438 = vrot.slane %v437, 1
    %v439 = vadd.f32 %v437, %v438
    %v440 = vsel %vm112, %v412, 0.0
    %v441 = vrot.slane %v440, 4
    %v442 = vadd.f32 %v440, %v441
    %v443 = vrot.slane %v442, 2
    %v444 = vadd.f32 %v442, %v443
    %v445 = vrot.slane %v444, 1
    %v446 = vadd.f32 %v444, %v445
    %v447 = vsel %vm112, %v413, 0.0
    %v448 = vrot.slane %v447, 4
    %v449 = vadd.f32 %v447, %v448
    %v450 = vrot.slane %v449, 2
    %v451 = vadd.f32 %v449, %v450
    %v452 = vrot.slane %v451, 1
    %v453 = vadd.f32 %v451, %v452
    %v454 = vsel %vm112, %v414, 0.0
    %v455 = vrot.slane %v454, 4
    %v456 = vadd.f32 %v454, %v455
    %v457 = vrot.slane %v456, 2
    %v458 = vadd.f32 %v456, %v457
    %v459 = vrot.slane %v458, 1
    %v460 = vadd.f32 %v458, %v459
    %v461 = vsel %vm112, %v415, 0.0
    %v462 = vrot.slane %v461, 4
    %v463 = vadd.f32 %v461, %v462
    %v464 = vrot.slane %v463, 2
    %v465 = vadd.f32 %v463, %v464
    %v466 = vrot.slane %v465, 1
    %v467 = vadd.f32 %v465, %v466
    %v468 = vsel %vm112, %v416, 0.0
    %v469 = vrot.slane %v468, 4
    %v470 = vadd.f32 %v468, %v469
    %v471 = vrot.slane %v470, 2
    %v472 = vadd.f32 %v470, %v471
    %v473 = vrot.slane %v472, 1
    %v474 = vadd.f32 %v472, %v473
    %v475 = vsel %vm112, %v417, 0.0
    %v476 = vrot.slane %v475, 4
    %v477 = vadd.f32 %v475, %v476
    %v478 = vrot.slane %v477, 2
    %v479 = vadd.f32 %v477, %v478
    %v480 = vrot.slane %v479, 1
    %v481 = vadd.f32 %v479, %v480
    %v482 = vsel %vm112, %v418, 0.0
    %v483 = vrot.slane %v482, 4
    %v484 = vadd.f32 %v482, %v483
    %v485 = vrot.slane %v484, 2
    %v486 = vadd.f32 %v484, %v485
    %v487 = vrot.slane %v486, 1
    %v488 = vadd.f32 %v486, %v487
    %v489 = vsel %vm112, %v419, 0.0
    %v490 = vrot.slane %v489, 4
    %v491 = vadd.f32 %v489, %v490
    %v492 = vrot.slane %v491, 2
    %v493 = vadd.f32 %v491, %v492
    %v494 = vrot.slane %v493, 1
    %v495 = vadd.f32 %v493, %v494
    %v496 = vsel %vm112, %v420, 0.0
    %v497 = vrot.slane %v496, 4
    %v498 = vadd.f32 %v496, %v497
    %v499 = vrot.slane %v498, 2
    %v500 = vadd.f32 %v498, %v499
    %v501 = vrot.slane %v500, 1
    %v502 = vadd.f32 %v500, %v501
    %v503 = vsel %vm112, %v421, 0.0
    %v504 = vrot.slane %v503, 4
    %v505 = vadd.f32 %v503, %v504
    %v506 = vrot.slane %v505, 2
    %v507 = vadd.f32 %v505, %v506
    %v508 = vrot.slane %v507, 1
    %v509 = vadd.f32 %v507, %v508
    %v510 = vsel %vm112, %v422, 0.0
    %v511 = vrot.slane %v510, 4
    %v512 = vadd.f32 %v510, %v511
    %v513 = vrot.slane %v512, 2
    %v514 = vadd.f32 %v512, %v513
    %v515 = vrot.slane %v514, 1
    %v516 = vadd.f32 %v514, %v515
    %v517 = vsel %vm112, %v423, 0.0
    %v518 = vrot.slane %v517, 4
    %v519 = vadd.f32 %v517, %v518
    %v520 = vrot.slane %v519, 2
    %v521 = vadd.f32 %v519, %v520
    %v522 = vrot.slane %v521, 1
    %v523 = vadd.f32 %v521, %v522
    %v524 = vsel %vm112, %v424, 0.0
    %v525 = vrot.slane %v524, 4
    %v526 = vadd.f32 %v524, %v525
    %v527 = vrot.slane %v526, 2
    %v528 = vadd.f32 %v526, %v527
    %v529 = vrot.slane %v528, 1
    %v530 = vadd.f32 %v528, %v529
    %v531 = vsel %vm112, %v425, 0.0
    %v532 = vrot.slane %v531, 4
    %v533 = vadd.f32 %v531, %v532
    %v534 = vrot.slane %v533, 2
    %v535 = vadd.f32 %v533, %v534
    %v536 = vrot.slane %v535, 1
    %v537 = vadd.f32 %v535, %v536
    %v538 = vrcp.pop 8.0
    %v539 = vmul.f32 %v432, %v538
    %v540 = vmul.f32 %v439, %v538
    %v541 = vmul.f32 %v446, %v538
    %v542 = vmul.f32 %v453, %v538
    %v543 = vmul.f32 %v460, %v538
    %v544 = vmul.f32 %v467, %v538
    %v545 = vmul.f32 %v474, %v538
    %v546 = vmul.f32 %v481, %v538
    %v547 = vmul.f32 %v488, %v538
    %v548 = vmul.f32 %v495, %v538
    %v549 = vmul.f32 %v502, %v538
    %v550 = vmul.f32 %v509, %v538
    %v551 = vmul.f32 %v516, %v538
    %v552 = vmul.f32 %v523, %v538
    %v553 = vmul.f32 %v530, %v538
    %v554 = vmul.f32 %v537, %v538
    %v555 = vsel %vm112, %v410, -inf
    %v556 = vrot.slane %v555, 4
    %v557 = vmax.f32 %v555, %v556
    %v558 = vrot.slane %v557, 2
    %v559 = vmax.f32 %v557, %v558
    %v560 = vrot.slane %v559, 1
    %v561 = vmax.f32 %v559, %v560
    %v562 = vsel %vm112, %v411, -inf
    %v563 = vrot.slane %v562, 4
    %v564 = vmax.f32 %v562, %v563
    %v565 = vrot.slane %v564, 2
    %v566 = vmax.f32 %v564, %v565
    %v567 = vrot.slane %v566, 1
    %v568 = vmax.f32 %v566, %v567
    %v569 = vsel %vm112, %v412, -inf
    %v570 = vrot.slane %v569, 4
    %v571 = vmax.f32 %v569, %v570
    %v572 = vrot.slane %v571, 2
    %v573 = vmax.f32 %v571, %v572
    %v574 = vrot.slane %v573, 1
    %v575 = vmax.f32 %v573, %v574
    %v576 = vsel %vm112, %v413, -inf
    %v577 = vrot.slane %v576, 4
    %v578 = vmax.f32 %v576, %v577
    %v579 = vrot.slane %v578, 2
    %v580 = vmax.f32 %v578, %v579
    %v581 = vrot.slane %v580, 1
    %v582 = vmax.f32 %v580, %v581
    %v583 = vsel %vm112, %v414, -inf
    %v584 = vrot.slane %v583, 4
    %v585 = vmax.f32 %v583, %v584
    %v586 = vrot.slane %v585, 2
    %v587 = vmax.f32 %v585, %v586
    %v588 = vrot.slane %v587, 1
    %v589 = vmax.f32 %v587, %v588
    %v590 = vsel %vm112, %v415, -inf
    %v591 = vrot.slane %v590, 4
    %v592 = vmax.f32 %v590, %v591
    %v593 = vrot.slane %v592, 2
    %v594 = vmax.f32 %v592, %v593
    %v595 = vrot.slane %v594, 1
    %v596 = vmax.f32 %v594, %v595
    %v597 = vsel %vm112, %v416, -inf
    %v598 = vrot.slane %v597, 4
    %v599 = vmax.f32 %v597, %v598
    %v600 = vrot.slane %v599, 2
    %v601 = vmax.f32 %v599, %v600
    %v602 = vrot.slane %v601, 1
    %v603 = vmax.f32 %v601, %v602
    %v604 = vsel %vm112, %v417, -inf
    %v605 = vrot.slane %v604, 4
    %v606 = vmax.f32 %v604, %v605
    %v607 = vrot.slane %v606, 2
    %v608 = vmax.f32 %v606, %v607
    %v609 = vrot.slane %v608, 1
    %v610 = vmax.f32 %v608, %v609
    %v611 = vsel %vm112, %v418, -inf
    %v612 = vrot.slane %v611, 4
    %v613 = vmax.f32 %v611, %v612
    %v614 = vrot.slane %v613, 2
    %v615 = vmax.f32 %v613, %v614
    %v616 = vrot.slane %v615, 1
    %v617 = vmax.f32 %v615, %v616
    %v618 = vsel %vm112, %v419, -inf
    %v619 = vrot.slane %v618, 4
    %v620 = vmax.f32 %v618, %v619
    %v621 = vrot.slane %v620, 2
    %v622 = vmax.f32 %v620, %v621
    %v623 = vrot.slane %v622, 1
    %v624 = vmax.f32 %v622, %v623
    %v625 = vsel %vm112, %v420, -inf
    %v626 = vrot.slane %v625, 4
    %v627 = vmax.f32 %v625, %v626
    %v628 = vrot.slane %v627, 2
    %v629 = vmax.f32 %v627, %v628
    %v630 = vrot.slane %v629, 1
    %v631 = vmax.f32 %v629, %v630
    %v632 = vsel %vm112, %v421, -inf
    %v633 = vrot.slane %v632, 4
    %v634 = vmax.f32 %v632, %v633
    %v635 = vrot.slane %v634, 2
    %v636 = vmax.f32 %v634, %v635
    %v637 = vrot.slane %v636, 1
    %v638 = vmax.f32 %v636, %v637
    %v639 = vsel %vm112, %v422, -inf
    %v640 = vrot.slane %v639, 4
    %v641 = vmax.f32 %v639, %v640
    %v642 = vrot.slane %v641, 2
    %v643 = vmax.f32 %v641, %v642
    %v644 = vrot.slane %v643, 1
    %v645 = vmax.f32 %v643, %v644
    %v646 = vsel %vm112, %v423, -inf
    %v647 = vrot.slane %v646, 4
    %v648 = vmax.f32 %v646, %v647
    %v649 = vrot.slane %v648, 2
    %v650 = vmax.f32 %v648, %v649
    %v651 = vrot.slane %v650, 1
    %v652 = vmax.f32 %v650, %v651
    %v653 = vsel %vm112, %v424, -inf
    %v654 = vrot.slane %v653, 4
    %v655 = vmax.f32 %v653, %v654
    %v656 = vrot.slane %v655, 2
    %v657 = vmax.f32 %v655, %v656
    %v658 = vrot.slane %v657, 1
    %v659 = vmax.f32 %v657, %v658
    %v660 = vsel %vm112, %v425, -inf
    %v661 = vrot.slane %v660, 4
    %v662 = vmax.f32 %v660, %v661
    %v663 = vrot.slane %v662, 2
    %v664 = vmax.f32 %v662, %v663
    %v665 = vrot.slane %v664, 1
    %v666 = vmax.f32 %v664, %v665
    %vm683 = vcmask 1041409
    %v684 = vsel %vm683, %v540, %v539
    %vm685 = vcmask 1042434
    %v686 = vsel %vm685, %v541, %v684
    %vm687 = vcmask 1043459
    %v688 = vsel %vm687, %v542, %v686
    %vm689 = vcmask 1044484
    %v690 = vsel %vm689, %v543, %v688
    %vm691 = vcmask 1045509
    %v692 = vsel %vm691, %v544, %v690
    %vm693 = vcmask 1046534
    %v694 = vsel %vm693, %v545, %v692
    %vm695 = vcmask 1047559
    %v696 = vsel %vm695, %v546, %v694
    %v697 = vsel %vm683, %v548, %v547
    %v698 = vsel %vm685, %v549, %v697
    %v699 = vsel %vm687, %v550, %v698
    %v700 = vsel %vm689, %v551, %v699
    %v701 = vsel %vm691, %v552, %v700
    %v702 = vsel %vm693, %v553, %v701
    %v703 = vsel %vm695, %v554, %v702
    %v722 = vsel %vm683, %v568, %v561
    %v723 = vsel %vm685, %v575, %v722
    %v724 = vsel %vm687, %v582, %v723
    %v725 = vsel %vm689, %v589, %v724
    %v726 = vsel %vm691, %v596, %v725
    %v727 = vsel %vm693, %v603, %v726
    %v728 = vsel %vm695, %v610, %v727
    %v729 = vsel %vm683, %v624, %v617
    %v730 = vsel %vm685, %v631, %v729
    %v731 = vsel %vm687, %v638, %v730
    %v732 = vsel %vm689, %v645, %v731
    %v733 = vsel %vm691, %v652, %v732
    %v734 = vsel %vm693, %v659, %v733
    %v735 = vsel %vm695, %v666, %v734
    %736 = vrot.lane.b32.xlu0 %v728, 16
    %v737 = vpop.permute.xlu0 %736
    %738 = vrot.lane.b32.xlu0 %v735, 16
    %v739 = vpop.permute.xlu0 %738
    %v742 = vsel %vm112, %v696, %v737
    %v743 = vsel %vm112, %v703, %v739
    %s744 = scalar_lea.vmem %s4, 8
    %v745 = vld [vmem:[%s744] sm:$0xf]
    %v746 = vld [vmem:[%s744 + $0x4] sm:$0xf]
    %v747 = vpack.c.bf16 %v411, %v410
    %v748 = vpack.c.bf16 %v413, %v412
    %v749 = vpack.c.bf16 %v415, %v414
    %v750 = vpack.c.bf16 %v417, %v416
    %v751 = vpack.c.bf16 %v419, %v418
    %v752 = vpack.c.bf16 %v421, %v420
    %v753 = vpack.c.bf16 %v423, %v422
    %v754 = vpack.c.bf16 %v425, %v424
    %v757 = vunpack.c.l.b16 %v745
    %v758 = vunpack.c.l.b16 %v746
    %v759 = vpack.c.b16 %v758, %v757
    %v762 = vsel %vm112, %v747, 0
    %v765 = vsel %vm112, %v748, 0
    %v768 = vsel %vm112, %v749, 0
    %v771 = vsel %vm112, %v750, 0
    %v774 = vsel %vm112, %v751, 0
    %v777 = vsel %vm112, %v752, 0
    %v780 = vsel %vm112, %v753, 0
    %v783 = vsel %vm112, %v754, 0
    %785 = vmatprep.subr.bf16.mxu0 0
    %786 = vmatpush1.bf16.msra.mxu0 0
    %787 = vmatprep.subr.bf16.mxu0 0
    %788 = vmatpush1.bf16.msra.mxu0 0
    %789 = vmatprep.subr.bf16.mxu0 0
    %790 = vmatpush1.bf16.msra.mxu0 0
    %791 = vmatprep.subr.bf16.mxu0 0
    %792 = vmatpush1.bf16.msra.mxu0 0
    %793 = vmatprep.subr.bf16.mxu0 0
    %794 = vmatpush1.bf16.msra.mxu0 0
    %795 = vmatprep.subr.bf16.mxu0 0
    %796 = vmatpush1.bf16.msra.mxu0 0
    %797 = vmatprep.subr.bf16.mxu0 0
    %798 = vmatpush1.bf16.msra.mxu0 0
    %799 = vmatprep.subr.bf16.mxu0 0
    %800 = vmatpush1.bf16.msra.mxu0 %v759
    %801 = vmatprep.subr.bf16.mxu0 0
    %802 = vmatpush2.bf16.msra.mxu0 0
    %803 = vmatprep.subr.bf16.mxu0 0
    %804 = vmatpush2.bf16.msra.mxu0 0
    %805 = vmatprep.subr.bf16.mxu0 0
    %806 = vmatpush2.bf16.msra.mxu0 0
    %807 = vmatprep.subr.bf16.mxu0 0
    %808 = vmatpush2.bf16.msra.mxu0 0
    %809 = vmatprep.subr.bf16.mxu0 0
    %810 = vmatpush2.bf16.msra.mxu0 0
    %811 = vmatprep.subr.bf16.mxu0 0
    %812 = vmatpush2.bf16.msra.mxu0 0
    %813 = vmatprep.subr.bf16.mxu0 0
    %814 = vmatpush2.bf16.msra.mxu0 0
    %815 = vmatprep.subr.bf16.mxu0 0
    %816 = vmatpush2.bf16.msra.mxu0 0
    %817 = vmatprep.mubr.bf16.mxu0 0
    %818 = vmatmul.mubr.bf16.gmra.mxu0 %v762
    %v819 = vpop.f32.mrf.mxu0
    %v820 = vadd.f32 0.0, %v819
    %v821 = vpop.f32.mrf.mxu0
    %v822 = vpop.f32.mrf.mxu0
    %v823 = vadd.f32 0.0, %v822
    %v824 = vpop.f32.mrf.mxu0
    %825 = vmatprep.mubr.bf16.mxu0 0
    %826 = vmatmul.mubr.bf16.gmra.mxu0 %v765
    %v827 = vpop.f32.mrf.mxu0
    %v828 = vadd.f32 0.0, %v827
    %v829 = vpop.f32.mrf.mxu0
    %v830 = vpop.f32.mrf.mxu0
    %v831 = vadd.f32 0.0, %v830
    %v832 = vpop.f32.mrf.mxu0
    %833 = vmatprep.mubr.bf16.mxu0 0
    %834 = vmatmul.mubr.bf16.gmra.mxu0 %v768
    %v835 = vpop.f32.mrf.mxu0
    %v836 = vadd.f32 0.0, %v835
    %v837 = vpop.f32.mrf.mxu0
    %v838 = vpop.f32.mrf.mxu0
    %v839 = vadd.f32 0.0, %v838
    %v840 = vpop.f32.mrf.mxu0
    %841 = vmatprep.mubr.bf16.mxu0 0
    %842 = vmatmul.mubr.bf16.gmra.mxu0 %v771
    %v843 = vpop.f32.mrf.mxu0
    %v844 = vadd.f32 0.0, %v843
    %v845 = vpop.f32.mrf.mxu0
    %v846 = vpop.f32.mrf.mxu0
    %v847 = vadd.f32 0.0, %v846
    %v848 = vpop.f32.mrf.mxu0
    %849 = vmatprep.mubr.bf16.mxu0 0
    %850 = vmatmul.mubr.bf16.gmra.mxu0 %v774
    %v851 = vpop.f32.mrf.mxu0
    %v852 = vadd.f32 0.0, %v851
    %v853 = vpop.f32.mrf.mxu0
    %v854 = vpop.f32.mrf.mxu0
    %v855 = vadd.f32 0.0, %v854
    %v856 = vpop.f32.mrf.mxu0
    %857 = vmatprep.mubr.bf16.mxu0 0
    %858 = vmatmul.mubr.bf16.gmra.mxu0 %v777
    %v859 = vpop.f32.mrf.mxu0
    %v860 = vadd.f32 0.0, %v859
    %v861 = vpop.f32.mrf.mxu0
    %v862 = vpop.f32.mrf.mxu0
    %v863 = vadd.f32 0.0, %v862
    %v864 = vpop.f32.mrf.mxu0
    %865 = vmatprep.mubr.bf16.mxu0 0
    %866 = vmatmul.mubr.bf16.gmra.mxu0 %v780
    %v867 = vpop.f32.mrf.mxu0
    %v868 = vadd.f32 0.0, %v867
    %v869 = vpop.f32.mrf.mxu0
    %v870 = vpop.f32.mrf.mxu0
    %v871 = vadd.f32 0.0, %v870
    %v872 = vpop.f32.mrf.mxu0
    %873 = vmatprep.mubr.bf16.mxu0 0
    %874 = vmatmul.mubr.bf16.gmra.mxu0 %v783
    %v875 = vpop.f32.mrf.mxu0
    %v876 = vadd.f32 0.0, %v875
    %v877 = vpop.f32.mrf.mxu0
    %v878 = vpop.f32.mrf.mxu0
    %v879 = vadd.f32 0.0, %v878
    %v880 = vpop.f32.mrf.mxu0
    %881 = vdwg.mxu0
    %v882 = vpack.c.bf16 %v823, %v820
    %v883 = vpack.c.bf16 %v831, %v828
    %v884 = vpack.c.bf16 %v839, %v836
    %v885 = vpack.c.bf16 %v847, %v844
    %v886 = vpack.c.bf16 %v855, %v852
    %v887 = vpack.c.bf16 %v863, %v860
    %v888 = vpack.c.bf16 %v871, %v868
    %v889 = vpack.c.bf16 %v879, %v876
    %s890 = scalar_lea.vmem %s5, 1
    %v891 = vld [vmem:[%s890] sm:$0x1]
    %v893 = vlaneseq
    %v894 = vshrl.u32 %v893, 7
    %v895 = vsub.s32 0, %v894
    %v896 = vrot.slane %v891, %v895
    %898 = vmatprep.subr.bf16.mxu0 0
    %899 = vmatpush1.bf16.msra.mxu0 %v889
    %900 = vmatprep.subr.bf16.mxu0 0
    %901 = vmatpush1.bf16.msra.mxu0 %v888
    %902 = vmatprep.subr.bf16.mxu0 0
    %903 = vmatpush1.bf16.msra.mxu0 %v887
    %904 = vmatprep.subr.bf16.mxu0 0
    %905 = vmatpush1.bf16.msra.mxu0 %v886
    %906 = vmatprep.subr.bf16.mxu0 0
    %907 = vmatpush1.bf16.msra.mxu0 %v885
    %908 = vmatprep.subr.bf16.mxu0 0
    %909 = vmatpush1.bf16.msra.mxu0 %v884
    %910 = vmatprep.subr.bf16.mxu0 0
    %911 = vmatpush1.bf16.msra.mxu0 %v883
    %912 = vmatprep.subr.bf16.mxu0 0
    %913 = vmatpush1.bf16.msra.mxu0 %v882
    %914 = vmatprep.subr.bf16.mxu0 0
    %915 = vmatpush2.bf16.msra.mxu0 0
    %916 = vmatprep.subr.bf16.mxu0 0
    %917 = vmatpush2.bf16.msra.mxu0 0
    %918 = vmatprep.subr.bf16.mxu0 0
    %919 = vmatpush2.bf16.msra.mxu0 0
    %920 = vmatprep.subr.bf16.mxu0 0
    %921 = vmatpush2.bf16.msra.mxu0 0
    %922 = vmatprep.subr.bf16.mxu0 0
    %923 = vmatpush2.bf16.msra.mxu0 0
    %924 = vmatprep.subr.bf16.mxu0 0
    %925 = vmatpush2.bf16.msra.mxu0 0
    %926 = vmatprep.subr.bf16.mxu0 0
    %927 = vmatpush2.bf16.msra.mxu0 0
    %928 = vmatprep.subr.bf16.mxu0 0
    %929 = vmatpush2.bf16.msra.mxu0 0
    %930 = vmatprep.mubr.bf16.mxu0 0
    %931 = vmatmul.mubr.bf16.gmra.mxu0 %v281
    %v932 = vpop.f32.mrf.mxu0
    %v933 = vadd.f32 %v896, %v932
    %v934 = vpop.f32.mrf.mxu0
    %v935 = vpop.f32.mrf.mxu0
    %v936 = vadd.f32 %v896, %v935
    %v937 = vpop.f32.mrf.mxu0
    %938 = vmatprep.mubr.bf16.mxu0 0
    %939 = vmatmul.mubr.bf16.gmra.mxu0 %v282
    %v940 = vpop.f32.mrf.mxu0
    %v941 = vadd.f32 %v896, %v940
    %v942 = vpop.f32.mrf.mxu0
    %v943 = vpop.f32.mrf.mxu0
    %v944 = vadd.f32 %v896, %v943
    %v945 = vpop.f32.mrf.mxu0
    %946 = vmatprep.mubr.bf16.mxu0 0
    %947 = vmatmul.mubr.bf16.gmra.mxu0 %v283
    %v948 = vpop.f32.mrf.mxu0
    %v949 = vadd.f32 %v896, %v948
    %v950 = vpop.f32.mrf.mxu0
    %v951 = vpop.f32.mrf.mxu0
    %v952 = vadd.f32 %v896, %v951
    %v953 = vpop.f32.mrf.mxu0
    %954 = vmatprep.mubr.bf16.mxu0 0
    %955 = vmatmul.mubr.bf16.gmra.mxu0 %v284
    %v956 = vpop.f32.mrf.mxu0
    %v957 = vadd.f32 %v896, %v956
    %v958 = vpop.f32.mrf.mxu0
    %v959 = vpop.f32.mrf.mxu0
    %v960 = vadd.f32 %v896, %v959
    %v961 = vpop.f32.mrf.mxu0
    %962 = vmatprep.mubr.bf16.mxu0 0
    %963 = vmatmul.mubr.bf16.gmra.mxu0 %v285
    %v964 = vpop.f32.mrf.mxu0
    %v965 = vadd.f32 %v896, %v964
    %v966 = vpop.f32.mrf.mxu0
    %v967 = vpop.f32.mrf.mxu0
    %v968 = vadd.f32 %v896, %v967
    %v969 = vpop.f32.mrf.mxu0
    %970 = vmatprep.mubr.bf16.mxu0 0
    %971 = vmatmul.mubr.bf16.gmra.mxu0 %v286
    %v972 = vpop.f32.mrf.mxu0
    %v973 = vadd.f32 %v896, %v972
    %v974 = vpop.f32.mrf.mxu0
    %v975 = vpop.f32.mrf.mxu0
    %v976 = vadd.f32 %v896, %v975
    %v977 = vpop.f32.mrf.mxu0
    %978 = vmatprep.mubr.bf16.mxu0 0
    %979 = vmatmul.mubr.bf16.gmra.mxu0 %v287
    %v980 = vpop.f32.mrf.mxu0
    %v981 = vadd.f32 %v896, %v980
    %v982 = vpop.f32.mrf.mxu0
    %v983 = vpop.f32.mrf.mxu0
    %v984 = vadd.f32 %v896, %v983
    %v985 = vpop.f32.mrf.mxu0
    %986 = vmatprep.mubr.bf16.mxu0 0
    %987 = vmatmul.mubr.bf16.gmra.mxu0 %v288
    %v988 = vpop.f32.mrf.mxu0
    %v989 = vadd.f32 %v896, %v988
    %v990 = vpop.f32.mrf.mxu0
    %v991 = vpop.f32.mrf.mxu0
    %v992 = vadd.f32 %v896, %v991
    %v993 = vpop.f32.mrf.mxu0
    %994 = vdwg.mxu0
    %v995 = vmax.f32 %v933, 0.0
    %v996 = vmax.f32 %v936, 0.0
    %v997 = vmax.f32 %v941, 0.0
    %v998 = vmax.f32 %v944, 0.0
    %v999 = vmax.f32 %v949, 0.0
    %v1000 = vmax.f32 %v952, 0.0
    %v1001 = vmax.f32 %v957, 0.0
    %v1002 = vmax.f32 %v960, 0.0
    %v1003 = vmax.f32 %v965, 0.0
    %v1004 = vmax.f32 %v968, 0.0
    %v1005 = vmax.f32 %v973, 0.0
    %v1006 = vmax.f32 %v976, 0.0
    %v1007 = vmax.f32 %v981, 0.0
    %v1008 = vmax.f32 %v984, 0.0
    %v1009 = vmax.f32 %v989, 0.0
    %v1010 = vmax.f32 %v992, 0.0
    %v1011 = vadd.f32 %v995, %v410
    %v1012 = vadd.f32 %v996, %v411
    %v1013 = vadd.f32 %v997, %v412
    %v1014 = vadd.f32 %v998, %v413
    %v1015 = vadd.f32 %v999, %v414
    %v1016 = vadd.f32 %v1000, %v415
    %v1017 = vadd.f32 %v1001, %v416
    %v1018 = vadd.f32 %v1002, %v417
    %v1019 = vadd.f32 %v1003, %v418
    %v1020 = vadd.f32 %v1004, %v419
    %v1021 = vadd.f32 %v1005, %v420
    %v1022 = vadd.f32 %v1006, %v421
    %v1023 = vadd.f32 %v1007, %v422
    %v1024 = vadd.f32 %v1008, %v423
    %v1025 = vadd.f32 %v1009, %v424
    %v1026 = vadd.f32 %v1010, %v425
    %v1027 = vsel %vm112, %v1011, 0.0
    %v1028 = vrot.slane %v1027, 4
    %v1029 = vadd.f32 %v1027, %v1028
    %v1030 = vrot.slane %v1029, 2
    %v1031 = vadd.f32 %v1029, %v1030
    %v1032 = vrot.slane %v1031, 1
    %v1033 = vadd.f32 %v1031, %v1032
    %v1034 = vsel %vm112, %v1012, 0.0
    %v1035 = vrot.slane %v1034, 4
    %v1036 = vadd.f32 %v1034, %v1035
    %v1037 = vrot.slane %v1036, 2
    %v1038 = vadd.f32 %v1036, %v1037
    %v1039 = vrot.slane %v1038, 1
    %v1040 = vadd.f32 %v1038, %v1039
    %v1041 = vsel %vm112, %v1013, 0.0
    %v1042 = vrot.slane %v1041, 4
    %v1043 = vadd.f32 %v1041, %v1042
    %v1044 = vrot.slane %v1043, 2
    %v1045 = vadd.f32 %v1043, %v1044
    %v1046 = vrot.slane %v1045, 1
    %v1047 = vadd.f32 %v1045, %v1046
    %v1048 = vsel %vm112, %v1014, 0.0
    %v1049 = vrot.slane %v1048, 4
    %v1050 = vadd.f32 %v1048, %v1049
    %v1051 = vrot.slane %v1050, 2
    %v1052 = vadd.f32 %v1050, %v1051
    %v1053 = vrot.slane %v1052, 1
    %v1054 = vadd.f32 %v1052, %v1053
    %v1055 = vsel %vm112, %v1015, 0.0
    %v1056 = vrot.slane %v1055, 4
    %v1057 = vadd.f32 %v1055, %v1056
    %v1058 = vrot.slane %v1057, 2
    %v1059 = vadd.f32 %v1057, %v1058
    %v1060 = vrot.slane %v1059, 1
    %v1061 = vadd.f32 %v1059, %v1060
    %v1062 = vsel %vm112, %v1016, 0.0
    %v1063 = vrot.slane %v1062, 4
    %v1064 = vadd.f32 %v1062, %v1063
    %v1065 = vrot.slane %v1064, 2
    %v1066 = vadd.f32 %v1064, %v1065
    %v1067 = vrot.slane %v1066, 1
    %v1068 = vadd.f32 %v1066, %v1067
    %v1069 = vsel %vm112, %v1017, 0.0
    %v1070 = vrot.slane %v1069, 4
    %v1071 = vadd.f32 %v1069, %v1070
    %v1072 = vrot.slane %v1071, 2
    %v1073 = vadd.f32 %v1071, %v1072
    %v1074 = vrot.slane %v1073, 1
    %v1075 = vadd.f32 %v1073, %v1074
    %v1076 = vsel %vm112, %v1018, 0.0
    %v1077 = vrot.slane %v1076, 4
    %v1078 = vadd.f32 %v1076, %v1077
    %v1079 = vrot.slane %v1078, 2
    %v1080 = vadd.f32 %v1078, %v1079
    %v1081 = vrot.slane %v1080, 1
    %v1082 = vadd.f32 %v1080, %v1081
    %v1083 = vsel %vm112, %v1019, 0.0
    %v1084 = vrot.slane %v1083, 4
    %v1085 = vadd.f32 %v1083, %v1084
    %v1086 = vrot.slane %v1085, 2
    %v1087 = vadd.f32 %v1085, %v1086
    %v1088 = vrot.slane %v1087, 1
    %v1089 = vadd.f32 %v1087, %v1088
    %v1090 = vsel %vm112, %v1020, 0.0
    %v1091 = vrot.slane %v1090, 4
    %v1092 = vadd.f32 %v1090, %v1091
    %v1093 = vrot.slane %v1092, 2
    %v1094 = vadd.f32 %v1092, %v1093
    %v1095 = vrot.slane %v1094, 1
    %v1096 = vadd.f32 %v1094, %v1095
    %v1097 = vsel %vm112, %v1021, 0.0
    %v1098 = vrot.slane %v1097, 4
    %v1099 = vadd.f32 %v1097, %v1098
    %v1100 = vrot.slane %v1099, 2
    %v1101 = vadd.f32 %v1099, %v1100
    %v1102 = vrot.slane %v1101, 1
    %v1103 = vadd.f32 %v1101, %v1102
    %v1104 = vsel %vm112, %v1022, 0.0
    %v1105 = vrot.slane %v1104, 4
    %v1106 = vadd.f32 %v1104, %v1105
    %v1107 = vrot.slane %v1106, 2
    %v1108 = vadd.f32 %v1106, %v1107
    %v1109 = vrot.slane %v1108, 1
    %v1110 = vadd.f32 %v1108, %v1109
    %v1111 = vsel %vm112, %v1023, 0.0
    %v1112 = vrot.slane %v1111, 4
    %v1113 = vadd.f32 %v1111, %v1112
    %v1114 = vrot.slane %v1113, 2
    %v1115 = vadd.f32 %v1113, %v1114
    %v1116 = vrot.slane %v1115, 1
    %v1117 = vadd.f32 %v1115, %v1116
    %v1118 = vsel %vm112, %v1024, 0.0
    %v1119 = vrot.slane %v1118, 4
    %v1120 = vadd.f32 %v1118, %v1119
    %v1121 = vrot.slane %v1120, 2
    %v1122 = vadd.f32 %v1120, %v1121
    %v1123 = vrot.slane %v1122, 1
    %v1124 = vadd.f32 %v1122, %v1123
    %v1125 = vsel %vm112, %v1025, 0.0
    %v1126 = vrot.slane %v1125, 4
    %v1127 = vadd.f32 %v1125, %v1126
    %v1128 = vrot.slane %v1127, 2
    %v1129 = vadd.f32 %v1127, %v1128
    %v1130 = vrot.slane %v1129, 1
    %v1131 = vadd.f32 %v1129, %v1130
    %v1132 = vsel %vm112, %v1026, 0.0
    %v1133 = vrot.slane %v1132, 4
    %v1134 = vadd.f32 %v1132, %v1133
    %v1135 = vrot.slane %v1134, 2
    %v1136 = vadd.f32 %v1134, %v1135
    %v1137 = vrot.slane %v1136, 1
    %v1138 = vadd.f32 %v1136, %v1137
    %v1139 = vmul.f32 %v1033, %v538
    %v1140 = vmul.f32 %v1040, %v538
    %v1141 = vmul.f32 %v1047, %v538
    %v1142 = vmul.f32 %v1054, %v538
    %v1143 = vmul.f32 %v1061, %v538
    %v1144 = vmul.f32 %v1068, %v538
    %v1145 = vmul.f32 %v1075, %v538
    %v1146 = vmul.f32 %v1082, %v538
    %v1147 = vmul.f32 %v1089, %v538
    %v1148 = vmul.f32 %v1096, %v538
    %v1149 = vmul.f32 %v1103, %v538
    %v1150 = vmul.f32 %v1110, %v538
    %v1151 = vmul.f32 %v1117, %v538
    %v1152 = vmul.f32 %v1124, %v538
    %v1153 = vmul.f32 %v1131, %v538
    %v1154 = vmul.f32 %v1138, %v538
    %v1155 = vsel %vm112, %v1011, -inf
    %v1156 = vrot.slane %v1155, 4
    %v1157 = vmax.f32 %v1155, %v1156
    %v1158 = vrot.slane %v1157, 2
    %v1159 = vmax.f32 %v1157, %v1158
    %v1160 = vrot.slane %v1159, 1
    %v1161 = vmax.f32 %v1159, %v1160
    %v1162 = vsel %vm112, %v1012, -inf
    %v1163 = vrot.slane %v1162, 4
    %v1164 = vmax.f32 %v1162, %v1163
    %v1165 = vrot.slane %v1164, 2
    %v1166 = vmax.f32 %v1164, %v1165
    %v1167 = vrot.slane %v1166, 1
    %v1168 = vmax.f32 %v1166, %v1167
    %v1169 = vsel %vm112, %v1013, -inf
    %v1170 = vrot.slane %v1169, 4
    %v1171 = vmax.f32 %v1169, %v1170
    %v1172 = vrot.slane %v1171, 2
    %v1173 = vmax.f32 %v1171, %v1172
    %v1174 = vrot.slane %v1173, 1
    %v1175 = vmax.f32 %v1173, %v1174
    %v1176 = vsel %vm112, %v1014, -inf
    %v1177 = vrot.slane %v1176, 4
    %v1178 = vmax.f32 %v1176, %v1177
    %v1179 = vrot.slane %v1178, 2
    %v1180 = vmax.f32 %v1178, %v1179
    %v1181 = vrot.slane %v1180, 1
    %v1182 = vmax.f32 %v1180, %v1181
    %v1183 = vsel %vm112, %v1015, -inf
    %v1184 = vrot.slane %v1183, 4
    %v1185 = vmax.f32 %v1183, %v1184
    %v1186 = vrot.slane %v1185, 2
    %v1187 = vmax.f32 %v1185, %v1186
    %v1188 = vrot.slane %v1187, 1
    %v1189 = vmax.f32 %v1187, %v1188
    %v1190 = vsel %vm112, %v1016, -inf
    %v1191 = vrot.slane %v1190, 4
    %v1192 = vmax.f32 %v1190, %v1191
    %v1193 = vrot.slane %v1192, 2
    %v1194 = vmax.f32 %v1192, %v1193
    %v1195 = vrot.slane %v1194, 1
    %v1196 = vmax.f32 %v1194, %v1195
    %v1197 = vsel %vm112, %v1017, -inf
    %v1198 = vrot.slane %v1197, 4
    %v1199 = vmax.f32 %v1197, %v1198
    %v1200 = vrot.slane %v1199, 2
    %v1201 = vmax.f32 %v1199, %v1200
    %v1202 = vrot.slane %v1201, 1
    %v1203 = vmax.f32 %v1201, %v1202
    %v1204 = vsel %vm112, %v1018, -inf
    %v1205 = vrot.slane %v1204, 4
    %v1206 = vmax.f32 %v1204, %v1205
    %v1207 = vrot.slane %v1206, 2
    %v1208 = vmax.f32 %v1206, %v1207
    %v1209 = vrot.slane %v1208, 1
    %v1210 = vmax.f32 %v1208, %v1209
    %v1211 = vsel %vm112, %v1019, -inf
    %v1212 = vrot.slane %v1211, 4
    %v1213 = vmax.f32 %v1211, %v1212
    %v1214 = vrot.slane %v1213, 2
    %v1215 = vmax.f32 %v1213, %v1214
    %v1216 = vrot.slane %v1215, 1
    %v1217 = vmax.f32 %v1215, %v1216
    %v1218 = vsel %vm112, %v1020, -inf
    %v1219 = vrot.slane %v1218, 4
    %v1220 = vmax.f32 %v1218, %v1219
    %v1221 = vrot.slane %v1220, 2
    %v1222 = vmax.f32 %v1220, %v1221
    %v1223 = vrot.slane %v1222, 1
    %v1224 = vmax.f32 %v1222, %v1223
    %v1225 = vsel %vm112, %v1021, -inf
    %v1226 = vrot.slane %v1225, 4
    %v1227 = vmax.f32 %v1225, %v1226
    %v1228 = vrot.slane %v1227, 2
    %v1229 = vmax.f32 %v1227, %v1228
    %v1230 = vrot.slane %v1229, 1
    %v1231 = vmax.f32 %v1229, %v1230
    %v1232 = vsel %vm112, %v1022, -inf
    %v1233 = vrot.slane %v1232, 4
    %v1234 = vmax.f32 %v1232, %v1233
    %v1235 = vrot.slane %v1234, 2
    %v1236 = vmax.f32 %v1234, %v1235
    %v1237 = vrot.slane %v1236, 1
    %v1238 = vmax.f32 %v1236, %v1237
    %v1239 = vsel %vm112, %v1023, -inf
    %v1240 = vrot.slane %v1239, 4
    %v1241 = vmax.f32 %v1239, %v1240
    %v1242 = vrot.slane %v1241, 2
    %v1243 = vmax.f32 %v1241, %v1242
    %v1244 = vrot.slane %v1243, 1
    %v1245 = vmax.f32 %v1243, %v1244
    %v1246 = vsel %vm112, %v1024, -inf
    %v1247 = vrot.slane %v1246, 4
    %v1248 = vmax.f32 %v1246, %v1247
    %v1249 = vrot.slane %v1248, 2
    %v1250 = vmax.f32 %v1248, %v1249
    %v1251 = vrot.slane %v1250, 1
    %v1252 = vmax.f32 %v1250, %v1251
    %v1253 = vsel %vm112, %v1025, -inf
    %v1254 = vrot.slane %v1253, 4
    %v1255 = vmax.f32 %v1253, %v1254
    %v1256 = vrot.slane %v1255, 2
    %v1257 = vmax.f32 %v1255, %v1256
    %v1258 = vrot.slane %v1257, 1
    %v1259 = vmax.f32 %v1257, %v1258
    %v1260 = vsel %vm112, %v1026, -inf
    %v1261 = vrot.slane %v1260, 4
    %v1262 = vmax.f32 %v1260, %v1261
    %v1263 = vrot.slane %v1262, 2
    %v1264 = vmax.f32 %v1262, %v1263
    %v1265 = vrot.slane %v1264, 1
    %v1266 = vmax.f32 %v1264, %v1265
    %v1283 = vsel %vm683, %v1140, %v1139
    %v1284 = vsel %vm685, %v1141, %v1283
    %v1285 = vsel %vm687, %v1142, %v1284
    %v1286 = vsel %vm689, %v1143, %v1285
    %v1287 = vsel %vm691, %v1144, %v1286
    %v1288 = vsel %vm693, %v1145, %v1287
    %v1289 = vsel %vm695, %v1146, %v1288
    %v1290 = vsel %vm683, %v1148, %v1147
    %v1291 = vsel %vm685, %v1149, %v1290
    %v1292 = vsel %vm687, %v1150, %v1291
    %v1293 = vsel %vm689, %v1151, %v1292
    %v1294 = vsel %vm691, %v1152, %v1293
    %v1295 = vsel %vm693, %v1153, %v1294
    %v1296 = vsel %vm695, %v1154, %v1295
    %v1315 = vsel %vm683, %v1168, %v1161
    %v1316 = vsel %vm685, %v1175, %v1315
    %v1317 = vsel %vm687, %v1182, %v1316
    %v1318 = vsel %vm689, %v1189, %v1317
    %v1319 = vsel %vm691, %v1196, %v1318
    %v1320 = vsel %vm693, %v1203, %v1319
    %v1321 = vsel %vm695, %v1210, %v1320
    %v1322 = vsel %vm683, %v1224, %v1217
    %v1323 = vsel %vm685, %v1231, %v1322
    %v1324 = vsel %vm687, %v1238, %v1323
    %v1325 = vsel %vm689, %v1245, %v1324
    %v1326 = vsel %vm691, %v1252, %v1325
    %v1327 = vsel %vm693, %v1259, %v1326
    %v1328 = vsel %vm695, %v1266, %v1327
    %1329 = vrot.lane.b32.xlu0 %v1321, 16
    %v1330 = vpop.permute.xlu0 %1329
    %1331 = vrot.lane.b32.xlu0 %v1328, 16
    %v1332 = vpop.permute.xlu0 %1331
    %v1335 = vsel %vm112, %v1289, %v1330
    %v1336 = vsel %vm112, %v1296, %v1332
    %1339 = vrot.lane.b32.xlu0 %v1335, 32
    %v1340 = vpop.permute.xlu0 %1339
    %1341 = vrot.lane.b32.xlu0 %v1336, 32
    %v1342 = vpop.permute.xlu0 %1341
    %vm1345 = vcmask 261120
    %v1346 = vsel %vm1345, %v742, %v1340
    %v1347 = vsel %vm1345, %v743, %v1342
    %v1348 = vld [vmem:[%s3] sm:$0xff]
    %v1349 = vld [vmem:[%s3 + $0x8] sm:$0xff]
    %v1350 = vadd.f32 %v1346, %v1348
    %v1351 = vadd.f32 %v1347, %v1349
    %v1352 = vld [vmem:[%s6] sm:$0xf]
    %v1353 = vld [vmem:[%s6 + $0x4] sm:$0xf]
    %v1354 = vld [vmem:[%s6 + $0x8] sm:$0xf]
    %v1355 = vld [vmem:[%s6 + $0xc] sm:$0xf]
    %v1356 = vld [vmem:[%s6 + $0x10] sm:$0xf]
    %v1357 = vld [vmem:[%s6 + $0x14] sm:$0xf]
    %v1358 = vld [vmem:[%s6 + $0x18] sm:$0xf]
    %v1359 = vld [vmem:[%s6 + $0x1c] sm:$0xf]
    %v1360 = vpack.c.bf16 %v1351, %v1350
    %v1361 = vld [vmem:[%s7] sm:$0x1]
    %v1363 = vlaneseq
    %v1364 = vshrl.u32 %v1363, 7
    %v1365 = vsub.s32 0, %v1364
    %v1366 = vrot.slane %v1361, %v1365
    %v1376 = vunpack.c.l.b16 %v1352
    %v1377 = vunpack.c.l.b16 %v1353
    %v1378 = vunpack.c.l.b16 %v1354
    %v1379 = vunpack.c.l.b16 %v1355
    %v1380 = vunpack.c.l.b16 %v1356
    %v1381 = vunpack.c.l.b16 %v1357
    %v1382 = vunpack.c.l.b16 %v1358
    %v1383 = vunpack.c.l.b16 %v1359
    %v1384 = vpack.c.b16 %v1377, %v1376
    %v1385 = vpack.c.b16 %v1379, %v1378
    %v1386 = vpack.c.b16 %v1381, %v1380
    %v1387 = vpack.c.b16 %v1383, %v1382
    %vm1392 = vcmask 523264
    %v1394 = vsel %vm1392, %v1360, 0
    %1396 = vmatprep.subr.bf16.mxu0 0
    %1397 = vmatpush1.bf16.msra.mxu0 0
    %1398 = vmatprep.subr.bf16.mxu0 0
    %1399 = vmatpush1.bf16.msra.mxu0 0
    %1400 = vmatprep.subr.bf16.mxu0 0
    %1401 = vmatpush1.bf16.msra.mxu0 0
    %1402 = vmatprep.subr.bf16.mxu0 0
    %1403 = vmatpush1.bf16.msra.mxu0 0
    %1404 = vmatprep.subr.bf16.mxu0 0
    %1405 = vmatpush1.bf16.msra.mxu0 %v1387
    %1406 = vmatprep.subr.bf16.mxu0 0
    %1407 = vmatpush1.bf16.msra.mxu0 %v1386
    %1408 = vmatprep.subr.bf16.mxu0 0
    %1409 = vmatpush1.bf16.msra.mxu0 %v1385
    %1410 = vmatprep.subr.bf16.mxu0 0
    %1411 = vmatpush1.bf16.msra.mxu0 %v1384
    %1412 = vmatprep.subr.bf16.mxu0 0
    %1413 = vmatpush2.bf16.msra.mxu0 0
    %1414 = vmatprep.subr.bf16.mxu0 0
    %1415 = vmatpush2.bf16.msra.mxu0 0
    %1416 = vmatprep.subr.bf16.mxu0 0
    %1417 = vmatpush2.bf16.msra.mxu0 0
    %1418 = vmatprep.subr.bf16.mxu0 0
    %1419 = vmatpush2.bf16.msra.mxu0 0
    %1420 = vmatprep.subr.bf16.mxu0 0
    %1421 = vmatpush2.bf16.msra.mxu0 0
    %1422 = vmatprep.subr.bf16.mxu0 0
    %1423 = vmatpush2.bf16.msra.mxu0 0
    %1424 = vmatprep.subr.bf16.mxu0 0
    %1425 = vmatpush2.bf16.msra.mxu0 0
    %1426 = vmatprep.subr.bf16.mxu0 0
    %1427 = vmatpush2.bf16.msra.mxu0 0
    %1428 = vmatprep.mubr.bf16.mxu0 0
    %1429 = vmatmul.mubr.bf16.gmra.mxu0 %v1394
    %v1430 = vpop.f32.mrf.mxu0
    %v1431 = vadd.f32 %v1366, %v1430
    %v1432 = vpop.f32.mrf.mxu0
    %v1433 = vpop.f32.mrf.mxu0
    %v1434 = vadd.f32 %v1366, %v1433
    %v1435 = vpop.f32.mrf.mxu0
    %1436 = vdwg.mxu0
    %s1437 = scalar_lea.vmem %s6, 32
    %v1438 = vld [vmem:[%s1437] sm:$0xf]
    %v1439 = vld [vmem:[%s1437 + $0x4] sm:$0xf]
    %v1440 = vld [vmem:[%s1437 + $0x8] sm:$0xf]
    %v1441 = vld [vmem:[%s1437 + $0xc] sm:$0xf]
    %v1442 = vld [vmem:[%s1437 + $0x10] sm:$0xf]
    %v1443 = vld [vmem:[%s1437 + $0x14] sm:$0xf]
    %v1444 = vld [vmem:[%s1437 + $0x18] sm:$0xf]
    %v1445 = vld [vmem:[%s1437 + $0x1c] sm:$0xf]
    %s1446 = scalar_lea.vmem %s7, 1
    %v1447 = vld [vmem:[%s1446] sm:$0x1]
    %v1449 = vlaneseq
    %v1450 = vshrl.u32 %v1449, 7
    %v1451 = vsub.s32 0, %v1450
    %v1452 = vrot.slane %v1447, %v1451
    %v1462 = vunpack.c.l.b16 %v1438
    %v1463 = vunpack.c.l.b16 %v1439
    %v1464 = vunpack.c.l.b16 %v1440
    %v1465 = vunpack.c.l.b16 %v1441
    %v1466 = vunpack.c.l.b16 %v1442
    %v1467 = vunpack.c.l.b16 %v1443
    %v1468 = vunpack.c.l.b16 %v1444
    %v1469 = vunpack.c.l.b16 %v1445
    %v1470 = vpack.c.b16 %v1463, %v1462
    %v1471 = vpack.c.b16 %v1465, %v1464
    %v1472 = vpack.c.b16 %v1467, %v1466
    %v1473 = vpack.c.b16 %v1469, %v1468
    %1478 = vmatprep.subr.bf16.mxu0 0
    %1479 = vmatpush1.bf16.msra.mxu0 0
    %1480 = vmatprep.subr.bf16.mxu0 0
    %1481 = vmatpush1.bf16.msra.mxu0 0
    %1482 = vmatprep.subr.bf16.mxu0 0
    %1483 = vmatpush1.bf16.msra.mxu0 0
    %1484 = vmatprep.subr.bf16.mxu0 0
    %1485 = vmatpush1.bf16.msra.mxu0 0
    %1486 = vmatprep.subr.bf16.mxu0 0
    %1487 = vmatpush1.bf16.msra.mxu0 %v1473
    %1488 = vmatprep.subr.bf16.mxu0 0
    %1489 = vmatpush1.bf16.msra.mxu0 %v1472
    %1490 = vmatprep.subr.bf16.mxu0 0
    %1491 = vmatpush1.bf16.msra.mxu0 %v1471
    %1492 = vmatprep.subr.bf16.mxu0 0
    %1493 = vmatpush1.bf16.msra.mxu0 %v1470
    %1494 = vmatprep.subr.bf16.mxu0 0
    %1495 = vmatpush2.bf16.msra.mxu0 0
    %1496 = vmatprep.subr.bf16.mxu0 0
    %1497 = vmatpush2.bf16.msra.mxu0 0
    %1498 = vmatprep.subr.bf16.mxu0 0
    %1499 = vmatpush2.bf16.msra.mxu0 0
    %1500 = vmatprep.subr.bf16.mxu0 0
    %1501 = vmatpush2.bf16.msra.mxu0 0
    %1502 = vmatprep.subr.bf16.mxu0 0
    %1503 = vmatpush2.bf16.msra.mxu0 0
    %1504 = vmatprep.subr.bf16.mxu0 0
    %1505 = vmatpush2.bf16.msra.mxu0 0
    %1506 = vmatprep.subr.bf16.mxu0 0
    %1507 = vmatpush2.bf16.msra.mxu0 0
    %1508 = vmatprep.subr.bf16.mxu0 0
    %1509 = vmatpush2.bf16.msra.mxu0 0
    %1510 = vmatprep.mubr.bf16.mxu0 0
    %1511 = vmatmul.mubr.bf16.gmra.mxu0 %v1394
    %v1512 = vpop.f32.mrf.mxu0
    %v1513 = vadd.f32 %v1452, %v1512
    %v1514 = vpop.f32.mrf.mxu0
    %v1515 = vpop.f32.mrf.mxu0
    %v1516 = vadd.f32 %v1452, %v1515
    %v1517 = vpop.f32.mrf.mxu0
    %1518 = vdwg.mxu0
    %s1519 = scalar_lea.vmem %s6, 64
    %v1520 = vld [vmem:[%s1519] sm:$0xf]
    %v1521 = vld [vmem:[%s1519 + $0x4] sm:$0xf]
    %v1522 = vld [vmem:[%s1519 + $0x8] sm:$0xf]
    %v1523 = vld [vmem:[%s1519 + $0xc] sm:$0xf]
    %v1524 = vld [vmem:[%s1519 + $0x10] sm:$0xf]
    %v1525 = vld [vmem:[%s1519 + $0x14] sm:$0xf]
    %v1526 = vld [vmem:[%s1519 + $0x18] sm:$0xf]
    %v1527 = vld [vmem:[%s1519 + $0x1c] sm:$0xf]
    %s1528 = scalar_lea.vmem %s7, 2
    %v1529 = vld [vmem:[%s1528] sm:$0x1]
    %v1531 = vlaneseq
    %v1532 = vshrl.u32 %v1531, 7
    %v1533 = vsub.s32 0, %v1532
    %v1534 = vrot.slane %v1529, %v1533
    %v1544 = vunpack.c.l.b16 %v1520
    %v1545 = vunpack.c.l.b16 %v1521
    %v1546 = vunpack.c.l.b16 %v1522
    %v1547 = vunpack.c.l.b16 %v1523
    %v1548 = vunpack.c.l.b16 %v1524
    %v1549 = vunpack.c.l.b16 %v1525
    %v1550 = vunpack.c.l.b16 %v1526
    %v1551 = vunpack.c.l.b16 %v1527
    %v1552 = vpack.c.b16 %v1545, %v1544
    %v1553 = vpack.c.b16 %v1547, %v1546
    %v1554 = vpack.c.b16 %v1549, %v1548
    %v1555 = vpack.c.b16 %v1551, %v1550
    %1560 = vmatprep.subr.bf16.mxu0 0
    %1561 = vmatpush1.bf16.msra.mxu0 0
    %1562 = vmatprep.subr.bf16.mxu0 0
    %1563 = vmatpush1.bf16.msra.mxu0 0
    %1564 = vmatprep.subr.bf16.mxu0 0
    %1565 = vmatpush1.bf16.msra.mxu0 0
    %1566 = vmatprep.subr.bf16.mxu0 0
    %1567 = vmatpush1.bf16.msra.mxu0 0
    %1568 = vmatprep.subr.bf16.mxu0 0
    %1569 = vmatpush1.bf16.msra.mxu0 %v1555
    %1570 = vmatprep.subr.bf16.mxu0 0
    %1571 = vmatpush1.bf16.msra.mxu0 %v1554
    %1572 = vmatprep.subr.bf16.mxu0 0
    %1573 = vmatpush1.bf16.msra.mxu0 %v1553
    %1574 = vmatprep.subr.bf16.mxu0 0
    %1575 = vmatpush1.bf16.msra.mxu0 %v1552
    %1576 = vmatprep.subr.bf16.mxu0 0
    %1577 = vmatpush2.bf16.msra.mxu0 0
    %1578 = vmatprep.subr.bf16.mxu0 0
    %1579 = vmatpush2.bf16.msra.mxu0 0
    %1580 = vmatprep.subr.bf16.mxu0 0
    %1581 = vmatpush2.bf16.msra.mxu0 0
    %1582 = vmatprep.subr.bf16.mxu0 0
    %1583 = vmatpush2.bf16.msra.mxu0 0
    %1584 = vmatprep.subr.bf16.mxu0 0
    %1585 = vmatpush2.bf16.msra.mxu0 0
    %1586 = vmatprep.subr.bf16.mxu0 0
    %1587 = vmatpush2.bf16.msra.mxu0 0
    %1588 = vmatprep.subr.bf16.mxu0 0
    %1589 = vmatpush2.bf16.msra.mxu0 0
    %1590 = vmatprep.subr.bf16.mxu0 0
    %1591 = vmatpush2.bf16.msra.mxu0 0
    %1592 = vmatprep.mubr.bf16.mxu0 0
    %1593 = vmatmul.mubr.bf16.gmra.mxu0 %v1394
    %v1594 = vpop.f32.mrf.mxu0
    %v1595 = vadd.f32 %v1534, %v1594
    %v1596 = vpop.f32.mrf.mxu0
    %v1597 = vpop.f32.mrf.mxu0
    %v1598 = vadd.f32 %v1534, %v1597
    %v1599 = vpop.f32.mrf.mxu0
    %1600 = vdwg.mxu0
    %v1601 = vld [vmem:[%s2] sm:$0x1]
    %v1602 = vpack.c.bf16 %v1431, %v1431
    %v1603 = vpack.c.bf16 %v1513, %v1513
    %v1605 = vsel %vm112, %v1602, 0
    %v1608 = vsel %vm112, %v1603, 0
    %1610 = vmatprep.subr.bf16.mxu0 0
    %1611 = vmatpush1.bf16.xpose.msra.mxu0 0
    %1612 = vmatprep.subr.bf16.mxu0 0
    %1613 = vmatpush1.bf16.xpose.msra.mxu0 0
    %1614 = vmatprep.subr.bf16.mxu0 0
    %1615 = vmatpush1.bf16.xpose.msra.mxu0 0
    %1616 = vmatprep.subr.bf16.mxu0 0
    %1617 = vmatpush1.bf16.xpose.msra.mxu0 0
    %1618 = vmatprep.subr.bf16.mxu0 0
    %1619 = vmatpush1.bf16.xpose.msra.mxu0 0
    %1620 = vmatprep.subr.bf16.mxu0 0
    %1621 = vmatpush1.bf16.xpose.msra.mxu0 0
    %1622 = vmatprep.subr.bf16.mxu0 0
    %1623 = vmatpush1.bf16.xpose.msra.mxu0 0
    %1624 = vmatprep.subr.bf16.mxu0 0
    %1625 = vmatpush1.bf16.xpose.msra.mxu0 %v1608
    %1626 = vmatprep.subr.bf16.mxu0 0
    %1627 = vmatpush2.bf16.xpose.msra.mxu0 0
    %1628 = vmatprep.subr.bf16.mxu0 0
    %1629 = vmatpush2.bf16.xpose.msra.mxu0 0
    %1630 = vmatprep.subr.bf16.mxu0 0
    %1631 = vmatpush2.bf16.xpose.msra.mxu0 0
    %1632 = vmatprep.subr.bf16.mxu0 0
    %1633 = vmatpush2.bf16.xpose.msra.mxu0 0
    %1634 = vmatprep.subr.bf16.mxu0 0
    %1635 = vmatpush2.bf16.xpose.msra.mxu0 0
    %1636 = vmatprep.subr.bf16.mxu0 0
    %1637 = vmatpush2.bf16.xpose.msra.mxu0 0
    %1638 = vmatprep.subr.bf16.mxu0 0
    %1639 = vmatpush2.bf16.xpose.msra.mxu0 0
    %1640 = vmatprep.subr.bf16.mxu0 0
    %1641 = vmatpush2.bf16.xpose.msra.mxu0 0
    %1642 = vmatprep.mubr.bf16.mxu0 0
    %1643 = vmatmul.mubr.bf16.gmra.mxu0 %v1605
    %v1644 = vpop.f32.mrf.mxu0
    %v1645 = vadd.f32 0.0, %v1644
    %v1646 = vpop.f32.mrf.mxu0
    %v1647 = vpop.f32.mrf.mxu0
    %v1648 = vpop.f32.mrf.mxu0
    %1649 = vdwg.mxu0
    %v1650 = vmul.f32 %v1645, 0.25
    %v1652 = vlaneseq
    %v1653 = vshrl.u32 %v1652, 7
    %v1654 = vsub.s32 0, %v1653
    %v1655 = vrot.slane %v1601, %v1654
    %v1657 = vadd.f32 %v1650, %v1655
    %vm1658 = vcmask 64512
    %v1659 = vsel %vm1658, %v1657, -inf
    %1660 = vmax.xlane.f32.xlu0 %v1659
    %v1661 = vpop.xlane.xlu0 %1660
    %v1662 = vsub.f32 %v1657, %v1661
    %v1663 = vmul.f32 %v1662, 1.442695
    %v1664 = vpow.pop %v1663
    %v1665 = vsel %vm1658, %v1664, 0.0
    %1666 = vadd.xlane.f32.xlu0 %v1665
    %v1667 = vpop.xlane.xlu0 %1666
    %v1668 = vrcp.pop %v1667
    %v1669 = vmul.f32 %v1664, %v1668
    %v1670 = vpack.c.bf16 %v1669, %v1669
    %v1671 = vpack.c.bf16 %v1595, %v1595
    %v1673 = vsel %vm1658, %v1670, 0
    %vm1675 = vcmask 1043456
    %v1677 = vsel %vm1675, %v1671, 0
    %1679 = vmatprep.subr.bf16.mxu0 0
    %1680 = vmatpush1.bf16.msra.mxu0 0
    %1681 = vmatprep.subr.bf16.mxu0 0
    %1682 = vmatpush1.bf16.msra.mxu0 0
    %1683 = vmatprep.subr.bf16.mxu0 0
    %1684 = vmatpush1.bf16.msra.mxu0 0
    %1685 = vmatprep.subr.bf16.mxu0 0
    %1686 = vmatpush1.bf16.msra.mxu0 0
    %1687 = vmatprep.subr.bf16.mxu0 0
    %1688 = vmatpush1.bf16.msra.mxu0 0
    %1689 = vmatprep.subr.bf16.mxu0 0
    %1690 = vmatpush1.bf16.msra.mxu0 0
    %1691 = vmatprep.subr.bf16.mxu0 0
    %1692 = vmatpush1.bf16.msra.mxu0 0
    %1693 = vmatprep.subr.bf16.mxu0 0
    %1694 = vmatpush1.bf16.msra.mxu0 %v1677
    %1695 = vmatprep.subr.bf16.mxu0 0
    %1696 = vmatpush2.bf16.msra.mxu0 0
    %1697 = vmatprep.subr.bf16.mxu0 0
    %1698 = vmatpush2.bf16.msra.mxu0 0
    %1699 = vmatprep.subr.bf16.mxu0 0
    %1700 = vmatpush2.bf16.msra.mxu0 0
    %1701 = vmatprep.subr.bf16.mxu0 0
    %1702 = vmatpush2.bf16.msra.mxu0 0
    %1703 = vmatprep.subr.bf16.mxu0 0
    %1704 = vmatpush2.bf16.msra.mxu0 0
    %1705 = vmatprep.subr.bf16.mxu0 0
    %1706 = vmatpush2.bf16.msra.mxu0 0
    %1707 = vmatprep.subr.bf16.mxu0 0
    %1708 = vmatpush2.bf16.msra.mxu0 0
    %1709 = vmatprep.subr.bf16.mxu0 0
    %1710 = vmatpush2.bf16.msra.mxu0 0
    %1711 = vmatprep.mubr.bf16.mxu0 0
    %1712 = vmatmul.mubr.bf16.gmra.mxu0 %v1673
    %v1713 = vpop.f32.mrf.mxu0
    %v1714 = vadd.f32 0.0, %v1713
    %v1715 = vpop.f32.mrf.mxu0
    %v1716 = vpop.f32.mrf.mxu0
    %v1717 = vpop.f32.mrf.mxu0
    %1718 = vdwg.mxu0
    %v1719 = vld [vmem:[%s8] sm:$0xf]
    %v1720 = vld [vmem:[%s8 + $0x4] sm:$0xf]
    %v1721 = vpack.c.bf16 %v1714, %v1714
    %1723 = vrot.lane.b32.xlu0 %v1602, 112
    %v1724 = vpop.permute.xlu0 %1723
    %1726 = vrot.lane.b32.xlu0 %v1603, 112
    %v1727 = vpop.permute.xlu0 %1726
    %v1729 = vsel %vm112, %v1724, 0
    %v1732 = vsel %vm112, %v1727, 0
    %1734 = vmatprep.subr.bf16.mxu0 0
    %1735 = vmatpush1.bf16.xpose.msra.mxu0 0
    %1736 = vmatprep.subr.bf16.mxu0 0
    %1737 = vmatpush1.bf16.xpose.msra.mxu0 0
    %1738 = vmatprep.subr.bf16.mxu0 0
    %1739 = vmatpush1.bf16.xpose.msra.mxu0 0
    %1740 = vmatprep.subr.bf16.mxu0 0
    %1741 = vmatpush1.bf16.xpose.msra.mxu0 0
    %1742 = vmatprep.subr.bf16.mxu0 0
    %1743 = vmatpush1.bf16.xpose.msra.mxu0 0
    %1744 = vmatprep.subr.bf16.mxu0 0
    %1745 = vmatpush1.bf16.xpose.msra.mxu0 0
    %1746 = vmatprep.subr.bf16.mxu0 0
    %1747 = vmatpush1.bf16.xpose.msra.mxu0 0
    %1748 = vmatprep.subr.bf16.mxu0 0
    %1749 = vmatpush1.bf16.xpose.msra.mxu0 %v1732
    %1750 = vmatprep.subr.bf16.mxu0 0
    %1751 = vmatpush2.bf16.xpose.msra.mxu0 0
    %1752 = vmatprep.subr.bf16.mxu0 0
    %1753 = vmatpush2.bf16.xpose.msra.mxu0 0
    %1754 = vmatprep.subr.bf16.mxu0 0
    %1755 = vmatpush2.bf16.xpose.msra.mxu0 0
    %1756 = vmatprep.subr.bf16.mxu0 0
    %1757 = vmatpush2.bf16.xpose.msra.mxu0 0
    %1758 = vmatprep.subr.bf16.mxu0 0
    %1759 = vmatpush2.bf16.xpose.msra.mxu0 0
    %1760 = vmatprep.subr.bf16.mxu0 0
    %1761 = vmatpush2.bf16.xpose.msra.mxu0 0
    %1762 = vmatprep.subr.bf16.mxu0 0
    %1763 = vmatpush2.bf16.xpose.msra.mxu0 0
    %1764 = vmatprep.subr.bf16.mxu0 0
    %1765 = vmatpush2.bf16.xpose.msra.mxu0 0
    %1766 = vmatprep.mubr.bf16.mxu0 0
    %1767 = vmatmul.mubr.bf16.gmra.mxu0 %v1729
    %v1768 = vpop.f32.mrf.mxu0
    %v1769 = vadd.f32 0.0, %v1768
    %v1770 = vpop.f32.mrf.mxu0
    %v1771 = vpop.f32.mrf.mxu0
    %v1772 = vpop.f32.mrf.mxu0
    %1773 = vdwg.mxu0
    %v1774 = vmul.f32 %v1769, 0.25
    %v1775 = vadd.f32 %v1774, %v1655
    %v1776 = vsel %vm1658, %v1775, -inf
    %1777 = vmax.xlane.f32.xlu0 %v1776
    %v1778 = vpop.xlane.xlu0 %1777
    %v1779 = vsub.f32 %v1775, %v1778
    %v1780 = vmul.f32 %v1779, 1.442695
    %v1781 = vpow.pop %v1780
    %v1782 = vsel %vm1658, %v1781, 0.0
    %1783 = vadd.xlane.f32.xlu0 %v1782
    %v1784 = vpop.xlane.xlu0 %1783
    %v1785 = vrcp.pop %v1784
    %v1786 = vmul.f32 %v1781, %v1785
    %v1787 = vpack.c.bf16 %v1786, %v1786
    %1789 = vrot.lane.b32.xlu0 %v1671, 112
    %v1790 = vpop.permute.xlu0 %1789
    %v1792 = vsel %vm1658, %v1787, 0
    %v1795 = vsel %vm1675, %v1790, 0
    %1797 = vmatprep.subr.bf16.mxu0 0
    %1798 = vmatpush1.bf16.msra.mxu0 0
    %1799 = vmatprep.subr.bf16.mxu0 0
    %1800 = vmatpush1.bf16.msra.mxu0 0
    %1801 = vmatprep.subr.bf16.mxu0 0
    %1802 = vmatpush1.bf16.msra.mxu0 0
    %1803 = vmatprep.subr.bf16.mxu0 0
    %1804 = vmatpush1.bf16.msra.mxu0 0
    %1805 = vmatprep.subr.bf16.mxu0 0
    %1806 = vmatpush1.bf16.msra.mxu0 0
    %1807 = vmatprep.subr.bf16.mxu0 0
    %1808 = vmatpush1.bf16.msra.mxu0 0
    %1809 = vmatprep.subr.bf16.mxu0 0
    %1810 = vmatpush1.bf16.msra.mxu0 0
    %1811 = vmatprep.subr.bf16.mxu0 0
    %1812 = vmatpush1.bf16.msra.mxu0 %v1795
    %1813 = vmatprep.subr.bf16.mxu0 0
    %1814 = vmatpush2.bf16.msra.mxu0 0
    %1815 = vmatprep.subr.bf16.mxu0 0
    %1816 = vmatpush2.bf16.msra.mxu0 0
    %1817 = vmatprep.subr.bf16.mxu0 0
    %1818 = vmatpush2.bf16.msra.mxu0 0
    %1819 = vmatprep.subr.bf16.mxu0 0
    %1820 = vmatpush2.bf16.msra.mxu0 0
    %1821 = vmatprep.subr.bf16.mxu0 0
    %1822 = vmatpush2.bf16.msra.mxu0 0
    %1823 = vmatprep.subr.bf16.mxu0 0
    %1824 = vmatpush2.bf16.msra.mxu0 0
    %1825 = vmatprep.subr.bf16.mxu0 0
    %1826 = vmatpush2.bf16.msra.mxu0 0
    %1827 = vmatprep.subr.bf16.mxu0 0
    %1828 = vmatpush2.bf16.msra.mxu0 0
    %1829 = vmatprep.mubr.bf16.mxu0 0
    %1830 = vmatmul.mubr.bf16.gmra.mxu0 %v1792
    %v1831 = vpop.f32.mrf.mxu0
    %v1832 = vadd.f32 0.0, %v1831
    %v1833 = vpop.f32.mrf.mxu0
    %v1834 = vpop.f32.mrf.mxu0
    %v1835 = vpop.f32.mrf.mxu0
    %1836 = vdwg.mxu0
    %s1837 = scalar_lea.vmem %s8, 8
    %v1838 = vld [vmem:[%s1837] sm:$0xf]
    %v1839 = vld [vmem:[%s1837 + $0x4] sm:$0xf]
    %v1840 = vpack.c.bf16 %v1832, %v1832
    %v1843 = vunpack.c.l.b16 %v1838
    %v1844 = vunpack.c.l.b16 %v1839
    %v1845 = vpack.c.b16 %v1844, %v1843
    %v1848 = vsel %vm112, %v1840, 0
    %1850 = vmatprep.subr.bf16.mxu0 0
    %1851 = vmatpush1.bf16.msra.mxu0 0
    %1852 = vmatprep.subr.bf16.mxu0 0
    %1853 = vmatpush1.bf16.msra.mxu0 0
    %1854 = vmatprep.subr.bf16.mxu0 0
    %1855 = vmatpush1.bf16.msra.mxu0 0
    %1856 = vmatprep.subr.bf16.mxu0 0
    %1857 = vmatpush1.bf16.msra.mxu0 0
    %1858 = vmatprep.subr.bf16.mxu0 0
    %1859 = vmatpush1.bf16.msra.mxu0 0
    %1860 = vmatprep.subr.bf16.mxu0 0
    %1861 = vmatpush1.bf16.msra.mxu0 0
    %1862 = vmatprep.subr.bf16.mxu0 0
    %1863 = vmatpush1.bf16.msra.mxu0 0
    %1864 = vmatprep.subr.bf16.mxu0 0
    %1865 = vmatpush1.bf16.msra.mxu0 %v1845
    %1866 = vmatprep.subr.bf16.mxu0 0
    %1867 = vmatpush2.bf16.msra.mxu0 0
    %1868 = vmatprep.subr.bf16.mxu0 0
    %1869 = vmatpush2.bf16.msra.mxu0 0
    %1870 = vmatprep.subr.bf16.mxu0 0
    %1871 = vmatpush2.bf16.msra.mxu0 0
    %1872 = vmatprep.subr.bf16.mxu0 0
    %1873 = vmatpush2.bf16.msra.mxu0 0
    %1874 = vmatprep.subr.bf16.mxu0 0
    %1875 = vmatpush2.bf16.msra.mxu0 0
    %1876 = vmatprep.subr.bf16.mxu0 0
    %1877 = vmatpush2.bf16.msra.mxu0 0
    %1878 = vmatprep.subr.bf16.mxu0 0
    %1879 = vmatpush2.bf16.msra.mxu0 0
    %1880 = vmatprep.subr.bf16.mxu0 0
    %1881 = vmatpush2.bf16.msra.mxu0 0
    %1882 = vmatprep.mubr.bf16.mxu0 0
    %1883 = vmatmul.mubr.bf16.gmra.mxu0 %v1848
    %v1884 = vpop.f32.mrf.mxu0
    %v1885 = vadd.f32 0.0, %v1884
    %v1886 = vpop.f32.mrf.mxu0
    %v1887 = vpop.f32.mrf.mxu0
    %v1888 = vpop.f32.mrf.mxu0
    %1889 = vdwg.mxu0
    %v1892 = vunpack.c.l.b16 %v1719
    %v1893 = vunpack.c.l.b16 %v1720
    %v1894 = vpack.c.b16 %v1893, %v1892
    %v1897 = vsel %vm112, %v1721, 0
    %1899 = vmatprep.subr.bf16.mxu0 0
    %1900 = vmatpush1.bf16.msra.mxu0 0
    %1901 = vmatprep.subr.bf16.mxu0 0
    %1902 = vmatpush1.bf16.msra.mxu0 0
    %1903 = vmatprep.subr.bf16.mxu0 0
    %1904 = vmatpush1.bf16.msra.mxu0 0
    %1905 = vmatprep.subr.bf16.mxu0 0
    %1906 = vmatpush1.bf16.msra.mxu0 0
    %1907 = vmatprep.subr.bf16.mxu0 0
    %1908 = vmatpush1.bf16.msra.mxu0 0
    %1909 = vmatprep.subr.bf16.mxu0 0
    %1910 = vmatpush1.bf16.msra.mxu0 0
    %1911 = vmatprep.subr.bf16.mxu0 0
    %1912 = vmatpush1.bf16.msra.mxu0 0
    %1913 = vmatprep.subr.bf16.mxu0 0
    %1914 = vmatpush1.bf16.msra.mxu0 %v1894
    %1915 = vmatprep.subr.bf16.mxu0 0
    %1916 = vmatpush2.bf16.msra.mxu0 0
    %1917 = vmatprep.subr.bf16.mxu0 0
    %1918 = vmatpush2.bf16.msra.mxu0 0
    %1919 = vmatprep.subr.bf16.mxu0 0
    %1920 = vmatpush2.bf16.msra.mxu0 0
    %1921 = vmatprep.subr.bf16.mxu0 0
    %1922 = vmatpush2.bf16.msra.mxu0 0
    %1923 = vmatprep.subr.bf16.mxu0 0
    %1924 = vmatpush2.bf16.msra.mxu0 0
    %1925 = vmatprep.subr.bf16.mxu0 0
    %1926 = vmatpush2.bf16.msra.mxu0 0
    %1927 = vmatprep.subr.bf16.mxu0 0
    %1928 = vmatpush2.bf16.msra.mxu0 0
    %1929 = vmatprep.subr.bf16.mxu0 0
    %1930 = vmatpush2.bf16.msra.mxu0 0
    %1931 = vmatprep.mubr.bf16.mxu0 0
    %1932 = vmatmul.mubr.bf16.gmra.mxu0 %v1897
    %v1933 = vpop.f32.mrf.mxu0
    %v1934 = vadd.f32 %v1885, %v1933
    %v1935 = vpop.f32.mrf.mxu0
    %v1936 = vpop.f32.mrf.mxu0
    %v1937 = vpop.f32.mrf.mxu0
    %1938 = vdwg.mxu0
    %1939 = vrot.lane.b32.xlu0 %v1602, 96
    %v1940 = vpop.permute.xlu0 %1939
    %1941 = vrot.lane.b32.xlu0 %v1603, 96
    %v1942 = vpop.permute.xlu0 %1941
    %v1944 = vsel %vm112, %v1940, 0
    %v1947 = vsel %vm112, %v1942, 0
    %1949 = vmatprep.subr.bf16.mxu0 0
    %1950 = vmatpush1.bf16.xpose.msra.mxu0 0
    %1951 = vmatprep.subr.bf16.mxu0 0
    %1952 = vmatpush1.bf16.xpose.msra.mxu0 0
    %1953 = vmatprep.subr.bf16.mxu0 0
    %1954 = vmatpush1.bf16.xpose.msra.mxu0 0
    %1955 = vmatprep.subr.bf16.mxu0 0
    %1956 = vmatpush1.bf16.xpose.msra.mxu0 0
    %1957 = vmatprep.subr.bf16.mxu0 0
    %1958 = vmatpush1.bf16.xpose.msra.mxu0 0
    %1959 = vmatprep.subr.bf16.mxu0 0
    %1960 = vmatpush1.bf16.xpose.msra.mxu0 0
    %1961 = vmatprep.subr.bf16.mxu0 0
    %1962 = vmatpush1.bf16.xpose.msra.mxu0 0
    %1963 = vmatprep.subr.bf16.mxu0 0
    %1964 = vmatpush1.bf16.xpose.msra.mxu0 %v1947
    %1965 = vmatprep.subr.bf16.mxu0 0
    %1966 = vmatpush2.bf16.xpose.msra.mxu0 0
    %1967 = vmatprep.subr.bf16.mxu0 0
    %1968 = vmatpush2.bf16.xpose.msra.mxu0 0
    %1969 = vmatprep.subr.bf16.mxu0 0
    %1970 = vmatpush2.bf16.xpose.msra.mxu0 0
    %1971 = vmatprep.subr.bf16.mxu0 0
    %1972 = vmatpush2.bf16.xpose.msra.mxu0 0
    %1973 = vmatprep.subr.bf16.mxu0 0
    %1974 = vmatpush2.bf16.xpose.msra.mxu0 0
    %1975 = vmatprep.subr.bf16.mxu0 0
    %1976 = vmatpush2.bf16.xpose.msra.mxu0 0
    %1977 = vmatprep.subr.bf16.mxu0 0
    %1978 = vmatpush2.bf16.xpose.msra.mxu0 0
    %1979 = vmatprep.subr.bf16.mxu0 0
    %1980 = vmatpush2.bf16.xpose.msra.mxu0 0
    %1981 = vmatprep.mubr.bf16.mxu0 0
    %1982 = vmatmul.mubr.bf16.gmra.mxu0 %v1944
    %v1983 = vpop.f32.mrf.mxu0
    %v1984 = vadd.f32 0.0, %v1983
    %v1985 = vpop.f32.mrf.mxu0
    %v1986 = vpop.f32.mrf.mxu0
    %v1987 = vpop.f32.mrf.mxu0
    %1988 = vdwg.mxu0
    %v1989 = vmul.f32 %v1984, 0.25
    %v1990 = vadd.f32 %v1989, %v1655
    %v1991 = vsel %vm1658, %v1990, -inf
    %1992 = vmax.xlane.f32.xlu0 %v1991
    %v1993 = vpop.xlane.xlu0 %1992
    %v1994 = vsub.f32 %v1990, %v1993
    %v1995 = vmul.f32 %v1994, 1.442695
    %v1996 = vpow.pop %v1995
    %v1997 = vsel %vm1658, %v1996, 0.0
    %1998 = vadd.xlane.f32.xlu0 %v1997
    %v1999 = vpop.xlane.xlu0 %1998
    %v2000 = vrcp.pop %v1999
    %v2001 = vmul.f32 %v1996, %v2000
    %v2002 = vpack.c.bf16 %v2001, %v2001
    %2003 = vrot.lane.b32.xlu0 %v1671, 96
    %v2004 = vpop.permute.xlu0 %2003
    %v2006 = vsel %vm1658, %v2002, 0
    %v2009 = vsel %vm1675, %v2004, 0
    %2011 = vmatprep.subr.bf16.mxu0 0
    %2012 = vmatpush1.bf16.msra.mxu0 0
    %2013 = vmatprep.subr.bf16.mxu0 0
    %2014 = vmatpush1.bf16.msra.mxu0 0
    %2015 = vmatprep.subr.bf16.mxu0 0
    %2016 = vmatpush1.bf16.msra.mxu0 0
    %2017 = vmatprep.subr.bf16.mxu0 0
    %2018 = vmatpush1.bf16.msra.mxu0 0
    %2019 = vmatprep.subr.bf16.mxu0 0
    %2020 = vmatpush1.bf16.msra.mxu0 0
    %2021 = vmatprep.subr.bf16.mxu0 0
    %2022 = vmatpush1.bf16.msra.mxu0 0
    %2023 = vmatprep.subr.bf16.mxu0 0
    %2024 = vmatpush1.bf16.msra.mxu0 0
    %2025 = vmatprep.subr.bf16.mxu0 0
    %2026 = vmatpush1.bf16.msra.mxu0 %v2009
    %2027 = vmatprep.subr.bf16.mxu0 0
    %2028 = vmatpush2.bf16.msra.mxu0 0
    %2029 = vmatprep.subr.bf16.mxu0 0
    %2030 = vmatpush2.bf16.msra.mxu0 0
    %2031 = vmatprep.subr.bf16.mxu0 0
    %2032 = vmatpush2.bf16.msra.mxu0 0
    %2033 = vmatprep.subr.bf16.mxu0 0
    %2034 = vmatpush2.bf16.msra.mxu0 0
    %2035 = vmatprep.subr.bf16.mxu0 0
    %2036 = vmatpush2.bf16.msra.mxu0 0
    %2037 = vmatprep.subr.bf16.mxu0 0
    %2038 = vmatpush2.bf16.msra.mxu0 0
    %2039 = vmatprep.subr.bf16.mxu0 0
    %2040 = vmatpush2.bf16.msra.mxu0 0
    %2041 = vmatprep.subr.bf16.mxu0 0
    %2042 = vmatpush2.bf16.msra.mxu0 0
    %2043 = vmatprep.mubr.bf16.mxu0 0
    %2044 = vmatmul.mubr.bf16.gmra.mxu0 %v2006
    %v2045 = vpop.f32.mrf.mxu0
    %v2046 = vadd.f32 0.0, %v2045
    %v2047 = vpop.f32.mrf.mxu0
    %v2048 = vpop.f32.mrf.mxu0
    %v2049 = vpop.f32.mrf.mxu0
    %2050 = vdwg.mxu0
    %s2051 = scalar_lea.vmem %s8, 16
    %v2052 = vld [vmem:[%s2051] sm:$0xf]
    %v2053 = vld [vmem:[%s2051 + $0x4] sm:$0xf]
    %v2054 = vpack.c.bf16 %v2046, %v2046
    %v2057 = vunpack.c.l.b16 %v2052
    %v2058 = vunpack.c.l.b16 %v2053
    %v2059 = vpack.c.b16 %v2058, %v2057
    %v2062 = vsel %vm112, %v2054, 0
    %2064 = vmatprep.subr.bf16.mxu0 0
    %2065 = vmatpush1.bf16.msra.mxu0 0
    %2066 = vmatprep.subr.bf16.mxu0 0
    %2067 = vmatpush1.bf16.msra.mxu0 0
    %2068 = vmatprep.subr.bf16.mxu0 0
    %2069 = vmatpush1.bf16.msra.mxu0 0
    %2070 = vmatprep.subr.bf16.mxu0 0
    %2071 = vmatpush1.bf16.msra.mxu0 0
    %2072 = vmatprep.subr.bf16.mxu0 0
    %2073 = vmatpush1.bf16.msra.mxu0 0
    %2074 = vmatprep.subr.bf16.mxu0 0
    %2075 = vmatpush1.bf16.msra.mxu0 0
    %2076 = vmatprep.subr.bf16.mxu0 0
    %2077 = vmatpush1.bf16.msra.mxu0 0
    %2078 = vmatprep.subr.bf16.mxu0 0
    %2079 = vmatpush1.bf16.msra.mxu0 %v2059
    %2080 = vmatprep.subr.bf16.mxu0 0
    %2081 = vmatpush2.bf16.msra.mxu0 0
    %2082 = vmatprep.subr.bf16.mxu0 0
    %2083 = vmatpush2.bf16.msra.mxu0 0
    %2084 = vmatprep.subr.bf16.mxu0 0
    %2085 = vmatpush2.bf16.msra.mxu0 0
    %2086 = vmatprep.subr.bf16.mxu0 0
    %2087 = vmatpush2.bf16.msra.mxu0 0
    %2088 = vmatprep.subr.bf16.mxu0 0
    %2089 = vmatpush2.bf16.msra.mxu0 0
    %2090 = vmatprep.subr.bf16.mxu0 0
    %2091 = vmatpush2.bf16.msra.mxu0 0
    %2092 = vmatprep.subr.bf16.mxu0 0
    %2093 = vmatpush2.bf16.msra.mxu0 0
    %2094 = vmatprep.subr.bf16.mxu0 0
    %2095 = vmatpush2.bf16.msra.mxu0 0
    %2096 = vmatprep.mubr.bf16.mxu0 0
    %2097 = vmatmul.mubr.bf16.gmra.mxu0 %v2062
    %v2098 = vpop.f32.mrf.mxu0
    %v2099 = vadd.f32 0.0, %v2098
    %v2100 = vpop.f32.mrf.mxu0
    %v2101 = vpop.f32.mrf.mxu0
    %v2102 = vpop.f32.mrf.mxu0
    %2103 = vdwg.mxu0
    %v2104 = vadd.f32 %v1934, %v2099
    %2105 = vrot.lane.b32.xlu0 %v1602, 80
    %v2106 = vpop.permute.xlu0 %2105
    %2107 = vrot.lane.b32.xlu0 %v1603, 80
    %v2108 = vpop.permute.xlu0 %2107
    %v2110 = vsel %vm112, %v2106, 0
    %v2113 = vsel %vm112, %v2108, 0
    %2115 = vmatprep.subr.bf16.mxu0 0
    %2116 = vmatpush1.bf16.xpose.msra.mxu0 0
    %2117 = vmatprep.subr.bf16.mxu0 0
    %2118 = vmatpush1.bf16.xpose.msra.mxu0 0
    %2119 = vmatprep.subr.bf16.mxu0 0
    %2120 = vmatpush1.bf16.xpose.msra.mxu0 0
    %2121 = vmatprep.subr.bf16.mxu0 0
    %2122 = vmatpush1.bf16.xpose.msra.mxu0 0
    %2123 = vmatprep.subr.bf16.mxu0 0
    %2124 = vmatpush1.bf16.xpose.msra.mxu0 0
    %2125 = vmatprep.subr.bf16.mxu0 0
    %2126 = vmatpush1.bf16.xpose.msra.mxu0 0
    %2127 = vmatprep.subr.bf16.mxu0 0
    %2128 = vmatpush1.bf16.xpose.msra.mxu0 0
    %2129 = vmatprep.subr.bf16.mxu0 0
    %2130 = vmatpush1.bf16.xpose.msra.mxu0 %v2113
    %2131 = vmatprep.subr.bf16.mxu0 0
    %2132 = vmatpush2.bf16.xpose.msra.mxu0 0
    %2133 = vmatprep.subr.bf16.mxu0 0
    %2134 = vmatpush2.bf16.xpose.msra.mxu0 0
    %2135 = vmatprep.subr.bf16.mxu0 0
    %2136 = vmatpush2.bf16.xpose.msra.mxu0 0
    %2137 = vmatprep.subr.bf16.mxu0 0
    %2138 = vmatpush2.bf16.xpose.msra.mxu0 0
    %2139 = vmatprep.subr.bf16.mxu0 0
    %2140 = vmatpush2.bf16.xpose.msra.mxu0 0
    %2141 = vmatprep.subr.bf16.mxu0 0
    %2142 = vmatpush2.bf16.xpose.msra.mxu0 0
    %2143 = vmatprep.subr.bf16.mxu0 0
    %2144 = vmatpush2.bf16.xpose.msra.mxu0 0
    %2145 = vmatprep.subr.bf16.mxu0 0
    %2146 = vmatpush2.bf16.xpose.msra.mxu0 0
    %2147 = vmatprep.mubr.bf16.mxu0 0
    %2148 = vmatmul.mubr.bf16.gmra.mxu0 %v2110
    %v2149 = vpop.f32.mrf.mxu0
    %v2150 = vadd.f32 0.0, %v2149
    %v2151 = vpop.f32.mrf.mxu0
    %v2152 = vpop.f32.mrf.mxu0
    %v2153 = vpop.f32.mrf.mxu0
    %2154 = vdwg.mxu0
    %v2155 = vmul.f32 %v2150, 0.25
    %v2156 = vadd.f32 %v2155, %v1655
    %v2157 = vsel %vm1658, %v2156, -inf
    %2158 = vmax.xlane.f32.xlu0 %v2157
    %v2159 = vpop.xlane.xlu0 %2158
    %v2160 = vsub.f32 %v2156, %v2159
    %v2161 = vmul.f32 %v2160, 1.442695
    %v2162 = vpow.pop %v2161
    %v2163 = vsel %vm1658, %v2162, 0.0
    %2164 = vadd.xlane.f32.xlu0 %v2163
    %v2165 = vpop.xlane.xlu0 %2164
    %v2166 = vrcp.pop %v2165
    %v2167 = vmul.f32 %v2162, %v2166
    %v2168 = vpack.c.bf16 %v2167, %v2167
    %2169 = vrot.lane.b32.xlu0 %v1671, 80
    %v2170 = vpop.permute.xlu0 %2169
    %v2172 = vsel %vm1658, %v2168, 0
    %v2175 = vsel %vm1675, %v2170, 0
    %2177 = vmatprep.subr.bf16.mxu0 0
    %2178 = vmatpush1.bf16.msra.mxu0 0
    %2179 = vmatprep.subr.bf16.mxu0 0
    %2180 = vmatpush1.bf16.msra.mxu0 0
    %2181 = vmatprep.subr.bf16.mxu0 0
    %2182 = vmatpush1.bf16.msra.mxu0 0
    %2183 = vmatprep.subr.bf16.mxu0 0
    %2184 = vmatpush1.bf16.msra.mxu0 0
    %2185 = vmatprep.subr.bf16.mxu0 0
    %2186 = vmatpush1.bf16.msra.mxu0 0
    %2187 = vmatprep.subr.bf16.mxu0 0
    %2188 = vmatpush1.bf16.msra.mxu0 0
    %2189 = vmatprep.subr.bf16.mxu0 0
    %2190 = vmatpush1.bf16.msra.mxu0 0
    %2191 = vmatprep.subr.bf16.mxu0 0
    %2192 = vmatpush1.bf16.msra.mxu0 %v2175
    %2193 = vmatprep.subr.bf16.mxu0 0
    %2194 = vmatpush2.bf16.msra.mxu0 0
    %2195 = vmatprep.subr.bf16.mxu0 0
    %2196 = vmatpush2.bf16.msra.mxu0 0
    %2197 = vmatprep.subr.bf16.mxu0 0
    %2198 = vmatpush2.bf16.msra.mxu0 0
    %2199 = vmatprep.subr.bf16.mxu0 0
    %2200 = vmatpush2.bf16.msra.mxu0 0
    %2201 = vmatprep.subr.bf16.mxu0 0
    %2202 = vmatpush2.bf16.msra.mxu0 0
    %2203 = vmatprep.subr.bf16.mxu0 0
    %2204 = vmatpush2.bf16.msra.mxu0 0
    %2205 = vmatprep.subr.bf16.mxu0 0
    %2206 = vmatpush2.bf16.msra.mxu0 0
    %2207 = vmatprep.subr.bf16.mxu0 0
    %2208 = vmatpush2.bf16.msra.mxu0 0
    %2209 = vmatprep.mubr.bf16.mxu0 0
    %2210 = vmatmul.mubr.bf16.gmra.mxu0 %v2172
    %v2211 = vpop.f32.mrf.mxu0
    %v2212 = vadd.f32 0.0, %v2211
    %v2213 = vpop.f32.mrf.mxu0
    %v2214 = vpop.f32.mrf.mxu0
    %v2215 = vpop.f32.mrf.mxu0
    %2216 = vdwg.mxu0
    %s2217 = scalar_lea.vmem %s8, 24
    %v2218 = vld [vmem:[%s2217] sm:$0xf]
    %v2219 = vld [vmem:[%s2217 + $0x4] sm:$0xf]
    %v2220 = vpack.c.bf16 %v2212, %v2212
    %v2223 = vunpack.c.l.b16 %v2218
    %v2224 = vunpack.c.l.b16 %v2219
    %v2225 = vpack.c.b16 %v2224, %v2223
    %v2228 = vsel %vm112, %v2220, 0
    %2230 = vmatprep.subr.bf16.mxu0 0
    %2231 = vmatpush1.bf16.msra.mxu0 0
    %2232 = vmatprep.subr.bf16.mxu0 0
    %2233 = vmatpush1.bf16.msra.mxu0 0
    %2234 = vmatprep.subr.bf16.mxu0 0
    %2235 = vmatpush1.bf16.msra.mxu0 0
    %2236 = vmatprep.subr.bf16.mxu0 0
    %2237 = vmatpush1.bf16.msra.mxu0 0
    %2238 = vmatprep.subr.bf16.mxu0 0
    %2239 = vmatpush1.bf16.msra.mxu0 0
    %2240 = vmatprep.subr.bf16.mxu0 0
    %2241 = vmatpush1.bf16.msra.mxu0 0
    %2242 = vmatprep.subr.bf16.mxu0 0
    %2243 = vmatpush1.bf16.msra.mxu0 0
    %2244 = vmatprep.subr.bf16.mxu0 0
    %2245 = vmatpush1.bf16.msra.mxu0 %v2225
    %2246 = vmatprep.subr.bf16.mxu0 0
    %2247 = vmatpush2.bf16.msra.mxu0 0
    %2248 = vmatprep.subr.bf16.mxu0 0
    %2249 = vmatpush2.bf16.msra.mxu0 0
    %2250 = vmatprep.subr.bf16.mxu0 0
    %2251 = vmatpush2.bf16.msra.mxu0 0
    %2252 = vmatprep.subr.bf16.mxu0 0
    %2253 = vmatpush2.bf16.msra.mxu0 0
    %2254 = vmatprep.subr.bf16.mxu0 0
    %2255 = vmatpush2.bf16.msra.mxu0 0
    %2256 = vmatprep.subr.bf16.mxu0 0
    %2257 = vmatpush2.bf16.msra.mxu0 0
    %2258 = vmatprep.subr.bf16.mxu0 0
    %2259 = vmatpush2.bf16.msra.mxu0 0
    %2260 = vmatprep.subr.bf16.mxu0 0
    %2261 = vmatpush2.bf16.msra.mxu0 0
    %2262 = vmatprep.mubr.bf16.mxu0 0
    %2263 = vmatmul.mubr.bf16.gmra.mxu0 %v2228
    %v2264 = vpop.f32.mrf.mxu0
    %v2265 = vadd.f32 0.0, %v2264
    %v2266 = vpop.f32.mrf.mxu0
    %v2267 = vpop.f32.mrf.mxu0
    %v2268 = vpop.f32.mrf.mxu0
    %2269 = vdwg.mxu0
    %v2270 = vadd.f32 %v2104, %v2265
    %s2271 = scalar_lea.vmem %s2, 1
    %v2272 = vld [vmem:[%s2271] sm:$0x1]
    %v2273 = vpack.c.bf16 %v1434, %v1434
    %v2274 = vpack.c.bf16 %v1516, %v1516
    %v2276 = vsel %vm112, %v2273, 0
    %v2279 = vsel %vm112, %v2274, 0
    %2281 = vmatprep.subr.bf16.mxu0 0
    %2282 = vmatpush1.bf16.xpose.msra.mxu0 0
    %2283 = vmatprep.subr.bf16.mxu0 0
    %2284 = vmatpush1.bf16.xpose.msra.mxu0 0
    %2285 = vmatprep.subr.bf16.mxu0 0
    %2286 = vmatpush1.bf16.xpose.msra.mxu0 0
    %2287 = vmatprep.subr.bf16.mxu0 0
    %2288 = vmatpush1.bf16.xpose.msra.mxu0 0
    %2289 = vmatprep.subr.bf16.mxu0 0
    %2290 = vmatpush1.bf16.xpose.msra.mxu0 0
    %2291 = vmatprep.subr.bf16.mxu0 0
    %2292 = vmatpush1.bf16.xpose.msra.mxu0 0
    %2293 = vmatprep.subr.bf16.mxu0 0
    %2294 = vmatpush1.bf16.xpose.msra.mxu0 0
    %2295 = vmatprep.subr.bf16.mxu0 0
    %2296 = vmatpush1.bf16.xpose.msra.mxu0 %v2279
    %2297 = vmatprep.subr.bf16.mxu0 0
    %2298 = vmatpush2.bf16.xpose.msra.mxu0 0
    %2299 = vmatprep.subr.bf16.mxu0 0
    %2300 = vmatpush2.bf16.xpose.msra.mxu0 0
    %2301 = vmatprep.subr.bf16.mxu0 0
    %2302 = vmatpush2.bf16.xpose.msra.mxu0 0
    %2303 = vmatprep.subr.bf16.mxu0 0
    %2304 = vmatpush2.bf16.xpose.msra.mxu0 0
    %2305 = vmatprep.subr.bf16.mxu0 0
    %2306 = vmatpush2.bf16.xpose.msra.mxu0 0
    %2307 = vmatprep.subr.bf16.mxu0 0
    %2308 = vmatpush2.bf16.xpose.msra.mxu0 0
    %2309 = vmatprep.subr.bf16.mxu0 0
    %2310 = vmatpush2.bf16.xpose.msra.mxu0 0
    %2311 = vmatprep.subr.bf16.mxu0 0
    %2312 = vmatpush2.bf16.xpose.msra.mxu0 0
    %2313 = vmatprep.mubr.bf16.mxu0 0
    %2314 = vmatmul.mubr.bf16.gmra.mxu0 %v2276
    %v2315 = vpop.f32.mrf.mxu0
    %v2316 = vadd.f32 0.0, %v2315
    %v2317 = vpop.f32.mrf.mxu0
    %v2318 = vpop.f32.mrf.mxu0
    %v2319 = vpop.f32.mrf.mxu0
    %2320 = vdwg.mxu0
    %v2321 = vmul.f32 %v2316, 0.25
    %v2323 = vlaneseq
    %v2324 = vshrl.u32 %v2323, 7
    %v2325 = vsub.s32 0, %v2324
    %v2326 = vrot.slane %v2272, %v2325
    %v2328 = vadd.f32 %v2321, %v2326
    %v2329 = vsel %vm1658, %v2328, -inf
    %2330 = vmax.xlane.f32.xlu0 %v2329
    %v2331 = vpop.xlane.xlu0 %2330
    %v2332 = vsub.f32 %v2328, %v2331
    %v2333 = vmul.f32 %v2332, 1.442695
    %v2334 = vpow.pop %v2333
    %v2335 = vsel %vm1658, %v2334, 0.0
    %2336 = vadd.xlane.f32.xlu0 %v2335
    %v2337 = vpop.xlane.xlu0 %2336
    %v2338 = vrcp.pop %v2337
    %v2339 = vmul.f32 %v2334, %v2338
    %v2340 = vpack.c.bf16 %v2339, %v2339
    %v2341 = vpack.c.bf16 %v1598, %v1598
    %v2343 = vsel %vm1658, %v2340, 0
    %v2346 = vsel %vm1675, %v2341, 0
    %2348 = vmatprep.subr.bf16.mxu0 0
    %2349 = vmatpush1.bf16.msra.mxu0 0
    %2350 = vmatprep.subr.bf16.mxu0 0
    %2351 = vmatpush1.bf16.msra.mxu0 0
    %2352 = vmatprep.subr.bf16.mxu0 0
    %2353 = vmatpush1.bf16.msra.mxu0 0
    %2354 = vmatprep.subr.bf16.mxu0 0
    %2355 = vmatpush1.bf16.msra.mxu0 0
    %2356 = vmatprep.subr.bf16.mxu0 0
    %2357 = vmatpush1.bf16.msra.mxu0 0
    %2358 = vmatprep.subr.bf16.mxu0 0
    %2359 = vmatpush1.bf16.msra.mxu0 0
    %2360 = vmatprep.subr.bf16.mxu0 0
    %2361 = vmatpush1.bf16.msra.mxu0 0
    %2362 = vmatprep.subr.bf16.mxu0 0
    %2363 = vmatpush1.bf16.msra.mxu0 %v2346
    %2364 = vmatprep.subr.bf16.mxu0 0
    %2365 = vmatpush2.bf16.msra.mxu0 0
    %2366 = vmatprep.subr.bf16.mxu0 0
    %2367 = vmatpush2.bf16.msra.mxu0 0
    %2368 = vmatprep.subr.bf16.mxu0 0
    %2369 = vmatpush2.bf16.msra.mxu0 0
    %2370 = vmatprep.subr.bf16.mxu0 0
    %2371 = vmatpush2.bf16.msra.mxu0 0
    %2372 = vmatprep.subr.bf16.mxu0 0
    %2373 = vmatpush2.bf16.msra.mxu0 0
    %2374 = vmatprep.subr.bf16.mxu0 0
    %2375 = vmatpush2.bf16.msra.mxu0 0
    %2376 = vmatprep.subr.bf16.mxu0 0
    %2377 = vmatpush2.bf16.msra.mxu0 0
    %2378 = vmatprep.subr.bf16.mxu0 0
    %2379 = vmatpush2.bf16.msra.mxu0 0
    %2380 = vmatprep.mubr.bf16.mxu0 0
    %2381 = vmatmul.mubr.bf16.gmra.mxu0 %v2343
    %v2382 = vpop.f32.mrf.mxu0
    %v2383 = vadd.f32 0.0, %v2382
    %v2384 = vpop.f32.mrf.mxu0
    %v2385 = vpop.f32.mrf.mxu0
    %v2386 = vpop.f32.mrf.mxu0
    %2387 = vdwg.mxu0
    %v2388 = vpack.c.bf16 %v2383, %v2383
    %2390 = vrot.lane.b32.xlu0 %v2273, 112
    %v2391 = vpop.permute.xlu0 %2390
    %2393 = vrot.lane.b32.xlu0 %v2274, 112
    %v2394 = vpop.permute.xlu0 %2393
    %v2396 = vsel %vm112, %v2391, 0
    %v2399 = vsel %vm112, %v2394, 0
    %2401 = vmatprep.subr.bf16.mxu0 0
    %2402 = vmatpush1.bf16.xpose.msra.mxu0 0
    %2403 = vmatprep.subr.bf16.mxu0 0
    %2404 = vmatpush1.bf16.xpose.msra.mxu0 0
    %2405 = vmatprep.subr.bf16.mxu0 0
    %2406 = vmatpush1.bf16.xpose.msra.mxu0 0
    %2407 = vmatprep.subr.bf16.mxu0 0
    %2408 = vmatpush1.bf16.xpose.msra.mxu0 0
    %2409 = vmatprep.subr.bf16.mxu0 0
    %2410 = vmatpush1.bf16.xpose.msra.mxu0 0
    %2411 = vmatprep.subr.bf16.mxu0 0
    %2412 = vmatpush1.bf16.xpose.msra.mxu0 0
    %2413 = vmatprep.subr.bf16.mxu0 0
    %2414 = vmatpush1.bf16.xpose.msra.mxu0 0
    %2415 = vmatprep.subr.bf16.mxu0 0
    %2416 = vmatpush1.bf16.xpose.msra.mxu0 %v2399
    %2417 = vmatprep.subr.bf16.mxu0 0
    %2418 = vmatpush2.bf16.xpose.msra.mxu0 0
    %2419 = vmatprep.subr.bf16.mxu0 0
    %2420 = vmatpush2.bf16.xpose.msra.mxu0 0
    %2421 = vmatprep.subr.bf16.mxu0 0
    %2422 = vmatpush2.bf16.xpose.msra.mxu0 0
    %2423 = vmatprep.subr.bf16.mxu0 0
    %2424 = vmatpush2.bf16.xpose.msra.mxu0 0
    %2425 = vmatprep.subr.bf16.mxu0 0
    %2426 = vmatpush2.bf16.xpose.msra.mxu0 0
    %2427 = vmatprep.subr.bf16.mxu0 0
    %2428 = vmatpush2.bf16.xpose.msra.mxu0 0
    %2429 = vmatprep.subr.bf16.mxu0 0
    %2430 = vmatpush2.bf16.xpose.msra.mxu0 0
    %2431 = vmatprep.subr.bf16.mxu0 0
    %2432 = vmatpush2.bf16.xpose.msra.mxu0 0
    %2433 = vmatprep.mubr.bf16.mxu0 0
    %2434 = vmatmul.mubr.bf16.gmra.mxu0 %v2396
    %v2435 = vpop.f32.mrf.mxu0
    %v2436 = vadd.f32 0.0, %v2435
    %v2437 = vpop.f32.mrf.mxu0
    %v2438 = vpop.f32.mrf.mxu0
    %v2439 = vpop.f32.mrf.mxu0
    %2440 = vdwg.mxu0
    %v2441 = vmul.f32 %v2436, 0.25
    %v2442 = vadd.f32 %v2441, %v2326
    %v2443 = vsel %vm1658, %v2442, -inf
    %2444 = vmax.xlane.f32.xlu0 %v2443
    %v2445 = vpop.xlane.xlu0 %2444
    %v2446 = vsub.f32 %v2442, %v2445
    %v2447 = vmul.f32 %v2446, 1.442695
    %v2448 = vpow.pop %v2447
    %v2449 = vsel %vm1658, %v2448, 0.0
    %2450 = vadd.xlane.f32.xlu0 %v2449
    %v2451 = vpop.xlane.xlu0 %2450
    %v2452 = vrcp.pop %v2451
    %v2453 = vmul.f32 %v2448, %v2452
    %v2454 = vpack.c.bf16 %v2453, %v2453
    %2456 = vrot.lane.b32.xlu0 %v2341, 112
    %v2457 = vpop.permute.xlu0 %2456
    %v2459 = vsel %vm1658, %v2454, 0
    %v2462 = vsel %vm1675, %v2457, 0
    %2464 = vmatprep.subr.bf16.mxu0 0
    %2465 = vmatpush1.bf16.msra.mxu0 0
    %2466 = vmatprep.subr.bf16.mxu0 0
    %2467 = vmatpush1.bf16.msra.mxu0 0
    %2468 = vmatprep.subr.bf16.mxu0 0
    %2469 = vmatpush1.bf16.msra.mxu0 0
    %2470 = vmatprep.subr.bf16.mxu0 0
    %2471 = vmatpush1.bf16.msra.mxu0 0
    %2472 = vmatprep.subr.bf16.mxu0 0
    %2473 = vmatpush1.bf16.msra.mxu0 0
    %2474 = vmatprep.subr.bf16.mxu0 0
    %2475 = vmatpush1.bf16.msra.mxu0 0
    %2476 = vmatprep.subr.bf16.mxu0 0
    %2477 = vmatpush1.bf16.msra.mxu0 0
    %2478 = vmatprep.subr.bf16.mxu0 0
    %2479 = vmatpush1.bf16.msra.mxu0 %v2462
    %2480 = vmatprep.subr.bf16.mxu0 0
    %2481 = vmatpush2.bf16.msra.mxu0 0
    %2482 = vmatprep.subr.bf16.mxu0 0
    %2483 = vmatpush2.bf16.msra.mxu0 0
    %2484 = vmatprep.subr.bf16.mxu0 0
    %2485 = vmatpush2.bf16.msra.mxu0 0
    %2486 = vmatprep.subr.bf16.mxu0 0
    %2487 = vmatpush2.bf16.msra.mxu0 0
    %2488 = vmatprep.subr.bf16.mxu0 0
    %2489 = vmatpush2.bf16.msra.mxu0 0
    %2490 = vmatprep.subr.bf16.mxu0 0
    %2491 = vmatpush2.bf16.msra.mxu0 0
    %2492 = vmatprep.subr.bf16.mxu0 0
    %2493 = vmatpush2.bf16.msra.mxu0 0
    %2494 = vmatprep.subr.bf16.mxu0 0
    %2495 = vmatpush2.bf16.msra.mxu0 0
    %2496 = vmatprep.mubr.bf16.mxu0 0
    %2497 = vmatmul.mubr.bf16.gmra.mxu0 %v2459
    %v2498 = vpop.f32.mrf.mxu0
    %v2499 = vadd.f32 0.0, %v2498
    %v2500 = vpop.f32.mrf.mxu0
    %v2501 = vpop.f32.mrf.mxu0
    %v2502 = vpop.f32.mrf.mxu0
    %2503 = vdwg.mxu0
    %v2504 = vpack.c.bf16 %v2499, %v2499
    %v2506 = vsel %vm112, %v2504, 0
    %2508 = vmatprep.subr.bf16.mxu0 0
    %2509 = vmatpush1.bf16.msra.mxu0 0
    %2510 = vmatprep.subr.bf16.mxu0 0
    %2511 = vmatpush1.bf16.msra.mxu0 0
    %2512 = vmatprep.subr.bf16.mxu0 0
    %2513 = vmatpush1.bf16.msra.mxu0 0
    %2514 = vmatprep.subr.bf16.mxu0 0
    %2515 = vmatpush1.bf16.msra.mxu0 0
    %2516 = vmatprep.subr.bf16.mxu0 0
    %2517 = vmatpush1.bf16.msra.mxu0 0
    %2518 = vmatprep.subr.bf16.mxu0 0
    %2519 = vmatpush1.bf16.msra.mxu0 0
    %2520 = vmatprep.subr.bf16.mxu0 0
    %2521 = vmatpush1.bf16.msra.mxu0 0
    %2522 = vmatprep.subr.bf16.mxu0 0
    %2523 = vmatpush1.bf16.msra.mxu0 %v1845
    %2524 = vmatprep.subr.bf16.mxu0 0
    %2525 = vmatpush2.bf16.msra.mxu0 0
    %2526 = vmatprep.subr.bf16.mxu0 0
    %2527 = vmatpush2.bf16.msra.mxu0 0
    %2528 = vmatprep.subr.bf16.mxu0 0
    %2529 = vmatpush2.bf16.msra.mxu0 0
    %2530 = vmatprep.subr.bf16.mxu0 0
    %2531 = vmatpush2.bf16.msra.mxu0 0
    %2532 = vmatprep.subr.bf16.mxu0 0
    %2533 = vmatpush2.bf16.msra.mxu0 0
    %2534 = vmatprep.subr.bf16.mxu0 0
    %2535 = vmatpush2.bf16.msra.mxu0 0
    %2536 = vmatprep.subr.bf16.mxu0 0
    %2537 = vmatpush2.bf16.msra.mxu0 0
    %2538 = vmatprep.subr.bf16.mxu0 0
    %2539 = vmatpush2.bf16.msra.mxu0 0
    %2540 = vmatprep.mubr.bf16.mxu0 0
    %2541 = vmatmul.mubr.bf16.gmra.mxu0 %v2506
    %v2542 = vpop.f32.mrf.mxu0
    %v2543 = vadd.f32 0.0, %v2542
    %v2544 = vpop.f32.mrf.mxu0
    %v2545 = vpop.f32.mrf.mxu0
    %v2546 = vpop.f32.mrf.mxu0
    %2547 = vdwg.mxu0
    %v2549 = vsel %vm112, %v2388, 0
    %2551 = vmatprep.subr.bf16.mxu0 0
    %2552 = vmatpush1.bf16.msra.mxu0 0
    %2553 = vmatprep.subr.bf16.mxu0 0
    %2554 = vmatpush1.bf16.msra.mxu0 0
    %2555 = vmatprep.subr.bf16.mxu0 0
    %2556 = vmatpush1.bf16.msra.mxu0 0
    %2557 = vmatprep.subr.bf16.mxu0 0
    %2558 = vmatpush1.bf16.msra.mxu0 0
    %2559 = vmatprep.subr.bf16.mxu0 0
    %2560 = vmatpush1.bf16.msra.mxu0 0
    %2561 = vmatprep.subr.bf16.mxu0 0
    %2562 = vmatpush1.bf16.msra.mxu0 0
    %2563 = vmatprep.subr.bf16.mxu0 0
    %2564 = vmatpush1.bf16.msra.mxu0 0
    %2565 = vmatprep.subr.bf16.mxu0 0
    %2566 = vmatpush1.bf16.msra.mxu0 %v1894
    %2567 = vmatprep.subr.bf16.mxu0 0
    %2568 = vmatpush2.bf16.msra.mxu0 0
    %2569 = vmatprep.subr.bf16.mxu0 0
    %2570 = vmatpush2.bf16.msra.mxu0 0
    %2571 = vmatprep.subr.bf16.mxu0 0
    %2572 = vmatpush2.bf16.msra.mxu0 0
    %2573 = vmatprep.subr.bf16.mxu0 0
    %2574 = vmatpush2.bf16.msra.mxu0 0
    %2575 = vmatprep.subr.bf16.mxu0 0
    %2576 = vmatpush2.bf16.msra.mxu0 0
    %2577 = vmatprep.subr.bf16.mxu0 0
    %2578 = vmatpush2.bf16.msra.mxu0 0
    %2579 = vmatprep.subr.bf16.mxu0 0
    %2580 = vmatpush2.bf16.msra.mxu0 0
    %2581 = vmatprep.subr.bf16.mxu0 0
    %2582 = vmatpush2.bf16.msra.mxu0 0
    %2583 = vmatprep.mubr.bf16.mxu0 0
    %2584 = vmatmul.mubr.bf16.gmra.mxu0 %v2549
    %v2585 = vpop.f32.mrf.mxu0
    %v2586 = vadd.f32 %v2543, %v2585
    %v2587 = vpop.f32.mrf.mxu0
    %v2588 = vpop.f32.mrf.mxu0
    %v2589 = vpop.f32.mrf.mxu0
    %2590 = vdwg.mxu0
    %2591 = vrot.lane.b32.xlu0 %v2273, 96
    %v2592 = vpop.permute.xlu0 %2591
    %2593 = vrot.lane.b32.xlu0 %v2274, 96
    %v2594 = vpop.permute.xlu0 %2593
    %v2596 = vsel %vm112, %v2592, 0
    %v2599 = vsel %vm112, %v2594, 0
    %2601 = vmatprep.subr.bf16.mxu0 0
    %2602 = vmatpush1.bf16.xpose.msra.mxu0 0
    %2603 = vmatprep.subr.bf16.mxu0 0
    %2604 = vmatpush1.bf16.xpose.msra.mxu0 0
    %2605 = vmatprep.subr.bf16.mxu0 0
    %2606 = vmatpush1.bf16.xpose.msra.mxu0 0
    %2607 = vmatprep.subr.bf16.mxu0 0
    %2608 = vmatpush1.bf16.xpose.msra.mxu0 0
    %2609 = vmatprep.subr.bf16.mxu0 0
    %2610 = vmatpush1.bf16.xpose.msra.mxu0 0
    %2611 = vmatprep.subr.bf16.mxu0 0
    %2612 = vmatpush1.bf16.xpose.msra.mxu0 0
    %2613 = vmatprep.subr.bf16.mxu0 0
    %2614 = vmatpush1.bf16.xpose.msra.mxu0 0
    %2615 = vmatprep.subr.bf16.mxu0 0
    %2616 = vmatpush1.bf16.xpose.msra.mxu0 %v2599
    %2617 = vmatprep.subr.bf16.mxu0 0
    %2618 = vmatpush2.bf16.xpose.msra.mxu0 0
    %2619 = vmatprep.subr.bf16.mxu0 0
    %2620 = vmatpush2.bf16.xpose.msra.mxu0 0
    %2621 = vmatprep.subr.bf16.mxu0 0
    %2622 = vmatpush2.bf16.xpose.msra.mxu0 0
    %2623 = vmatprep.subr.bf16.mxu0 0
    %2624 = vmatpush2.bf16.xpose.msra.mxu0 0
    %2625 = vmatprep.subr.bf16.mxu0 0
    %2626 = vmatpush2.bf16.xpose.msra.mxu0 0
    %2627 = vmatprep.subr.bf16.mxu0 0
    %2628 = vmatpush2.bf16.xpose.msra.mxu0 0
    %2629 = vmatprep.subr.bf16.mxu0 0
    %2630 = vmatpush2.bf16.xpose.msra.mxu0 0
    %2631 = vmatprep.subr.bf16.mxu0 0
    %2632 = vmatpush2.bf16.xpose.msra.mxu0 0
    %2633 = vmatprep.mubr.bf16.mxu0 0
    %2634 = vmatmul.mubr.bf16.gmra.mxu0 %v2596
    %v2635 = vpop.f32.mrf.mxu0
    %v2636 = vadd.f32 0.0, %v2635
    %v2637 = vpop.f32.mrf.mxu0
    %v2638 = vpop.f32.mrf.mxu0
    %v2639 = vpop.f32.mrf.mxu0
    %2640 = vdwg.mxu0
    %v2641 = vmul.f32 %v2636, 0.25
    %v2642 = vadd.f32 %v2641, %v2326
    %v2643 = vsel %vm1658, %v2642, -inf
    %2644 = vmax.xlane.f32.xlu0 %v2643
    %v2645 = vpop.xlane.xlu0 %2644
    %v2646 = vsub.f32 %v2642, %v2645
    %v2647 = vmul.f32 %v2646, 1.442695
    %v2648 = vpow.pop %v2647
    %v2649 = vsel %vm1658, %v2648, 0.0
    %2650 = vadd.xlane.f32.xlu0 %v2649
    %v2651 = vpop.xlane.xlu0 %2650
    %v2652 = vrcp.pop %v2651
    %v2653 = vmul.f32 %v2648, %v2652
    %v2654 = vpack.c.bf16 %v2653, %v2653
    %2655 = vrot.lane.b32.xlu0 %v2341, 96
    %v2656 = vpop.permute.xlu0 %2655
    %v2658 = vsel %vm1658, %v2654, 0
    %v2661 = vsel %vm1675, %v2656, 0
    %2663 = vmatprep.subr.bf16.mxu0 0
    %2664 = vmatpush1.bf16.msra.mxu0 0
    %2665 = vmatprep.subr.bf16.mxu0 0
    %2666 = vmatpush1.bf16.msra.mxu0 0
    %2667 = vmatprep.subr.bf16.mxu0 0
    %2668 = vmatpush1.bf16.msra.mxu0 0
    %2669 = vmatprep.subr.bf16.mxu0 0
    %2670 = vmatpush1.bf16.msra.mxu0 0
    %2671 = vmatprep.subr.bf16.mxu0 0
    %2672 = vmatpush1.bf16.msra.mxu0 0
    %2673 = vmatprep.subr.bf16.mxu0 0
    %2674 = vmatpush1.bf16.msra.mxu0 0
    %2675 = vmatprep.subr.bf16.mxu0 0
    %2676 = vmatpush1.bf16.msra.mxu0 0
    %2677 = vmatprep.subr.bf16.mxu0 0
    %2678 = vmatpush1.bf16.msra.mxu0 %v2661
    %2679 = vmatprep.subr.bf16.mxu0 0
    %2680 = vmatpush2.bf16.msra.mxu0 0
    %2681 = vmatprep.subr.bf16.mxu0 0
    %2682 = vmatpush2.bf16.msra.mxu0 0
    %2683 = vmatprep.subr.bf16.mxu0 0
    %2684 = vmatpush2.bf16.msra.mxu0 0
    %2685 = vmatprep.subr.bf16.mxu0 0
    %2686 = vmatpush2.bf16.msra.mxu0 0
    %2687 = vmatprep.subr.bf16.mxu0 0
    %2688 = vmatpush2.bf16.msra.mxu0 0
    %2689 = vmatprep.subr.bf16.mxu0 0
    %2690 = vmatpush2.bf16.msra.mxu0 0
    %2691 = vmatprep.subr.bf16.mxu0 0
    %2692 = vmatpush2.bf16.msra.mxu0 0
    %2693 = vmatprep.subr.bf16.mxu0 0
    %2694 = vmatpush2.bf16.msra.mxu0 0
    %2695 = vmatprep.mubr.bf16.mxu0 0
    %2696 = vmatmul.mubr.bf16.gmra.mxu0 %v2658
    %v2697 = vpop.f32.mrf.mxu0
    %v2698 = vadd.f32 0.0, %v2697
    %v2699 = vpop.f32.mrf.mxu0
    %v2700 = vpop.f32.mrf.mxu0
    %v2701 = vpop.f32.mrf.mxu0
    %2702 = vdwg.mxu0
    %v2703 = vpack.c.bf16 %v2698, %v2698
    %v2705 = vsel %vm112, %v2703, 0
    %2707 = vmatprep.subr.bf16.mxu0 0
    %2708 = vmatpush1.bf16.msra.mxu0 0
    %2709 = vmatprep.subr.bf16.mxu0 0
    %2710 = vmatpush1.bf16.msra.mxu0 0
    %2711 = vmatprep.subr.bf16.mxu0 0
    %2712 = vmatpush1.bf16.msra.mxu0 0
    %2713 = vmatprep.subr.bf16.mxu0 0
    %2714 = vmatpush1.bf16.msra.mxu0 0
    %2715 = vmatprep.subr.bf16.mxu0 0
    %2716 = vmatpush1.bf16.msra.mxu0 0
    %2717 = vmatprep.subr.bf16.mxu0 0
    %2718 = vmatpush1.bf16.msra.mxu0 0
    %2719 = vmatprep.subr.bf16.mxu0 0
    %2720 = vmatpush1.bf16.msra.mxu0 0
    %2721 = vmatprep.subr.bf16.mxu0 0
    %2722 = vmatpush1.bf16.msra.mxu0 %v2059
    %2723 = vmatprep.subr.bf16.mxu0 0
    %2724 = vmatpush2.bf16.msra.mxu0 0
    %2725 = vmatprep.subr.bf16.mxu0 0
    %2726 = vmatpush2.bf16.msra.mxu0 0
    %2727 = vmatprep.subr.bf16.mxu0 0
    %2728 = vmatpush2.bf16.msra.mxu0 0
    %2729 = vmatprep.subr.bf16.mxu0 0
    %2730 = vmatpush2.bf16.msra.mxu0 0
    %2731 = vmatprep.subr.bf16.mxu0 0
    %2732 = vmatpush2.bf16.msra.mxu0 0
    %2733 = vmatprep.subr.bf16.mxu0 0
    %2734 = vmatpush2.bf16.msra.mxu0 0
    %2735 = vmatprep.subr.bf16.mxu0 0
    %2736 = vmatpush2.bf16.msra.mxu0 0
    %2737 = vmatprep.subr.bf16.mxu0 0
    %2738 = vmatpush2.bf16.msra.mxu0 0
    %2739 = vmatprep.mubr.bf16.mxu0 0
    %2740 = vmatmul.mubr.bf16.gmra.mxu0 %v2705
    %v2741 = vpop.f32.mrf.mxu0
    %v2742 = vadd.f32 0.0, %v2741
    %v2743 = vpop.f32.mrf.mxu0
    %v2744 = vpop.f32.mrf.mxu0
    %v2745 = vpop.f32.mrf.mxu0
    %2746 = vdwg.mxu0
    %v2747 = vadd.f32 %v2586, %v2742
    %2748 = vrot.lane.b32.xlu0 %v2273, 80
    %v2749 = vpop.permute.xlu0 %2748
    %2750 = vrot.lane.b32.xlu0 %v2274, 80
    %v2751 = vpop.permute.xlu0 %2750
    %v2753 = vsel %vm112, %v2749, 0
    %v2756 = vsel %vm112, %v2751, 0
    %2758 = vmatprep.subr.bf16.mxu0 0
    %2759 = vmatpush1.bf16.xpose.msra.mxu0 0
    %2760 = vmatprep.subr.bf16.mxu0 0
    %2761 = vmatpush1.bf16.xpose.msra.mxu0 0
    %2762 = vmatprep.subr.bf16.mxu0 0
    %2763 = vmatpush1.bf16.xpose.msra.mxu0 0
    %2764 = vmatprep.subr.bf16.mxu0 0
    %2765 = vmatpush1.bf16.xpose.msra.mxu0 0
    %2766 = vmatprep.subr.bf16.mxu0 0
    %2767 = vmatpush1.bf16.xpose.msra.mxu0 0
    %2768 = vmatprep.subr.bf16.mxu0 0
    %2769 = vmatpush1.bf16.xpose.msra.mxu0 0
    %2770 = vmatprep.subr.bf16.mxu0 0
    %2771 = vmatpush1.bf16.xpose.msra.mxu0 0
    %2772 = vmatprep.subr.bf16.mxu0 0
    %2773 = vmatpush1.bf16.xpose.msra.mxu0 %v2756
    %2774 = vmatprep.subr.bf16.mxu0 0
    %2775 = vmatpush2.bf16.xpose.msra.mxu0 0
    %2776 = vmatprep.subr.bf16.mxu0 0
    %2777 = vmatpush2.bf16.xpose.msra.mxu0 0
    %2778 = vmatprep.subr.bf16.mxu0 0
    %2779 = vmatpush2.bf16.xpose.msra.mxu0 0
    %2780 = vmatprep.subr.bf16.mxu0 0
    %2781 = vmatpush2.bf16.xpose.msra.mxu0 0
    %2782 = vmatprep.subr.bf16.mxu0 0
    %2783 = vmatpush2.bf16.xpose.msra.mxu0 0
    %2784 = vmatprep.subr.bf16.mxu0 0
    %2785 = vmatpush2.bf16.xpose.msra.mxu0 0
    %2786 = vmatprep.subr.bf16.mxu0 0
    %2787 = vmatpush2.bf16.xpose.msra.mxu0 0
    %2788 = vmatprep.subr.bf16.mxu0 0
    %2789 = vmatpush2.bf16.xpose.msra.mxu0 0
    %2790 = vmatprep.mubr.bf16.mxu0 0
    %2791 = vmatmul.mubr.bf16.gmra.mxu0 %v2753
    %v2792 = vpop.f32.mrf.mxu0
    %v2793 = vadd.f32 0.0, %v2792
    %v2794 = vpop.f32.mrf.mxu0
    %v2795 = vpop.f32.mrf.mxu0
    %v2796 = vpop.f32.mrf.mxu0
    %2797 = vdwg.mxu0
    %v2798 = vmul.f32 %v2793, 0.25
    %v2799 = vadd.f32 %v2798, %v2326
    %v2800 = vsel %vm1658, %v2799, -inf
    %2801 = vmax.xlane.f32.xlu0 %v2800
    %v2802 = vpop.xlane.xlu0 %2801
    %v2803 = vsub.f32 %v2799, %v2802
    %v2804 = vmul.f32 %v2803, 1.442695
    %v2805 = vpow.pop %v2804
    %v2806 = vsel %vm1658, %v2805, 0.0
    %2807 = vadd.xlane.f32.xlu0 %v2806
    %v2808 = vpop.xlane.xlu0 %2807
    %v2809 = vrcp.pop %v2808
    %v2810 = vmul.f32 %v2805, %v2809
    %v2811 = vpack.c.bf16 %v2810, %v2810
    %2812 = vrot.lane.b32.xlu0 %v2341, 80
    %v2813 = vpop.permute.xlu0 %2812
    %v2815 = vsel %vm1658, %v2811, 0
    %v2818 = vsel %vm1675, %v2813, 0
    %2820 = vmatprep.subr.bf16.mxu0 0
    %2821 = vmatpush1.bf16.msra.mxu0 0
    %2822 = vmatprep.subr.bf16.mxu0 0
    %2823 = vmatpush1.bf16.msra.mxu0 0
    %2824 = vmatprep.subr.bf16.mxu0 0
    %2825 = vmatpush1.bf16.msra.mxu0 0
    %2826 = vmatprep.subr.bf16.mxu0 0
    %2827 = vmatpush1.bf16.msra.mxu0 0
    %2828 = vmatprep.subr.bf16.mxu0 0
    %2829 = vmatpush1.bf16.msra.mxu0 0
    %2830 = vmatprep.subr.bf16.mxu0 0
    %2831 = vmatpush1.bf16.msra.mxu0 0
    %2832 = vmatprep.subr.bf16.mxu0 0
    %2833 = vmatpush1.bf16.msra.mxu0 0
    %2834 = vmatprep.subr.bf16.mxu0 0
    %2835 = vmatpush1.bf16.msra.mxu0 %v2818
    %2836 = vmatprep.subr.bf16.mxu0 0
    %2837 = vmatpush2.bf16.msra.mxu0 0
    %2838 = vmatprep.subr.bf16.mxu0 0
    %2839 = vmatpush2.bf16.msra.mxu0 0
    %2840 = vmatprep.subr.bf16.mxu0 0
    %2841 = vmatpush2.bf16.msra.mxu0 0
    %2842 = vmatprep.subr.bf16.mxu0 0
    %2843 = vmatpush2.bf16.msra.mxu0 0
    %2844 = vmatprep.subr.bf16.mxu0 0
    %2845 = vmatpush2.bf16.msra.mxu0 0
    %2846 = vmatprep.subr.bf16.mxu0 0
    %2847 = vmatpush2.bf16.msra.mxu0 0
    %2848 = vmatprep.subr.bf16.mxu0 0
    %2849 = vmatpush2.bf16.msra.mxu0 0
    %2850 = vmatprep.subr.bf16.mxu0 0
    %2851 = vmatpush2.bf16.msra.mxu0 0
    %2852 = vmatprep.mubr.bf16.mxu0 0
    %2853 = vmatmul.mubr.bf16.gmra.mxu0 %v2815
    %v2854 = vpop.f32.mrf.mxu0
    %v2855 = vadd.f32 0.0, %v2854
    %v2856 = vpop.f32.mrf.mxu0
    %v2857 = vpop.f32.mrf.mxu0
    %v2858 = vpop.f32.mrf.mxu0
    %2859 = vdwg.mxu0
    %v2860 = vpack.c.bf16 %v2855, %v2855
    %v2862 = vsel %vm112, %v2860, 0
    %2864 = vmatprep.subr.bf16.mxu0 0
    %2865 = vmatpush1.bf16.msra.mxu0 0
    %2866 = vmatprep.subr.bf16.mxu0 0
    %2867 = vmatpush1.bf16.msra.mxu0 0
    %2868 = vmatprep.subr.bf16.mxu0 0
    %2869 = vmatpush1.bf16.msra.mxu0 0
    %2870 = vmatprep.subr.bf16.mxu0 0
    %2871 = vmatpush1.bf16.msra.mxu0 0
    %2872 = vmatprep.subr.bf16.mxu0 0
    %2873 = vmatpush1.bf16.msra.mxu0 0
    %2874 = vmatprep.subr.bf16.mxu0 0
    %2875 = vmatpush1.bf16.msra.mxu0 0
    %2876 = vmatprep.subr.bf16.mxu0 0
    %2877 = vmatpush1.bf16.msra.mxu0 0
    %2878 = vmatprep.subr.bf16.mxu0 0
    %2879 = vmatpush1.bf16.msra.mxu0 %v2225
    %2880 = vmatprep.subr.bf16.mxu0 0
    %2881 = vmatpush2.bf16.msra.mxu0 0
    %2882 = vmatprep.subr.bf16.mxu0 0
    %2883 = vmatpush2.bf16.msra.mxu0 0
    %2884 = vmatprep.subr.bf16.mxu0 0
    %2885 = vmatpush2.bf16.msra.mxu0 0
    %2886 = vmatprep.subr.bf16.mxu0 0
    %2887 = vmatpush2.bf16.msra.mxu0 0
    %2888 = vmatprep.subr.bf16.mxu0 0
    %2889 = vmatpush2.bf16.msra.mxu0 0
    %2890 = vmatprep.subr.bf16.mxu0 0
    %2891 = vmatpush2.bf16.msra.mxu0 0
    %2892 = vmatprep.subr.bf16.mxu0 0
    %2893 = vmatpush2.bf16.msra.mxu0 0
    %2894 = vmatprep.subr.bf16.mxu0 0
    %2895 = vmatpush2.bf16.msra.mxu0 0
    %2896 = vmatprep.mubr.bf16.mxu0 0
    %2897 = vmatmul.mubr.bf16.gmra.mxu0 %v2862
    %v2898 = vpop.f32.mrf.mxu0
    %v2899 = vadd.f32 0.0, %v2898
    %v2900 = vpop.f32.mrf.mxu0
    %v2901 = vpop.f32.mrf.mxu0
    %v2902 = vpop.f32.mrf.mxu0
    %2903 = vdwg.mxu0
    %v2904 = vadd.f32 %v2747, %v2899
    %v2905 = vld [vmem:[%s9] sm:$0x1]
    %v2907 = vlaneseq
    %v2908 = vshrl.u32 %v2907, 7
    %v2909 = vsub.s32 0, %v2908
    %v2910 = vrot.slane %v2905, %v2909
    %v2912 = vadd.f32 %v2270, %v2910
    %v2913 = vadd.f32 %v2904, %v2910
    %v2914 = vadd.f32 %v1350, %v2912
    %v2915 = vadd.f32 %v1351, %v2913
    %v2916 = vld [vmem:[%s10] sm:$0x1]
    %s2917 = scalar_lea.vmem %s10, 1
    %v2918 = vld [vmem:[%s2917] sm:$0x1]
    %v2919 = vsel %vm1392, %v2914, 0.0
    %2920 = vadd.xlane.f32.xlu0 %v2919
    %v2921 = vpop.xlane.xlu0 %2920
    %v2922 = vsel %vm1392, %v2915, 0.0
    %2923 = vadd.xlane.f32.xlu0 %v2922
    %v2924 = vpop.xlane.xlu0 %2923
    %v2925 = vrcp.pop 64.0
    %v2926 = vmul.f32 %v2921, %v2925
    %v2927 = vmul.f32 %v2924, %v2925
    %v2928 = vsub.f32 %v2914, %v2926
    %v2929 = vsub.f32 %v2915, %v2927
    %v2930 = vmul.f32 %v2928, %v2928
    %v2931 = vmul.f32 %v2929, %v2929
    %v2932 = vsel %vm1392, %v2930, 0.0
    %2933 = vadd.xlane.f32.xlu0 %v2932
    %v2934 = vpop.xlane.xlu0 %2933
    %v2935 = vsel %vm1392, %v2931, 0.0
    %2936 = vadd.xlane.f32.xlu0 %v2935
    %v2937 = vpop.xlane.xlu0 %2936
    %v2938 = vmul.f32 %v2934, %v2925
    %v2939 = vmul.f32 %v2937, %v2925
    %v2940 = vadd.f32 %v2938, 1e-05
    %v2941 = vadd.f32 %v2939, 1e-05
    %v2942 = vrsqrt.pop %v2940
    %v2943 = vrsqrt.pop %v2941
    %v2944 = vmul.f32 %v2928, %v2942
    %v2945 = vmul.f32 %v2929, %v2943
    %v2947 = vlaneseq
    %v2948 = vshrl.u32 %v2947, 7
    %v2949 = vsub.s32 0, %v2948
    %v2950 = vrot.slane %v2916, %v2949
    %v2952 = vmul.f32 %v2944, %v2950
    %v2953 = vmul.f32 %v2945, %v2950
    %v2955 = vlaneseq
    %v2956 = vshrl.u32 %v2955, 7
    %v2957 = vsub.s32 0, %v2956
    %v2958 = vrot.slane %v2918, %v2957
    %v2960 = vadd.f32 %v2952, %v2958
    %v2961 = vadd.f32 %v2953, %v2958
    %v2962 = vld [vmem:[%s11] sm:$0xf]
    %v2963 = vld [vmem:[%s11 + $0x4] sm:$0xf]
    %v2964 = vld [vmem:[%s11 + $0x8] sm:$0xf]
    %v2965 = vld [vmem:[%s11 + $0xc] sm:$0xf]
    %v2966 = vld [vmem:[%s11 + $0x10] sm:$0xf]
    %v2967 = vld [vmem:[%s11 + $0x14] sm:$0xf]
    %v2968 = vld [vmem:[%s11 + $0x18] sm:$0xf]
    %v2969 = vld [vmem:[%s11 + $0x1c] sm:$0xf]
    %v2970 = vpack.c.bf16 %v2961, %v2960
    %v2971 = vld [vmem:[%s12] sm:$0x1]
    %v2973 = vlaneseq
    %v2974 = vshrl.u32 %v2973, 7
    %v2975 = vsub.s32 0, %v2974
    %v2976 = vrot.slane %v2971, %v2975
    %v2986 = vunpack.c.l.b16 %v2962
    %v2987 = vunpack.c.l.b16 %v2963
    %v2988 = vunpack.c.l.b16 %v2964
    %v2989 = vunpack.c.l.b16 %v2965
    %v2990 = vunpack.c.l.b16 %v2966
    %v2991 = vunpack.c.l.b16 %v2967
    %v2992 = vunpack.c.l.b16 %v2968
    %v2993 = vunpack.c.l.b16 %v2969
    %v2994 = vpack.c.b16 %v2987, %v2986
    %v2995 = vpack.c.b16 %v2989, %v2988
    %v2996 = vpack.c.b16 %v2991, %v2990
    %v2997 = vpack.c.b16 %v2993, %v2992
    %v3003 = vsel %vm1392, %v2970, 0
    %3005 = vmatprep.subr.bf16.mxu0 0
    %3006 = vmatpush1.bf16.msra.mxu0 0
    %3007 = vmatprep.subr.bf16.mxu0 0
    %3008 = vmatpush1.bf16.msra.mxu0 0
    %3009 = vmatprep.subr.bf16.mxu0 0
    %3010 = vmatpush1.bf16.msra.mxu0 0
    %3011 = vmatprep.subr.bf16.mxu0 0
    %3012 = vmatpush1.bf16.msra.mxu0 0
    %3013 = vmatprep.subr.bf16.mxu0 0
    %3014 = vmatpush1.bf16.msra.mxu0 %v2997
    %3015 = vmatprep.subr.bf16.mxu0 0
    %3016 = vmatpush1.bf16.msra.mxu0 %v2996
    %3017 = vmatprep.subr.bf16.mxu0 0
    %3018 = vmatpush1.bf16.msra.mxu0 %v2995
    %3019 = vmatprep.subr.bf16.mxu0 0
    %3020 = vmatpush1.bf16.msra.mxu0 %v2994
    %3021 = vmatprep.subr.bf16.mxu0 0
    %3022 = vmatpush2.bf16.msra.mxu0 0
    %3023 = vmatprep.subr.bf16.mxu0 0
    %3024 = vmatpush2.bf16.msra.mxu0 0
    %3025 = vmatprep.subr.bf16.mxu0 0
    %3026 = vmatpush2.bf16.msra.mxu0 0
    %3027 = vmatprep.subr.bf16.mxu0 0
    %3028 = vmatpush2.bf16.msra.mxu0 0
    %3029 = vmatprep.subr.bf16.mxu0 0
    %3030 = vmatpush2.bf16.msra.mxu0 0
    %3031 = vmatprep.subr.bf16.mxu0 0
    %3032 = vmatpush2.bf16.msra.mxu0 0
    %3033 = vmatprep.subr.bf16.mxu0 0
    %3034 = vmatpush2.bf16.msra.mxu0 0
    %3035 = vmatprep.subr.bf16.mxu0 0
    %3036 = vmatpush2.bf16.msra.mxu0 0
    %3037 = vmatprep.mubr.bf16.mxu0 0
    %3038 = vmatmul.mubr.bf16.gmra.mxu0 %v3003
    %v3039 = vpop.f32.mrf.mxu0
    %v3040 = vadd.f32 %v2976, %v3039
    %v3041 = vpop.f32.mrf.mxu0
    %v3042 = vpop.f32.mrf.mxu0
    %v3043 = vadd.f32 %v2976, %v3042
    %v3044 = vpop.f32.mrf.mxu0
    %3045 = vdwg.mxu0
    %v3046 = vmax.f32 %v3040, 0.0
    %v3047 = vmax.f32 %v3043, 0.0
    %v3048 = vld [vmem:[%s13] sm:$0xf]
    %v3049 = vld [vmem:[%s13 + $0x4] sm:$0xf]
    %v3050 = vld [vmem:[%s13 + $0x8] sm:$0xf]
    %v3051 = vld [vmem:[%s13 + $0xc] sm:$0xf]
    %v3052 = vld [vmem:[%s13 + $0x10] sm:$0xf]
    %v3053 = vld [vmem:[%s13 + $0x14] sm:$0xf]
    %v3054 = vld [vmem:[%s13 + $0x18] sm:$0xf]
    %v3055 = vld [vmem:[%s13 + $0x1c] sm:$0xf]
    %v3056 = vld [vmem:[%s13 + $0x20] sm:$0xf]
    %v3057 = vld [vmem:[%s13 + $0x24] sm:$0xf]
    %v3058 = vld [vmem:[%s13 + $0x28] sm:$0xf]
    %v3059 = vld [vmem:[%s13 + $0x2c] sm:$0xf]
    %v3060 = vld [vmem:[%s13 + $0x30] sm:$0xf]
    %v3061 = vld [vmem:[%s13 + $0x34] sm:$0xf]
    %v3062 = vld [vmem:[%s13 + $0x38] sm:$0xf]
    %v3063 = vld [vmem:[%s13 + $0x3c] sm:$0xf]
    %v3064 = vpack.c.bf16 %v3047, %v3046
    %v3065 = vld [vmem:[%s14] sm:$0x1]
    %v3067 = vlaneseq
    %v3068 = vshrl.u32 %v3067, 7
    %v3069 = vsub.s32 0, %v3068
    %v3070 = vrot.slane %v3065, %v3069
    %v3088 = vunpack.c.l.b16 %v3048
    %v3089 = vunpack.c.l.b16 %v3049
    %v3090 = vunpack.c.l.b16 %v3050
    %v3091 = vunpack.c.l.b16 %v3051
    %v3092 = vunpack.c.l.b16 %v3052
    %v3093 = vunpack.c.l.b16 %v3053
    %v3094 = vunpack.c.l.b16 %v3054
    %v3095 = vunpack.c.l.b16 %v3055
    %v3096 = vunpack.c.l.b16 %v3056
    %v3097 = vunpack.c.l.b16 %v3057
    %v3098 = vunpack.c.l.b16 %v3058
    %v3099 = vunpack.c.l.b16 %v3059
    %v3100 = vunpack.c.l.b16 %v3060
    %v3101 = vunpack.c.l.b16 %v3061
    %v3102 = vunpack.c.l.b16 %v3062
    %v3103 = vunpack.c.l.b16 %v3063
    %v3104 = vpack.c.b16 %v3089, %v3088
    %v3105 = vpack.c.b16 %v3091, %v3090
    %v3106 = vpack.c.b16 %v3093, %v3092
    %v3107 = vpack.c.b16 %v3095, %v3094
    %v3108 = vpack.c.b16 %v3097, %v3096
    %v3109 = vpack.c.b16 %v3099, %v3098
    %v3110 = vpack.c.b16 %v3101, %v3100
    %v3111 = vpack.c.b16 %v3103, %v3102
    %3120 = vmatprep.subr.bf16.mxu0 0
    %3121 = vmatpush1.bf16.msra.mxu0 %v3111
    %3122 = vmatprep.subr.bf16.mxu0 0
    %3123 = vmatpush1.bf16.msra.mxu0 %v3110
    %3124 = vmatprep.subr.bf16.mxu0 0
    %3125 = vmatpush1.bf16.msra.mxu0 %v3109
    %3126 = vmatprep.subr.bf16.mxu0 0
    %3127 = vmatpush1.bf16.msra.mxu0 %v3108
    %3128 = vmatprep.subr.bf16.mxu0 0
    %3129 = vmatpush1.bf16.msra.mxu0 %v3107
    %3130 = vmatprep.subr.bf16.mxu0 0
    %3131 = vmatpush1.bf16.msra.mxu0 %v3106
    %3132 = vmatprep.subr.bf16.mxu0 0
    %3133 = vmatpush1.bf16.msra.mxu0 %v3105
    %3134 = vmatprep.subr.bf16.mxu0 0
    %3135 = vmatpush1.bf16.msra.mxu0 %v3104
    %3136 = vmatprep.subr.bf16.mxu0 0
    %3137 = vmatpush2.bf16.msra.mxu0 0
    %3138 = vmatprep.subr.bf16.mxu0 0
    %3139 = vmatpush2.bf16.msra.mxu0 0
    %3140 = vmatprep.subr.bf16.mxu0 0
    %3141 = vmatpush2.bf16.msra.mxu0 0
    %3142 = vmatprep.subr.bf16.mxu0 0
    %3143 = vmatpush2.bf16.msra.mxu0 0
    %3144 = vmatprep.subr.bf16.mxu0 0
    %3145 = vmatpush2.bf16.msra.mxu0 0
    %3146 = vmatprep.subr.bf16.mxu0 0
    %3147 = vmatpush2.bf16.msra.mxu0 0
    %3148 = vmatprep.subr.bf16.mxu0 0
    %3149 = vmatpush2.bf16.msra.mxu0 0
    %3150 = vmatprep.subr.bf16.mxu0 0
    %3151 = vmatpush2.bf16.msra.mxu0 0
    %3152 = vmatprep.mubr.bf16.mxu0 0
    %3153 = vmatmul.mubr.bf16.gmra.mxu0 %v3064
    %v3154 = vpop.f32.mrf.mxu0
    %v3155 = vadd.f32 %v3070, %v3154
    %v3156 = vpop.f32.mrf.mxu0
    %v3157 = vpop.f32.mrf.mxu0
    %v3158 = vadd.f32 %v3070, %v3157
    %v3159 = vpop.f32.mrf.mxu0
    %3160 = vdwg.mxu0
    %v3161 = vadd.f32 %v2960, %v3155
    %v3162 = vadd.f32 %v2961, %v3158
    %s3163 = scalar_lea.vmem %s10, 2
    %v3164 = vld [vmem:[%s3163] sm:$0x1]
    %s3165 = scalar_lea.vmem %s10, 3
    %v3166 = vld [vmem:[%s3165] sm:$0x1]
    %v3167 = vsel %vm1392, %v3161, 0.0
    %3168 = vadd.xlane.f32.xlu0 %v3167
    %v3169 = vpop.xlane.xlu0 %3168
    %v3170 = vsel %vm1392, %v3162, 0.0
    %3171 = vadd.xlane.f32.xlu0 %v3170
    %v3172 = vpop.xlane.xlu0 %3171
    %v3173 = vmul.f32 %v3169, %v2925
    %v3174 = vmul.f32 %v3172, %v2925
    %v3175 = vsub.f32 %v3161, %v3173
    %v3176 = vsub.f32 %v3162, %v3174
    %v3177 = vmul.f32 %v3175, %v3175
    %v3178 = vmul.f32 %v3176, %v3176
    %v3179 = vsel %vm1392, %v3177, 0.0
    %3180 = vadd.xlane.f32.xlu0 %v3179
    %v3181 = vpop.xlane.xlu0 %3180
    %v3182 = vsel %vm1392, %v3178, 0.0
    %3183 = vadd.xlane.f32.xlu0 %v3182
    %v3184 = vpop.xlane.xlu0 %3183
    %v3185 = vmul.f32 %v3181, %v2925
    %v3186 = vmul.f32 %v3184, %v2925
    %v3187 = vadd.f32 %v3185, 1e-05
    %v3188 = vadd.f32 %v3186, 1e-05
    %v3189 = vrsqrt.pop %v3187
    %v3190 = vrsqrt.pop %v3188
    %v3191 = vmul.f32 %v3175, %v3189
    %v3192 = vmul.f32 %v3176, %v3190
    %v3194 = vlaneseq
    %v3195 = vshrl.u32 %v3194, 7
    %v3196 = vsub.s32 0, %v3195
    %v3197 = vrot.slane %v3164, %v3196
    %v3199 = vmul.f32 %v3191, %v3197
    %v3200 = vmul.f32 %v3192, %v3197
    %v3202 = vlaneseq
    %v3203 = vshrl.u32 %v3202, 7
    %v3204 = vsub.s32 0, %v3203
    %v3205 = vrot.slane %v3166, %v3204
    %v3207 = vadd.f32 %v3199, %v3205
    %v3208 = vadd.f32 %v3200, %v3205
    %s3209 = scalar_lea.vmem %s6, 96
    %v3210 = vld [vmem:[%s3209] sm:$0xf]
    %v3211 = vld [vmem:[%s3209 + $0x4] sm:$0xf]
    %v3212 = vld [vmem:[%s3209 + $0x8] sm:$0xf]
    %v3213 = vld [vmem:[%s3209 + $0xc] sm:$0xf]
    %v3214 = vld [vmem:[%s3209 + $0x10] sm:$0xf]
    %v3215 = vld [vmem:[%s3209 + $0x14] sm:$0xf]
    %v3216 = vld [vmem:[%s3209 + $0x18] sm:$0xf]
    %v3217 = vld [vmem:[%s3209 + $0x1c] sm:$0xf]
    %v3218 = vpack.c.bf16 %v3208, %v3207
    %s3219 = scalar_lea.vmem %s7, 3
    %v3220 = vld [vmem:[%s3219] sm:$0x1]
    %v3222 = vlaneseq
    %v3223 = vshrl.u32 %v3222, 7
    %v3224 = vsub.s32 0, %v3223
    %v3225 = vrot.slane %v3220, %v3224
    %v3235 = vunpack.c.l.b16 %v3210
    %v3236 = vunpack.c.l.b16 %v3211
    %v3237 = vunpack.c.l.b16 %v3212
    %v3238 = vunpack.c.l.b16 %v3213
    %v3239 = vunpack.c.l.b16 %v3214
    %v3240 = vunpack.c.l.b16 %v3215
    %v3241 = vunpack.c.l.b16 %v3216
    %v3242 = vunpack.c.l.b16 %v3217
    %v3243 = vpack.c.b16 %v3236, %v3235
    %v3244 = vpack.c.b16 %v3238, %v3237
    %v3245 = vpack.c.b16 %v3240, %v3239
    %v3246 = vpack.c.b16 %v3242, %v3241
    %v3252 = vsel %vm1392, %v3218, 0
    %3254 = vmatprep.subr.bf16.mxu0 0
    %3255 = vmatpush1.bf16.msra.mxu0 0
    %3256 = vmatprep.subr.bf16.mxu0 0
    %3257 = vmatpush1.bf16.msra.mxu0 0
    %3258 = vmatprep.subr.bf16.mxu0 0
    %3259 = vmatpush1.bf16.msra.mxu0 0
    %3260 = vmatprep.subr.bf16.mxu0 0
    %3261 = vmatpush1.bf16.msra.mxu0 0
    %3262 = vmatprep.subr.bf16.mxu0 0
    %3263 = vmatpush1.bf16.msra.mxu0 %v3246
    %3264 = vmatprep.subr.bf16.mxu0 0
    %3265 = vmatpush1.bf16.msra.mxu0 %v3245
    %3266 = vmatprep.subr.bf16.mxu0 0
    %3267 = vmatpush1.bf16.msra.mxu0 %v3244
    %3268 = vmatprep.subr.bf16.mxu0 0
    %3269 = vmatpush1.bf16.msra.mxu0 %v3243
    %3270 = vmatprep.subr.bf16.mxu0 0
    %3271 = vmatpush2.bf16.msra.mxu0 0
    %3272 = vmatprep.subr.bf16.mxu0 0
    %3273 = vmatpush2.bf16.msra.mxu0 0
    %3274 = vmatprep.subr.bf16.mxu0 0
    %3275 = vmatpush2.bf16.msra.mxu0 0
    %3276 = vmatprep.subr.bf16.mxu0 0
    %3277 = vmatpush2.bf16.msra.mxu0 0
    %3278 = vmatprep.subr.bf16.mxu0 0
    %3279 = vmatpush2.bf16.msra.mxu0 0
    %3280 = vmatprep.subr.bf16.mxu0 0
    %3281 = vmatpush2.bf16.msra.mxu0 0
    %3282 = vmatprep.subr.bf16.mxu0 0
    %3283 = vmatpush2.bf16.msra.mxu0 0
    %3284 = vmatprep.subr.bf16.mxu0 0
    %3285 = vmatpush2.bf16.msra.mxu0 0
    %3286 = vmatprep.mubr.bf16.mxu0 0
    %3287 = vmatmul.mubr.bf16.gmra.mxu0 %v3252
    %v3288 = vpop.f32.mrf.mxu0
    %v3289 = vadd.f32 %v3225, %v3288
    %v3290 = vpop.f32.mrf.mxu0
    %v3291 = vpop.f32.mrf.mxu0
    %v3292 = vadd.f32 %v3225, %v3291
    %v3293 = vpop.f32.mrf.mxu0
    %3294 = vdwg.mxu0
    %s3295 = scalar_lea.vmem %s6, 128
    %v3296 = vld [vmem:[%s3295] sm:$0xf]
    %v3297 = vld [vmem:[%s3295 + $0x4] sm:$0xf]
    %v3298 = vld [vmem:[%s3295 + $0x8] sm:$0xf]
    %v3299 = vld [vmem:[%s3295 + $0xc] sm:$0xf]
    %v3300 = vld [vmem:[%s3295 + $0x10] sm:$0xf]
    %v3301 = vld [vmem:[%s3295 + $0x14] sm:$0xf]
    %v3302 = vld [vmem:[%s3295 + $0x18] sm:$0xf]
    %v3303 = vld [vmem:[%s3295 + $0x1c] sm:$0xf]
    %s3304 = scalar_lea.vmem %s7, 4
    %v3305 = vld [vmem:[%s3304] sm:$0x1]
    %v3307 = vlaneseq
    %v3308 = vshrl.u32 %v3307, 7
    %v3309 = vsub.s32 0, %v3308
    %v3310 = vrot.slane %v3305, %v3309
    %v3320 = vunpack.c.l.b16 %v3296
    %v3321 = vunpack.c.l.b16 %v3297
    %v3322 = vunpack.c.l.b16 %v3298
    %v3323 = vunpack.c.l.b16 %v3299
    %v3324 = vunpack.c.l.b16 %v3300
    %v3325 = vunpack.c.l.b16 %v3301
    %v3326 = vunpack.c.l.b16 %v3302
    %v3327 = vunpack.c.l.b16 %v3303
    %v3328 = vpack.c.b16 %v3321, %v3320
    %v3329 = vpack.c.b16 %v3323, %v3322
    %v3330 = vpack.c.b16 %v3325, %v3324
    %v3331 = vpack.c.b16 %v3327, %v3326
    %3336 = vmatprep.subr.bf16.mxu0 0
    %3337 = vmatpush1.bf16.msra.mxu0 0
    %3338 = vmatprep.subr.bf16.mxu0 0
    %3339 = vmatpush1.bf16.msra.mxu0 0
    %3340 = vmatprep.subr.bf16.mxu0 0
    %3341 = vmatpush1.bf16.msra.mxu0 0
    %3342 = vmatprep.subr.bf16.mxu0 0
    %3343 = vmatpush1.bf16.msra.mxu0 0
    %3344 = vmatprep.subr.bf16.mxu0 0
    %3345 = vmatpush1.bf16.msra.mxu0 %v3331
    %3346 = vmatprep.subr.bf16.mxu0 0
    %3347 = vmatpush1.bf16.msra.mxu0 %v3330
    %3348 = vmatprep.subr.bf16.mxu0 0
    %3349 = vmatpush1.bf16.msra.mxu0 %v3329
    %3350 = vmatprep.subr.bf16.mxu0 0
    %3351 = vmatpush1.bf16.msra.mxu0 %v3328
    %3352 = vmatprep.subr.bf16.mxu0 0
    %3353 = vmatpush2.bf16.msra.mxu0 0
    %3354 = vmatprep.subr.bf16.mxu0 0
    %3355 = vmatpush2.bf16.msra.mxu0 0
    %3356 = vmatprep.subr.bf16.mxu0 0
    %3357 = vmatpush2.bf16.msra.mxu0 0
    %3358 = vmatprep.subr.bf16.mxu0 0
    %3359 = vmatpush2.bf16.msra.mxu0 0
    %3360 = vmatprep.subr.bf16.mxu0 0
    %3361 = vmatpush2.bf16.msra.mxu0 0
    %3362 = vmatprep.subr.bf16.mxu0 0
    %3363 = vmatpush2.bf16.msra.mxu0 0
    %3364 = vmatprep.subr.bf16.mxu0 0
    %3365 = vmatpush2.bf16.msra.mxu0 0
    %3366 = vmatprep.subr.bf16.mxu0 0
    %3367 = vmatpush2.bf16.msra.mxu0 0
    %3368 = vmatprep.mubr.bf16.mxu0 0
    %3369 = vmatmul.mubr.bf16.gmra.mxu0 %v3252
    %v3370 = vpop.f32.mrf.mxu0
    %v3371 = vadd.f32 %v3310, %v3370
    %v3372 = vpop.f32.mrf.mxu0
    %v3373 = vpop.f32.mrf.mxu0
    %v3374 = vadd.f32 %v3310, %v3373
    %v3375 = vpop.f32.mrf.mxu0
    %3376 = vdwg.mxu0
    %s3377 = scalar_lea.vmem %s6, 160
    %v3378 = vld [vmem:[%s3377] sm:$0xf]
    %v3379 = vld [vmem:[%s3377 + $0x4] sm:$0xf]
    %v3380 = vld [vmem:[%s3377 + $0x8] sm:$0xf]
    %v3381 = vld [vmem:[%s3377 + $0xc] sm:$0xf]
    %v3382 = vld [vmem:[%s3377 + $0x10] sm:$0xf]
    %v3383 = vld [vmem:[%s3377 + $0x14] sm:$0xf]
    %v3384 = vld [vmem:[%s3377 + $0x18] sm:$0xf]
    %v3385 = vld [vmem:[%s3377 + $0x1c] sm:$0xf]
    %s3386 = scalar_lea.vmem %s7, 5
    %v3387 = vld [vmem:[%s3386] sm:$0x1]
    %v3389 = vlaneseq
    %v3390 = vshrl.u32 %v3389, 7
    %v3391 = vsub.s32 0, %v3390
    %v3392 = vrot.slane %v3387, %v3391
    %v3402 = vunpack.c.l.b16 %v3378
    %v3403 = vunpack.c.l.b16 %v3379
    %v3404 = vunpack.c.l.b16 %v3380
    %v3405 = vunpack.c.l.b16 %v3381
    %v3406 = vunpack.c.l.b16 %v3382
    %v3407 = vunpack.c.l.b16 %v3383
    %v3408 = vunpack.c.l.b16 %v3384
    %v3409 = vunpack.c.l.b16 %v3385
    %v3410 = vpack.c.b16 %v3403, %v3402
    %v3411 = vpack.c.b16 %v3405, %v3404
    %v3412 = vpack.c.b16 %v3407, %v3406
    %v3413 = vpack.c.b16 %v3409, %v3408
    %3418 = vmatprep.subr.bf16.mxu0 0
    %3419 = vmatpush1.bf16.msra.mxu0 0
    %3420 = vmatprep.subr.bf16.mxu0 0
    %3421 = vmatpush1.bf16.msra.mxu0 0
    %3422 = vmatprep.subr.bf16.mxu0 0
    %3423 = vmatpush1.bf16.msra.mxu0 0
    %3424 = vmatprep.subr.bf16.mxu0 0
    %3425 = vmatpush1.bf16.msra.mxu0 0
    %3426 = vmatprep.subr.bf16.mxu0 0
    %3427 = vmatpush1.bf16.msra.mxu0 %v3413
    %3428 = vmatprep.subr.bf16.mxu0 0
    %3429 = vmatpush1.bf16.msra.mxu0 %v3412
    %3430 = vmatprep.subr.bf16.mxu0 0
    %3431 = vmatpush1.bf16.msra.mxu0 %v3411
    %3432 = vmatprep.subr.bf16.mxu0 0
    %3433 = vmatpush1.bf16.msra.mxu0 %v3410
    %3434 = vmatprep.subr.bf16.mxu0 0
    %3435 = vmatpush2.bf16.msra.mxu0 0
    %3436 = vmatprep.subr.bf16.mxu0 0
    %3437 = vmatpush2.bf16.msra.mxu0 0
    %3438 = vmatprep.subr.bf16.mxu0 0
    %3439 = vmatpush2.bf16.msra.mxu0 0
    %3440 = vmatprep.subr.bf16.mxu0 0
    %3441 = vmatpush2.bf16.msra.mxu0 0
    %3442 = vmatprep.subr.bf16.mxu0 0
    %3443 = vmatpush2.bf16.msra.mxu0 0
    %3444 = vmatprep.subr.bf16.mxu0 0
    %3445 = vmatpush2.bf16.msra.mxu0 0
    %3446 = vmatprep.subr.bf16.mxu0 0
    %3447 = vmatpush2.bf16.msra.mxu0 0
    %3448 = vmatprep.subr.bf16.mxu0 0
    %3449 = vmatpush2.bf16.msra.mxu0 0
    %3450 = vmatprep.mubr.bf16.mxu0 0
    %3451 = vmatmul.mubr.bf16.gmra.mxu0 %v3252
    %v3452 = vpop.f32.mrf.mxu0
    %v3453 = vadd.f32 %v3392, %v3452
    %v3454 = vpop.f32.mrf.mxu0
    %v3455 = vpop.f32.mrf.mxu0
    %v3456 = vadd.f32 %v3392, %v3455
    %v3457 = vpop.f32.mrf.mxu0
    %3458 = vdwg.mxu0
    %v3459 = vpack.c.bf16 %v3289, %v3289
    %v3460 = vpack.c.bf16 %v3371, %v3371
    %v3462 = vsel %vm112, %v3459, 0
    %v3465 = vsel %vm112, %v3460, 0
    %3467 = vmatprep.subr.bf16.mxu0 0
    %3468 = vmatpush1.bf16.xpose.msra.mxu0 0
    %3469 = vmatprep.subr.bf16.mxu0 0
    %3470 = vmatpush1.bf16.xpose.msra.mxu0 0
    %3471 = vmatprep.subr.bf16.mxu0 0
    %3472 = vmatpush1.bf16.xpose.msra.mxu0 0
    %3473 = vmatprep.subr.bf16.mxu0 0
    %3474 = vmatpush1.bf16.xpose.msra.mxu0 0
    %3475 = vmatprep.subr.bf16.mxu0 0
    %3476 = vmatpush1.bf16.xpose.msra.mxu0 0
    %3477 = vmatprep.subr.bf16.mxu0 0
    %3478 = vmatpush1.bf16.xpose.msra.mxu0 0
    %3479 = vmatprep.subr.bf16.mxu0 0
    %3480 = vmatpush1.bf16.xpose.msra.mxu0 0
    %3481 = vmatprep.subr.bf16.mxu0 0
    %3482 = vmatpush1.bf16.xpose.msra.mxu0 %v3465
    %3483 = vmatprep.subr.bf16.mxu0 0
    %3484 = vmatpush2.bf16.xpose.msra.mxu0 0
    %3485 = vmatprep.subr.bf16.mxu0 0
    %3486 = vmatpush2.bf16.xpose.msra.mxu0 0
    %3487 = vmatprep.subr.bf16.mxu0 0
    %3488 = vmatpush2.bf16.xpose.msra.mxu0 0
    %3489 = vmatprep.subr.bf16.mxu0 0
    %3490 = vmatpush2.bf16.xpose.msra.mxu0 0
    %3491 = vmatprep.subr.bf16.mxu0 0
    %3492 = vmatpush2.bf16.xpose.msra.mxu0 0
    %3493 = vmatprep.subr.bf16.mxu0 0
    %3494 = vmatpush2.bf16.xpose.msra.mxu0 0
    %3495 = vmatprep.subr.bf16.mxu0 0
    %3496 = vmatpush2.bf16.xpose.msra.mxu0 0
    %3497 = vmatprep.subr.bf16.mxu0 0
    %3498 = vmatpush2.bf16.xpose.msra.mxu0 0
    %3499 = vmatprep.mubr.bf16.mxu0 0
    %3500 = vmatmul.mubr.bf16.gmra.mxu0 %v3462
    %v3501 = vpop.f32.mrf.mxu0
    %v3502 = vadd.f32 0.0, %v3501
    %v3503 = vpop.f32.mrf.mxu0
    %v3504 = vpop.f32.mrf.mxu0
    %v3505 = vpop.f32.mrf.mxu0
    %3506 = vdwg.mxu0
    %v3507 = vmul.f32 %v3502, 0.25
    %v3508 = vadd.f32 %v3507, %v1655
    %v3509 = vsel %vm1658, %v3508, -inf
    %3510 = vmax.xlane.f32.xlu0 %v3509
    %v3511 = vpop.xlane.xlu0 %3510
    %v3512 = vsub.f32 %v3508, %v3511
    %v3513 = vmul.f32 %v3512, 1.442695
    %v3514 = vpow.pop %v3513
    %v3515 = vsel %vm1658, %v3514, 0.0
    %3516 = vadd.xlane.f32.xlu0 %v3515
    %v3517 = vpop.xlane.xlu0 %3516
    %v3518 = vrcp.pop %v3517
    %v3519 = vmul.f32 %v3514, %v3518
    %v3520 = vpack.c.bf16 %v3519, %v3519
    %v3521 = vpack.c.bf16 %v3453, %v3453
    %v3523 = vsel %vm1658, %v3520, 0
    %v3526 = vsel %vm1675, %v3521, 0
    %3528 = vmatprep.subr.bf16.mxu0 0
    %3529 = vmatpush1.bf16.msra.mxu0 0
    %3530 = vmatprep.subr.bf16.mxu0 0
    %3531 = vmatpush1.bf16.msra.mxu0 0
    %3532 = vmatprep.subr.bf16.mxu0 0
    %3533 = vmatpush1.bf16.msra.mxu0 0
    %3534 = vmatprep.subr.bf16.mxu0 0
    %3535 = vmatpush1.bf16.msra.mxu0 0
    %3536 = vmatprep.subr.bf16.mxu0 0
    %3537 = vmatpush1.bf16.msra.mxu0 0
    %3538 = vmatprep.subr.bf16.mxu0 0
    %3539 = vmatpush1.bf16.msra.mxu0 0
    %3540 = vmatprep.subr.bf16.mxu0 0
    %3541 = vmatpush1.bf16.msra.mxu0 0
    %3542 = vmatprep.subr.bf16.mxu0 0
    %3543 = vmatpush1.bf16.msra.mxu0 %v3526
    %3544 = vmatprep.subr.bf16.mxu0 0
    %3545 = vmatpush2.bf16.msra.mxu0 0
    %3546 = vmatprep.subr.bf16.mxu0 0
    %3547 = vmatpush2.bf16.msra.mxu0 0
    %3548 = vmatprep.subr.bf16.mxu0 0
    %3549 = vmatpush2.bf16.msra.mxu0 0
    %3550 = vmatprep.subr.bf16.mxu0 0
    %3551 = vmatpush2.bf16.msra.mxu0 0
    %3552 = vmatprep.subr.bf16.mxu0 0
    %3553 = vmatpush2.bf16.msra.mxu0 0
    %3554 = vmatprep.subr.bf16.mxu0 0
    %3555 = vmatpush2.bf16.msra.mxu0 0
    %3556 = vmatprep.subr.bf16.mxu0 0
    %3557 = vmatpush2.bf16.msra.mxu0 0
    %3558 = vmatprep.subr.bf16.mxu0 0
    %3559 = vmatpush2.bf16.msra.mxu0 0
    %3560 = vmatprep.mubr.bf16.mxu0 0
    %3561 = vmatmul.mubr.bf16.gmra.mxu0 %v3523
    %v3562 = vpop.f32.mrf.mxu0
    %v3563 = vadd.f32 0.0, %v3562
    %v3564 = vpop.f32.mrf.mxu0
    %v3565 = vpop.f32.mrf.mxu0
    %v3566 = vpop.f32.mrf.mxu0
    %3567 = vdwg.mxu0
    %s3568 = scalar_lea.vmem %s8, 32
    %v3569 = vld [vmem:[%s3568] sm:$0xf]
    %v3570 = vld [vmem:[%s3568 + $0x4] sm:$0xf]
    %v3571 = vpack.c.bf16 %v3563, %v3563
    %3573 = vrot.lane.b32.xlu0 %v3459, 112
    %v3574 = vpop.permute.xlu0 %3573
    %3576 = vrot.lane.b32.xlu0 %v3460, 112
    %v3577 = vpop.permute.xlu0 %3576
    %v3579 = vsel %vm112, %v3574, 0
    %v3582 = vsel %vm112, %v3577, 0
    %3584 = vmatprep.subr.bf16.mxu0 0
    %3585 = vmatpush1.bf16.xpose.msra.mxu0 0
    %3586 = vmatprep.subr.bf16.mxu0 0
    %3587 = vmatpush1.bf16.xpose.msra.mxu0 0
    %3588 = vmatprep.subr.bf16.mxu0 0
    %3589 = vmatpush1.bf16.xpose.msra.mxu0 0
    %3590 = vmatprep.subr.bf16.mxu0 0
    %3591 = vmatpush1.bf16.xpose.msra.mxu0 0
    %3592 = vmatprep.subr.bf16.mxu0 0
    %3593 = vmatpush1.bf16.xpose.msra.mxu0 0
    %3594 = vmatprep.subr.bf16.mxu0 0
    %3595 = vmatpush1.bf16.xpose.msra.mxu0 0
    %3596 = vmatprep.subr.bf16.mxu0 0
    %3597 = vmatpush1.bf16.xpose.msra.mxu0 0
    %3598 = vmatprep.subr.bf16.mxu0 0
    %3599 = vmatpush1.bf16.xpose.msra.mxu0 %v3582
    %3600 = vmatprep.subr.bf16.mxu0 0
    %3601 = vmatpush2.bf16.xpose.msra.mxu0 0
    %3602 = vmatprep.subr.bf16.mxu0 0
    %3603 = vmatpush2.bf16.xpose.msra.mxu0 0
    %3604 = vmatprep.subr.bf16.mxu0 0
    %3605 = vmatpush2.bf16.xpose.msra.mxu0 0
    %3606 = vmatprep.subr.bf16.mxu0 0
    %3607 = vmatpush2.bf16.xpose.msra.mxu0 0
    %3608 = vmatprep.subr.bf16.mxu0 0
    %3609 = vmatpush2.bf16.xpose.msra.mxu0 0
    %3610 = vmatprep.subr.bf16.mxu0 0
    %3611 = vmatpush2.bf16.xpose.msra.mxu0 0
    %3612 = vmatprep.subr.bf16.mxu0 0
    %3613 = vmatpush2.bf16.xpose.msra.mxu0 0
    %3614 = vmatprep.subr.bf16.mxu0 0
    %3615 = vmatpush2.bf16.xpose.msra.mxu0 0
    %3616 = vmatprep.mubr.bf16.mxu0 0
    %3617 = vmatmul.mubr.bf16.gmra.mxu0 %v3579
    %v3618 = vpop.f32.mrf.mxu0
    %v3619 = vadd.f32 0.0, %v3618
    %v3620 = vpop.f32.mrf.mxu0
    %v3621 = vpop.f32.mrf.mxu0
    %v3622 = vpop.f32.mrf.mxu0
    %3623 = vdwg.mxu0
    %v3624 = vmul.f32 %v3619, 0.25
    %v3625 = vadd.f32 %v3624, %v1655
    %v3626 = vsel %vm1658, %v3625, -inf
    %3627 = vmax.xlane.f32.xlu0 %v3626
    %v3628 = vpop.xlane.xlu0 %3627
    %v3629 = vsub.f32 %v3625, %v3628
    %v3630 = vmul.f32 %v3629, 1.442695
    %v3631 = vpow.pop %v3630
    %v3632 = vsel %vm1658, %v3631, 0.0
    %3633 = vadd.xlane.f32.xlu0 %v3632
    %v3634 = vpop.xlane.xlu0 %3633
    %v3635 = vrcp.pop %v3634
    %v3636 = vmul.f32 %v3631, %v3635
    %v3637 = vpack.c.bf16 %v3636, %v3636
    %3639 = vrot.lane.b32.xlu0 %v3521, 112
    %v3640 = vpop.permute.xlu0 %3639
    %v3642 = vsel %vm1658, %v3637, 0
    %v3645 = vsel %vm1675, %v3640, 0
    %3647 = vmatprep.subr.bf16.mxu0 0
    %3648 = vmatpush1.bf16.msra.mxu0 0
    %3649 = vmatprep.subr.bf16.mxu0 0
    %3650 = vmatpush1.bf16.msra.mxu0 0
    %3651 = vmatprep.subr.bf16.mxu0 0
    %3652 = vmatpush1.bf16.msra.mxu0 0
    %3653 = vmatprep.subr.bf16.mxu0 0
    %3654 = vmatpush1.bf16.msra.mxu0 0
    %3655 = vmatprep.subr.bf16.mxu0 0
    %3656 = vmatpush1.bf16.msra.mxu0 0
    %3657 = vmatprep.subr.bf16.mxu0 0
    %3658 = vmatpush1.bf16.msra.mxu0 0
    %3659 = vmatprep.subr.bf16.mxu0 0
    %3660 = vmatpush1.bf16.msra.mxu0 0
    %3661 = vmatprep.subr.bf16.mxu0 0
    %3662 = vmatpush1.bf16.msra.mxu0 %v3645
    %3663 = vmatprep.subr.bf16.mxu0 0
    %3664 = vmatpush2.bf16.msra.mxu0 0
    %3665 = vmatprep.subr.bf16.mxu0 0
    %3666 = vmatpush2.bf16.msra.mxu0 0
    %3667 = vmatprep.subr.bf16.mxu0 0
    %3668 = vmatpush2.bf16.msra.mxu0 0
    %3669 = vmatprep.subr.bf16.mxu0 0
    %3670 = vmatpush2.bf16.msra.mxu0 0
    %3671 = vmatprep.subr.bf16.mxu0 0
    %3672 = vmatpush2.bf16.msra.mxu0 0
    %3673 = vmatprep.subr.bf16.mxu0 0
    %3674 = vmatpush2.bf16.msra.mxu0 0
    %3675 = vmatprep.subr.bf16.mxu0 0
    %3676 = vmatpush2.bf16.msra.mxu0 0
    %3677 = vmatprep.subr.bf16.mxu0 0
    %3678 = vmatpush2.bf16.msra.mxu0 0
    %3679 = vmatprep.mubr.bf16.mxu0 0
    %3680 = vmatmul.mubr.bf16.gmra.mxu0 %v3642
    %v3681 = vpop.f32.mrf.mxu0
    %v3682 = vadd.f32 0.0, %v3681
    %v3683 = vpop.f32.mrf.mxu0
    %v3684 = vpop.f32.mrf.mxu0
    %v3685 = vpop.f32.mrf.mxu0
    %3686 = vdwg.mxu0
    %s3687 = scalar_lea.vmem %s8, 40
    %v3688 = vld [vmem:[%s3687] sm:$0xf]
    %v3689 = vld [vmem:[%s3687 + $0x4] sm:$0xf]
    %v3690 = vpack.c.bf16 %v3682, %v3682
    %v3693 = vunpack.c.l.b16 %v3688
    %v3694 = vunpack.c.l.b16 %v3689
    %v3695 = vpack.c.b16 %v3694, %v3693
    %v3698 = vsel %vm112, %v3690, 0
    %3700 = vmatprep.subr.bf16.mxu0 0
    %3701 = vmatpush1.bf16.msra.mxu0 0
    %3702 = vmatprep.subr.bf16.mxu0 0
    %3703 = vmatpush1.bf16.msra.mxu0 0
    %3704 = vmatprep.subr.bf16.mxu0 0
    %3705 = vmatpush1.bf16.msra.mxu0 0
    %3706 = vmatprep.subr.bf16.mxu0 0
    %3707 = vmatpush1.bf16.msra.mxu0 0
    %3708 = vmatprep.subr.bf16.mxu0 0
    %3709 = vmatpush1.bf16.msra.mxu0 0
    %3710 = vmatprep.subr.bf16.mxu0 0
    %3711 = vmatpush1.bf16.msra.mxu0 0
    %3712 = vmatprep.subr.bf16.mxu0 0
    %3713 = vmatpush1.bf16.msra.mxu0 0
    %3714 = vmatprep.subr.bf16.mxu0 0
    %3715 = vmatpush1.bf16.msra.mxu0 %v3695
    %3716 = vmatprep.subr.bf16.mxu0 0
    %3717 = vmatpush2.bf16.msra.mxu0 0
    %3718 = vmatprep.subr.bf16.mxu0 0
    %3719 = vmatpush2.bf16.msra.mxu0 0
    %3720 = vmatprep.subr.bf16.mxu0 0
    %3721 = vmatpush2.bf16.msra.mxu0 0
    %3722 = vmatprep.subr.bf16.mxu0 0
    %3723 = vmatpush2.bf16.msra.mxu0 0
    %3724 = vmatprep.subr.bf16.mxu0 0
    %3725 = vmatpush2.bf16.msra.mxu0 0
    %3726 = vmatprep.subr.bf16.mxu0 0
    %3727 = vmatpush2.bf16.msra.mxu0 0
    %3728 = vmatprep.subr.bf16.mxu0 0
    %3729 = vmatpush2.bf16.msra.mxu0 0
    %3730 = vmatprep.subr.bf16.mxu0 0
    %3731 = vmatpush2.bf16.msra.mxu0 0
    %3732 = vmatprep.mubr.bf16.mxu0 0
    %3733 = vmatmul.mubr.bf16.gmra.mxu0 %v3698
    %v3734 = vpop.f32.mrf.mxu0
    %v3735 = vadd.f32 0.0, %v3734
    %v3736 = vpop.f32.mrf.mxu0
    %v3737 = vpop.f32.mrf.mxu0
    %v3738 = vpop.f32.mrf.mxu0
    %3739 = vdwg.mxu0
    %v3742 = vunpack.c.l.b16 %v3569
    %v3743 = vunpack.c.l.b16 %v3570
    %v3744 = vpack.c.b16 %v3743, %v3742
    %v3747 = vsel %vm112, %v3571, 0
    %3749 = vmatprep.subr.bf16.mxu0 0
    %3750 = vmatpush1.bf16.msra.mxu0 0
    %3751 = vmatprep.subr.bf16.mxu0 0
    %3752 = vmatpush1.bf16.msra.mxu0 0
    %3753 = vmatprep.subr.bf16.mxu0 0
    %3754 = vmatpush1.bf16.msra.mxu0 0
    %3755 = vmatprep.subr.bf16.mxu0 0
    %3756 = vmatpush1.bf16.msra.mxu0 0
    %3757 = vmatprep.subr.bf16.mxu0 0
    %3758 = vmatpush1.bf16.msra.mxu0 0
    %3759 = vmatprep.subr.bf16.mxu0 0
    %3760 = vmatpush1.bf16.msra.mxu0 0
    %3761 = vmatprep.subr.bf16.mxu0 0
    %3762 = vmatpush1.bf16.msra.mxu0 0
    %3763 = vmatprep.subr.bf16.mxu0 0
    %3764 = vmatpush1.bf16.msra.mxu0 %v3744
    %3765 = vmatprep.subr.bf16.mxu0 0
    %3766 = vmatpush2.bf16.msra.mxu0 0
    %3767 = vmatprep.subr.bf16.mxu0 0
    %3768 = vmatpush2.bf16.msra.mxu0 0
    %3769 = vmatprep.subr.bf16.mxu0 0
    %3770 = vmatpush2.bf16.msra.mxu0 0
    %3771 = vmatprep.subr.bf16.mxu0 0
    %3772 = vmatpush2.bf16.msra.mxu0 0
    %3773 = vmatprep.subr.bf16.mxu0 0
    %3774 = vmatpush2.bf16.msra.mxu0 0
    %3775 = vmatprep.subr.bf16.mxu0 0
    %3776 = vmatpush2.bf16.msra.mxu0 0
    %3777 = vmatprep.subr.bf16.mxu0 0
    %3778 = vmatpush2.bf16.msra.mxu0 0
    %3779 = vmatprep.subr.bf16.mxu0 0
    %3780 = vmatpush2.bf16.msra.mxu0 0
    %3781 = vmatprep.mubr.bf16.mxu0 0
    %3782 = vmatmul.mubr.bf16.gmra.mxu0 %v3747
    %v3783 = vpop.f32.mrf.mxu0
    %v3784 = vadd.f32 %v3735, %v3783
    %v3785 = vpop.f32.mrf.mxu0
    %v3786 = vpop.f32.mrf.mxu0
    %v3787 = vpop.f32.mrf.mxu0
    %3788 = vdwg.mxu0
    %3789 = vrot.lane.b32.xlu0 %v3459, 96
    %v3790 = vpop.permute.xlu0 %3789
    %3791 = vrot.lane.b32.xlu0 %v3460, 96
    %v3792 = vpop.permute.xlu0 %3791
    %v3794 = vsel %vm112, %v3790, 0
    %v3797 = vsel %vm112, %v3792, 0
    %3799 = vmatprep.subr.bf16.mxu0 0
    %3800 = vmatpush1.bf16.xpose.msra.mxu0 0
    %3801 = vmatprep.subr.bf16.mxu0 0
    %3802 = vmatpush1.bf16.xpose.msra.mxu0 0
    %3803 = vmatprep.subr.bf16.mxu0 0
    %3804 = vmatpush1.bf16.xpose.msra.mxu0 0
    %3805 = vmatprep.subr.bf16.mxu0 0
    %3806 = vmatpush1.bf16.xpose.msra.mxu0 0
    %3807 = vmatprep.subr.bf16.mxu0 0
    %3808 = vmatpush1.bf16.xpose.msra.mxu0 0
    %3809 = vmatprep.subr.bf16.mxu0 0
    %3810 = vmatpush1.bf16.xpose.msra.mxu0 0
    %3811 = vmatprep.subr.bf16.mxu0 0
    %3812 = vmatpush1.bf16.xpose.msra.mxu0 0
    %3813 = vmatprep.subr.bf16.mxu0 0
    %3814 = vmatpush1.bf16.xpose.msra.mxu0 %v3797
    %3815 = vmatprep.subr.bf16.mxu0 0
    %3816 = vmatpush2.bf16.xpose.msra.mxu0 0
    %3817 = vmatprep.subr.bf16.mxu0 0
    %3818 = vmatpush2.bf16.xpose.msra.mxu0 0
    %3819 = vmatprep.subr.bf16.mxu0 0
    %3820 = vmatpush2.bf16.xpose.msra.mxu0 0
    %3821 = vmatprep.subr.bf16.mxu0 0
    %3822 = vmatpush2.bf16.xpose.msra.mxu0 0
    %3823 = vmatprep.subr.bf16.mxu0 0
    %3824 = vmatpush2.bf16.xpose.msra.mxu0 0
    %3825 = vmatprep.subr.bf16.mxu0 0
    %3826 = vmatpush2.bf16.xpose.msra.mxu0 0
    %3827 = vmatprep.subr.bf16.mxu0 0
    %3828 = vmatpush2.bf16.xpose.msra.mxu0 0
    %3829 = vmatprep.subr.bf16.mxu0 0
    %3830 = vmatpush2.bf16.xpose.msra.mxu0 0
    %3831 = vmatprep.mubr.bf16.mxu0 0
    %3832 = vmatmul.mubr.bf16.gmra.mxu0 %v3794
    %v3833 = vpop.f32.mrf.mxu0
    %v3834 = vadd.f32 0.0, %v3833
    %v3835 = vpop.f32.mrf.mxu0
    %v3836 = vpop.f32.mrf.mxu0
    %v3837 = vpop.f32.mrf.mxu0
    %3838 = vdwg.mxu0
    %v3839 = vmul.f32 %v3834, 0.25
    %v3840 = vadd.f32 %v3839, %v1655
    %v3841 = vsel %vm1658, %v3840, -inf
    %3842 = vmax.xlane.f32.xlu0 %v3841
    %v3843 = vpop.xlane.xlu0 %3842
    %v3844 = vsub.f32 %v3840, %v3843
    %v3845 = vmul.f32 %v3844, 1.442695
    %v3846 = vpow.pop %v3845
    %v3847 = vsel %vm1658, %v3846, 0.0
    %3848 = vadd.xlane.f32.xlu0 %v3847
    %v3849 = vpop.xlane.xlu0 %3848
    %v3850 = vrcp.pop %v3849
    %v3851 = vmul.f32 %v3846, %v3850
    %v3852 = vpack.c.bf16 %v3851, %v3851
    %3853 = vrot.lane.b32.xlu0 %v3521, 96
    %v3854 = vpop.permute.xlu0 %3853
    %v3856 = vsel %vm1658, %v3852, 0
    %v3859 = vsel %vm1675, %v3854, 0
    %3861 = vmatprep.subr.bf16.mxu0 0
    %3862 = vmatpush1.bf16.msra.mxu0 0
    %3863 = vmatprep.subr.bf16.mxu0 0
    %3864 = vmatpush1.bf16.msra.mxu0 0
    %3865 = vmatprep.subr.bf16.mxu0 0
    %3866 = vmatpush1.bf16.msra.mxu0 0
    %3867 = vmatprep.subr.bf16.mxu0 0
    %3868 = vmatpush1.bf16.msra.mxu0 0
    %3869 = vmatprep.subr.bf16.mxu0 0
    %3870 = vmatpush1.bf16.msra.mxu0 0
    %3871 = vmatprep.subr.bf16.mxu0 0
    %3872 = vmatpush1.bf16.msra.mxu0 0
    %3873 = vmatprep.subr.bf16.mxu0 0
    %3874 = vmatpush1.bf16.msra.mxu0 0
    %3875 = vmatprep.subr.bf16.mxu0 0
    %3876 = vmatpush1.bf16.msra.mxu0 %v3859
    %3877 = vmatprep.subr.bf16.mxu0 0
    %3878 = vmatpush2.bf16.msra.mxu0 0
    %3879 = vmatprep.subr.bf16.mxu0 0
    %3880 = vmatpush2.bf16.msra.mxu0 0
    %3881 = vmatprep.subr.bf16.mxu0 0
    %3882 = vmatpush2.bf16.msra.mxu0 0
    %3883 = vmatprep.subr.bf16.mxu0 0
    %3884 = vmatpush2.bf16.msra.mxu0 0
    %3885 = vmatprep.subr.bf16.mxu0 0
    %3886 = vmatpush2.bf16.msra.mxu0 0
    %3887 = vmatprep.subr.bf16.mxu0 0
    %3888 = vmatpush2.bf16.msra.mxu0 0
    %3889 = vmatprep.subr.bf16.mxu0 0
    %3890 = vmatpush2.bf16.msra.mxu0 0
    %3891 = vmatprep.subr.bf16.mxu0 0
    %3892 = vmatpush2.bf16.msra.mxu0 0
    %3893 = vmatprep.mubr.bf16.mxu0 0
    %3894 = vmatmul.mubr.bf16.gmra.mxu0 %v3856
    %v3895 = vpop.f32.mrf.mxu0
    %v3896 = vadd.f32 0.0, %v3895
    %v3897 = vpop.f32.mrf.mxu0
    %v3898 = vpop.f32.mrf.mxu0
    %v3899 = vpop.f32.mrf.mxu0
    %3900 = vdwg.mxu0
    %s3901 = scalar_lea.vmem %s8, 48
    %v3902 = vld [vmem:[%s3901] sm:$0xf]
    %v3903 = vld [vmem:[%s3901 + $0x4] sm:$0xf]
    %v3904 = vpack.c.bf16 %v3896, %v3896
    %v3907 = vunpack.c.l.b16 %v3902
    %v3908 = vunpack.c.l.b16 %v3903
    %v3909 = vpack.c.b16 %v3908, %v3907
    %v3912 = vsel %vm112, %v3904, 0
    %3914 = vmatprep.subr.bf16.mxu0 0
    %3915 = vmatpush1.bf16.msra.mxu0 0
    %3916 = vmatprep.subr.bf16.mxu0 0
    %3917 = vmatpush1.bf16.msra.mxu0 0
    %3918 = vmatprep.subr.bf16.mxu0 0
    %3919 = vmatpush1.bf16.msra.mxu0 0
    %3920 = vmatprep.subr.bf16.mxu0 0
    %3921 = vmatpush1.bf16.msra.mxu0 0
    %3922 = vmatprep.subr.bf16.mxu0 0
    %3923 = vmatpush1.bf16.msra.mxu0 0
    %3924 = vmatprep.subr.bf16.mxu0 0
    %3925 = vmatpush1.bf16.msra.mxu0 0
    %3926 = vmatprep.subr.bf16.mxu0 0
    %3927 = vmatpush1.bf16.msra.mxu0 0
    %3928 = vmatprep.subr.bf16.mxu0 0
    %3929 = vmatpush1.bf16.msra.mxu0 %v3909
    %3930 = vmatprep.subr.bf16.mxu0 0
    %3931 = vmatpush2.bf16.msra.mxu0 0
    %3932 = vmatprep.subr.bf16.mxu0 0
    %3933 = vmatpush2.bf16.msra.mxu0 0
    %3934 = vmatprep.subr.bf16.mxu0 0
    %3935 = vmatpush2.bf16.msra.mxu0 0
    %3936 = vmatprep.subr.bf16.mxu0 0
    %3937 = vmatpush2.bf16.msra.mxu0 0
    %3938 = vmatprep.subr.bf16.mxu0 0
    %3939 = vmatpush2.bf16.msra.mxu0 0
    %3940 = vmatprep.subr.bf16.mxu0 0
    %3941 = vmatpush2.bf16.msra.mxu0 0
    %3942 = vmatprep.subr.bf16.mxu0 0
    %3943 = vmatpush2.bf16.msra.mxu0 0
    %3944 = vmatprep.subr.bf16.mxu0 0
    %3945 = vmatpush2.bf16.msra.mxu0 0
    %3946 = vmatprep.mubr.bf16.mxu0 0
    %3947 = vmatmul.mubr.bf16.gmra.mxu0 %v3912
    %v3948 = vpop.f32.mrf.mxu0
    %v3949 = vadd.f32 0.0, %v3948
    %v3950 = vpop.f32.mrf.mxu0
    %v3951 = vpop.f32.mrf.mxu0
    %v3952 = vpop.f32.mrf.mxu0
    %3953 = vdwg.mxu0
    %v3954 = vadd.f32 %v3784, %v3949
    %3955 = vrot.lane.b32.xlu0 %v3459, 80
    %v3956 = vpop.permute.xlu0 %3955
    %3957 = vrot.lane.b32.xlu0 %v3460, 80
    %v3958 = vpop.permute.xlu0 %3957
    %v3960 = vsel %vm112, %v3956, 0
    %v3963 = vsel %vm112, %v3958, 0
    %3965 = vmatprep.subr.bf16.mxu0 0
    %3966 = vmatpush1.bf16.xpose.msra.mxu0 0
    %3967 = vmatprep.subr.bf16.mxu0 0
    %3968 = vmatpush1.bf16.xpose.msra.mxu0 0
    %3969 = vmatprep.subr.bf16.mxu0 0
    %3970 = vmatpush1.bf16.xpose.msra.mxu0 0
    %3971 = vmatprep.subr.bf16.mxu0 0
    %3972 = vmatpush1.bf16.xpose.msra.mxu0 0
    %3973 = vmatprep.subr.bf16.mxu0 0
    %3974 = vmatpush1.bf16.xpose.msra.mxu0 0
    %3975 = vmatprep.subr.bf16.mxu0 0
    %3976 = vmatpush1.bf16.xpose.msra.mxu0 0
    %3977 = vmatprep.subr.bf16.mxu0 0
    %3978 = vmatpush1.bf16.xpose.msra.mxu0 0
    %3979 = vmatprep.subr.bf16.mxu0 0
    %3980 = vmatpush1.bf16.xpose.msra.mxu0 %v3963
    %3981 = vmatprep.subr.bf16.mxu0 0
    %3982 = vmatpush2.bf16.xpose.msra.mxu0 0
    %3983 = vmatprep.subr.bf16.mxu0 0
    %3984 = vmatpush2.bf16.xpose.msra.mxu0 0
    %3985 = vmatprep.subr.bf16.mxu0 0
    %3986 = vmatpush2.bf16.xpose.msra.mxu0 0
    %3987 = vmatprep.subr.bf16.mxu0 0
    %3988 = vmatpush2.bf16.xpose.msra.mxu0 0
    %3989 = vmatprep.subr.bf16.mxu0 0
    %3990 = vmatpush2.bf16.xpose.msra.mxu0 0
    %3991 = vmatprep.subr.bf16.mxu0 0
    %3992 = vmatpush2.bf16.xpose.msra.mxu0 0
    %3993 = vmatprep.subr.bf16.mxu0 0
    %3994 = vmatpush2.bf16.xpose.msra.mxu0 0
    %3995 = vmatprep.subr.bf16.mxu0 0
    %3996 = vmatpush2.bf16.xpose.msra.mxu0 0
    %3997 = vmatprep.mubr.bf16.mxu0 0
    %3998 = vmatmul.mubr.bf16.gmra.mxu0 %v3960
    %v3999 = vpop.f32.mrf.mxu0
    %v4000 = vadd.f32 0.0, %v3999
    %v4001 = vpop.f32.mrf.mxu0
    %v4002 = vpop.f32.mrf.mxu0
    %v4003 = vpop.f32.mrf.mxu0
    %4004 = vdwg.mxu0
    %v4005 = vmul.f32 %v4000, 0.25
    %v4006 = vadd.f32 %v4005, %v1655
    %v4007 = vsel %vm1658, %v4006, -inf
    %4008 = vmax.xlane.f32.xlu0 %v4007
    %v4009 = vpop.xlane.xlu0 %4008
    %v4010 = vsub.f32 %v4006, %v4009
    %v4011 = vmul.f32 %v4010, 1.442695
    %v4012 = vpow.pop %v4011
    %v4013 = vsel %vm1658, %v4012, 0.0
    %4014 = vadd.xlane.f32.xlu0 %v4013
    %v4015 = vpop.xlane.xlu0 %4014
    %v4016 = vrcp.pop %v4015
    %v4017 = vmul.f32 %v4012, %v4016
    %v4018 = vpack.c.bf16 %v4017, %v4017
    %4019 = vrot.lane.b32.xlu0 %v3521, 80
    %v4020 = vpop.permute.xlu0 %4019
    %v4022 = vsel %vm1658, %v4018, 0
    %v4025 = vsel %vm1675, %v4020, 0
    %4027 = vmatprep.subr.bf16.mxu0 0
    %4028 = vmatpush1.bf16.msra.mxu0 0
    %4029 = vmatprep.subr.bf16.mxu0 0
    %4030 = vmatpush1.bf16.msra.mxu0 0
    %4031 = vmatprep.subr.bf16.mxu0 0
    %4032 = vmatpush1.bf16.msra.mxu0 0
    %4033 = vmatprep.subr.bf16.mxu0 0
    %4034 = vmatpush1.bf16.msra.mxu0 0
    %4035 = vmatprep.subr.bf16.mxu0 0
    %4036 = vmatpush1.bf16.msra.mxu0 0
    %4037 = vmatprep.subr.bf16.mxu0 0
    %4038 = vmatpush1.bf16.msra.mxu0 0
    %4039 = vmatprep.subr.bf16.mxu0 0
    %4040 = vmatpush1.bf16.msra.mxu0 0
    %4041 = vmatprep.subr.bf16.mxu0 0
    %4042 = vmatpush1.bf16.msra.mxu0 %v4025
    %4043 = vmatprep.subr.bf16.mxu0 0
    %4044 = vmatpush2.bf16.msra.mxu0 0
    %4045 = vmatprep.subr.bf16.mxu0 0
    %4046 = vmatpush2.bf16.msra.mxu0 0
    %4047 = vmatprep.subr.bf16.mxu0 0
    %4048 = vmatpush2.bf16.msra.mxu0 0
    %4049 = vmatprep.subr.bf16.mxu0 0
    %4050 = vmatpush2.bf16.msra.mxu0 0
    %4051 = vmatprep.subr.bf16.mxu0 0
    %4052 = vmatpush2.bf16.msra.mxu0 0
    %4053 = vmatprep.subr.bf16.mxu0 0
    %4054 = vmatpush2.bf16.msra.mxu0 0
    %4055 = vmatprep.subr.bf16.mxu0 0
    %4056 = vmatpush2.bf16.msra.mxu0 0
    %4057 = vmatprep.subr.bf16.mxu0 0
    %4058 = vmatpush2.bf16.msra.mxu0 0
    %4059 = vmatprep.mubr.bf16.mxu0 0
    %4060 = vmatmul.mubr.bf16.gmra.mxu0 %v4022
    %v4061 = vpop.f32.mrf.mxu0
    %v4062 = vadd.f32 0.0, %v4061
    %v4063 = vpop.f32.mrf.mxu0
    %v4064 = vpop.f32.mrf.mxu0
    %v4065 = vpop.f32.mrf.mxu0
    %4066 = vdwg.mxu0
    %s4067 = scalar_lea.vmem %s8, 56
    %v4068 = vld [vmem:[%s4067] sm:$0xf]
    %v4069 = vld [vmem:[%s4067 + $0x4] sm:$0xf]
    %v4070 = vpack.c.bf16 %v4062, %v4062
    %v4073 = vunpack.c.l.b16 %v4068
    %v4074 = vunpack.c.l.b16 %v4069
    %v4075 = vpack.c.b16 %v4074, %v4073
    %v4078 = vsel %vm112, %v4070, 0
    %4080 = vmatprep.subr.bf16.mxu0 0
    %4081 = vmatpush1.bf16.msra.mxu0 0
    %4082 = vmatprep.subr.bf16.mxu0 0
    %4083 = vmatpush1.bf16.msra.mxu0 0
    %4084 = vmatprep.subr.bf16.mxu0 0
    %4085 = vmatpush1.bf16.msra.mxu0 0
    %4086 = vmatprep.subr.bf16.mxu0 0
    %4087 = vmatpush1.bf16.msra.mxu0 0
    %4088 = vmatprep.subr.bf16.mxu0 0
    %4089 = vmatpush1.bf16.msra.mxu0 0
    %4090 = vmatprep.subr.bf16.mxu0 0
    %4091 = vmatpush1.bf16.msra.mxu0 0
    %4092 = vmatprep.subr.bf16.mxu0 0
    %4093 = vmatpush1.bf16.msra.mxu0 0
    %4094 = vmatprep.subr.bf16.mxu0 0
    %4095 = vmatpush1.bf16.msra.mxu0 %v4075
    %4096 = vmatprep.subr.bf16.mxu0 0
    %4097 = vmatpush2.bf16.msra.mxu0 0
    %4098 = vmatprep.subr.bf16.mxu0 0
    %4099 = vmatpush2.bf16.msra.mxu0 0
    %4100 = vmatprep.subr.bf16.mxu0 0
    %4101 = vmatpush2.bf16.msra.mxu0 0
    %4102 = vmatprep.subr.bf16.mxu0 0
    %4103 = vmatpush2.bf16.msra.mxu0 0
    %4104 = vmatprep.subr.bf16.mxu0 0
    %4105 = vmatpush2.bf16.msra.mxu0 0
    %4106 = vmatprep.subr.bf16.mxu0 0
    %4107 = vmatpush2.bf16.msra.mxu0 0
    %4108 = vmatprep.subr.bf16.mxu0 0
    %4109 = vmatpush2.bf16.msra.mxu0 0
    %4110 = vmatprep.subr.bf16.mxu0 0
    %4111 = vmatpush2.bf16.msra.mxu0 0
    %4112 = vmatprep.mubr.bf16.mxu0 0
    %4113 = vmatmul.mubr.bf16.gmra.mxu0 %v4078
    %v4114 = vpop.f32.mrf.mxu0
    %v4115 = vadd.f32 0.0, %v4114
    %v4116 = vpop.f32.mrf.mxu0
    %v4117 = vpop.f32.mrf.mxu0
    %v4118 = vpop.f32.mrf.mxu0
    %4119 = vdwg.mxu0
    %v4120 = vadd.f32 %v3954, %v4115
    %v4121 = vpack.c.bf16 %v3292, %v3292
    %v4122 = vpack.c.bf16 %v3374, %v3374
    %v4124 = vsel %vm112, %v4121, 0
    %v4127 = vsel %vm112, %v4122, 0
    %4129 = vmatprep.subr.bf16.mxu0 0
    %4130 = vmatpush1.bf16.xpose.msra.mxu0 0
    %4131 = vmatprep.subr.bf16.mxu0 0
    %4132 = vmatpush1.bf16.xpose.msra.mxu0 0
    %4133 = vmatprep.subr.bf16.mxu0 0
    %4134 = vmatpush1.bf16.xpose.msra.mxu0 0
    %4135 = vmatprep.subr.bf16.mxu0 0
    %4136 = vmatpush1.bf16.xpose.msra.mxu0 0
    %4137 = vmatprep.subr.bf16.mxu0 0
    %4138 = vmatpush1.bf16.xpose.msra.mxu0 0
    %4139 = vmatprep.subr.bf16.mxu0 0
    %4140 = vmatpush1.bf16.xpose.msra.mxu0 0
    %4141 = vmatprep.subr.bf16.mxu0 0
    %4142 = vmatpush1.bf16.xpose.msra.mxu0 0
    %4143 = vmatprep.subr.bf16.mxu0 0
    %4144 = vmatpush1.bf16.xpose.msra.mxu0 %v4127
    %4145 = vmatprep.subr.bf16.mxu0 0
    %4146 = vmatpush2.bf16.xpose.msra.mxu0 0
    %4147 = vmatprep.subr.bf16.mxu0 0
    %4148 = vmatpush2.bf16.xpose.msra.mxu0 0
    %4149 = vmatprep.subr.bf16.mxu0 0
    %4150 = vmatpush2.bf16.xpose.msra.mxu0 0
    %4151 = vmatprep.subr.bf16.mxu0 0
    %4152 = vmatpush2.bf16.xpose.msra.mxu0 0
    %4153 = vmatprep.subr.bf16.mxu0 0
    %4154 = vmatpush2.bf16.xpose.msra.mxu0 0
    %4155 = vmatprep.subr.bf16.mxu0 0
    %4156 = vmatpush2.bf16.xpose.msra.mxu0 0
    %4157 = vmatprep.subr.bf16.mxu0 0
    %4158 = vmatpush2.bf16.xpose.msra.mxu0 0
    %4159 = vmatprep.subr.bf16.mxu0 0
    %4160 = vmatpush2.bf16.xpose.msra.mxu0 0
    %4161 = vmatprep.mubr.bf16.mxu0 0
    %4162 = vmatmul.mubr.bf16.gmra.mxu0 %v4124
    %v4163 = vpop.f32.mrf.mxu0
    %v4164 = vadd.f32 0.0, %v4163
    %v4165 = vpop.f32.mrf.mxu0
    %v4166 = vpop.f32.mrf.mxu0
    %v4167 = vpop.f32.mrf.mxu0
    %4168 = vdwg.mxu0
    %v4169 = vmul.f32 %v4164, 0.25
    %v4170 = vadd.f32 %v4169, %v2326
    %v4171 = vsel %vm1658, %v4170, -inf
    %4172 = vmax.xlane.f32.xlu0 %v4171
    %v4173 = vpop.xlane.xlu0 %4172
    %v4174 = vsub.f32 %v4170, %v4173
    %v4175 = vmul.f32 %v4174, 1.442695
    %v4176 = vpow.pop %v4175
    %v4177 = vsel %vm1658, %v4176, 0.0
    %4178 = vadd.xlane.f32.xlu0 %v4177
    %v4179 = vpop.xlane.xlu0 %4178
    %v4180 = vrcp.pop %v4179
    %v4181 = vmul.f32 %v4176, %v4180
    %v4182 = vpack.c.bf16 %v4181, %v4181
    %v4183 = vpack.c.bf16 %v3456, %v3456
    %v4185 = vsel %vm1658, %v4182, 0
    %v4188 = vsel %vm1675, %v4183, 0
    %4190 = vmatprep.subr.bf16.mxu0 0
    %4191 = vmatpush1.bf16.msra.mxu0 0
    %4192 = vmatprep.subr.bf16.mxu0 0
    %4193 = vmatpush1.bf16.msra.mxu0 0
    %4194 = vmatprep.subr.bf16.mxu0 0
    %4195 = vmatpush1.bf16.msra.mxu0 0
    %4196 = vmatprep.subr.bf16.mxu0 0
    %4197 = vmatpush1.bf16.msra.mxu0 0
    %4198 = vmatprep.subr.bf16.mxu0 0
    %4199 = vmatpush1.bf16.msra.mxu0 0
    %4200 = vmatprep.subr.bf16.mxu0 0
    %4201 = vmatpush1.bf16.msra.mxu0 0
    %4202 = vmatprep.subr.bf16.mxu0 0
    %4203 = vmatpush1.bf16.msra.mxu0 0
    %4204 = vmatprep.subr.bf16.mxu0 0
    %4205 = vmatpush1.bf16.msra.mxu0 %v4188
    %4206 = vmatprep.subr.bf16.mxu0 0
    %4207 = vmatpush2.bf16.msra.mxu0 0
    %4208 = vmatprep.subr.bf16.mxu0 0
    %4209 = vmatpush2.bf16.msra.mxu0 0
    %4210 = vmatprep.subr.bf16.mxu0 0
    %4211 = vmatpush2.bf16.msra.mxu0 0
    %4212 = vmatprep.subr.bf16.mxu0 0
    %4213 = vmatpush2.bf16.msra.mxu0 0
    %4214 = vmatprep.subr.bf16.mxu0 0
    %4215 = vmatpush2.bf16.msra.mxu0 0
    %4216 = vmatprep.subr.bf16.mxu0 0
    %4217 = vmatpush2.bf16.msra.mxu0 0
    %4218 = vmatprep.subr.bf16.mxu0 0
    %4219 = vmatpush2.bf16.msra.mxu0 0
    %4220 = vmatprep.subr.bf16.mxu0 0
    %4221 = vmatpush2.bf16.msra.mxu0 0
    %4222 = vmatprep.mubr.bf16.mxu0 0
    %4223 = vmatmul.mubr.bf16.gmra.mxu0 %v4185
    %v4224 = vpop.f32.mrf.mxu0
    %v4225 = vadd.f32 0.0, %v4224
    %v4226 = vpop.f32.mrf.mxu0
    %v4227 = vpop.f32.mrf.mxu0
    %v4228 = vpop.f32.mrf.mxu0
    %4229 = vdwg.mxu0
    %v4230 = vpack.c.bf16 %v4225, %v4225
    %4232 = vrot.lane.b32.xlu0 %v4121, 112
    %v4233 = vpop.permute.xlu0 %4232
    %4235 = vrot.lane.b32.xlu0 %v4122, 112
    %v4236 = vpop.permute.xlu0 %4235
    %v4238 = vsel %vm112, %v4233, 0
    %v4241 = vsel %vm112, %v4236, 0
    %4243 = vmatprep.subr.bf16.mxu0 0
    %4244 = vmatpush1.bf16.xpose.msra.mxu0 0
    %4245 = vmatprep.subr.bf16.mxu0 0
    %4246 = vmatpush1.bf16.xpose.msra.mxu0 0
    %4247 = vmatprep.subr.bf16.mxu0 0
    %4248 = vmatpush1.bf16.xpose.msra.mxu0 0
    %4249 = vmatprep.subr.bf16.mxu0 0
    %4250 = vmatpush1.bf16.xpose.msra.mxu0 0
    %4251 = vmatprep.subr.bf16.mxu0 0
    %4252 = vmatpush1.bf16.xpose.msra.mxu0 0
    %4253 = vmatprep.subr.bf16.mxu0 0
    %4254 = vmatpush1.bf16.xpose.msra.mxu0 0
    %4255 = vmatprep.subr.bf16.mxu0 0
    %4256 = vmatpush1.bf16.xpose.msra.mxu0 0
    %4257 = vmatprep.subr.bf16.mxu0 0
    %4258 = vmatpush1.bf16.xpose.msra.mxu0 %v4241
    %4259 = vmatprep.subr.bf16.mxu0 0
    %4260 = vmatpush2.bf16.xpose.msra.mxu0 0
    %4261 = vmatprep.subr.bf16.mxu0 0
    %4262 = vmatpush2.bf16.xpose.msra.mxu0 0
    %4263 = vmatprep.subr.bf16.mxu0 0
    %4264 = vmatpush2.bf16.xpose.msra.mxu0 0
    %4265 = vmatprep.subr.bf16.mxu0 0
    %4266 = vmatpush2.bf16.xpose.msra.mxu0 0
    %4267 = vmatprep.subr.bf16.mxu0 0
    %4268 = vmatpush2.bf16.xpose.msra.mxu0 0
    %4269 = vmatprep.subr.bf16.mxu0 0
    %4270 = vmatpush2.bf16.xpose.msra.mxu0 0
    %4271 = vmatprep.subr.bf16.mxu0 0
    %4272 = vmatpush2.bf16.xpose.msra.mxu0 0
    %4273 = vmatprep.subr.bf16.mxu0 0
    %4274 = vmatpush2.bf16.xpose.msra.mxu0 0
    %4275 = vmatprep.mubr.bf16.mxu0 0
    %4276 = vmatmul.mubr.bf16.gmra.mxu0 %v4238
    %v4277 = vpop.f32.mrf.mxu0
    %v4278 = vadd.f32 0.0, %v4277
    %v4279 = vpop.f32.mrf.mxu0
    %v4280 = vpop.f32.mrf.mxu0
    %v4281 = vpop.f32.mrf.mxu0
    %4282 = vdwg.mxu0
    %v4283 = vmul.f32 %v4278, 0.25
    %v4284 = vadd.f32 %v4283, %v2326
    %v4285 = vsel %vm1658, %v4284, -inf
    %4286 = vmax.xlane.f32.xlu0 %v4285
    %v4287 = vpop.xlane.xlu0 %4286
    %v4288 = vsub.f32 %v4284, %v4287
    %v4289 = vmul.f32 %v4288, 1.442695
    %v4290 = vpow.pop %v4289
    %v4291 = vsel %vm1658, %v4290, 0.0
    %4292 = vadd.xlane.f32.xlu0 %v4291
    %v4293 = vpop.xlane.xlu0 %4292
    %v4294 = vrcp.pop %v4293
    %v4295 = vmul.f32 %v4290, %v4294
    %v4296 = vpack.c.bf16 %v4295, %v4295
    %4298 = vrot.lane.b32.xlu0 %v4183, 112
    %v4299 = vpop.permute.xlu0 %4298
    %v4301 = vsel %vm1658, %v4296, 0
    %v4304 = vsel %vm1675, %v4299, 0
    %4306 = vmatprep.subr.bf16.mxu0 0
    %4307 = vmatpush1.bf16.msra.mxu0 0
    %4308 = vmatprep.subr.bf16.mxu0 0
    %4309 = vmatpush1.bf16.msra.mxu0 0
    %4310 = vmatprep.subr.bf16.mxu0 0
    %4311 = vmatpush1.bf16.msra.mxu0 0
    %4312 = vmatprep.subr.bf16.mxu0 0
    %4313 = vmatpush1.bf16.msra.mxu0 0
    %4314 = vmatprep.subr.bf16.mxu0 0
    %4315 = vmatpush1.bf16.msra.mxu0 0
    %4316 = vmatprep.subr.bf16.mxu0 0
    %4317 = vmatpush1.bf16.msra.mxu0 0
    %4318 = vmatprep.subr.bf16.mxu0 0
    %4319 = vmatpush1.bf16.msra.mxu0 0
    %4320 = vmatprep.subr.bf16.mxu0 0
    %4321 = vmatpush1.bf16.msra.mxu0 %v4304
    %4322 = vmatprep.subr.bf16.mxu0 0
    %4323 = vmatpush2.bf16.msra.mxu0 0
    %4324 = vmatprep.subr.bf16.mxu0 0
    %4325 = vmatpush2.bf16.msra.mxu0 0
    %4326 = vmatprep.subr.bf16.mxu0 0
    %4327 = vmatpush2.bf16.msra.mxu0 0
    %4328 = vmatprep.subr.bf16.mxu0 0
    %4329 = vmatpush2.bf16.msra.mxu0 0
    %4330 = vmatprep.subr.bf16.mxu0 0
    %4331 = vmatpush2.bf16.msra.mxu0 0
    %4332 = vmatprep.subr.bf16.mxu0 0
    %4333 = vmatpush2.bf16.msra.mxu0 0
    %4334 = vmatprep.subr.bf16.mxu0 0
    %4335 = vmatpush2.bf16.msra.mxu0 0
    %4336 = vmatprep.subr.bf16.mxu0 0
    %4337 = vmatpush2.bf16.msra.mxu0 0
    %4338 = vmatprep.mubr.bf16.mxu0 0
    %4339 = vmatmul.mubr.bf16.gmra.mxu0 %v4301
    %v4340 = vpop.f32.mrf.mxu0
    %v4341 = vadd.f32 0.0, %v4340
    %v4342 = vpop.f32.mrf.mxu0
    %v4343 = vpop.f32.mrf.mxu0
    %v4344 = vpop.f32.mrf.mxu0
    %4345 = vdwg.mxu0
    %v4346 = vpack.c.bf16 %v4341, %v4341
    %v4348 = vsel %vm112, %v4346, 0
    %4350 = vmatprep.subr.bf16.mxu0 0
    %4351 = vmatpush1.bf16.msra.mxu0 0
    %4352 = vmatprep.subr.bf16.mxu0 0
    %4353 = vmatpush1.bf16.msra.mxu0 0
    %4354 = vmatprep.subr.bf16.mxu0 0
    %4355 = vmatpush1.bf16.msra.mxu0 0
    %4356 = vmatprep.subr.bf16.mxu0 0
    %4357 = vmatpush1.bf16.msra.mxu0 0
    %4358 = vmatprep.subr.bf16.mxu0 0
    %4359 = vmatpush1.bf16.msra.mxu0 0
    %4360 = vmatprep.subr.bf16.mxu0 0
    %4361 = vmatpush1.bf16.msra.mxu0 0
    %4362 = vmatprep.subr.bf16.mxu0 0
    %4363 = vmatpush1.bf16.msra.mxu0 0
    %4364 = vmatprep.subr.bf16.mxu0 0
    %4365 = vmatpush1.bf16.msra.mxu0 %v3695
    %4366 = vmatprep.subr.bf16.mxu0 0
    %4367 = vmatpush2.bf16.msra.mxu0 0
    %4368 = vmatprep.subr.bf16.mxu0 0
    %4369 = vmatpush2.bf16.msra.mxu0 0
    %4370 = vmatprep.subr.bf16.mxu0 0
    %4371 = vmatpush2.bf16.msra.mxu0 0
    %4372 = vmatprep.subr.bf16.mxu0 0
    %4373 = vmatpush2.bf16.msra.mxu0 0
    %4374 = vmatprep.subr.bf16.mxu0 0
    %4375 = vmatpush2.bf16.msra.mxu0 0
    %4376 = vmatprep.subr.bf16.mxu0 0
    %4377 = vmatpush2.bf16.msra.mxu0 0
    %4378 = vmatprep.subr.bf16.mxu0 0
    %4379 = vmatpush2.bf16.msra.mxu0 0
    %4380 = vmatprep.subr.bf16.mxu0 0
    %4381 = vmatpush2.bf16.msra.mxu0 0
    %4382 = vmatprep.mubr.bf16.mxu0 0
    %4383 = vmatmul.mubr.bf16.gmra.mxu0 %v4348
    %v4384 = vpop.f32.mrf.mxu0
    %v4385 = vadd.f32 0.0, %v4384
    %v4386 = vpop.f32.mrf.mxu0
    %v4387 = vpop.f32.mrf.mxu0
    %v4388 = vpop.f32.mrf.mxu0
    %4389 = vdwg.mxu0
    %v4391 = vsel %vm112, %v4230, 0
    %4393 = vmatprep.subr.bf16.mxu0 0
    %4394 = vmatpush1.bf16.msra.mxu0 0
    %4395 = vmatprep.subr.bf16.mxu0 0
    %4396 = vmatpush1.bf16.msra.mxu0 0
    %4397 = vmatprep.subr.bf16.mxu0 0
    %4398 = vmatpush1.bf16.msra.mxu0 0
    %4399 = vmatprep.subr.bf16.mxu0 0
    %4400 = vmatpush1.bf16.msra.mxu0 0
    %4401 = vmatprep.subr.bf16.mxu0 0
    %4402 = vmatpush1.bf16.msra.mxu0 0
    %4403 = vmatprep.subr.bf16.mxu0 0
    %4404 = vmatpush1.bf16.msra.mxu0 0
    %4405 = vmatprep.subr.bf16.mxu0 0
    %4406 = vmatpush1.bf16.msra.mxu0 0
    %4407 = vmatprep.subr.bf16.mxu0 0
    %4408 = vmatpush1.bf16.msra.mxu0 %v3744
    %4409 = vmatprep.subr.bf16.mxu0 0
    %4410 = vmatpush2.bf16.msra.mxu0 0
    %4411 = vmatprep.subr.bf16.mxu0 0
    %4412 = vmatpush2.bf16.msra.mxu0 0
    %4413 = vmatprep.subr.bf16.mxu0 0
    %4414 = vmatpush2.bf16.msra.mxu0 0
    %4415 = vmatprep.subr.bf16.mxu0 0
    %4416 = vmatpush2.bf16.msra.mxu0 0
    %4417 = vmatprep.subr.bf16.mxu0 0
    %4418 = vmatpush2.bf16.msra.mxu0 0
    %4419 = vmatprep.subr.bf16.mxu0 0
    %4420 = vmatpush2.bf16.msra.mxu0 0
    %4421 = vmatprep.subr.bf16.mxu0 0
    %4422 = vmatpush2.bf16.msra.mxu0 0
    %4423 = vmatprep.subr.bf16.mxu0 0
    %4424 = vmatpush2.bf16.msra.mxu0 0
    %4425 = vmatprep.mubr.bf16.mxu0 0
    %4426 = vmatmul.mubr.bf16.gmra.mxu0 %v4391
    %v4427 = vpop.f32.mrf.mxu0
    %v4428 = vadd.f32 %v4385, %v4427
    %v4429 = vpop.f32.mrf.mxu0
    %v4430 = vpop.f32.mrf.mxu0
    %v4431 = vpop.f32.mrf.mxu0
    %4432 = vdwg.mxu0
    %4433 = vrot.lane.b32.xlu0 %v4121, 96
    %v4434 = vpop.permute.xlu0 %4433
    %4435 = vrot.lane.b32.xlu0 %v4122, 96
    %v4436 = vpop.permute.xlu0 %4435
    %v4438 = vsel %vm112, %v4434, 0
    %v4441 = vsel %vm112, %v4436, 0
    %4443 = vmatprep.subr.bf16.mxu0 0
    %4444 = vmatpush1.bf16.xpose.msra.mxu0 0
    %4445 = vmatprep.subr.bf16.mxu0 0
    %4446 = vmatpush1.bf16.xpose.msra.mxu0 0
    %4447 = vmatprep.subr.bf16.mxu0 0
    %4448 = vmatpush1.bf16.xpose.msra.mxu0 0
    %4449 = vmatprep.subr.bf16.mxu0 0
    %4450 = vmatpush1.bf16.xpose.msra.mxu0 0
    %4451 = vmatprep.subr.bf16.mxu0 0
    %4452 = vmatpush1.bf16.xpose.msra.mxu0 0
    %4453 = vmatprep.subr.bf16.mxu0 0
    %4454 = vmatpush1.bf16.xpose.msra.mxu0 0
    %4455 = vmatprep.subr.bf16.mxu0 0
    %4456 = vmatpush1.bf16.xpose.msra.mxu0 0
    %4457 = vmatprep.subr.bf16.mxu0 0
    %4458 = vmatpush1.bf16.xpose.msra.mxu0 %v4441
    %4459 = vmatprep.subr.bf16.mxu0 0
    %4460 = vmatpush2.bf16.xpose.msra.mxu0 0
    %4461 = vmatprep.subr.bf16.mxu0 0
    %4462 = vmatpush2.bf16.xpose.msra.mxu0 0
    %4463 = vmatprep.subr.bf16.mxu0 0
    %4464 = vmatpush2.bf16.xpose.msra.mxu0 0
    %4465 = vmatprep.subr.bf16.mxu0 0
    %4466 = vmatpush2.bf16.xpose.msra.mxu0 0
    %4467 = vmatprep.subr.bf16.mxu0 0
    %4468 = vmatpush2.bf16.xpose.msra.mxu0 0
    %4469 = vmatprep.subr.bf16.mxu0 0
    %4470 = vmatpush2.bf16.xpose.msra.mxu0 0
    %4471 = vmatprep.subr.bf16.mxu0 0
    %4472 = vmatpush2.bf16.xpose.msra.mxu0 0
    %4473 = vmatprep.subr.bf16.mxu0 0
    %4474 = vmatpush2.bf16.xpose.msra.mxu0 0
    %4475 = vmatprep.mubr.bf16.mxu0 0
    %4476 = vmatmul.mubr.bf16.gmra.mxu0 %v4438
    %v4477 = vpop.f32.mrf.mxu0
    %v4478 = vadd.f32 0.0, %v4477
    %v4479 = vpop.f32.mrf.mxu0
    %v4480 = vpop.f32.mrf.mxu0
    %v4481 = vpop.f32.mrf.mxu0
    %4482 = vdwg.mxu0
    %v4483 = vmul.f32 %v4478, 0.25
    %v4484 = vadd.f32 %v4483, %v2326
    %v4485 = vsel %vm1658, %v4484, -inf
    %4486 = vmax.xlane.f32.xlu0 %v4485
    %v4487 = vpop.xlane.xlu0 %4486
    %v4488 = vsub.f32 %v4484, %v4487
    %v4489 = vmul.f32 %v4488, 1.442695
    %v4490 = vpow.pop %v4489
    %v4491 = vsel %vm1658, %v4490, 0.0
    %4492 = vadd.xlane.f32.xlu0 %v4491
    %v4493 = vpop.xlane.xlu0 %4492
    %v4494 = vrcp.pop %v4493
    %v4495 = vmul.f32 %v4490, %v4494
    %v4496 = vpack.c.bf16 %v4495, %v4495
    %4497 = vrot.lane.b32.xlu0 %v4183, 96
    %v4498 = vpop.permute.xlu0 %4497
    %v4500 = vsel %vm1658, %v4496, 0
    %v4503 = vsel %vm1675, %v4498, 0
    %4505 = vmatprep.subr.bf16.mxu0 0
    %4506 = vmatpush1.bf16.msra.mxu0 0
    %4507 = vmatprep.subr.bf16.mxu0 0
    %4508 = vmatpush1.bf16.msra.mxu0 0
    %4509 = vmatprep.subr.bf16.mxu0 0
    %4510 = vmatpush1.bf16.msra.mxu0 0
    %4511 = vmatprep.subr.bf16.mxu0 0
    %4512 = vmatpush1.bf16.msra.mxu0 0
    %4513 = vmatprep.subr.bf16.mxu0 0
    %4514 = vmatpush1.bf16.msra.mxu0 0
    %4515 = vmatprep.subr.bf16.mxu0 0
    %4516 = vmatpush1.bf16.msra.mxu0 0
    %4517 = vmatprep.subr.bf16.mxu0 0
    %4518 = vmatpush1.bf16.msra.mxu0 0
    %4519 = vmatprep.subr.bf16.mxu0 0
    %4520 = vmatpush1.bf16.msra.mxu0 %v4503
    %4521 = vmatprep.subr.bf16.mxu0 0
    %4522 = vmatpush2.bf16.msra.mxu0 0
    %4523 = vmatprep.subr.bf16.mxu0 0
    %4524 = vmatpush2.bf16.msra.mxu0 0
    %4525 = vmatprep.subr.bf16.mxu0 0
    %4526 = vmatpush2.bf16.msra.mxu0 0
    %4527 = vmatprep.subr.bf16.mxu0 0
    %4528 = vmatpush2.bf16.msra.mxu0 0
    %4529 = vmatprep.subr.bf16.mxu0 0
    %4530 = vmatpush2.bf16.msra.mxu0 0
    %4531 = vmatprep.subr.bf16.mxu0 0
    %4532 = vmatpush2.bf16.msra.mxu0 0
    %4533 = vmatprep.subr.bf16.mxu0 0
    %4534 = vmatpush2.bf16.msra.mxu0 0
    %4535 = vmatprep.subr.bf16.mxu0 0
    %4536 = vmatpush2.bf16.msra.mxu0 0
    %4537 = vmatprep.mubr.bf16.mxu0 0
    %4538 = vmatmul.mubr.bf16.gmra.mxu0 %v4500
    %v4539 = vpop.f32.mrf.mxu0
    %v4540 = vadd.f32 0.0, %v4539
    %v4541 = vpop.f32.mrf.mxu0
    %v4542 = vpop.f32.mrf.mxu0
    %v4543 = vpop.f32.mrf.mxu0
    %4544 = vdwg.mxu0
    %v4545 = vpack.c.bf16 %v4540, %v4540
    %v4547 = vsel %vm112, %v4545, 0
    %4549 = vmatprep.subr.bf16.mxu0 0
    %4550 = vmatpush1.bf16.msra.mxu0 0
    %4551 = vmatprep.subr.bf16.mxu0 0
    %4552 = vmatpush1.bf16.msra.mxu0 0
    %4553 = vmatprep.subr.bf16.mxu0 0
    %4554 = vmatpush1.bf16.msra.mxu0 0
    %4555 = vmatprep.subr.bf16.mxu0 0
    %4556 = vmatpush1.bf16.msra.mxu0 0
    %4557 = vmatprep.subr.bf16.mxu0 0
    %4558 = vmatpush1.bf16.msra.mxu0 0
    %4559 = vmatprep.subr.bf16.mxu0 0
    %4560 = vmatpush1.bf16.msra.mxu0 0
    %4561 = vmatprep.subr.bf16.mxu0 0
    %4562 = vmatpush1.bf16.msra.mxu0 0
    %4563 = vmatprep.subr.bf16.mxu0 0
    %4564 = vmatpush1.bf16.msra.mxu0 %v3909
    %4565 = vmatprep.subr.bf16.mxu0 0
    %4566 = vmatpush2.bf16.msra.mxu0 0
    %4567 = vmatprep.subr.bf16.mxu0 0
    %4568 = vmatpush2.bf16.msra.mxu0 0
    %4569 = vmatprep.subr.bf16.mxu0 0
    %4570 = vmatpush2.bf16.msra.mxu0 0
    %4571 = vmatprep.subr.bf16.mxu0 0
    %4572 = vmatpush2.bf16.msra.mxu0 0
    %4573 = vmatprep.subr.bf16.mxu0 0
    %4574 = vmatpush2.bf16.msra.mxu0 0
    %4575 = vmatprep.subr.bf16.mxu0 0
    %4576 = vmatpush2.bf16.msra.mxu0 0
    %4577 = vmatprep.subr.bf16.mxu0 0
    %4578 = vmatpush2.bf16.msra.mxu0 0
    %4579 = vmatprep.subr.bf16.mxu0 0
    %4580 = vmatpush2.bf16.msra.mxu0 0
    %4581 = vmatprep.mubr.bf16.mxu0 0
    %4582 = vmatmul.mubr.bf16.gmra.mxu0 %v4547
    %v4583 = vpop.f32.mrf.mxu0
    %v4584 = vadd.f32 0.0, %v4583
    %v4585 = vpop.f32.mrf.mxu0
    %v4586 = vpop.f32.mrf.mxu0
    %v4587 = vpop.f32.mrf.mxu0
    %4588 = vdwg.mxu0
    %v4589 = vadd.f32 %v4428, %v4584
    %4590 = vrot.lane.b32.xlu0 %v4121, 80
    %v4591 = vpop.permute.xlu0 %4590
    %4592 = vrot.lane.b32.xlu0 %v4122, 80
    %v4593 = vpop.permute.xlu0 %4592
    %v4595 = vsel %vm112, %v4591, 0
    %v4598 = vsel %vm112, %v4593, 0
    %4600 = vmatprep.subr.bf16.mxu0 0
    %4601 = vmatpush1.bf16.xpose.msra.mxu0 0
    %4602 = vmatprep.subr.bf16.mxu0 0
    %4603 = vmatpush1.bf16.xpose.msra.mxu0 0
    %4604 = vmatprep.subr.bf16.mxu0 0
    %4605 = vmatpush1.bf16.xpose.msra.mxu0 0
    %4606 = vmatprep.subr.bf16.mxu0 0
    %4607 = vmatpush1.bf16.xpose.msra.mxu0 0
    %4608 = vmatprep.subr.bf16.mxu0 0
    %4609 = vmatpush1.bf16.xpose.msra.mxu0 0
    %4610 = vmatprep.subr.bf16.mxu0 0
    %4611 = vmatpush1.bf16.xpose.msra.mxu0 0
    %4612 = vmatprep.subr.bf16.mxu0 0
    %4613 = vmatpush1.bf16.xpose.msra.mxu0 0
    %4614 = vmatprep.subr.bf16.mxu0 0
    %4615 = vmatpush1.bf16.xpose.msra.mxu0 %v4598
    %4616 = vmatprep.subr.bf16.mxu0 0
    %4617 = vmatpush2.bf16.xpose.msra.mxu0 0
    %4618 = vmatprep.subr.bf16.mxu0 0
    %4619 = vmatpush2.bf16.xpose.msra.mxu0 0
    %4620 = vmatprep.subr.bf16.mxu0 0
    %4621 = vmatpush2.bf16.xpose.msra.mxu0 0
    %4622 = vmatprep.subr.bf16.mxu0 0
    %4623 = vmatpush2.bf16.xpose.msra.mxu0 0
    %4624 = vmatprep.subr.bf16.mxu0 0
    %4625 = vmatpush2.bf16.xpose.msra.mxu0 0
    %4626 = vmatprep.subr.bf16.mxu0 0
    %4627 = vmatpush2.bf16.xpose.msra.mxu0 0
    %4628 = vmatprep.subr.bf16.mxu0 0
    %4629 = vmatpush2.bf16.xpose.msra.mxu0 0
    %4630 = vmatprep.subr.bf16.mxu0 0
    %4631 = vmatpush2.bf16.xpose.msra.mxu0 0
    %4632 = vmatprep.mubr.bf16.mxu0 0
    %4633 = vmatmul.mubr.bf16.gmra.mxu0 %v4595
    %v4634 = vpop.f32.mrf.mxu0
    %v4635 = vadd.f32 0.0, %v4634
    %v4636 = vpop.f32.mrf.mxu0
    %v4637 = vpop.f32.mrf.mxu0
    %v4638 = vpop.f32.mrf.mxu0
    %4639 = vdwg.mxu0
    %v4640 = vmul.f32 %v4635, 0.25
    %v4641 = vadd.f32 %v4640, %v2326
    %v4642 = vsel %vm1658, %v4641, -inf
    %4643 = vmax.xlane.f32.xlu0 %v4642
    %v4644 = vpop.xlane.xlu0 %4643
    %v4645 = vsub.f32 %v4641, %v4644
    %v4646 = vmul.f32 %v4645, 1.442695
    %v4647 = vpow.pop %v4646
    %v4648 = vsel %vm1658, %v4647, 0.0
    %4649 = vadd.xlane.f32.xlu0 %v4648
    %v4650 = vpop.xlane.xlu0 %4649
    %v4651 = vrcp.pop %v4650
    %v4652 = vmul.f32 %v4647, %v4651
    %v4653 = vpack.c.bf16 %v4652, %v4652
    %4654 = vrot.lane.b32.xlu0 %v4183, 80
    %v4655 = vpop.permute.xlu0 %4654
    %v4657 = vsel %vm1658, %v4653, 0
    %v4660 = vsel %vm1675, %v4655, 0
    %4662 = vmatprep.subr.bf16.mxu0 0
    %4663 = vmatpush1.bf16.msra.mxu0 0
    %4664 = vmatprep.subr.bf16.mxu0 0
    %4665 = vmatpush1.bf16.msra.mxu0 0
    %4666 = vmatprep.subr.bf16.mxu0 0
    %4667 = vmatpush1.bf16.msra.mxu0 0
    %4668 = vmatprep.subr.bf16.mxu0 0
    %4669 = vmatpush1.bf16.msra.mxu0 0
    %4670 = vmatprep.subr.bf16.mxu0 0
    %4671 = vmatpush1.bf16.msra.mxu0 0
    %4672 = vmatprep.subr.bf16.mxu0 0
    %4673 = vmatpush1.bf16.msra.mxu0 0
    %4674 = vmatprep.subr.bf16.mxu0 0
    %4675 = vmatpush1.bf16.msra.mxu0 0
    %4676 = vmatprep.subr.bf16.mxu0 0
    %4677 = vmatpush1.bf16.msra.mxu0 %v4660
    %4678 = vmatprep.subr.bf16.mxu0 0
    %4679 = vmatpush2.bf16.msra.mxu0 0
    %4680 = vmatprep.subr.bf16.mxu0 0
    %4681 = vmatpush2.bf16.msra.mxu0 0
    %4682 = vmatprep.subr.bf16.mxu0 0
    %4683 = vmatpush2.bf16.msra.mxu0 0
    %4684 = vmatprep.subr.bf16.mxu0 0
    %4685 = vmatpush2.bf16.msra.mxu0 0
    %4686 = vmatprep.subr.bf16.mxu0 0
    %4687 = vmatpush2.bf16.msra.mxu0 0
    %4688 = vmatprep.subr.bf16.mxu0 0
    %4689 = vmatpush2.bf16.msra.mxu0 0
    %4690 = vmatprep.subr.bf16.mxu0 0
    %4691 = vmatpush2.bf16.msra.mxu0 0
    %4692 = vmatprep.subr.bf16.mxu0 0
    %4693 = vmatpush2.bf16.msra.mxu0 0
    %4694 = vmatprep.mubr.bf16.mxu0 0
    %4695 = vmatmul.mubr.bf16.gmra.mxu0 %v4657
    %v4696 = vpop.f32.mrf.mxu0
    %v4697 = vadd.f32 0.0, %v4696
    %v4698 = vpop.f32.mrf.mxu0
    %v4699 = vpop.f32.mrf.mxu0
    %v4700 = vpop.f32.mrf.mxu0
    %4701 = vdwg.mxu0
    %v4702 = vpack.c.bf16 %v4697, %v4697
    %v4704 = vsel %vm112, %v4702, 0
    %4706 = vmatprep.subr.bf16.mxu0 0
    %4707 = vmatpush1.bf16.msra.mxu0 0
    %4708 = vmatprep.subr.bf16.mxu0 0
    %4709 = vmatpush1.bf16.msra.mxu0 0
    %4710 = vmatprep.subr.bf16.mxu0 0
    %4711 = vmatpush1.bf16.msra.mxu0 0
    %4712 = vmatprep.subr.bf16.mxu0 0
    %4713 = vmatpush1.bf16.msra.mxu0 0
    %4714 = vmatprep.subr.bf16.mxu0 0
    %4715 = vmatpush1.bf16.msra.mxu0 0
    %4716 = vmatprep.subr.bf16.mxu0 0
    %4717 = vmatpush1.bf16.msra.mxu0 0
    %4718 = vmatprep.subr.bf16.mxu0 0
    %4719 = vmatpush1.bf16.msra.mxu0 0
    %4720 = vmatprep.subr.bf16.mxu0 0
    %4721 = vmatpush1.bf16.msra.mxu0 %v4075
    %4722 = vmatprep.subr.bf16.mxu0 0
    %4723 = vmatpush2.bf16.msra.mxu0 0
    %4724 = vmatprep.subr.bf16.mxu0 0
    %4725 = vmatpush2.bf16.msra.mxu0 0
    %4726 = vmatprep.subr.bf16.mxu0 0
    %4727 = vmatpush2.bf16.msra.mxu0 0
    %4728 = vmatprep.subr.bf16.mxu0 0
    %4729 = vmatpush2.bf16.msra.mxu0 0
    %4730 = vmatprep.subr.bf16.mxu0 0
    %4731 = vmatpush2.bf16.msra.mxu0 0
    %4732 = vmatprep.subr.bf16.mxu0 0
    %4733 = vmatpush2.bf16.msra.mxu0 0
    %4734 = vmatprep.subr.bf16.mxu0 0
    %4735 = vmatpush2.bf16.msra.mxu0 0
    %4736 = vmatprep.subr.bf16.mxu0 0
    %4737 = vmatpush2.bf16.msra.mxu0 0
    %4738 = vmatprep.mubr.bf16.mxu0 0
    %4739 = vmatmul.mubr.bf16.gmra.mxu0 %v4704
    %v4740 = vpop.f32.mrf.mxu0
    %v4741 = vadd.f32 0.0, %v4740
    %v4742 = vpop.f32.mrf.mxu0
    %v4743 = vpop.f32.mrf.mxu0
    %v4744 = vpop.f32.mrf.mxu0
    %4745 = vdwg.mxu0
    %v4746 = vadd.f32 %v4589, %v4741
    %s4747 = scalar_lea.vmem %s9, 1
    %v4748 = vld [vmem:[%s4747] sm:$0x1]
    %v4750 = vlaneseq
    %v4751 = vshrl.u32 %v4750, 7
    %v4752 = vsub.s32 0, %v4751
    %v4753 = vrot.slane %v4748, %v4752
    %v4755 = vadd.f32 %v4120, %v4753
    %v4756 = vadd.f32 %v4746, %v4753
    %v4757 = vadd.f32 %v3207, %v4755
    %v4758 = vadd.f32 %v3208, %v4756
    %s4759 = scalar_lea.vmem %s10, 4
    %v4760 = vld [vmem:[%s4759] sm:$0x1]
    %s4761 = scalar_lea.vmem %s10, 5
    %v4762 = vld [vmem:[%s4761] sm:$0x1]
    %v4763 = vsel %vm1392, %v4757, 0.0
    %4764 = vadd.xlane.f32.xlu0 %v4763
    %v4765 = vpop.xlane.xlu0 %4764
    %v4766 = vsel %vm1392, %v4758, 0.0
    %4767 = vadd.xlane.f32.xlu0 %v4766
    %v4768 = vpop.xlane.xlu0 %4767
    %v4769 = vmul.f32 %v4765, %v2925
    %v4770 = vmul.f32 %v4768, %v2925
    %v4771 = vsub.f32 %v4757, %v4769
    %v4772 = vsub.f32 %v4758, %v4770
    %v4773 = vmul.f32 %v4771, %v4771
    %v4774 = vmul.f32 %v4772, %v4772
    %v4775 = vsel %vm1392, %v4773, 0.0
    %4776 = vadd.xlane.f32.xlu0 %v4775
    %v4777 = vpop.xlane.xlu0 %4776
    %v4778 = vsel %vm1392, %v4774, 0.0
    %4779 = vadd.xlane.f32.xlu0 %v4778
    %v4780 = vpop.xlane.xlu0 %4779
    %v4781 = vmul.f32 %v4777, %v2925
    %v4782 = vmul.f32 %v4780, %v2925
    %v4783 = vadd.f32 %v4781, 1e-05
    %v4784 = vadd.f32 %v4782, 1e-05
    %v4785 = vrsqrt.pop %v4783
    %v4786 = vrsqrt.pop %v4784
    %v4787 = vmul.f32 %v4771, %v4785
    %v4788 = vmul.f32 %v4772, %v4786
    %v4790 = vlaneseq
    %v4791 = vshrl.u32 %v4790, 7
    %v4792 = vsub.s32 0, %v4791
    %v4793 = vrot.slane %v4760, %v4792
    %v4795 = vmul.f32 %v4787, %v4793
    %v4796 = vmul.f32 %v4788, %v4793
    %v4798 = vlaneseq
    %v4799 = vshrl.u32 %v4798, 7
    %v4800 = vsub.s32 0, %v4799
    %v4801 = vrot.slane %v4762, %v4800
    %v4803 = vadd.f32 %v4795, %v4801
    %v4804 = vadd.f32 %v4796, %v4801
    %s4805 = scalar_lea.vmem %s11, 32
    %v4806 = vld [vmem:[%s4805] sm:$0xf]
    %v4807 = vld [vmem:[%s4805 + $0x4] sm:$0xf]
    %v4808 = vld [vmem:[%s4805 + $0x8] sm:$0xf]
    %v4809 = vld [vmem:[%s4805 + $0xc] sm:$0xf]
    %v4810 = vld [vmem:[%s4805 + $0x10] sm:$0xf]
    %v4811 = vld [vmem:[%s4805 + $0x14] sm:$0xf]
    %v4812 = vld [vmem:[%s4805 + $0x18] sm:$0xf]
    %v4813 = vld [vmem:[%s4805 + $0x1c] sm:$0xf]
    %v4814 = vpack.c.bf16 %v4804, %v4803
    %s4815 = scalar_lea.vmem %s12, 1
    %v4816 = vld [vmem:[%s4815] sm:$0x1]
    %v4818 = vlaneseq
    %v4819 = vshrl.u32 %v4818, 7
    %v4820 = vsub.s32 0, %v4819
    %v4821 = vrot.slane %v4816, %v4820
    %v4831 = vunpack.c.l.b16 %v4806
    %v4832 = vunpack.c.l.b16 %v4807
    %v4833 = vunpack.c.l.b16 %v4808
    %v4834 = vunpack.c.l.b16 %v4809
    %v4835 = vunpack.c.l.b16 %v4810
    %v4836 = vunpack.c.l.b16 %v4811
    %v4837 = vunpack.c.l.b16 %v4812
    %v4838 = vunpack.c.l.b16 %v4813
    %v4839 = vpack.c.b16 %v4832, %v4831
    %v4840 = vpack.c.b16 %v4834, %v4833
    %v4841 = vpack.c.b16 %v4836, %v4835
    %v4842 = vpack.c.b16 %v4838, %v4837
    %v4848 = vsel %vm1392, %v4814, 0
    %4850 = vmatprep.subr.bf16.mxu0 0
    %4851 = vmatpush1.bf16.msra.mxu0 0
    %4852 = vmatprep.subr.bf16.mxu0 0
    %4853 = vmatpush1.bf16.msra.mxu0 0
    %4854 = vmatprep.subr.bf16.mxu0 0
    %4855 = vmatpush1.bf16.msra.mxu0 0
    %4856 = vmatprep.subr.bf16.mxu0 0
    %4857 = vmatpush1.bf16.msra.mxu0 0
    %4858 = vmatprep.subr.bf16.mxu0 0
    %4859 = vmatpush1.bf16.msra.mxu0 %v4842
    %4860 = vmatprep.subr.bf16.mxu0 0
    %4861 = vmatpush1.bf16.msra.mxu0 %v4841
    %4862 = vmatprep.subr.bf16.mxu0 0
    %4863 = vmatpush1.bf16.msra.mxu0 %v4840
    %4864 = vmatprep.subr.bf16.mxu0 0
    %4865 = vmatpush1.bf16.msra.mxu0 %v4839
    %4866 = vmatprep.subr.bf16.mxu0 0
    %4867 = vmatpush2.bf16.msra.mxu0 0
    %4868 = vmatprep.subr.bf16.mxu0 0
    %4869 = vmatpush2.bf16.msra.mxu0 0
    %4870 = vmatprep.subr.bf16.mxu0 0
    %4871 = vmatpush2.bf16.msra.mxu0 0
    %4872 = vmatprep.subr.bf16.mxu0 0
    %4873 = vmatpush2.bf16.msra.mxu0 0
    %4874 = vmatprep.subr.bf16.mxu0 0
    %4875 = vmatpush2.bf16.msra.mxu0 0
    %4876 = vmatprep.subr.bf16.mxu0 0
    %4877 = vmatpush2.bf16.msra.mxu0 0
    %4878 = vmatprep.subr.bf16.mxu0 0
    %4879 = vmatpush2.bf16.msra.mxu0 0
    %4880 = vmatprep.subr.bf16.mxu0 0
    %4881 = vmatpush2.bf16.msra.mxu0 0
    %4882 = vmatprep.mubr.bf16.mxu0 0
    %4883 = vmatmul.mubr.bf16.gmra.mxu0 %v4848
    %v4884 = vpop.f32.mrf.mxu0
    %v4885 = vadd.f32 %v4821, %v4884
    %v4886 = vpop.f32.mrf.mxu0
    %v4887 = vpop.f32.mrf.mxu0
    %v4888 = vadd.f32 %v4821, %v4887
    %v4889 = vpop.f32.mrf.mxu0
    %4890 = vdwg.mxu0
    %v4891 = vmax.f32 %v4885, 0.0
    %v4892 = vmax.f32 %v4888, 0.0
    %s4893 = scalar_lea.vmem %s13, 64
    %v4894 = vld [vmem:[%s4893] sm:$0xf]
    %v4895 = vld [vmem:[%s4893 + $0x4] sm:$0xf]
    %v4896 = vld [vmem:[%s4893 + $0x8] sm:$0xf]
    %v4897 = vld [vmem:[%s4893 + $0xc] sm:$0xf]
    %v4898 = vld [vmem:[%s4893 + $0x10] sm:$0xf]
    %v4899 = vld [vmem:[%s4893 + $0x14] sm:$0xf]
    %v4900 = vld [vmem:[%s4893 + $0x18] sm:$0xf]
    %v4901 = vld [vmem:[%s4893 + $0x1c] sm:$0xf]
    %v4902 = vld [vmem:[%s4893 + $0x20] sm:$0xf]
    %v4903 = vld [vmem:[%s4893 + $0x24] sm:$0xf]
    %v4904 = vld [vmem:[%s4893 + $0x28] sm:$0xf]
    %v4905 = vld [vmem:[%s4893 + $0x2c] sm:$0xf]
    %v4906 = vld [vmem:[%s4893 + $0x30] sm:$0xf]
    %v4907 = vld [vmem:[%s4893 + $0x34] sm:$0xf]
    %v4908 = vld [vmem:[%s4893 + $0x38] sm:$0xf]
    %v4909 = vld [vmem:[%s4893 + $0x3c] sm:$0xf]
    %v4910 = vpack.c.bf16 %v4892, %v4891
    %s4911 = scalar_lea.vmem %s14, 1
    %v4912 = vld [vmem:[%s4911] sm:$0x1]
    %v4914 = vlaneseq
    %v4915 = vshrl.u32 %v4914, 7
    %v4916 = vsub.s32 0, %v4915
    %v4917 = vrot.slane %v4912, %v4916
    %v4935 = vunpack.c.l.b16 %v4894
    %v4936 = vunpack.c.l.b16 %v4895
    %v4937 = vunpack.c.l.b16 %v4896
    %v4938 = vunpack.c.l.b16 %v4897
    %v4939 = vunpack.c.l.b16 %v4898
    %v4940 = vunpack.c.l.b16 %v4899
    %v4941 = vunpack.c.l.b16 %v4900
    %v4942 = vunpack.c.l.b16 %v4901
    %v4943 = vunpack.c.l.b16 %v4902
    %v4944 = vunpack.c.l.b16 %v4903
    %v4945 = vunpack.c.l.b16 %v4904
    %v4946 = vunpack.c.l.b16 %v4905
    %v4947 = vunpack.c.l.b16 %v4906
    %v4948 = vunpack.c.l.b16 %v4907
    %v4949 = vunpack.c.l.b16 %v4908
    %v4950 = vunpack.c.l.b16 %v4909
    %v4951 = vpack.c.b16 %v4936, %v4935
    %v4952 = vpack.c.b16 %v4938, %v4937
    %v4953 = vpack.c.b16 %v4940, %v4939
    %v4954 = vpack.c.b16 %v4942, %v4941
    %v4955 = vpack.c.b16 %v4944, %v4943
    %v4956 = vpack.c.b16 %v4946, %v4945
    %v4957 = vpack.c.b16 %v4948, %v4947
    %v4958 = vpack.c.b16 %v4950, %v4949
    %4967 = vmatprep.subr.bf16.mxu0 0
    %4968 = vmatpush1.bf16.msra.mxu0 %v4958
    %4969 = vmatprep.subr.bf16.mxu0 0
    %4970 = vmatpush1.bf16.msra.mxu0 %v4957
    %4971 = vmatprep.subr.bf16.mxu0 0
    %4972 = vmatpush1.bf16.msra.mxu0 %v4956
    %4973 = vmatprep.subr.bf16.mxu0 0
    %4974 = vmatpush1.bf16.msra.mxu0 %v4955
    %4975 = vmatprep.subr.bf16.mxu0 0
    %4976 = vmatpush1.bf16.msra.mxu0 %v4954
    %4977 = vmatprep.subr.bf16.mxu0 0
    %4978 = vmatpush1.bf16.msra.mxu0 %v4953
    %4979 = vmatprep.subr.bf16.mxu0 0
    %4980 = vmatpush1.bf16.msra.mxu0 %v4952
    %4981 = vmatprep.subr.bf16.mxu0 0
    %4982 = vmatpush1.bf16.msra.mxu0 %v4951
    %4983 = vmatprep.subr.bf16.mxu0 0
    %4984 = vmatpush2.bf16.msra.mxu0 0
    %4985 = vmatprep.subr.bf16.mxu0 0
    %4986 = vmatpush2.bf16.msra.mxu0 0
    %4987 = vmatprep.subr.bf16.mxu0 0
    %4988 = vmatpush2.bf16.msra.mxu0 0
    %4989 = vmatprep.subr.bf16.mxu0 0
    %4990 = vmatpush2.bf16.msra.mxu0 0
    %4991 = vmatprep.subr.bf16.mxu0 0
    %4992 = vmatpush2.bf16.msra.mxu0 0
    %4993 = vmatprep.subr.bf16.mxu0 0
    %4994 = vmatpush2.bf16.msra.mxu0 0
    %4995 = vmatprep.subr.bf16.mxu0 0
    %4996 = vmatpush2.bf16.msra.mxu0 0
    %4997 = vmatprep.subr.bf16.mxu0 0
    %4998 = vmatpush2.bf16.msra.mxu0 0
    %4999 = vmatprep.mubr.bf16.mxu0 0
    %5000 = vmatmul.mubr.bf16.gmra.mxu0 %v4910
    %v5001 = vpop.f32.mrf.mxu0
    %v5002 = vadd.f32 %v4917, %v5001
    %v5003 = vpop.f32.mrf.mxu0
    %v5004 = vpop.f32.mrf.mxu0
    %v5005 = vadd.f32 %v4917, %v5004
    %v5006 = vpop.f32.mrf.mxu0
    %5007 = vdwg.mxu0
    %v5008 = vadd.f32 %v4803, %v5002
    %v5009 = vadd.f32 %v4804, %v5005
    %s5010 = scalar_lea.vmem %s10, 6
    %v5011 = vld [vmem:[%s5010] sm:$0x1]
    %s5012 = scalar_lea.vmem %s10, 7
    %v5013 = vld [vmem:[%s5012] sm:$0x1]
    %v5014 = vsel %vm1392, %v5008, 0.0
    %5015 = vadd.xlane.f32.xlu0 %v5014
    %v5016 = vpop.xlane.xlu0 %5015
    %v5017 = vsel %vm1392, %v5009, 0.0
    %5018 = vadd.xlane.f32.xlu0 %v5017
    %v5019 = vpop.xlane.xlu0 %5018
    %v5020 = vmul.f32 %v5016, %v2925
    %v5021 = vmul.f32 %v5019, %v2925
    %v5022 = vsub.f32 %v5008, %v5020
    %v5023 = vsub.f32 %v5009, %v5021
    %v5024 = vmul.f32 %v5022, %v5022
    %v5025 = vmul.f32 %v5023, %v5023
    %v5026 = vsel %vm1392, %v5024, 0.0
    %5027 = vadd.xlane.f32.xlu0 %v5026
    %v5028 = vpop.xlane.xlu0 %5027
    %v5029 = vsel %vm1392, %v5025, 0.0
    %5030 = vadd.xlane.f32.xlu0 %v5029
    %v5031 = vpop.xlane.xlu0 %5030
    %v5032 = vmul.f32 %v5028, %v2925
    %v5033 = vmul.f32 %v5031, %v2925
    %v5034 = vadd.f32 %v5032, 1e-05
    %v5035 = vadd.f32 %v5033, 1e-05
    %v5036 = vrsqrt.pop %v5034
    %v5037 = vrsqrt.pop %v5035
    %v5038 = vmul.f32 %v5022, %v5036
    %v5039 = vmul.f32 %v5023, %v5037
    %v5041 = vlaneseq
    %v5042 = vshrl.u32 %v5041, 7
    %v5043 = vsub.s32 0, %v5042
    %v5044 = vrot.slane %v5011, %v5043
    %v5046 = vmul.f32 %v5038, %v5044
    %v5047 = vmul.f32 %v5039, %v5044
    %v5049 = vlaneseq
    %v5050 = vshrl.u32 %v5049, 7
    %v5051 = vsub.s32 0, %v5050
    %v5052 = vrot.slane %v5013, %v5051
    %v5054 = vadd.f32 %v5046, %v5052
    %v5055 = vadd.f32 %v5047, %v5052
    %v5056 = vsel %vm1392, %v5054, 0.0
    %v5057 = vrot.slane %v5056, 4
    %v5058 = vadd.f32 %v5056, %v5057
    %v5059 = vrot.slane %v5058, 2
    %v5060 = vadd.f32 %v5058, %v5059
    %v5061 = vrot.slane %v5060, 1
    %v5062 = vadd.f32 %v5060, %v5061
    %v5063 = vmul.f32 %v5062, %v538
    %v5064 = vsel %vm1392, %v5055, 0.0
    %v5065 = vrot.slane %v5064, 4
    %v5066 = vadd.f32 %v5064, %v5065
    %v5067 = vrot.slane %v5066, 2
    %v5068 = vadd.f32 %v5066, %v5067
    %v5069 = vrot.slane %v5068, 1
    %v5070 = vadd.f32 %v5068, %v5069
    %v5071 = vmul.f32 %v5070, %v538
    %vm5072 = vcmask 1040384
    %v5073 = vsel %vm5072, %v5063, %v5071
    %v5074 = vld [vmem:[%s15] sm:$0xff]
    %v5075 = vld [vmem:[%s15 + $0x8] sm:$0xff]
    %v5076 = vld [vmem:[%s15 + $0x10] sm:$0xff]
    %v5077 = vld [vmem:[%s15 + $0x18] sm:$0xff]
    %v5078 = vld [vmem:[%s15 + $0x20] sm:$0xff]
    %v5079 = vld [vmem:[%s15 + $0x28] sm:$0xff]
    %v5080 = vld [vmem:[%s15 + $0x30] sm:$0xff]
    %v5081 = vld [vmem:[%s15 + $0x38] sm:$0xff]
    %v5082 = vpack.c.bf16 %v5073, %v5073
    %v5083 = vld [vmem:[%s16] sm:$0x3]
    %v5085 = vlaneseq
    %v5086 = vshrl.u32 %v5085, 7
    %v5087 = vsub.s32 0, %v5086
    %v5088 = vrot.slane %v5083, %v5087
    %v5089 = vlaneseq
    %v5090 = vshrl.u32 %v5089, 7
    %v5091 = vsub.s32 1, %v5090
    %v5092 = vrot.slane %v5083, %v5091
    %v5103 = vunpack.c.l.b16 %v5074
    %v5104 = vunpack.c.h.b16 %v5074
    %v5105 = vunpack.c.l.b16 %v5075
    %v5106 = vunpack.c.h.b16 %v5075
    %v5107 = vunpack.c.l.b16 %v5076
    %v5108 = vunpack.c.h.b16 %v5076
    %v5109 = vunpack.c.l.b16 %v5077
    %v5110 = vunpack.c.h.b16 %v5077
    %v5111 = vunpack.c.l.b16 %v5078
    %v5112 = vunpack.c.h.b16 %v5078
    %v5113 = vunpack.c.l.b16 %v5079
    %v5114 = vunpack.c.h.b16 %v5079
    %v5115 = vunpack.c.l.b16 %v5080
    %v5116 = vunpack.c.h.b16 %v5080
    %v5117 = vunpack.c.l.b16 %v5081
    %v5118 = vunpack.c.h.b16 %v5081
    %v5119 = vpack.c.b16 %v5105, %v5103
    %v5120 = vpack.c.b16 %v5106, %v5104
    %v5121 = vpack.c.b16 %v5109, %v5107
    %v5122 = vpack.c.b16 %v5110, %v5108
    %v5123 = vpack.c.b16 %v5113, %v5111
    %v5124 = vpack.c.b16 %v5114, %v5112
    %v5125 = vpack.c.b16 %v5117, %v5115
    %v5126 = vpack.c.b16 %v5118, %v5116
    %v5136 = vsel %vm1392, %v5082, 0
    %5138 = vmatprep.subr.bf16.mxu0 0
    %5139 = vmatpush1.bf16.msra.mxu0 0
    %5140 = vmatprep.subr.bf16.mxu0 0
    %5141 = vmatpush1.bf16.msra.mxu0 0
    %5142 = vmatprep.subr.bf16.mxu0 0
    %5143 = vmatpush1.bf16.msra.mxu0 0
    %5144 = vmatprep.subr.bf16.mxu0 0
    %5145 = vmatpush1.bf16.msra.mxu0 0
    %5146 = vmatprep.subr.bf16.mxu0 %v5126
    %5147 = vmatpush1.bf16.msra.mxu0 %v5125
    %5148 = vmatprep.subr.bf16.mxu0 %v5124
    %5149 = vmatpush1.bf16.msra.mxu0 %v5123
    %5150 = vmatprep.subr.bf16.mxu0 %v5122
    %5151 = vmatpush1.bf16.msra.mxu0 %v5121
    %5152 = vmatprep.subr.bf16.mxu0 %v5120
    %5153 = vmatpush1.bf16.msra.mxu0 %v5119
    %5154 = vmatprep.subr.bf16.mxu0 0
    %5155 = vmatpush2.bf16.msra.mxu0 0
    %5156 = vmatprep.subr.bf16.mxu0 0
    %5157 = vmatpush2.bf16.msra.mxu0 0
    %5158 = vmatprep.subr.bf16.mxu0 0
    %5159 = vmatpush2.bf16.msra.mxu0 0
    %5160 = vmatprep.subr.bf16.mxu0 0
    %5161 = vmatpush2.bf16.msra.mxu0 0
    %5162 = vmatprep.subr.bf16.mxu0 0
    %5163 = vmatpush2.bf16.msra.mxu0 0
    %5164 = vmatprep.subr.bf16.mxu0 0
    %5165 = vmatpush2.bf16.msra.mxu0 0
    %5166 = vmatprep.subr.bf16.mxu0 0
    %5167 = vmatpush2.bf16.msra.mxu0 0
    %5168 = vmatprep.subr.bf16.mxu0 0
    %5169 = vmatpush2.bf16.msra.mxu0 0
    %5170 = vmatprep.mubr.bf16.mxu0 0
    %5171 = vmatmul.mubr.bf16.gmra.mxu0 %v5136
    %v5172 = vpop.f32.mrf.mxu0
    %v5173 = vadd.f32 %v5088, %v5172
    %v5174 = vpop.f32.mrf.mxu0
    %v5175 = vadd.f32 %v5092, %v5174
    %v5176 = vpop.f32.mrf.mxu0
    %v5177 = vpop.f32.mrf.mxu0
    %5178 = vdwg.mxu0
    %v5179 = vmul.f32 %v5173, 0.999995
    %v5180 = vmul.f32 %v5175, 0.999995
    %s5181 = scalar_lea.vmem %s16, 2
    %v5182 = vld [vmem:[%s5181] sm:$0x3]
    %v5184 = vlaneseq
    %v5185 = vshrl.u32 %v5184, 7
    %v5186 = vsub.s32 0, %v5185
    %v5187 = vrot.slane %v5182, %v5186
    %v5188 = vlaneseq
    %v5189 = vshrl.u32 %v5188, 7
    %v5190 = vsub.s32 1, %v5189
    %v5191 = vrot.slane %v5182, %v5190
    %v5194 = vmul.f32 %v5179, %v5187
    %v5195 = vmul.f32 %v5180, %v5191
    %s5196 = scalar_lea.vmem %s16, 4
    %v5197 = vld [vmem:[%s5196] sm:$0x3]
    %v5199 = vlaneseq
    %v5200 = vshrl.u32 %v5199, 7
    %v5201 = vsub.s32 0, %v5200
    %v5202 = vrot.slane %v5197, %v5201
    %v5203 = vlaneseq
    %v5204 = vshrl.u32 %v5203, 7
    %v5205 = vsub.s32 1, %v5204
    %v5206 = vrot.slane %v5197, %v5205
    %v5209 = vadd.f32 %v5194, %v5202
    %v5210 = vadd.f32 %v5195, %v5206
    %v5211 = vmax.f32 %v5209, 0.0
    %v5212 = vmax.f32 %v5210, 0.0
    %v5213 = vld [vmem:[%s17] sm:$0xf]
    %v5214 = vld [vmem:[%s17 + $0x4] sm:$0xf]
    %v5215 = vld [vmem:[%s17 + $0x8] sm:$0xf]
    %v5216 = vld [vmem:[%s17 + $0xc] sm:$0xf]
    %v5217 = vld [vmem:[%s17 + $0x10] sm:$0xf]
    %v5218 = vld [vmem:[%s17 + $0x14] sm:$0xf]
    %v5219 = vld [vmem:[%s17 + $0x18] sm:$0xf]
    %v5220 = vld [vmem:[%s17 + $0x1c] sm:$0xf]
    %v5221 = vld [vmem:[%s17 + $0x20] sm:$0xf]
    %v5222 = vld [vmem:[%s17 + $0x24] sm:$0xf]
    %v5223 = vld [vmem:[%s17 + $0x28] sm:$0xf]
    %v5224 = vld [vmem:[%s17 + $0x2c] sm:$0xf]
    %v5225 = vld [vmem:[%s17 + $0x30] sm:$0xf]
    %v5226 = vld [vmem:[%s17 + $0x34] sm:$0xf]
    %v5227 = vld [vmem:[%s17 + $0x38] sm:$0xf]
    %v5228 = vld [vmem:[%s17 + $0x3c] sm:$0xf]
    %v5229 = vld [vmem:[%s17 + $0x40] sm:$0xf]
    %v5230 = vld [vmem:[%s17 + $0x44] sm:$0xf]
    %v5231 = vld [vmem:[%s17 + $0x48] sm:$0xf]
    %v5232 = vld [vmem:[%s17 + $0x4c] sm:$0xf]
    %v5233 = vld [vmem:[%s17 + $0x50] sm:$0xf]
    %v5234 = vld [vmem:[%s17 + $0x54] sm:$0xf]
    %v5235 = vld [vmem:[%s17 + $0x58] sm:$0xf]
    %v5236 = vld [vmem:[%s17 + $0x5c] sm:$0xf]
    %v5237 = vld [vmem:[%s17 + $0x60] sm:$0xf]
    %v5238 = vld [vmem:[%s17 + $0x64] sm:$0xf]
    %v5239 = vld [vmem:[%s17 + $0x68] sm:$0xf]
    %v5240 = vld [vmem:[%s17 + $0x6c] sm:$0xf]
    %v5241 = vld [vmem:[%s17 + $0x70] sm:$0xf]
    %v5242 = vld [vmem:[%s17 + $0x74] sm:$0xf]
    %v5243 = vld [vmem:[%s17 + $0x78] sm:$0xf]
    %v5244 = vld [vmem:[%s17 + $0x7c] sm:$0xf]
    %v5245 = vpack.c.bf16 %v5211, %v5211
    %v5246 = vpack.c.bf16 %v5212, %v5212
    %v5247 = vld [vmem:[%s18] sm:$0x1]
    %v5249 = vlaneseq
    %v5250 = vshrl.u32 %v5249, 7
    %v5251 = vsub.s32 0, %v5250
    %v5252 = vrot.slane %v5247, %v5251
    %v5286 = vunpack.c.l.b16 %v5213
    %v5287 = vunpack.c.l.b16 %v5214
    %v5288 = vunpack.c.l.b16 %v5215
    %v5289 = vunpack.c.l.b16 %v5216
    %v5290 = vunpack.c.l.b16 %v5217
    %v5291 = vunpack.c.l.b16 %v5218
    %v5292 = vunpack.c.l.b16 %v5219
    %v5293 = vunpack.c.l.b16 %v5220
    %v5294 = vunpack.c.l.b16 %v5221
    %v5295 = vunpack.c.l.b16 %v5222
    %v5296 = vunpack.c.l.b16 %v5223
    %v5297 = vunpack.c.l.b16 %v5224
    %v5298 = vunpack.c.l.b16 %v5225
    %v5299 = vunpack.c.l.b16 %v5226
    %v5300 = vunpack.c.l.b16 %v5227
    %v5301 = vunpack.c.l.b16 %v5228
    %v5302 = vunpack.c.l.b16 %v5229
    %v5303 = vunpack.c.l.b16 %v5230
    %v5304 = vunpack.c.l.b16 %v5231
    %v5305 = vunpack.c.l.b16 %v5232
    %v5306 = vunpack.c.l.b16 %v5233
    %v5307 = vunpack.c.l.b16 %v5234
    %v5308 = vunpack.c.l.b16 %v5235
    %v5309 = vunpack.c.l.b16 %v5236
    %v5310 = vunpack.c.l.b16 %v5237
    %v5311 = vunpack.c.l.b16 %v5238
    %v5312 = vunpack.c.l.b16 %v5239
    %v5313 = vunpack.c.l.b16 %v5240
    %v5314 = vunpack.c.l.b16 %v5241
    %v5315 = vunpack.c.l.b16 %v5242
    %v5316 = vunpack.c.l.b16 %v5243
    %v5317 = vunpack.c.l.b16 %v5244
    %v5318 = vpack.c.b16 %v5287, %v5286
    %v5319 = vpack.c.b16 %v5289, %v5288
    %v5320 = vpack.c.b16 %v5291, %v5290
    %v5321 = vpack.c.b16 %v5293, %v5292
    %v5322 = vpack.c.b16 %v5295, %v5294
    %v5323 = vpack.c.b16 %v5297, %v5296
    %v5324 = vpack.c.b16 %v5299, %v5298
    %v5325 = vpack.c.b16 %v5301, %v5300
    %v5326 = vpack.c.b16 %v5303, %v5302
    %v5327 = vpack.c.b16 %v5305, %v5304
    %v5328 = vpack.c.b16 %v5307, %v5306
    %v5329 = vpack.c.b16 %v5309, %v5308
    %v5330 = vpack.c.b16 %v5311, %v5310
    %v5331 = vpack.c.b16 %v5313, %v5312
    %v5332 = vpack.c.b16 %v5315, %v5314
    %v5333 = vpack.c.b16 %v5317, %v5316
    %5350 = vmatprep.subr.bf16.mxu0 0
    %5351 = vmatpush1.bf16.msra.mxu0 %v5325
    %5352 = vmatprep.subr.bf16.mxu0 0
    %5353 = vmatpush1.bf16.msra.mxu0 %v5324
    %5354 = vmatprep.subr.bf16.mxu0 0
    %5355 = vmatpush1.bf16.msra.mxu0 %v5323
    %5356 = vmatprep.subr.bf16.mxu0 0
    %5357 = vmatpush1.bf16.msra.mxu0 %v5322
    %5358 = vmatprep.subr.bf16.mxu0 0
    %5359 = vmatpush1.bf16.msra.mxu0 %v5321
    %5360 = vmatprep.subr.bf16.mxu0 0
    %5361 = vmatpush1.bf16.msra.mxu0 %v5320
    %5362 = vmatprep.subr.bf16.mxu0 0
    %5363 = vmatpush1.bf16.msra.mxu0 %v5319
    %5364 = vmatprep.subr.bf16.mxu0 0
    %5365 = vmatpush1.bf16.msra.mxu0 %v5318
    %5366 = vmatprep.subr.bf16.mxu0 0
    %5367 = vmatpush2.bf16.msra.mxu0 %v5333
    %5368 = vmatprep.subr.bf16.mxu0 0
    %5369 = vmatpush2.bf16.msra.mxu0 %v5332
    %5370 = vmatprep.subr.bf16.mxu0 0
    %5371 = vmatpush2.bf16.msra.mxu0 %v5331
    %5372 = vmatprep.subr.bf16.mxu0 0
    %5373 = vmatpush2.bf16.msra.mxu0 %v5330
    %5374 = vmatprep.subr.bf16.mxu0 0
    %5375 = vmatpush2.bf16.msra.mxu0 %v5329
    %5376 = vmatprep.subr.bf16.mxu0 0
    %5377 = vmatpush2.bf16.msra.mxu0 %v5328
    %5378 = vmatprep.subr.bf16.mxu0 0
    %5379 = vmatpush2.bf16.msra.mxu0 %v5327
    %5380 = vmatprep.subr.bf16.mxu0 0
    %5381 = vmatpush2.bf16.msra.mxu0 %v5326
    %5382 = vmatprep.mubr.bf16.mxu0 %v5246
    %5383 = vmatmul.mubr.bf16.gmra.mxu0 %v5245
    %v5384 = vpop.f32.mrf.mxu0
    %v5385 = vadd.f32 %v5252, %v5384
    %v5386 = vpop.f32.mrf.mxu0
    %v5387 = vpop.f32.mrf.mxu0
    %v5388 = vpop.f32.mrf.mxu0
    %5389 = vdwg.mxu0
    %vm5390 = vcmask 9216
    %5391 = vst.msk [vmem:[#allocation2] sm:$0x3] %vm5390, %v5385
    // Predicated region
    $region78: #{gait_graph_net_forward.1} parent=1 // pred_check
      _
    $region79: #{gait_graph_net_forward.1} parent=1 // pred_check_branch
      %5393 = sbr.rel (0) target = $region81
    $region80: #{gait_graph_net_forward.1} parent=1 // pred_region
      %s5395 = ssub.s32 32, 32
      %5396 = vsyncadd [#allocation3], %s5395
      %s5398 = sshll.u32 [#allocation2], 4
      %s5399 = int_to_ptr.vmem [resolvable:$true] %s5398
      %5401 = dma.vmem_to_hbm [thread:$0]  %s5399, 32, %s19, [#allocation3]
    $region81: #{gait_graph_net_forward.1} parent=1 // pred_fallthru
      _
    // Predicated region
    $region82: #{gait_graph_net_forward.1} parent=1 // pred_check
      _
    $region83: #{gait_graph_net_forward.1} parent=1 // pred_check_branch
      %5403 = sbr.rel (0) target = $region85
    $region84: #{gait_graph_net_forward.1} parent=1 // pred_region
      %5404 = dma.done [#allocation3], 32
    $region85: #{gait_graph_net_forward.1} parent=1 // pred_fallthru
      _
    %5405 = vsyncpa [#allocation3], 1

</llo_original>
